<compile_context>
chip_gen: v5e
topology: v5e:2x2
jax: 0.10.0
libtpu: 0.0.40
codegen_flags: <defaults>
</compile_context>

<pallas_src>
import functools

import jax
import jax.numpy as jnp
from jax import lax
from jax.experimental import pallas as pl
from jax.experimental.pallas import tpu as pltpu


# ----------------------------------------------------------------------------
# Small host-side helpers
# ----------------------------------------------------------------------------
def _pair(v):
    if isinstance(v, (tuple, list)):
        return int(v[0]), int(v[1])
    return int(v), int(v)


def _largest_divisor_leq(n, cap):
    cap = max(1, min(int(n), int(cap)))
    for d in range(cap, 0, -1):
        if n % d == 0:
            return d
    return 1


def _itemsize(dt):
    return jnp.dtype(dt).itemsize


def _vmem_limit_bytes(need):
    # Explicit scoped-VMEM limit with headroom; clamp so it is valid on every
    # chip (v7x physical VMEM is 64 MiB).
    return int(min(max(int(need) + (4 << 20), 32 << 20), 64 << 20))


# ----------------------------------------------------------------------------
# In-kernel helpers
# ----------------------------------------------------------------------------
def _fill_halo(x_ref, xpad_ref, ph, pw, copy_rows):
    """Zero only the halo ring, then copy (and cast once) the interior in
    row chunks so no full-image SSA value is kept live."""
    H, W, C = x_ref.shape[1], x_ref.shape[2], x_ref.shape[3]
    Hp, Wp = xpad_ref.shape[0], xpad_ref.shape[1]
    dt = xpad_ref.dtype
    if ph > 0:
        xpad_ref[pl.ds(0, ph), :, :] = jnp.zeros((ph, Wp, C), dt)
        xpad_ref[pl.ds(ph + H, ph), :, :] = jnp.zeros((ph, Wp, C), dt)
    if pw > 0:
        xpad_ref[pl.ds(ph, H), pl.ds(0, pw), :] = jnp.zeros((H, pw, C), dt)
        xpad_ref[pl.ds(ph, H), pl.ds(pw + W, pw), :] = jnp.zeros((H, pw, C), dt)

    def copy_body(i, carry):
        r0 = pl.multiple_of(i * copy_rows, copy_rows)
        xpad_ref[pl.ds(ph + r0, copy_rows), pl.ds(pw, W), :] = (
            x_ref[0, pl.ds(r0, copy_rows), :, :].astype(dt))
        return carry

    lax.fori_loop(0, H // copy_rows, copy_body, 0)


def _load_tap(src_ref, lead, h0, kh, kw, th, out_w, sh, sw):
    """Load the (th, out_w, C) tap for kernel offset (kh, kw), output rows
    [h0, h0+th).  Stride-1 taps are plain ref loads; strided taps load the
    contiguous window from the ref and subsample with a strided lax.slice."""
    row0 = h0 * sh + kh
    if sh == 1 and sw == 1:
        idx = (pl.ds(row0, th), pl.ds(kw, out_w), slice(None))
        window = src_ref[idx] if lead is None else src_ref[(lead,) + idx]
        return window
    span_h = (th - 1) * sh + 1
    span_w = (out_w - 1) * sw + 1
    idx = (pl.ds(row0, span_h), pl.ds(kw, span_w), slice(None))
    window = src_ref[idx] if lead is None else src_ref[(lead,) + idx]
    return lax.slice(window, (0, 0, 0), window.shape, (sh, sw, 1))


# ----------------------------------------------------------------------------
# Kernels
# ----------------------------------------------------------------------------
def _depthwise_kernel(x_ref, w_ref, b_ref, out_ref, *scratch,
                      strides, padding, th, copy_rows):
    """groups == Cin == Cout: per-channel FMA on the VPU, exact f32.
    One image per grid step; output rows processed in chunks of `th` so the
    accumulator stays within vreg capacity."""
    _, out_h, out_w, C = out_ref.shape
    KH, KW = w_ref.shape[0], w_ref.shape[1]
    sh, sw = strides
    ph, pw = padding
    padded = (ph > 0) or (pw > 0)

    if padded:
        xpad_ref = scratch[0]
        _fill_halo(x_ref, xpad_ref, ph, pw, copy_rows)
        src, lead = xpad_ref, None
    else:
        src, lead = x_ref, 0          # no halo scratch / no copy when pad == 0

    bias = b_ref[0].astype(jnp.float32)          # (C,)

    def chunk_body(t, carry):
        h0 = pl.multiple_of(t * th, th)
        acc = jnp.zeros((th, out_w, C), jnp.float32)
        for kh in range(KH):
            for kw in range(KW):
                tap = _load_tap(src, lead, h0, kh, kw, th, out_w, sh, sw)
                acc = acc + tap.astype(jnp.float32) * w_ref[kh, kw, :]
        acc = acc + bias
        out_ref[0, pl.ds(h0, th), :, :] = acc.astype(out_ref.dtype)
        return carry

    lax.fori_loop(0, out_h // th, chunk_body, 0)


def _folded_matmul_kernel(x_ref, w_ref, b_ref, out_ref):
    """stride == kernel, padding == 0 (ConvNeXt stem / downsample): the host
    folded the non-overlapping KHxKW patches into the channel axis, so this is
    one lane-dense MXU matmul with K = KH*KW*Cin per (batch, row-tile)."""
    _, th, ow, K = x_ref.shape
    Cout = out_ref.shape[3]
    lhs = x_ref[0].reshape(th * ow, K)                    # already MXU dtype
    acc = jnp.dot(lhs, w_ref[...], preferred_element_type=jnp.float32)
    acc = acc + b_ref[0].astype(jnp.float32)
    out_ref[0] = acc.reshape(th, ow, Cout).astype(out_ref.dtype)


def _dense_general_kernel(x_ref, w_ref, b_ref, out_ref, *scratch,
                          strides, padding, th, copy_rows):
    """General fallback (padding > 0 and/or stride != kernel, groups folded
    block-diagonally): per-tap K=Cin MXU matmuls, row-chunked accumulation."""
    _, out_h, out_w, Cout = out_ref.shape
    Cin = x_ref.shape[3]
    KH, KW = w_ref.shape[0], w_ref.shape[1]
    sh, sw = strides
    ph, pw = padding
    padded = (ph > 0) or (pw > 0)
    mxu_dtype = w_ref.dtype

    if padded:
        xpad_ref = scratch[0]                # scratch is already in MXU dtype:
        _fill_halo(x_ref, xpad_ref, ph, pw, copy_rows)   # cast once while filling
        src, lead = xpad_ref, None
    else:
        src, lead = x_ref, 0

    bias = b_ref[0].astype(jnp.float32)          # (Cout,)

    def chunk_body(t, carry):
        h0 = pl.multiple_of(t * th, th)
        acc = jnp.zeros((th * out_w, Cout), jnp.float32)
        for kh in range(KH):
            for kw in range(KW):
                tap = _load_tap(src, lead, h0, kh, kw, th, out_w, sh, sw)
                lhs = tap.reshape(th * out_w, Cin).astype(mxu_dtype)
                acc = acc + jnp.dot(lhs, w_ref[kh, kw, :, :],
                                    preferred_element_type=jnp.float32)
        acc = acc + bias
        out_ref[0, pl.ds(h0, th), :, :] = (
            acc.reshape(th, out_w, Cout).astype(out_ref.dtype))
        return carry

    lax.fori_loop(0, out_h // th, chunk_body, 0)


# ----------------------------------------------------------------------------
# Host-side weight preparation
# ----------------------------------------------------------------------------
def _expand_grouped_weight(weight, groups):
    """(Cout, Cin/g, KH, KW) torch layout -> block-diagonal (KH, KW, Cin, Cout)."""
    Cout, Cin_g, KH, KW = weight.shape
    Cout_g = Cout // groups
    Cin = Cin_g * groups
    w_g = weight.reshape(groups, Cout_g, Cin_g, KH, KW)
    full = jnp.zeros((KH, KW, Cin, Cout), weight.dtype)
    for g in range(groups):
        blk = jnp.transpose(w_g[g], (2, 3, 1, 0))  # (KH, KW, Cin_g, Cout_g)
        full = full.at[:, :, g * Cin_g:(g + 1) * Cin_g,
                       g * Cout_g:(g + 1) * Cout_g].set(blk)
    return full


# ----------------------------------------------------------------------------
# Wrappers
# ----------------------------------------------------------------------------
def conv_block_nhwc(x, weight, bias, *, stride=1, padding=0, groups=1,
                    matmul_dtype=jnp.bfloat16):
    """x: (N, H, W, Cin) NHWC.  weight: torch layout (Cout, Cin/groups, KH, KW)."""
    N, H, W, Cin = x.shape
    Cout, Cin_g, KH, KW = weight.shape
    assert Cin_g * groups == Cin and Cout % groups == 0

    sh, sw = _pair(stride)
    ph, pw = _pair(padding)
    out_h = (H + 2 * ph - KH) // sh + 1
    out_w = (W + 2 * pw - KW) // sw + 1
    Hp, Wp = H + 2 * ph, W + 2 * pw
    assert out_h >= 1 and out_w >= 1

    mxu_dtype = matmul_dtype if matmul_dtype is not None else x.dtype
    b_k = jnp.asarray(bias).reshape(1, Cout).astype(jnp.float32)
    out_shape = jax.ShapeDtypeStruct((N, out_h, out_w, Cout), x.dtype)
    x_isz = _itemsize(x.dtype)
    m_isz = _itemsize(mxu_dtype)

    depthwise = (groups == Cin) and (Cout == Cin)
    foldable = (not depthwise and groups == 1 and ph == 0 and pw == 0
                and sh == KH and sw == KW and H % KH == 0 and W % KW == 0)

    # ---------------- depthwise (ConvNeXt 7x7/s1/p3) -------------------------
    if depthwise:
        w_k = jnp.transpose(weight[:, 0], (1, 2, 0)).astype(jnp.float32)  # (KH,KW,C)
        padded = (ph > 0) or (pw > 0)
        th = _largest_divisor_leq(out_h, max(1, (128 * 1024) // max(1, out_w * Cout * 4)))
        copy_rows = _largest_divisor_leq(H, 16)
        scratch = [pltpu.VMEM((Hp, Wp, Cin), x.dtype)] if padded else []
        kernel = functools.partial(_depthwise_kernel, strides=(sh, sw),
                                   padding=(ph, pw), th=th, copy_rows=copy_rows)
        need = (2 * H * W * Cin * x_isz + 2 * out_h * out_w * Cout * x_isz
                + KH * KW * Cin * 4 + (Hp * Wp * Cin * x_isz if padded else 0))
        return pl.pallas_call(
            kernel,
            out_shape=out_shape,
            grid_spec=pltpu.PrefetchScalarGridSpec(
                num_scalar_prefetch=0, grid=(N,),
                in_specs=[pl.BlockSpec((1, H, W, Cin), lambda n: (n, 0, 0, 0)),
                          pl.BlockSpec((KH, KW, Cin), lambda n: (0, 0, 0)),
                          pl.BlockSpec((1, Cout), lambda n: (0, 0))],
                out_specs=pl.BlockSpec((1, out_h, out_w, Cout),
                                       lambda n: (n, 0, 0, 0)),
                scratch_shapes=scratch),
            compiler_params=pltpu.CompilerParams(
                dimension_semantics=("parallel",),
                vmem_limit_bytes=_vmem_limit_bytes(need)),
        )(x, w_k, b_k)

    # ---------------- folded dense (stem / downsample) -----------------------
    if foldable:
        # Host-side layout plumbing only: patches are non-overlapping when
        # stride == kernel, so this is a pure reshape/transpose (no duplication)
        # producing K = KH*KW*Cin contraction for a single MXU matmul.
        K = KH * KW * Cin
        x2 = x.reshape(N, out_h, KH, out_w, KW, Cin)
        x2 = jnp.transpose(x2, (0, 1, 3, 2, 4, 5)).reshape(N, out_h, out_w, K)
        x2 = x2.astype(mxu_dtype)                                  # cast once
        w_k = jnp.transpose(weight, (2, 3, 1, 0)).reshape(K, Cout).astype(mxu_dtype)
        th = _largest_divisor_leq(out_h, max(1, 512 // max(1, out_w)))
        need = (2 * th * out_w * K * m_isz + 2 * th * out_w * Cout * x_isz
                + K * Cout * m_isz)
        return pl.pallas_call(
            _folded_matmul_kernel,
            out_shape=out_shape,
            grid_spec=pltpu.PrefetchScalarGridSpec(
                num_scalar_prefetch=0, grid=(N, out_h // th),
                in_specs=[pl.BlockSpec((1, th, out_w, K), lambda n, t: (n, t, 0, 0)),
                          pl.BlockSpec((K, Cout), lambda n, t: (0, 0)),
                          pl.BlockSpec((1, Cout), lambda n, t: (0, 0))],
                out_specs=pl.BlockSpec((1, th, out_w, Cout),
                                       lambda n, t: (n, t, 0, 0)),
                scratch_shapes=[]),
            compiler_params=pltpu.CompilerParams(
                dimension_semantics=("parallel", "parallel"),
                vmem_limit_bytes=_vmem_limit_bytes(need)),
        )(x2, w_k, b_k)

    # ---------------- general fallback ---------------------------------------
    if groups == 1:
        w_k = jnp.transpose(weight, (2, 3, 1, 0)).astype(mxu_dtype)   # (KH,KW,Cin,Cout)
    else:
        w_k = _expand_grouped_weight(weight, groups).astype(mxu_dtype)
    padded = (ph > 0) or (pw > 0)
    th = _largest_divisor_leq(out_h, max(1, (128 * 1024) // max(1, out_w * Cout * 4)))
    copy_rows = _largest_divisor_leq(H, 16)
    scratch = [pltpu.VMEM((Hp, Wp, Cin), mxu_dtype)] if padded else []
    kernel = functools.partial(_dense_general_kernel, strides=(sh, sw),
                               padding=(ph, pw), th=th, copy_rows=copy_rows)
    need = (2 * H * W * Cin * x_isz + 2 * out_h * out_w * Cout * x_isz
            + KH * KW * Cin * Cout * m_isz
            + (Hp * Wp * Cin * m_isz if padded else 0))
    return pl.pallas_call(
        kernel,
        out_shape=out_shape,
        grid_spec=pltpu.PrefetchScalarGridSpec(
            num_scalar_prefetch=0, grid=(N,),
            in_specs=[pl.BlockSpec((1, H, W, Cin), lambda n: (n, 0, 0, 0)),
                      pl.BlockSpec((KH, KW, Cin, Cout), lambda n: (0, 0, 0, 0)),
                      pl.BlockSpec((1, Cout), lambda n: (0, 0))],
            out_specs=pl.BlockSpec((1, out_h, out_w, Cout),
                                   lambda n: (n, 0, 0, 0)),
            scratch_shapes=scratch),
        compiler_params=pltpu.CompilerParams(
            dimension_semantics=("parallel",),
            vmem_limit_bytes=_vmem_limit_bytes(need)),
    )(x, w_k, b_k)


def conv_block(x_nchw, weight, bias, *, stride=1, padding=0, groups=1,
               matmul_dtype=jnp.bfloat16):
    """PyTorch-parity entry point: NCHW in, NCHW out."""
    x = jnp.transpose(x_nchw, (0, 2, 3, 1))
    y = conv_block_nhwc(x, weight, bias, stride=stride, padding=padding,
                        groups=groups, matmul_dtype=matmul_dtype)
    return jnp.transpose(y, (0, 3, 1, 2))


def init_conv_params(key, in_channels, out_channels, kernel_size, groups=1):
    """Mirrors ConvBlock.initializeConv: trunc_normal_(std=0.2, a=-2, b=2), zero bias."""
    kh, kw = _pair(kernel_size)
    std = 0.2
    w = jax.random.truncated_normal(
        key, -2.0 / std, 2.0 / std,
        (out_channels, in_channels // groups, kh, kw), jnp.float32) * std
    b = jnp.zeros((out_channels,), jnp.float32)
    return w, b


# ----------------------------------------------------------------------------
# Reference (pure XLA) for in-script validation
# ----------------------------------------------------------------------------
def _conv_ref_nchw(x, w, b, stride, padding, groups):
    sh, sw = _pair(stride)
    ph, pw = _pair(padding)
    out = lax.conv_general_dilated(
        x, w, window_strides=(sh, sw), padding=[(ph, ph), (pw, pw)],
        dimension_numbers=("NCHW", "OIHW", "NCHW"),
        feature_group_count=groups,
        precision=lax.Precision.HIGHEST)
    return out + b.reshape(1, -1, 1, 1)


if __name__ == "__main__":
    key = jax.random.PRNGKey(0)
    kx, k1, k2, k3, k4, k5 = jax.random.split(key, 6)

    N, C, H, W = 2, 4, 16, 16
    x = jax.random.normal(kx, (N, C, H, W), jnp.float32)

    # (a) ConvNeXt depthwise 7x7, stride 1, pad 3, groups=C  (exact f32 VPU path)
    w_dw, b_dw = init_conv_params(k1, C, C, 7, groups=C)
    y_dw = conv_block(x, w_dw, b_dw, stride=1, padding=3, groups=C)
    ref_dw = _conv_ref_nchw(x, w_dw, b_dw, 1, 3, C)
    assert y_dw.shape == ref_dw.shape
    assert float(jnp.max(jnp.abs(y_dw - ref_dw))) < 1e-3

    # (b) stem-like 4x4, stride 4, pad 0 -> folded single-matmul MXU path
    w_st, b_st = init_conv_params(k2, C, 8, 4, groups=1)
    ref_st = _conv_ref_nchw(x, w_st, b_st, 4, 0, 1)
    y_st_f32 = conv_block(x, w_st, b_st, stride=4, padding=0, groups=1,
                          matmul_dtype=jnp.float32)
    assert y_st_f32.shape == ref_st.shape
    assert float(jnp.max(jnp.abs(y_st_f32 - ref_st))) < 5e-3
    y_st_bf16 = conv_block(x, w_st, b_st, stride=4, padding=0, groups=1)
    assert float(jnp.max(jnp.abs(y_st_bf16 - ref_st))) < 1e-1

    # (c) downsample-like 2x2, stride 2, pad 0 -> folded MXU path (bf16)
    w_ds, b_ds = init_conv_params(k3, C, 8, 2, groups=1)
    y_ds = conv_block(x, w_ds, b_ds, stride=2, padding=0, groups=1)
    ref_ds = _conv_ref_nchw(x, w_ds, b_ds, 2, 0, 1)
    assert float(jnp.max(jnp.abs(y_ds - ref_ds))) < 1e-1

    # (d) dense 3x3, stride 1, pad 1 -> general fallback path
    w_d, b_d = init_conv_params(k4, C, 8, 3, groups=1)
    ref_d = _conv_ref_nchw(x, w_d, b_d, 1, 1, 1)
    y_d_f32 = conv_block(x, w_d, b_d, stride=1, padding=1, groups=1,
                         matmul_dtype=jnp.float32)
    assert float(jnp.max(jnp.abs(y_d_f32 - ref_d))) < 5e-3
    y_d_bf16 = conv_block(x, w_d, b_d, stride=1, padding=1, groups=1)
    assert float(jnp.max(jnp.abs(y_d_bf16 - ref_d))) < 1e-1

    # (e) grouped 3x3, groups=2 (block-diagonal fallback path)
    w_g, b_g = init_conv_params(k5, C, 8, 3, groups=2)
    y_g = conv_block(x, w_g, b_g, stride=1, padding=1, groups=2)
    ref_g = _conv_ref_nchw(x, w_g, b_g, 1, 1, 2)
    assert float(jnp.max(jnp.abs(y_g - ref_g))) < 1e-1

    jax.block_until_ready((y_dw, y_st_f32, y_st_bf16, y_ds, y_d_f32, y_d_bf16, y_g))
    print("KERNEL_OK")
</pallas_src>

<mosaic_0001>
module attributes {stable_mosaic.version = 11 : i64} {
  func.func @_depthwise_kernel(%arg0: i32, %arg1: memref<1x16x16x4xf32, #tpu.memory_space<vmem>>, %arg2: memref<7x7x4xf32, #tpu.memory_space<vmem>>, %arg3: memref<1x4xf32, #tpu.memory_space<vmem>>, %arg4: memref<1x16x16x4xf32, #tpu.memory_space<vmem>>, %arg5: memref<22x22x4xf32, #tpu.memory_space<vmem>>) attributes {dimension_semantics = [#tpu.dimension_semantics<parallel>], iteration_bounds = array<i64: 2>, scalar_prefetch = 0 : i64, scratch_operands = 1 : i64, tpu.core_type = #tpu.core_type<tc>, window_params = [{transform_indices = @transform_0, window_bounds = array<i64: 1, 16, 16, 4>}, {pipeline_mode = #tpu.pipeline_mode<synchronous>, transform_indices = @transform_1, window_bounds = array<i64: 7, 7, 4>}, {pipeline_mode = #tpu.pipeline_mode<synchronous>, transform_indices = @transform_2, window_bounds = array<i64: 1, 4>}, {transform_indices = @transform_3, window_bounds = array<i64: 1, 16, 16, 4>}]} {
    %cst = arith.constant 0.000000e+00 : f32
    %0 = vector.broadcast %cst : f32 to vector<3x22x4xf32>
    %c0 = arith.constant 0 : index
    %c0_0 = arith.constant 0 : index
    %c0_1 = arith.constant 0 : index
    %1 = vector.load %arg5[%c0, %c0_0, %c0_1] : memref<22x22x4xf32, #tpu.memory_space<vmem>>, vector<3x22x4xf32>
    tpu.vector_store %arg5[%c0, %c0_0, %c0_1], %0 {strides = array<i32>} : memref<22x22x4xf32, #tpu.memory_space<vmem>>, vector<3x22x4xf32>,
    %cst_2 = arith.constant 0.000000e+00 : f32
    %2 = vector.broadcast %cst_2 : f32 to vector<3x22x4xf32>
    %c19 = arith.constant 19 : index
    %c0_3 = arith.constant 0 : index
    %c0_4 = arith.constant 0 : index
    %3 = vector.load %arg5[%c19, %c0_3, %c0_4] : memref<22x22x4xf32, #tpu.memory_space<vmem>>, vector<3x22x4xf32>
    tpu.vector_store %arg5[%c19, %c0_3, %c0_4], %2 {strides = array<i32>} : memref<22x22x4xf32, #tpu.memory_space<vmem>>, vector<3x22x4xf32>,
    %cst_5 = arith.constant 0.000000e+00 : f32
    %4 = vector.broadcast %cst_5 : f32 to vector<16x3x4xf32>
    %c3 = arith.constant 3 : index
    %c0_6 = arith.constant 0 : index
    %c0_7 = arith.constant 0 : index
    %5 = vector.load %arg5[%c3, %c0_6, %c0_7] : memref<22x22x4xf32, #tpu.memory_space<vmem>>, vector<16x3x4xf32>
    tpu.vector_store %arg5[%c3, %c0_6, %c0_7], %4 {strides = array<i32>} : memref<22x22x4xf32, #tpu.memory_space<vmem>>, vector<16x3x4xf32>,
    %cst_8 = arith.constant 0.000000e+00 : f32
    %6 = vector.broadcast %cst_8 : f32 to vector<16x3x4xf32>
    %c3_9 = arith.constant 3 : index
    %c19_10 = arith.constant 19 : index
    %c0_11 = arith.constant 0 : index
    %7 = vector.load %arg5[%c3_9, %c19_10, %c0_11] : memref<22x22x4xf32, #tpu.memory_space<vmem>>, vector<16x3x4xf32>
    tpu.vector_store %arg5[%c3_9, %c19_10, %c0_11], %6 {strides = array<i32>} : memref<22x22x4xf32, #tpu.memory_space<vmem>>, vector<16x3x4xf32>,
    %c0_i32 = arith.constant 0 : i32
    %c16_i32 = arith.constant 16 : i32
    %8 = arith.muli %c0_i32, %c16_i32 : i32
    %9 = tpu.assume_multiple %8, 16 : i32
    %c0_12 = arith.constant 0 : index
    %10 = arith.index_cast %9 : i32 to index
    %c0_13 = arith.constant 0 : index
    %c0_14 = arith.constant 0 : index
    %11 = vector.load %arg1[%c0_12, %10, %c0_13, %c0_14] : memref<1x16x16x4xf32, #tpu.memory_space<vmem>>, vector<1x16x16x4xf32>
    %12 = vector.shape_cast %11 : vector<1x16x16x4xf32> to vector<16x16x4xf32>
    %c3_i32 = arith.constant 3 : i32
    %13 = arith.addi %c3_i32, %9 : i32
    %14 = arith.index_cast %13 : i32 to index
    %c3_15 = arith.constant 3 : index
    %c0_16 = arith.constant 0 : index
    %15 = vector.load %arg5[%14, %c3_15, %c0_16] : memref<22x22x4xf32, #tpu.memory_space<vmem>>, vector<16x16x4xf32>
    tpu.vector_store %arg5[%14, %c3_15, %c0_16], %12 {strides = array<i32>} : memref<22x22x4xf32, #tpu.memory_space<vmem>>, vector<16x16x4xf32>,
    %c1_i32 = arith.constant 1 : i32
    %c0_17 = arith.constant 0 : index
    %c0_18 = arith.constant 0 : index
    %16 = vector.load %arg3[%c0_17, %c0_18] : memref<1x4xf32, #tpu.memory_space<vmem>>, vector<1x4xf32>
    %17 = vector.shape_cast %16 : vector<1x4xf32> to vector<4xf32>
    %c0_i32_19 = arith.constant 0 : i32
    %c16_i32_20 = arith.constant 16 : i32
    %18 = arith.muli %c0_i32_19, %c16_i32_20 : i32
    %19 = tpu.assume_multiple %18, 16 : i32
    %cst_21 = arith.constant 0.000000e+00 : f32
    %20 = vector.broadcast %cst_21 : f32 to vector<16x16x4xf32>
    %c1_i32_22 = arith.constant 1 : i32
    %21 = arith.muli %19, %c1_i32_22 : i32
    %c0_i32_23 = arith.constant 0 : i32
    %22 = arith.addi %21, %c0_i32_23 : i32
    %23 = arith.index_cast %22 : i32 to index
    %c0_24 = arith.constant 0 : index
    %c0_25 = arith.constant 0 : index
    %24 = vector.load %arg5[%23, %c0_24, %c0_25] : memref<22x22x4xf32, #tpu.memory_space<vmem>>, vector<16x16x4xf32>
    %c0_26 = arith.constant 0 : index
    %c0_27 = arith.constant 0 : index
    %c0_28 = arith.constant 0 : index
    %25 = vector.load %arg2[%c0_26, %c0_27, %c0_28] : memref<7x7x4xf32, #tpu.memory_space<vmem>>, vector<1x1x4xf32>
    %26 = vector.shape_cast %25 : vector<1x1x4xf32> to vector<4xf32>
    %27 = vector.shape_cast %26 : vector<4xf32> to vector<1x1x4xf32>
    %28 = vector.broadcast %27 : vector<1x1x4xf32> to vector<16x16x4xf32>
    %29 = arith.mulf %24, %28 : vector<16x16x4xf32>
    %30 = arith.addf %20, %29 : vector<16x16x4xf32>
    %c1_i32_29 = arith.constant 1 : i32
    %31 = arith.muli %19, %c1_i32_29 : i32
    %c0_i32_30 = arith.constant 0 : i32
    %32 = arith.addi %31, %c0_i32_30 : i32
    %33 = arith.index_cast %32 : i32 to index
    %c1 = arith.constant 1 : index
    %c0_31 = arith.constant 0 : index
    %34 = vector.load %arg5[%33, %c1, %c0_31] : memref<22x22x4xf32, #tpu.memory_space<vmem>>, vector<16x16x4xf32>
    %c0_32 = arith.constant 0 : index
    %c1_33 = arith.constant 1 : index
    %c0_34 = arith.constant 0 : index
    %35 = vector.load %arg2[%c0_32, %c1_33, %c0_34] : memref<7x7x4xf32, #tpu.memory_space<vmem>>, vector<1x1x4xf32>
    %36 = vector.shape_cast %35 : vector<1x1x4xf32> to vector<4xf32>
    %37 = vector.shape_cast %36 : vector<4xf32> to vector<1x1x4xf32>
    %38 = vector.broadcast %37 : vector<1x1x4xf32> to vector<16x16x4xf32>
    %39 = arith.mulf %34, %38 : vector<16x16x4xf32>
    %40 = arith.addf %30, %39 : vector<16x16x4xf32>
    %c1_i32_35 = arith.constant 1 : i32
    %41 = arith.muli %19, %c1_i32_35 : i32
    %c0_i32_36 = arith.constant 0 : i32
    %42 = arith.addi %41, %c0_i32_36 : i32
    %43 = arith.index_cast %42 : i32 to index
    %c2 = arith.constant 2 : index
    %c0_37 = arith.constant 0 : index
    %44 = vector.load %arg5[%43, %c2, %c0_37] : memref<22x22x4xf32, #tpu.memory_space<vmem>>, vector<16x16x4xf32>
    %c0_38 = arith.constant 0 : index
    %c2_39 = arith.constant 2 : index
    %c0_40 = arith.constant 0 : index
    %45 = vector.load %arg2[%c0_38, %c2_39, %c0_40] : memref<7x7x4xf32, #tpu.memory_space<vmem>>, vector<1x1x4xf32>
    %46 = vector.shape_cast %45 : vector<1x1x4xf32> to vector<4xf32>
    %47 = vector.shape_cast %46 : vector<4xf32> to vector<1x1x4xf32>
    %48 = vector.broadcast %47 : vector<1x1x4xf32> to vector<16x16x4xf32>
    %49 = arith.mulf %44, %48 : vector<16x16x4xf32>
    %50 = arith.addf %40, %49 : vector<16x16x4xf32>
    %c1_i32_41 = arith.constant 1 : i32
    %51 = arith.muli %19, %c1_i32_41 : i32
    %c0_i32_42 = arith.constant 0 : i32
    %52 = arith.addi %51, %c0_i32_42 : i32
    %53 = arith.index_cast %52 : i32 to index
    %c3_43 = arith.constant 3 : index
    %c0_44 = arith.constant 0 : index
    %54 = vector.load %arg5[%53, %c3_43, %c0_44] : memref<22x22x4xf32, #tpu.memory_space<vmem>>, vector<16x16x4xf32>
    %c0_45 = arith.constant 0 : index
    %c3_46 = arith.constant 3 : index
    %c0_47 = arith.constant 0 : index
    %55 = vector.load %arg2[%c0_45, %c3_46, %c0_47] : memref<7x7x4xf32, #tpu.memory_space<vmem>>, vector<1x1x4xf32>
    %56 = vector.shape_cast %55 : vector<1x1x4xf32> to vector<4xf32>
    %57 = vector.shape_cast %56 : vector<4xf32> to vector<1x1x4xf32>
    %58 = vector.broadcast %57 : vector<1x1x4xf32> to vector<16x16x4xf32>
    %59 = arith.mulf %54, %58 : vector<16x16x4xf32>
    %60 = arith.addf %50, %59 : vector<16x16x4xf32>
    %c1_i32_48 = arith.constant 1 : i32
    %61 = arith.muli %19, %c1_i32_48 : i32
    %c0_i32_49 = arith.constant 0 : i32
    %62 = arith.addi %61, %c0_i32_49 : i32
    %63 = arith.index_cast %62 : i32 to index
    %c4 = arith.constant 4 : index
    %c0_50 = arith.constant 0 : index
    %64 = vector.load %arg5[%63, %c4, %c0_50] : memref<22x22x4xf32, #tpu.memory_space<vmem>>, vector<16x16x4xf32>
    %c0_51 = arith.constant 0 : index
    %c4_52 = arith.constant 4 : index
    %c0_53 = arith.constant 0 : index
    %65 = vector.load %arg2[%c0_51, %c4_52, %c0_53] : memref<7x7x4xf32, #tpu.memory_space<vmem>>, vector<1x1x4xf32>
    %66 = vector.shape_cast %65 : vector<1x1x4xf32> to vector<4xf32>
    %67 = vector.shape_cast %66 : vector<4xf32> to vector<1x1x4xf32>
    %68 = vector.broadcast %67 : vector<1x1x4xf32> to vector<16x16x4xf32>
    %69 = arith.mulf %64, %68 : vector<16x16x4xf32>
    %70 = arith.addf %60, %69 : vector<16x16x4xf32>
    %c1_i32_54 = arith.constant 1 : i32
    %71 = arith.muli %19, %c1_i32_54 : i32
    %c0_i32_55 = arith.constant 0 : i32
    %72 = arith.addi %71, %c0_i32_55 : i32
    %73 = arith.index_cast %72 : i32 to index
    %c5 = arith.constant 5 : index
    %c0_56 = arith.constant 0 : index
    %74 = vector.load %arg5[%73, %c5, %c0_56] : memref<22x22x4xf32, #tpu.memory_space<vmem>>, vector<16x16x4xf32>
    %c0_57 = arith.constant 0 : index
    %c5_58 = arith.constant 5 : index
    %c0_59 = arith.constant 0 : index
    %75 = vector.load %arg2[%c0_57, %c5_58, %c0_59] : memref<7x7x4xf32, #tpu.memory_space<vmem>>, vector<1x1x4xf32>
    %76 = vector.shape_cast %75 : vector<1x1x4xf32> to vector<4xf32>
    %77 = vector.shape_cast %76 : vector<4xf32> to vector<1x1x4xf32>
    %78 = vector.broadcast %77 : vector<1x1x4xf32> to vector<16x16x4xf32>
    %79 = arith.mulf %74, %78 : vector<16x16x4xf32>
    %80 = arith.addf %70, %79 : vector<16x16x4xf32>
    %c1_i32_60 = arith.constant 1 : i32
    %81 = arith.muli %19, %c1_i32_60 : i32
    %c0_i32_61 = arith.constant 0 : i32
    %82 = arith.addi %81, %c0_i32_61 : i32
    %83 = arith.index_cast %82 : i32 to index
    %c6 = arith.constant 6 : index
    %c0_62 = arith.constant 0 : index
    %84 = vector.load %arg5[%83, %c6, %c0_62] : memref<22x22x4xf32, #tpu.memory_space<vmem>>, vector<16x16x4xf32>
    %c0_63 = arith.constant 0 : index
    %c6_64 = arith.constant 6 : index
    %c0_65 = arith.constant 0 : index
    %85 = vector.load %arg2[%c0_63, %c6_64, %c0_65] : memref<7x7x4xf32, #tpu.memory_space<vmem>>, vector<1x1x4xf32>
    %86 = vector.shape_cast %85 : vector<1x1x4xf32> to vector<4xf32>
    %87 = vector.shape_cast %86 : vector<4xf32> to vector<1x1x4xf32>
    %88 = vector.broadcast %87 : vector<1x1x4xf32> to vector<16x16x4xf32>
    %89 = arith.mulf %84, %88 : vector<16x16x4xf32>
    %90 = arith.addf %80, %89 : vector<16x16x4xf32>
    %c1_i32_66 = arith.constant 1 : i32
    %91 = arith.muli %19, %c1_i32_66 : i32
    %c1_i32_67 = arith.constant 1 : i32
    %92 = arith.addi %91, %c1_i32_67 : i32
    %93 = arith.index_cast %92 : i32 to index
    %c0_68 = arith.constant 0 : index
    %c0_69 = arith.constant 0 : index
    %94 = vector.load %arg5[%93, %c0_68, %c0_69] : memref<22x22x4xf32, #tpu.memory_space<vmem>>, vector<16x16x4xf32>
    %c1_70 = arith.constant 1 : index
    %c0_71 = arith.constant 0 : index
    %c0_72 = arith.constant 0 : index
    %95 = vector.load %arg2[%c1_70, %c0_71, %c0_72] : memref<7x7x4xf32, #tpu.memory_space<vmem>>, vector<1x1x4xf32>
    %96 = vector.shape_cast %95 : vector<1x1x4xf32> to vector<4xf32>
    %97 = vector.shape_cast %96 : vector<4xf32> to vector<1x1x4xf32>
    %98 = vector.broadcast %97 : vector<1x1x4xf32> to vector<16x16x4xf32>
    %99 = arith.mulf %94, %98 : vector<16x16x4xf32>
    %100 = arith.addf %90, %99 : vector<16x16x4xf32>
    %c1_i32_73 = arith.constant 1 : i32
    %101 = arith.muli %19, %c1_i32_73 : i32
    %c1_i32_74 = arith.constant 1 : i32
    %102 = arith.addi %101, %c1_i32_74 : i32
    %103 = arith.index_cast %102 : i32 to index
    %c1_75 = arith.constant 1 : index
    %c0_76 = arith.constant 0 : index
    %104 = vector.load %arg5[%103, %c1_75, %c0_76] : memref<22x22x4xf32, #tpu.memory_space<vmem>>, vector<16x16x4xf32>
    %c1_77 = arith.constant 1 : index
    %c1_78 = arith.constant 1 : index
    %c0_79 = arith.constant 0 : index
    %105 = vector.load %arg2[%c1_77, %c1_78, %c0_79] : memref<7x7x4xf32, #tpu.memory_space<vmem>>, vector<1x1x4xf32>
    %106 = vector.shape_cast %105 : vector<1x1x4xf32> to vector<4xf32>
    %107 = vector.shape_cast %106 : vector<4xf32> to vector<1x1x4xf32>
    %108 = vector.broadcast %107 : vector<1x1x4xf32> to vector<16x16x4xf32>
    %109 = arith.mulf %104, %108 : vector<16x16x4xf32>
    %110 = arith.addf %100, %109 : vector<16x16x4xf32>
    %c1_i32_80 = arith.constant 1 : i32
    %111 = arith.muli %19, %c1_i32_80 : i32
    %c1_i32_81 = arith.constant 1 : i32
    %112 = arith.addi %111, %c1_i32_81 : i32
    %113 = arith.index_cast %112 : i32 to index
    %c2_82 = arith.constant 2 : index
    %c0_83 = arith.constant 0 : index
    %114 = vector.load %arg5[%113, %c2_82, %c0_83] : memref<22x22x4xf32, #tpu.memory_space<vmem>>, vector<16x16x4xf32>
    %c1_84 = arith.constant 1 : index
    %c2_85 = arith.constant 2 : index
    %c0_86 = arith.constant 0 : index
    %115 = vector.load %arg2[%c1_84, %c2_85, %c0_86] : memref<7x7x4xf32, #tpu.memory_space<vmem>>, vector<1x1x4xf32>
    %116 = vector.shape_cast %115 : vector<1x1x4xf32> to vector<4xf32>
    %117 = vector.shape_cast %116 : vector<4xf32> to vector<1x1x4xf32>
    %118 = vector.broadcast %117 : vector<1x1x4xf32> to vector<16x16x4xf32>
    %119 = arith.mulf %114, %118 : vector<16x16x4xf32>
    %120 = arith.addf %110, %119 : vector<16x16x4xf32>
    %c1_i32_87 = arith.constant 1 : i32
    %121 = arith.muli %19, %c1_i32_87 : i32
    %c1_i32_88 = arith.constant 1 : i32
    %122 = arith.addi %121, %c1_i32_88 : i32
    %123 = arith.index_cast %122 : i32 to index
    %c3_89 = arith.constant 3 : index
    %c0_90 = arith.constant 0 : index
    %124 = vector.load %arg5[%123, %c3_89, %c0_90] : memref<22x22x4xf32, #tpu.memory_space<vmem>>, vector<16x16x4xf32>
    %c1_91 = arith.constant 1 : index
    %c3_92 = arith.constant 3 : index
    %c0_93 = arith.constant 0 : index
    %125 = vector.load %arg2[%c1_91, %c3_92, %c0_93] : memref<7x7x4xf32, #tpu.memory_space<vmem>>, vector<1x1x4xf32>
    %126 = vector.shape_cast %125 : vector<1x1x4xf32> to vector<4xf32>
    %127 = vector.shape_cast %126 : vector<4xf32> to vector<1x1x4xf32>
    %128 = vector.broadcast %127 : vector<1x1x4xf32> to vector<16x16x4xf32>
    %129 = arith.mulf %124, %128 : vector<16x16x4xf32>
    %130 = arith.addf %120, %129 : vector<16x16x4xf32>
    %c1_i32_94 = arith.constant 1 : i32
    %131 = arith.muli %19, %c1_i32_94 : i32
    %c1_i32_95 = arith.constant 1 : i32
    %132 = arith.addi %131, %c1_i32_95 : i32
    %133 = arith.index_cast %132 : i32 to index
    %c4_96 = arith.constant 4 : index
    %c0_97 = arith.constant 0 : index
    %134 = vector.load %arg5[%133, %c4_96, %c0_97] : memref<22x22x4xf32, #tpu.memory_space<vmem>>, vector<16x16x4xf32>
    %c1_98 = arith.constant 1 : index
    %c4_99 = arith.constant 4 : index
    %c0_100 = arith.constant 0 : index
    %135 = vector.load %arg2[%c1_98, %c4_99, %c0_100] : memref<7x7x4xf32, #tpu.memory_space<vmem>>, vector<1x1x4xf32>
    %136 = vector.shape_cast %135 : vector<1x1x4xf32> to vector<4xf32>
    %137 = vector.shape_cast %136 : vector<4xf32> to vector<1x1x4xf32>
    %138 = vector.broadcast %137 : vector<1x1x4xf32> to vector<16x16x4xf32>
    %139 = arith.mulf %134, %138 : vector<16x16x4xf32>
    %140 = arith.addf %130, %139 : vector<16x16x4xf32>
    %c1_i32_101 = arith.constant 1 : i32
    %141 = arith.muli %19, %c1_i32_101 : i32
    %c1_i32_102 = arith.constant 1 : i32
    %142 = arith.addi %141, %c1_i32_102 : i32
    %143 = arith.index_cast %142 : i32 to index
    %c5_103 = arith.constant 5 : index
    %c0_104 = arith.constant 0 : index
    %144 = vector.load %arg5[%143, %c5_103, %c0_104] : memref<22x22x4xf32, #tpu.memory_space<vmem>>, vector<16x16x4xf32>
    %c1_105 = arith.constant 1 : index
    %c5_106 = arith.constant 5 : index
    %c0_107 = arith.constant 0 : index
    %145 = vector.load %arg2[%c1_105, %c5_106, %c0_107] : memref<7x7x4xf32, #tpu.memory_space<vmem>>, vector<1x1x4xf32>
    %146 = vector.shape_cast %145 : vector<1x1x4xf32> to vector<4xf32>
    %147 = vector.shape_cast %146 : vector<4xf32> to vector<1x1x4xf32>
    %148 = vector.broadcast %147 : vector<1x1x4xf32> to vector<16x16x4xf32>
    %149 = arith.mulf %144, %148 : vector<16x16x4xf32>
    %150 = arith.addf %140, %149 : vector<16x16x4xf32>
    %c1_i32_108 = arith.constant 1 : i32
    %151 = arith.muli %19, %c1_i32_108 : i32
    %c1_i32_109 = arith.constant 1 : i32
    %152 = arith.addi %151, %c1_i32_109 : i32
    %153 = arith.index_cast %152 : i32 to index
    %c6_110 = arith.constant 6 : index
    %c0_111 = arith.constant 0 : index
    %154 = vector.load %arg5[%153, %c6_110, %c0_111] : memref<22x22x4xf32, #tpu.memory_space<vmem>>, vector<16x16x4xf32>
    %c1_112 = arith.constant 1 : index
    %c6_113 = arith.constant 6 : index
    %c0_114 = arith.constant 0 : index
    %155 = vector.load %arg2[%c1_112, %c6_113, %c0_114] : memref<7x7x4xf32, #tpu.memory_space<vmem>>, vector<1x1x4xf32>
    %156 = vector.shape_cast %155 : vector<1x1x4xf32> to vector<4xf32>
    %157 = vector.shape_cast %156 : vector<4xf32> to vector<1x1x4xf32>
    %158 = vector.broadcast %157 : vector<1x1x4xf32> to vector<16x16x4xf32>
    %159 = arith.mulf %154, %158 : vector<16x16x4xf32>
    %160 = arith.addf %150, %159 : vector<16x16x4xf32>
    %c1_i32_115 = arith.constant 1 : i32
    %161 = arith.muli %19, %c1_i32_115 : i32
    %c2_i32 = arith.constant 2 : i32
    %162 = arith.addi %161, %c2_i32 : i32
    %163 = arith.index_cast %162 : i32 to index
    %c0_116 = arith.constant 0 : index
    %c0_117 = arith.constant 0 : index
    %164 = vector.load %arg5[%163, %c0_116, %c0_117] : memref<22x22x4xf32, #tpu.memory_space<vmem>>, vector<16x16x4xf32>
    %c2_118 = arith.constant 2 : index
    %c0_119 = arith.constant 0 : index
    %c0_120 = arith.constant 0 : index
    %165 = vector.load %arg2[%c2_118, %c0_119, %c0_120] : memref<7x7x4xf32, #tpu.memory_space<vmem>>, vector<1x1x4xf32>
    %166 = vector.shape_cast %165 : vector<1x1x4xf32> to vector<4xf32>
    %167 = vector.shape_cast %166 : vector<4xf32> to vector<1x1x4xf32>
    %168 = vector.broadcast %167 : vector<1x1x4xf32> to vector<16x16x4xf32>
    %169 = arith.mulf %164, %168 : vector<16x16x4xf32>
    %170 = arith.addf %160, %169 : vector<16x16x4xf32>
    %c1_i32_121 = arith.constant 1 : i32
    %171 = arith.muli %19, %c1_i32_121 : i32
    %c2_i32_122 = arith.constant 2 : i32
    %172 = arith.addi %171, %c2_i32_122 : i32
    %173 = arith.index_cast %172 : i32 to index
    %c1_123 = arith.constant 1 : index
    %c0_124 = arith.constant 0 : index
    %174 = vector.load %arg5[%173, %c1_123, %c0_124] : memref<22x22x4xf32, #tpu.memory_space<vmem>>, vector<16x16x4xf32>
    %c2_125 = arith.constant 2 : index
    %c1_126 = arith.constant 1 : index
    %c0_127 = arith.constant 0 : index
    %175 = vector.load %arg2[%c2_125, %c1_126, %c0_127] : memref<7x7x4xf32, #tpu.memory_space<vmem>>, vector<1x1x4xf32>
    %176 = vector.shape_cast %175 : vector<1x1x4xf32> to vector<4xf32>
    %177 = vector.shape_cast %176 : vector<4xf32> to vector<1x1x4xf32>
    %178 = vector.broadcast %177 : vector<1x1x4xf32> to vector<16x16x4xf32>
    %179 = arith.mulf %174, %178 : vector<16x16x4xf32>
    %180 = arith.addf %170, %179 : vector<16x16x4xf32>
    %c1_i32_128 = arith.constant 1 : i32
    %181 = arith.muli %19, %c1_i32_128 : i32
    %c2_i32_129 = arith.constant 2 : i32
    %182 = arith.addi %181, %c2_i32_129 : i32
    %183 = arith.index_cast %182 : i32 to index
    %c2_130 = arith.constant 2 : index
    %c0_131 = arith.constant 0 : index
    %184 = vector.load %arg5[%183, %c2_130, %c0_131] : memref<22x22x4xf32, #tpu.memory_space<vmem>>, vector<16x16x4xf32>
    %c2_132 = arith.constant 2 : index
    %c2_133 = arith.constant 2 : index
    %c0_134 = arith.constant 0 : index
    %185 = vector.load %arg2[%c2_132, %c2_133, %c0_134] : memref<7x7x4xf32, #tpu.memory_space<vmem>>, vector<1x1x4xf32>
    %186 = vector.shape_cast %185 : vector<1x1x4xf32> to vector<4xf32>
    %187 = vector.shape_cast %186 : vector<4xf32> to vector<1x1x4xf32>
    %188 = vector.broadcast %187 : vector<1x1x4xf32> to vector<16x16x4xf32>
    %189 = arith.mulf %184, %188 : vector<16x16x4xf32>
    %190 = arith.addf %180, %189 : vector<16x16x4xf32>
    %c1_i32_135 = arith.constant 1 : i32
    %191 = arith.muli %19, %c1_i32_135 : i32
    %c2_i32_136 = arith.constant 2 : i32
    %192 = arith.addi %191, %c2_i32_136 : i32
    %193 = arith.index_cast %192 : i32 to index
    %c3_137 = arith.constant 3 : index
    %c0_138 = arith.constant 0 : index
    %194 = vector.load %arg5[%193, %c3_137, %c0_138] : memref<22x22x4xf32, #tpu.memory_space<vmem>>, vector<16x16x4xf32>
    %c2_139 = arith.constant 2 : index
    %c3_140 = arith.constant 3 : index
    %c0_141 = arith.constant 0 : index
    %195 = vector.load %arg2[%c2_139, %c3_140, %c0_141] : memref<7x7x4xf32, #tpu.memory_space<vmem>>, vector<1x1x4xf32>
    %196 = vector.shape_cast %195 : vector<1x1x4xf32> to vector<4xf32>
    %197 = vector.shape_cast %196 : vector<4xf32> to vector<1x1x4xf32>
    %198 = vector.broadcast %197 : vector<1x1x4xf32> to vector<16x16x4xf32>
    %199 = arith.mulf %194, %198 : vector<16x16x4xf32>
    %200 = arith.addf %190, %199 : vector<16x16x4xf32>
    %c1_i32_142 = arith.constant 1 : i32
    %201 = arith.muli %19, %c1_i32_142 : i32
    %c2_i32_143 = arith.constant 2 : i32
    %202 = arith.addi %201, %c2_i32_143 : i32
    %203 = arith.index_cast %202 : i32 to index
    %c4_144 = arith.constant 4 : index
    %c0_145 = arith.constant 0 : index
    %204 = vector.load %arg5[%203, %c4_144, %c0_145] : memref<22x22x4xf32, #tpu.memory_space<vmem>>, vector<16x16x4xf32>
    %c2_146 = arith.constant 2 : index
    %c4_147 = arith.constant 4 : index
    %c0_148 = arith.constant 0 : index
    %205 = vector.load %arg2[%c2_146, %c4_147, %c0_148] : memref<7x7x4xf32, #tpu.memory_space<vmem>>, vector<1x1x4xf32>
    %206 = vector.shape_cast %205 : vector<1x1x4xf32> to vector<4xf32>
    %207 = vector.shape_cast %206 : vector<4xf32> to vector<1x1x4xf32>
    %208 = vector.broadcast %207 : vector<1x1x4xf32> to vector<16x16x4xf32>
    %209 = arith.mulf %204, %208 : vector<16x16x4xf32>
    %210 = arith.addf %200, %209 : vector<16x16x4xf32>
    %c1_i32_149 = arith.constant 1 : i32
    %211 = arith.muli %19, %c1_i32_149 : i32
    %c2_i32_150 = arith.constant 2 : i32
    %212 = arith.addi %211, %c2_i32_150 : i32
    %213 = arith.index_cast %212 : i32 to index
    %c5_151 = arith.constant 5 : index
    %c0_152 = arith.constant 0 : index
    %214 = vector.load %arg5[%213, %c5_151, %c0_152] : memref<22x22x4xf32, #tpu.memory_space<vmem>>, vector<16x16x4xf32>
    %c2_153 = arith.constant 2 : index
    %c5_154 = arith.constant 5 : index
    %c0_155 = arith.constant 0 : index
    %215 = vector.load %arg2[%c2_153, %c5_154, %c0_155] : memref<7x7x4xf32, #tpu.memory_space<vmem>>, vector<1x1x4xf32>
    %216 = vector.shape_cast %215 : vector<1x1x4xf32> to vector<4xf32>
    %217 = vector.shape_cast %216 : vector<4xf32> to vector<1x1x4xf32>
    %218 = vector.broadcast %217 : vector<1x1x4xf32> to vector<16x16x4xf32>
    %219 = arith.mulf %214, %218 : vector<16x16x4xf32>
    %220 = arith.addf %210, %219 : vector<16x16x4xf32>
    %c1_i32_156 = arith.constant 1 : i32
    %221 = arith.muli %19, %c1_i32_156 : i32
    %c2_i32_157 = arith.constant 2 : i32
    %222 = arith.addi %221, %c2_i32_157 : i32
    %223 = arith.index_cast %222 : i32 to index
    %c6_158 = arith.constant 6 : index
    %c0_159 = arith.constant 0 : index
    %224 = vector.load %arg5[%223, %c6_158, %c0_159] : memref<22x22x4xf32, #tpu.memory_space<vmem>>, vector<16x16x4xf32>
    %c2_160 = arith.constant 2 : index
    %c6_161 = arith.constant 6 : index
    %c0_162 = arith.constant 0 : index
    %225 = vector.load %arg2[%c2_160, %c6_161, %c0_162] : memref<7x7x4xf32, #tpu.memory_space<vmem>>, vector<1x1x4xf32>
    %226 = vector.shape_cast %225 : vector<1x1x4xf32> to vector<4xf32>
    %227 = vector.shape_cast %226 : vector<4xf32> to vector<1x1x4xf32>
    %228 = vector.broadcast %227 : vector<1x1x4xf32> to vector<16x16x4xf32>
    %229 = arith.mulf %224, %228 : vector<16x16x4xf32>
    %230 = arith.addf %220, %229 : vector<16x16x4xf32>
    %c1_i32_163 = arith.constant 1 : i32
    %231 = arith.muli %19, %c1_i32_163 : i32
    %c3_i32_164 = arith.constant 3 : i32
    %232 = arith.addi %231, %c3_i32_164 : i32
    %233 = arith.index_cast %232 : i32 to index
    %c0_165 = arith.constant 0 : index
    %c0_166 = arith.constant 0 : index
    %234 = vector.load %arg5[%233, %c0_165, %c0_166] : memref<22x22x4xf32, #tpu.memory_space<vmem>>, vector<16x16x4xf32>
    %c3_167 = arith.constant 3 : index
    %c0_168 = arith.constant 0 : index
    %c0_169 = arith.constant 0 : index
    %235 = vector.load %arg2[%c3_167, %c0_168, %c0_169] : memref<7x7x4xf32, #tpu.memory_space<vmem>>, vector<1x1x4xf32>
    %236 = vector.shape_cast %235 : vector<1x1x4xf32> to vector<4xf32>
    %237 = vector.shape_cast %236 : vector<4xf32> to vector<1x1x4xf32>
    %238 = vector.broadcast %237 : vector<1x1x4xf32> to vector<16x16x4xf32>
    %239 = arith.mulf %234, %238 : vector<16x16x4xf32>
    %240 = arith.addf %230, %239 : vector<16x16x4xf32>
    %c1_i32_170 = arith.constant 1 : i32
    %241 = arith.muli %19, %c1_i32_170 : i32
    %c3_i32_171 = arith.constant 3 : i32
    %242 = arith.addi %241, %c3_i32_171 : i32
    %243 = arith.index_cast %242 : i32 to index
    %c1_172 = arith.constant 1 : index
    %c0_173 = arith.constant 0 : index
    %244 = vector.load %arg5[%243, %c1_172, %c0_173] : memref<22x22x4xf32, #tpu.memory_space<vmem>>, vector<16x16x4xf32>
    %c3_174 = arith.constant 3 : index
    %c1_175 = arith.constant 1 : index
    %c0_176 = arith.constant 0 : index
    %245 = vector.load %arg2[%c3_174, %c1_175, %c0_176] : memref<7x7x4xf32, #tpu.memory_space<vmem>>, vector<1x1x4xf32>
    %246 = vector.shape_cast %245 : vector<1x1x4xf32> to vector<4xf32>
    %247 = vector.shape_cast %246 : vector<4xf32> to vector<1x1x4xf32>
    %248 = vector.broadcast %247 : vector<1x1x4xf32> to vector<16x16x4xf32>
    %249 = arith.mulf %244, %248 : vector<16x16x4xf32>
    %250 = arith.addf %240, %249 : vector<16x16x4xf32>
    %c1_i32_177 = arith.constant 1 : i32
    %251 = arith.muli %19, %c1_i32_177 : i32
    %c3_i32_178 = arith.constant 3 : i32
    %252 = arith.addi %251, %c3_i32_178 : i32
    %253 = arith.index_cast %252 : i32 to index
    %c2_179 = arith.constant 2 : index
    %c0_180 = arith.constant 0 : index
    %254 = vector.load %arg5[%253, %c2_179, %c0_180] : memref<22x22x4xf32, #tpu.memory_space<vmem>>, vector<16x16x4xf32>
    %c3_181 = arith.constant 3 : index
    %c2_182 = arith.constant 2 : index
    %c0_183 = arith.constant 0 : index
    %255 = vector.load %arg2[%c3_181, %c2_182, %c0_183] : memref<7x7x4xf32, #tpu.memory_space<vmem>>, vector<1x1x4xf32>
    %256 = vector.shape_cast %255 : vector<1x1x4xf32> to vector<4xf32>
    %257 = vector.shape_cast %256 : vector<4xf32> to vector<1x1x4xf32>
    %258 = vector.broadcast %257 : vector<1x1x4xf32> to vector<16x16x4xf32>
    %259 = arith.mulf %254, %258 : vector<16x16x4xf32>
    %260 = arith.addf %250, %259 : vector<16x16x4xf32>
    %c1_i32_184 = arith.constant 1 : i32
    %261 = arith.muli %19, %c1_i32_184 : i32
    %c3_i32_185 = arith.constant 3 : i32
    %262 = arith.addi %261, %c3_i32_185 : i32
    %263 = arith.index_cast %262 : i32 to index
    %c3_186 = arith.constant 3 : index
    %c0_187 = arith.constant 0 : index
    %264 = vector.load %arg5[%263, %c3_186, %c0_187] : memref<22x22x4xf32, #tpu.memory_space<vmem>>, vector<16x16x4xf32>
    %c3_188 = arith.constant 3 : index
    %c3_189 = arith.constant 3 : index
    %c0_190 = arith.constant 0 : index
    %265 = vector.load %arg2[%c3_188, %c3_189, %c0_190] : memref<7x7x4xf32, #tpu.memory_space<vmem>>, vector<1x1x4xf32>
    %266 = vector.shape_cast %265 : vector<1x1x4xf32> to vector<4xf32>
    %267 = vector.shape_cast %266 : vector<4xf32> to vector<1x1x4xf32>
    %268 = vector.broadcast %267 : vector<1x1x4xf32> to vector<16x16x4xf32>
    %269 = arith.mulf %264, %268 : vector<16x16x4xf32>
    %270 = arith.addf %260, %269 : vector<16x16x4xf32>
    %c1_i32_191 = arith.constant 1 : i32
    %271 = arith.muli %19, %c1_i32_191 : i32
    %c3_i32_192 = arith.constant 3 : i32
    %272 = arith.addi %271, %c3_i32_192 : i32
    %273 = arith.index_cast %272 : i32 to index
    %c4_193 = arith.constant 4 : index
    %c0_194 = arith.constant 0 : index
    %274 = vector.load %arg5[%273, %c4_193, %c0_194] : memref<22x22x4xf32, #tpu.memory_space<vmem>>, vector<16x16x4xf32>
    %c3_195 = arith.constant 3 : index
    %c4_196 = arith.constant 4 : index
    %c0_197 = arith.constant 0 : index
    %275 = vector.load %arg2[%c3_195, %c4_196, %c0_197] : memref<7x7x4xf32, #tpu.memory_space<vmem>>, vector<1x1x4xf32>
    %276 = vector.shape_cast %275 : vector<1x1x4xf32> to vector<4xf32>
    %277 = vector.shape_cast %276 : vector<4xf32> to vector<1x1x4xf32>
    %278 = vector.broadcast %277 : vector<1x1x4xf32> to vector<16x16x4xf32>
    %279 = arith.mulf %274, %278 : vector<16x16x4xf32>
    %280 = arith.addf %270, %279 : vector<16x16x4xf32>
    %c1_i32_198 = arith.constant 1 : i32
    %281 = arith.muli %19, %c1_i32_198 : i32
    %c3_i32_199 = arith.constant 3 : i32
    %282 = arith.addi %281, %c3_i32_199 : i32
    %283 = arith.index_cast %282 : i32 to index
    %c5_200 = arith.constant 5 : index
    %c0_201 = arith.constant 0 : index
    %284 = vector.load %arg5[%283, %c5_200, %c0_201] : memref<22x22x4xf32, #tpu.memory_space<vmem>>, vector<16x16x4xf32>
    %c3_202 = arith.constant 3 : index
    %c5_203 = arith.constant 5 : index
    %c0_204 = arith.constant 0 : index
    %285 = vector.load %arg2[%c3_202, %c5_203, %c0_204] : memref<7x7x4xf32, #tpu.memory_space<vmem>>, vector<1x1x4xf32>
    %286 = vector.shape_cast %285 : vector<1x1x4xf32> to vector<4xf32>
    %287 = vector.shape_cast %286 : vector<4xf32> to vector<1x1x4xf32>
    %288 = vector.broadcast %287 : vector<1x1x4xf32> to vector<16x16x4xf32>
    %289 = arith.mulf %284, %288 : vector<16x16x4xf32>
    %290 = arith.addf %280, %289 : vector<16x16x4xf32>
    %c1_i32_205 = arith.constant 1 : i32
    %291 = arith.muli %19, %c1_i32_205 : i32
    %c3_i32_206 = arith.constant 3 : i32
    %292 = arith.addi %291, %c3_i32_206 : i32
    %293 = arith.index_cast %292 : i32 to index
    %c6_207 = arith.constant 6 : index
    %c0_208 = arith.constant 0 : index
    %294 = vector.load %arg5[%293, %c6_207, %c0_208] : memref<22x22x4xf32, #tpu.memory_space<vmem>>, vector<16x16x4xf32>
    %c3_209 = arith.constant 3 : index
    %c6_210 = arith.constant 6 : index
    %c0_211 = arith.constant 0 : index
    %295 = vector.load %arg2[%c3_209, %c6_210, %c0_211] : memref<7x7x4xf32, #tpu.memory_space<vmem>>, vector<1x1x4xf32>
    %296 = vector.shape_cast %295 : vector<1x1x4xf32> to vector<4xf32>
    %297 = vector.shape_cast %296 : vector<4xf32> to vector<1x1x4xf32>
    %298 = vector.broadcast %297 : vector<1x1x4xf32> to vector<16x16x4xf32>
    %299 = arith.mulf %294, %298 : vector<16x16x4xf32>
    %300 = arith.addf %290, %299 : vector<16x16x4xf32>
    %c1_i32_212 = arith.constant 1 : i32
    %301 = arith.muli %19, %c1_i32_212 : i32
    %c4_i32 = arith.constant 4 : i32
    %302 = arith.addi %301, %c4_i32 : i32
    %303 = arith.index_cast %302 : i32 to index
    %c0_213 = arith.constant 0 : index
    %c0_214 = arith.constant 0 : index
    %304 = vector.load %arg5[%303, %c0_213, %c0_214] : memref<22x22x4xf32, #tpu.memory_space<vmem>>, vector<16x16x4xf32>
    %c4_215 = arith.constant 4 : index
    %c0_216 = arith.constant 0 : index
    %c0_217 = arith.constant 0 : index
    %305 = vector.load %arg2[%c4_215, %c0_216, %c0_217] : memref<7x7x4xf32, #tpu.memory_space<vmem>>, vector<1x1x4xf32>
    %306 = vector.shape_cast %305 : vector<1x1x4xf32> to vector<4xf32>
    %307 = vector.shape_cast %306 : vector<4xf32> to vector<1x1x4xf32>
    %308 = vector.broadcast %307 : vector<1x1x4xf32> to vector<16x16x4xf32>
    %309 = arith.mulf %304, %308 : vector<16x16x4xf32>
    %310 = arith.addf %300, %309 : vector<16x16x4xf32>
    %c1_i32_218 = arith.constant 1 : i32
    %311 = arith.muli %19, %c1_i32_218 : i32
    %c4_i32_219 = arith.constant 4 : i32
    %312 = arith.addi %311, %c4_i32_219 : i32
    %313 = arith.index_cast %312 : i32 to index
    %c1_220 = arith.constant 1 : index
    %c0_221 = arith.constant 0 : index
    %314 = vector.load %arg5[%313, %c1_220, %c0_221] : memref<22x22x4xf32, #tpu.memory_space<vmem>>, vector<16x16x4xf32>
    %c4_222 = arith.constant 4 : index
    %c1_223 = arith.constant 1 : index
    %c0_224 = arith.constant 0 : index
    %315 = vector.load %arg2[%c4_222, %c1_223, %c0_224] : memref<7x7x4xf32, #tpu.memory_space<vmem>>, vector<1x1x4xf32>
    %316 = vector.shape_cast %315 : vector<1x1x4xf32> to vector<4xf32>
    %317 = vector.shape_cast %316 : vector<4xf32> to vector<1x1x4xf32>
    %318 = vector.broadcast %317 : vector<1x1x4xf32> to vector<16x16x4xf32>
    %319 = arith.mulf %314, %318 : vector<16x16x4xf32>
    %320 = arith.addf %310, %319 : vector<16x16x4xf32>
    %c1_i32_225 = arith.constant 1 : i32
    %321 = arith.muli %19, %c1_i32_225 : i32
    %c4_i32_226 = arith.constant 4 : i32
    %322 = arith.addi %321, %c4_i32_226 : i32
    %323 = arith.index_cast %322 : i32 to index
    %c2_227 = arith.constant 2 : index
    %c0_228 = arith.constant 0 : index
    %324 = vector.load %arg5[%323, %c2_227, %c0_228] : memref<22x22x4xf32, #tpu.memory_space<vmem>>, vector<16x16x4xf32>
    %c4_229 = arith.constant 4 : index
    %c2_230 = arith.constant 2 : index
    %c0_231 = arith.constant 0 : index
    %325 = vector.load %arg2[%c4_229, %c2_230, %c0_231] : memref<7x7x4xf32, #tpu.memory_space<vmem>>, vector<1x1x4xf32>
    %326 = vector.shape_cast %325 : vector<1x1x4xf32> to vector<4xf32>
    %327 = vector.shape_cast %326 : vector<4xf32> to vector<1x1x4xf32>
    %328 = vector.broadcast %327 : vector<1x1x4xf32> to vector<16x16x4xf32>
    %329 = arith.mulf %324, %328 : vector<16x16x4xf32>
    %330 = arith.addf %320, %329 : vector<16x16x4xf32>
    %c1_i32_232 = arith.constant 1 : i32
    %331 = arith.muli %19, %c1_i32_232 : i32
    %c4_i32_233 = arith.constant 4 : i32
    %332 = arith.addi %331, %c4_i32_233 : i32
    %333 = arith.index_cast %332 : i32 to index
    %c3_234 = arith.constant 3 : index
    %c0_235 = arith.constant 0 : index
    %334 = vector.load %arg5[%333, %c3_234, %c0_235] : memref<22x22x4xf32, #tpu.memory_space<vmem>>, vector<16x16x4xf32>
    %c4_236 = arith.constant 4 : index
    %c3_237 = arith.constant 3 : index
    %c0_238 = arith.constant 0 : index
    %335 = vector.load %arg2[%c4_236, %c3_237, %c0_238] : memref<7x7x4xf32, #tpu.memory_space<vmem>>, vector<1x1x4xf32>
    %336 = vector.shape_cast %335 : vector<1x1x4xf32> to vector<4xf32>
    %337 = vector.shape_cast %336 : vector<4xf32> to vector<1x1x4xf32>
    %338 = vector.broadcast %337 : vector<1x1x4xf32> to vector<16x16x4xf32>
    %339 = arith.mulf %334, %338 : vector<16x16x4xf32>
    %340 = arith.addf %330, %339 : vector<16x16x4xf32>
    %c1_i32_239 = arith.constant 1 : i32
    %341 = arith.muli %19, %c1_i32_239 : i32
    %c4_i32_240 = arith.constant 4 : i32
    %342 = arith.addi %341, %c4_i32_240 : i32
    %343 = arith.index_cast %342 : i32 to index
    %c4_241 = arith.constant 4 : index
    %c0_242 = arith.constant 0 : index
    %344 = vector.load %arg5[%343, %c4_241, %c0_242] : memref<22x22x4xf32, #tpu.memory_space<vmem>>, vector<16x16x4xf32>
    %c4_243 = arith.constant 4 : index
    %c4_244 = arith.constant 4 : index
    %c0_245 = arith.constant 0 : index
    %345 = vector.load %arg2[%c4_243, %c4_244, %c0_245] : memref<7x7x4xf32, #tpu.memory_space<vmem>>, vector<1x1x4xf32>
    %346 = vector.shape_cast %345 : vector<1x1x4xf32> to vector<4xf32>
    %347 = vector.shape_cast %346 : vector<4xf32> to vector<1x1x4xf32>
    %348 = vector.broadcast %347 : vector<1x1x4xf32> to vector<16x16x4xf32>
    %349 = arith.mulf %344, %348 : vector<16x16x4xf32>
    %350 = arith.addf %340, %349 : vector<16x16x4xf32>
    %c1_i32_246 = arith.constant 1 : i32
    %351 = arith.muli %19, %c1_i32_246 : i32
    %c4_i32_247 = arith.constant 4 : i32
    %352 = arith.addi %351, %c4_i32_247 : i32
    %353 = arith.index_cast %352 : i32 to index
    %c5_248 = arith.constant 5 : index
    %c0_249 = arith.constant 0 : index
    %354 = vector.load %arg5[%353, %c5_248, %c0_249] : memref<22x22x4xf32, #tpu.memory_space<vmem>>, vector<16x16x4xf32>
    %c4_250 = arith.constant 4 : index
    %c5_251 = arith.constant 5 : index
    %c0_252 = arith.constant 0 : index
    %355 = vector.load %arg2[%c4_250, %c5_251, %c0_252] : memref<7x7x4xf32, #tpu.memory_space<vmem>>, vector<1x1x4xf32>
    %356 = vector.shape_cast %355 : vector<1x1x4xf32> to vector<4xf32>
    %357 = vector.shape_cast %356 : vector<4xf32> to vector<1x1x4xf32>
    %358 = vector.broadcast %357 : vector<1x1x4xf32> to vector<16x16x4xf32>
    %359 = arith.mulf %354, %358 : vector<16x16x4xf32>
    %360 = arith.addf %350, %359 : vector<16x16x4xf32>
    %c1_i32_253 = arith.constant 1 : i32
    %361 = arith.muli %19, %c1_i32_253 : i32
    %c4_i32_254 = arith.constant 4 : i32
    %362 = arith.addi %361, %c4_i32_254 : i32
    %363 = arith.index_cast %362 : i32 to index
    %c6_255 = arith.constant 6 : index
    %c0_256 = arith.constant 0 : index
    %364 = vector.load %arg5[%363, %c6_255, %c0_256] : memref<22x22x4xf32, #tpu.memory_space<vmem>>, vector<16x16x4xf32>
    %c4_257 = arith.constant 4 : index
    %c6_258 = arith.constant 6 : index
    %c0_259 = arith.constant 0 : index
    %365 = vector.load %arg2[%c4_257, %c6_258, %c0_259] : memref<7x7x4xf32, #tpu.memory_space<vmem>>, vector<1x1x4xf32>
    %366 = vector.shape_cast %365 : vector<1x1x4xf32> to vector<4xf32>
    %367 = vector.shape_cast %366 : vector<4xf32> to vector<1x1x4xf32>
    %368 = vector.broadcast %367 : vector<1x1x4xf32> to vector<16x16x4xf32>
    %369 = arith.mulf %364, %368 : vector<16x16x4xf32>
    %370 = arith.addf %360, %369 : vector<16x16x4xf32>
    %c1_i32_260 = arith.constant 1 : i32
    %371 = arith.muli %19, %c1_i32_260 : i32
    %c5_i32 = arith.constant 5 : i32
    %372 = arith.addi %371, %c5_i32 : i32
    %373 = arith.index_cast %372 : i32 to index
    %c0_261 = arith.constant 0 : index
    %c0_262 = arith.constant 0 : index
    %374 = vector.load %arg5[%373, %c0_261, %c0_262] : memref<22x22x4xf32, #tpu.memory_space<vmem>>, vector<16x16x4xf32>
    %c5_263 = arith.constant 5 : index
    %c0_264 = arith.constant 0 : index
    %c0_265 = arith.constant 0 : index
    %375 = vector.load %arg2[%c5_263, %c0_264, %c0_265] : memref<7x7x4xf32, #tpu.memory_space<vmem>>, vector<1x1x4xf32>
    %376 = vector.shape_cast %375 : vector<1x1x4xf32> to vector<4xf32>
    %377 = vector.shape_cast %376 : vector<4xf32> to vector<1x1x4xf32>
    %378 = vector.broadcast %377 : vector<1x1x4xf32> to vector<16x16x4xf32>
    %379 = arith.mulf %374, %378 : vector<16x16x4xf32>
    %380 = arith.addf %370, %379 : vector<16x16x4xf32>
    %c1_i32_266 = arith.constant 1 : i32
    %381 = arith.muli %19, %c1_i32_266 : i32
    %c5_i32_267 = arith.constant 5 : i32
    %382 = arith.addi %381, %c5_i32_267 : i32
    %383 = arith.index_cast %382 : i32 to index
    %c1_268 = arith.constant 1 : index
    %c0_269 = arith.constant 0 : index
    %384 = vector.load %arg5[%383, %c1_268, %c0_269] : memref<22x22x4xf32, #tpu.memory_space<vmem>>, vector<16x16x4xf32>
    %c5_270 = arith.constant 5 : index
    %c1_271 = arith.constant 1 : index
    %c0_272 = arith.constant 0 : index
    %385 = vector.load %arg2[%c5_270, %c1_271, %c0_272] : memref<7x7x4xf32, #tpu.memory_space<vmem>>, vector<1x1x4xf32>
    %386 = vector.shape_cast %385 : vector<1x1x4xf32> to vector<4xf32>
    %387 = vector.shape_cast %386 : vector<4xf32> to vector<1x1x4xf32>
    %388 = vector.broadcast %387 : vector<1x1x4xf32> to vector<16x16x4xf32>
    %389 = arith.mulf %384, %388 : vector<16x16x4xf32>
    %390 = arith.addf %380, %389 : vector<16x16x4xf32>
    %c1_i32_273 = arith.constant 1 : i32
    %391 = arith.muli %19, %c1_i32_273 : i32
    %c5_i32_274 = arith.constant 5 : i32
    %392 = arith.addi %391, %c5_i32_274 : i32
    %393 = arith.index_cast %392 : i32 to index
    %c2_275 = arith.constant 2 : index
    %c0_276 = arith.constant 0 : index
    %394 = vector.load %arg5[%393, %c2_275, %c0_276] : memref<22x22x4xf32, #tpu.memory_space<vmem>>, vector<16x16x4xf32>
    %c5_277 = arith.constant 5 : index
    %c2_278 = arith.constant 2 : index
    %c0_279 = arith.constant 0 : index
    %395 = vector.load %arg2[%c5_277, %c2_278, %c0_279] : memref<7x7x4xf32, #tpu.memory_space<vmem>>, vector<1x1x4xf32>
    %396 = vector.shape_cast %395 : vector<1x1x4xf32> to vector<4xf32>
    %397 = vector.shape_cast %396 : vector<4xf32> to vector<1x1x4xf32>
    %398 = vector.broadcast %397 : vector<1x1x4xf32> to vector<16x16x4xf32>
    %399 = arith.mulf %394, %398 : vector<16x16x4xf32>
    %400 = arith.addf %390, %399 : vector<16x16x4xf32>
    %c1_i32_280 = arith.constant 1 : i32
    %401 = arith.muli %19, %c1_i32_280 : i32
    %c5_i32_281 = arith.constant 5 : i32
    %402 = arith.addi %401, %c5_i32_281 : i32
    %403 = arith.index_cast %402 : i32 to index
    %c3_282 = arith.constant 3 : index
    %c0_283 = arith.constant 0 : index
    %404 = vector.load %arg5[%403, %c3_282, %c0_283] : memref<22x22x4xf32, #tpu.memory_space<vmem>>, vector<16x16x4xf32>
    %c5_284 = arith.constant 5 : index
    %c3_285 = arith.constant 3 : index
    %c0_286 = arith.constant 0 : index
    %405 = vector.load %arg2[%c5_284, %c3_285, %c0_286] : memref<7x7x4xf32, #tpu.memory_space<vmem>>, vector<1x1x4xf32>
    %406 = vector.shape_cast %405 : vector<1x1x4xf32> to vector<4xf32>
    %407 = vector.shape_cast %406 : vector<4xf32> to vector<1x1x4xf32>
    %408 = vector.broadcast %407 : vector<1x1x4xf32> to vector<16x16x4xf32>
    %409 = arith.mulf %404, %408 : vector<16x16x4xf32>
    %410 = arith.addf %400, %409 : vector<16x16x4xf32>
    %c1_i32_287 = arith.constant 1 : i32
    %411 = arith.muli %19, %c1_i32_287 : i32
    %c5_i32_288 = arith.constant 5 : i32
    %412 = arith.addi %411, %c5_i32_288 : i32
    %413 = arith.index_cast %412 : i32 to index
    %c4_289 = arith.constant 4 : index
    %c0_290 = arith.constant 0 : index
    %414 = vector.load %arg5[%413, %c4_289, %c0_290] : memref<22x22x4xf32, #tpu.memory_space<vmem>>, vector<16x16x4xf32>
    %c5_291 = arith.constant 5 : index
    %c4_292 = arith.constant 4 : index
    %c0_293 = arith.constant 0 : index
    %415 = vector.load %arg2[%c5_291, %c4_292, %c0_293] : memref<7x7x4xf32, #tpu.memory_space<vmem>>, vector<1x1x4xf32>
    %416 = vector.shape_cast %415 : vector<1x1x4xf32> to vector<4xf32>
    %417 = vector.shape_cast %416 : vector<4xf32> to vector<1x1x4xf32>
    %418 = vector.broadcast %417 : vector<1x1x4xf32> to vector<16x16x4xf32>
    %419 = arith.mulf %414, %418 : vector<16x16x4xf32>
    %420 = arith.addf %410, %419 : vector<16x16x4xf32>
    %c1_i32_294 = arith.constant 1 : i32
    %421 = arith.muli %19, %c1_i32_294 : i32
    %c5_i32_295 = arith.constant 5 : i32
    %422 = arith.addi %421, %c5_i32_295 : i32
    %423 = arith.index_cast %422 : i32 to index
    %c5_296 = arith.constant 5 : index
    %c0_297 = arith.constant 0 : index
    %424 = vector.load %arg5[%423, %c5_296, %c0_297] : memref<22x22x4xf32, #tpu.memory_space<vmem>>, vector<16x16x4xf32>
    %c5_298 = arith.constant 5 : index
    %c5_299 = arith.constant 5 : index
    %c0_300 = arith.constant 0 : index
    %425 = vector.load %arg2[%c5_298, %c5_299, %c0_300] : memref<7x7x4xf32, #tpu.memory_space<vmem>>, vector<1x1x4xf32>
    %426 = vector.shape_cast %425 : vector<1x1x4xf32> to vector<4xf32>
    %427 = vector.shape_cast %426 : vector<4xf32> to vector<1x1x4xf32>
    %428 = vector.broadcast %427 : vector<1x1x4xf32> to vector<16x16x4xf32>
    %429 = arith.mulf %424, %428 : vector<16x16x4xf32>
    %430 = arith.addf %420, %429 : vector<16x16x4xf32>
    %c1_i32_301 = arith.constant 1 : i32
    %431 = arith.muli %19, %c1_i32_301 : i32
    %c5_i32_302 = arith.constant 5 : i32
    %432 = arith.addi %431, %c5_i32_302 : i32
    %433 = arith.index_cast %432 : i32 to index
    %c6_303 = arith.constant 6 : index
    %c0_304 = arith.constant 0 : index
    %434 = vector.load %arg5[%433, %c6_303, %c0_304] : memref<22x22x4xf32, #tpu.memory_space<vmem>>, vector<16x16x4xf32>
    %c5_305 = arith.constant 5 : index
    %c6_306 = arith.constant 6 : index
    %c0_307 = arith.constant 0 : index
    %435 = vector.load %arg2[%c5_305, %c6_306, %c0_307] : memref<7x7x4xf32, #tpu.memory_space<vmem>>, vector<1x1x4xf32>
    %436 = vector.shape_cast %435 : vector<1x1x4xf32> to vector<4xf32>
    %437 = vector.shape_cast %436 : vector<4xf32> to vector<1x1x4xf32>
    %438 = vector.broadcast %437 : vector<1x1x4xf32> to vector<16x16x4xf32>
    %439 = arith.mulf %434, %438 : vector<16x16x4xf32>
    %440 = arith.addf %430, %439 : vector<16x16x4xf32>
    %c1_i32_308 = arith.constant 1 : i32
    %441 = arith.muli %19, %c1_i32_308 : i32
    %c6_i32 = arith.constant 6 : i32
    %442 = arith.addi %441, %c6_i32 : i32
    %443 = arith.index_cast %442 : i32 to index
    %c0_309 = arith.constant 0 : index
    %c0_310 = arith.constant 0 : index
    %444 = vector.load %arg5[%443, %c0_309, %c0_310] : memref<22x22x4xf32, #tpu.memory_space<vmem>>, vector<16x16x4xf32>
    %c6_311 = arith.constant 6 : index
    %c0_312 = arith.constant 0 : index
    %c0_313 = arith.constant 0 : index
    %445 = vector.load %arg2[%c6_311, %c0_312, %c0_313] : memref<7x7x4xf32, #tpu.memory_space<vmem>>, vector<1x1x4xf32>
    %446 = vector.shape_cast %445 : vector<1x1x4xf32> to vector<4xf32>
    %447 = vector.shape_cast %446 : vector<4xf32> to vector<1x1x4xf32>
    %448 = vector.broadcast %447 : vector<1x1x4xf32> to vector<16x16x4xf32>
    %449 = arith.mulf %444, %448 : vector<16x16x4xf32>
    %450 = arith.addf %440, %449 : vector<16x16x4xf32>
    %c1_i32_314 = arith.constant 1 : i32
    %451 = arith.muli %19, %c1_i32_314 : i32
    %c6_i32_315 = arith.constant 6 : i32
    %452 = arith.addi %451, %c6_i32_315 : i32
    %453 = arith.index_cast %452 : i32 to index
    %c1_316 = arith.constant 1 : index
    %c0_317 = arith.constant 0 : index
    %454 = vector.load %arg5[%453, %c1_316, %c0_317] : memref<22x22x4xf32, #tpu.memory_space<vmem>>, vector<16x16x4xf32>
    %c6_318 = arith.constant 6 : index
    %c1_319 = arith.constant 1 : index
    %c0_320 = arith.constant 0 : index
    %455 = vector.load %arg2[%c6_318, %c1_319, %c0_320] : memref<7x7x4xf32, #tpu.memory_space<vmem>>, vector<1x1x4xf32>
    %456 = vector.shape_cast %455 : vector<1x1x4xf32> to vector<4xf32>
    %457 = vector.shape_cast %456 : vector<4xf32> to vector<1x1x4xf32>
    %458 = vector.broadcast %457 : vector<1x1x4xf32> to vector<16x16x4xf32>
    %459 = arith.mulf %454, %458 : vector<16x16x4xf32>
    %460 = arith.addf %450, %459 : vector<16x16x4xf32>
    %c1_i32_321 = arith.constant 1 : i32
    %461 = arith.muli %19, %c1_i32_321 : i32
    %c6_i32_322 = arith.constant 6 : i32
    %462 = arith.addi %461, %c6_i32_322 : i32
    %463 = arith.index_cast %462 : i32 to index
    %c2_323 = arith.constant 2 : index
    %c0_324 = arith.constant 0 : index
    %464 = vector.load %arg5[%463, %c2_323, %c0_324] : memref<22x22x4xf32, #tpu.memory_space<vmem>>, vector<16x16x4xf32>
    %c6_325 = arith.constant 6 : index
    %c2_326 = arith.constant 2 : index
    %c0_327 = arith.constant 0 : index
    %465 = vector.load %arg2[%c6_325, %c2_326, %c0_327] : memref<7x7x4xf32, #tpu.memory_space<vmem>>, vector<1x1x4xf32>
    %466 = vector.shape_cast %465 : vector<1x1x4xf32> to vector<4xf32>
    %467 = vector.shape_cast %466 : vector<4xf32> to vector<1x1x4xf32>
    %468 = vector.broadcast %467 : vector<1x1x4xf32> to vector<16x16x4xf32>
    %469 = arith.mulf %464, %468 : vector<16x16x4xf32>
    %470 = arith.addf %460, %469 : vector<16x16x4xf32>
    %c1_i32_328 = arith.constant 1 : i32
    %471 = arith.muli %19, %c1_i32_328 : i32
    %c6_i32_329 = arith.constant 6 : i32
    %472 = arith.addi %471, %c6_i32_329 : i32
    %473 = arith.index_cast %472 : i32 to index
    %c3_330 = arith.constant 3 : index
    %c0_331 = arith.constant 0 : index
    %474 = vector.load %arg5[%473, %c3_330, %c0_331] : memref<22x22x4xf32, #tpu.memory_space<vmem>>, vector<16x16x4xf32>
    %c6_332 = arith.constant 6 : index
    %c3_333 = arith.constant 3 : index
    %c0_334 = arith.constant 0 : index
    %475 = vector.load %arg2[%c6_332, %c3_333, %c0_334] : memref<7x7x4xf32, #tpu.memory_space<vmem>>, vector<1x1x4xf32>
    %476 = vector.shape_cast %475 : vector<1x1x4xf32> to vector<4xf32>
    %477 = vector.shape_cast %476 : vector<4xf32> to vector<1x1x4xf32>
    %478 = vector.broadcast %477 : vector<1x1x4xf32> to vector<16x16x4xf32>
    %479 = arith.mulf %474, %478 : vector<16x16x4xf32>
    %480 = arith.addf %470, %479 : vector<16x16x4xf32>
    %c1_i32_335 = arith.constant 1 : i32
    %481 = arith.muli %19, %c1_i32_335 : i32
    %c6_i32_336 = arith.constant 6 : i32
    %482 = arith.addi %481, %c6_i32_336 : i32
    %483 = arith.index_cast %482 : i32 to index
    %c4_337 = arith.constant 4 : index
    %c0_338 = arith.constant 0 : index
    %484 = vector.load %arg5[%483, %c4_337, %c0_338] : memref<22x22x4xf32, #tpu.memory_space<vmem>>, vector<16x16x4xf32>
    %c6_339 = arith.constant 6 : index
    %c4_340 = arith.constant 4 : index
    %c0_341 = arith.constant 0 : index
    %485 = vector.load %arg2[%c6_339, %c4_340, %c0_341] : memref<7x7x4xf32, #tpu.memory_space<vmem>>, vector<1x1x4xf32>
    %486 = vector.shape_cast %485 : vector<1x1x4xf32> to vector<4xf32>
    %487 = vector.shape_cast %486 : vector<4xf32> to vector<1x1x4xf32>
    %488 = vector.broadcast %487 : vector<1x1x4xf32> to vector<16x16x4xf32>
    %489 = arith.mulf %484, %488 : vector<16x16x4xf32>
    %490 = arith.addf %480, %489 : vector<16x16x4xf32>
    %c1_i32_342 = arith.constant 1 : i32
    %491 = arith.muli %19, %c1_i32_342 : i32
    %c6_i32_343 = arith.constant 6 : i32
    %492 = arith.addi %491, %c6_i32_343 : i32
    %493 = arith.index_cast %492 : i32 to index
    %c5_344 = arith.constant 5 : index
    %c0_345 = arith.constant 0 : index
    %494 = vector.load %arg5[%493, %c5_344, %c0_345] : memref<22x22x4xf32, #tpu.memory_space<vmem>>, vector<16x16x4xf32>
    %c6_346 = arith.constant 6 : index
    %c5_347 = arith.constant 5 : index
    %c0_348 = arith.constant 0 : index
    %495 = vector.load %arg2[%c6_346, %c5_347, %c0_348] : memref<7x7x4xf32, #tpu.memory_space<vmem>>, vector<1x1x4xf32>
    %496 = vector.shape_cast %495 : vector<1x1x4xf32> to vector<4xf32>
    %497 = vector.shape_cast %496 : vector<4xf32> to vector<1x1x4xf32>
    %498 = vector.broadcast %497 : vector<1x1x4xf32> to vector<16x16x4xf32>
    %499 = arith.mulf %494, %498 : vector<16x16x4xf32>
    %500 = arith.addf %490, %499 : vector<16x16x4xf32>
    %c1_i32_349 = arith.constant 1 : i32
    %501 = arith.muli %19, %c1_i32_349 : i32
    %c6_i32_350 = arith.constant 6 : i32
    %502 = arith.addi %501, %c6_i32_350 : i32
    %503 = arith.index_cast %502 : i32 to index
    %c6_351 = arith.constant 6 : index
    %c0_352 = arith.constant 0 : index
    %504 = vector.load %arg5[%503, %c6_351, %c0_352] : memref<22x22x4xf32, #tpu.memory_space<vmem>>, vector<16x16x4xf32>
    %c6_353 = arith.constant 6 : index
    %c6_354 = arith.constant 6 : index
    %c0_355 = arith.constant 0 : index
    %505 = vector.load %arg2[%c6_353, %c6_354, %c0_355] : memref<7x7x4xf32, #tpu.memory_space<vmem>>, vector<1x1x4xf32>
    %506 = vector.shape_cast %505 : vector<1x1x4xf32> to vector<4xf32>
    %507 = vector.shape_cast %506 : vector<4xf32> to vector<1x1x4xf32>
    %508 = vector.broadcast %507 : vector<1x1x4xf32> to vector<16x16x4xf32>
    %509 = arith.mulf %504, %508 : vector<16x16x4xf32>
    %510 = arith.addf %500, %509 : vector<16x16x4xf32>
    %511 = vector.shape_cast %17 : vector<4xf32> to vector<1x1x4xf32>
    %512 = vector.broadcast %511 : vector<1x1x4xf32> to vector<16x16x4xf32>
    %513 = arith.addf %510, %512 : vector<16x16x4xf32>
    %c0_356 = arith.constant 0 : index
    %514 = arith.index_cast %19 : i32 to index
    %c0_357 = arith.constant 0 : index
    %c0_358 = arith.constant 0 : index
    %515 = vector.load %arg4[%c0_356, %514, %c0_357, %c0_358] : memref<1x16x16x4xf32, #tpu.memory_space<vmem>>, vector<1x16x16x4xf32>
    %516 = vector.shape_cast %515 : vector<1x16x16x4xf32> to vector<16x16x4xf32>
    %517 = vector.shape_cast %513 : vector<16x16x4xf32> to vector<1x16x16x4xf32>
    tpu.vector_store %arg4[%c0_356, %514, %c0_357, %c0_358], %517 {strides = array<i32>} : memref<1x16x16x4xf32, #tpu.memory_space<vmem>>, vector<1x16x16x4xf32>,
    %c1_i32_359 = arith.constant 1 : i32
    return
  }
  func.func @transform_0(%arg0: i32) -> (i32, i32, i32, i32) {
    %c0_i32 = arith.constant 0 : i32
    %c0_i32_0 = arith.constant 0 : i32
    %c0_i32_1 = arith.constant 0 : i32
    %c0_i32_2 = arith.constant 0 : i32
    return %arg0, %c0_i32, %c0_i32_0, %c0_i32_1 : i32, i32, i32, i32
  }
  func.func @transform_1(%arg0: i32) -> (i32, i32, i32) {
    %c0_i32 = arith.constant 0 : i32
    %c0_i32_0 = arith.constant 0 : i32
    %c0_i32_1 = arith.constant 0 : i32
    %c0_i32_2 = arith.constant 0 : i32
    return %c0_i32, %c0_i32_0, %c0_i32_1 : i32, i32, i32
  }
  func.func @transform_2(%arg0: i32) -> (i32, i32) {
    %c0_i32 = arith.constant 0 : i32
    %c0_i32_0 = arith.constant 0 : i32
    %c0_i32_1 = arith.constant 0 : i32
    return %c0_i32, %c0_i32_0 : i32, i32
  }
  func.func @transform_3(%arg0: i32) -> (i32, i32, i32, i32) {
    %c0_i32 = arith.constant 0 : i32
    %c0_i32_0 = arith.constant 0 : i32
    %c0_i32_1 = arith.constant 0 : i32
    %c0_i32_2 = arith.constant 0 : i32
    return %arg0, %c0_i32, %c0_i32_0, %c0_i32_1 : i32, i32, i32, i32
  }
}

</mosaic_0001>

<llo_original>
// kernel: tpu_custom_call.1
$region0: #{tpu_custom_call.1}
  #allocation0 [shape = 'u32[]', space=smem, size = 0x4, offset = 0x4, fixed_abs, tag = 'smem constant byte address 0x4 - core index']
  #allocation1 [shape = 'u32[72,128]{1,0:T(1,128)}', space=vmem, size = 0x9000, scoped, tag = 'internal scratch']
  #allocation2 [shape = 'f32[22,22,4]{2,1,0:T(8,128)}', space=vmem, size = 0x42000, scoped, tag = 'scratch operand']
  %s0 = inlined_call_operand.vmem [shape: f32[2,16,16,4], index: 0, kind: input, shape index: {}]
  %s1 = inlined_call_operand.vmem [shape: f32[7,7,4], index: 1, kind: input, shape index: {}]
  %s2 = inlined_call_operand.vmem [shape: f32[1,4], index: 2, kind: input, shape index: {}]
  %s3 = inlined_call_operand.vmem [shape: f32[2,16,16,4], index: 3, kind: output, shape index: {}]
  %s4 = sld [smem:[#allocation0]]
  $region45: #{tpu_custom_call.1} parent=0
    _
  %s6 = ssub.s32 1, %s4
  %s7 = scalar_select 0, %s6, %s4
  loop: start=0, step=1, limit=4
  $region2: #{tpu_custom_call.1} parent=0 // loop_pre_header
    _
  $region3: #{tpu_custom_call.1} parent=0 // loop_header
    %s9 = sphi 0, %s13
    %p10 = scmp.ge.s32.totalorder %s9, 4
    %s19 = sphi 0, %s21
    %s22 = sphi 0, %s19
    %s23 = sphi 0, %s22
    %s39 = sphi 0, %s23
    %s43 = sphi 0, %s43
    %s45 = sphi 0, %s43
    %s46 = sphi 0, %s45
    %s60 = sphi 0, %s46
    %s64 = sphi 0, %s64
    %s66 = sphi 0, %s64
    %s67 = sphi 0, %s66
    %s81 = sphi 0, %s67
    %s87 = sphi 0, %s89
    %s90 = sphi 0, %s87
    %s91 = sphi 0, %s90
    %s107 = sphi 0, %s91
  $region4: #{tpu_custom_call.1} parent=0 // loop_header_branch
    %12 = sbr.rel (%p10) target = $region8
  $region5: #{tpu_custom_call.1} parent=0 // loop_body
    %s14 = ssub.s32 %s9, 1
    %s15 = ssub.s32 %s9, 2
    %s16 = sadd.s32 %s9, 1
    %s17 = ssub.s32 %s9, %s16
    %p18 = scmp.eq.s32.totalorder %s17, 0
    %s20 = sadd.s32 %s19, 1
    %s21 = scalar_select %p18, %s19, %s20
    %p24 = pneg %p18
    %p25 = scmp.eq.s32.totalorder %s9, 1
    %p26 = por %p24, %p25
    %p27 = scmp.ne.s32.totalorder %s19, %s22
    %p28 = scmp.eq.s32.totalorder %s9, 0
    %p29 = por %p27, %p28
    %p30 = scmp.ne.s32.totalorder %s19, %s22
    %p31 = scmp.eq.s32.totalorder %s14, 1
    %p32 = por %p30, %p31
    %p33 = scmp.ne.s32.totalorder %s22, %s23
    %p34 = scmp.eq.s32.totalorder %s14, 0
    %p35 = por %p33, %p34
    %p36 = scmp.ne.s32.totalorder %s22, %s23
    %p37 = scmp.eq.s32.totalorder %s15, 1
    %p38 = por %p36, %p37
    %p40 = scmp.ne.s32.totalorder %s23, %s39
    %p41 = scmp.eq.s32.totalorder %s15, 0
    %p42 = por %p40, %p41
    %s44 = sadd.s32 %s43, 1
    %p47 = scmp.eq.s32.totalorder %s9, 1
    %p48 = scmp.ne.s32.totalorder %s43, %s45
    %p49 = scmp.eq.s32.totalorder %s9, 0
    %p50 = por %p48, %p49
    %p51 = scmp.ne.s32.totalorder %s43, %s45
    %p52 = scmp.eq.s32.totalorder %s14, 1
    %p53 = por %p51, %p52
    %p54 = scmp.ne.s32.totalorder %s45, %s46
    %p55 = scmp.eq.s32.totalorder %s14, 0
    %p56 = por %p54, %p55
    %p57 = scmp.ne.s32.totalorder %s45, %s46
    %p58 = scmp.eq.s32.totalorder %s15, 1
    %p59 = por %p57, %p58
    %p61 = scmp.ne.s32.totalorder %s46, %s60
    %p62 = scmp.eq.s32.totalorder %s15, 0
    %p63 = por %p61, %p62
    %s65 = sadd.s32 %s64, 1
    %p68 = scmp.eq.s32.totalorder %s9, 1
    %p69 = scmp.ne.s32.totalorder %s64, %s66
    %p70 = scmp.eq.s32.totalorder %s9, 0
    %p71 = por %p69, %p70
    %p72 = scmp.ne.s32.totalorder %s64, %s66
    %p73 = scmp.eq.s32.totalorder %s14, 1
    %p74 = por %p72, %p73
    %p75 = scmp.ne.s32.totalorder %s66, %s67
    %p76 = scmp.eq.s32.totalorder %s14, 0
    %p77 = por %p75, %p76
    %p78 = scmp.ne.s32.totalorder %s66, %s67
    %p79 = scmp.eq.s32.totalorder %s15, 1
    %p80 = por %p78, %p79
    %p82 = scmp.ne.s32.totalorder %s67, %s81
    %p83 = scmp.eq.s32.totalorder %s15, 0
    %p84 = por %p82, %p83
    %s85 = ssub.s32 %s9, %s16
    %p86 = scmp.eq.s32.totalorder %s85, 0
    %s88 = sadd.s32 %s87, 1
    %s89 = scalar_select %p86, %s87, %s88
    %p92 = pneg %p86
    %p93 = scmp.eq.s32.totalorder %s9, 1
    %p94 = por %p92, %p93
    %p95 = scmp.ne.s32.totalorder %s87, %s90
    %p96 = scmp.eq.s32.totalorder %s9, 0
    %p97 = por %p95, %p96
    %p98 = scmp.ne.s32.totalorder %s87, %s90
    %p99 = scmp.eq.s32.totalorder %s14, 1
    %p100 = por %p98, %p99
    %p101 = scmp.ne.s32.totalorder %s90, %s91
    %p102 = scmp.eq.s32.totalorder %s14, 0
    %p103 = por %p101, %p102
    %p104 = scmp.ne.s32.totalorder %s90, %s91
    %p105 = scmp.eq.s32.totalorder %s15, 1
    %p106 = por %p104, %p105
    %p108 = scmp.ne.s32.totalorder %s91, %s107
    %p109 = scmp.eq.s32.totalorder %s15, 0
    %p110 = por %p108, %p109
    %p111 = scmp.le.s32.totalorder 1, %s9
    %p112 = scmp.lt.s32.totalorder %s9, 3
    %p113 = pnand %p111, %p112
    %p114 = pneg %p113
    // Predicated region
    $region9: #{tpu_custom_call.1} parent=5 // pred_check
      _
    $region10: #{tpu_custom_call.1} parent=5 // pred_check_branch
      %116 = sbr.rel (%p113) target = $region12
    $region11: #{tpu_custom_call.1} parent=5 // pred_region
      %s117 = ssub.s32 %s9, 1
      // Predicated region
      $region13: #{tpu_custom_call.1} parent=11 // pred_check
        %p118 = pneg %p56
      $region14: #{tpu_custom_call.1} parent=11 // pred_check_branch
        %120 = sbr.rel (%p118) target = $region16
      $region15: #{tpu_custom_call.1} parent=11 // pred_region
        _
      $region16: #{tpu_custom_call.1} parent=11 // pred_fallthru
        _
      // Predicated region
      $region17: #{tpu_custom_call.1} parent=11 // pred_check
        %p121 = pneg %p77
      $region18: #{tpu_custom_call.1} parent=11 // pred_check_branch
        %123 = sbr.rel (%p121) target = $region20
      $region19: #{tpu_custom_call.1} parent=11 // pred_region
        _
      $region20: #{tpu_custom_call.1} parent=11 // pred_fallthru
        _
    $region12: #{tpu_custom_call.1} parent=5 // pred_fallthru
      _
    %p124 = scmp.lt.s32.totalorder %s9, 2
    // Predicated region
    $region21: #{tpu_custom_call.1} parent=5 // pred_check
      %p125 = pneg %p124
    $region22: #{tpu_custom_call.1} parent=5 // pred_check_branch
      %127 = sbr.rel (%p125) target = $region24
    $region23: #{tpu_custom_call.1} parent=5 // pred_region
      // Predicated region
      $region25: #{tpu_custom_call.1} parent=23 // pred_check
        %p128 = pneg %p29
      $region26: #{tpu_custom_call.1} parent=23 // pred_check_branch
        %130 = sbr.rel (%p128) target = $region28
      $region27: #{tpu_custom_call.1} parent=23 // pred_region
        %p131 = scmp.lt.s32.totalorder %s9, 1
        %s132 = scalar_select %p131, %s9, 1
        %s133 = smul.addr %s132, 32
        %s134 = smul.addr %s133, 8
        %s135 = scalar_lea.vmem %s0, %s134
      $region28: #{tpu_custom_call.1} parent=23 // pred_fallthru
        _
    $region24: #{tpu_custom_call.1} parent=5 // pred_fallthru
      _
    %p136 = scmp.le.s32.totalorder 1, %s9
    %p137 = scmp.lt.s32.totalorder %s9, 3
    %p138 = pnand %p136, %p137
    %p139 = pneg %p138
    // Predicated region
    $region29: #{tpu_custom_call.1} parent=5 // pred_check
      _
    $region30: #{tpu_custom_call.1} parent=5 // pred_check_branch
      %141 = sbr.rel (%p138) target = $region32
    $region31: #{tpu_custom_call.1} parent=5 // pred_region
      %s142 = ssub.s32 %s9, 1
      %p143 = scmp.lt.s32.totalorder %s14, 1
      %s144 = scalar_select %p143, %s14, 1
      %s145 = smul.addr %s144, 32
      %s146 = smul.addr %s145, 8
      %s147 = scalar_lea.vmem %s0, %s146
      %p148 = pneg %p35
      %p149 = pneg %p32
      %p150 = pneg %p56
      %p151 = pneg %p53
      %p152 = pneg %p77
      %p153 = pneg %p74
      %p154 = pneg %p103
      %p155 = pneg %p100
      %p156 = scmp.lt.s32.totalorder %s14, 1
      %s157 = scalar_select %p156, %s14, 1
      %s158 = smul.addr %s157, 32
      %s159 = smul.addr %s158, 8
      %s160 = scalar_lea.vmem %s3, %s159
      %p161 = scmp.lt.s32.totalorder %s14, 1
      %s162 = scalar_select %p161, %s14, 1
      %s163 = smul.addr %s162, 32
      %s164 = smul.addr %s163, 8
      %s165 = scalar_lea.vmem %s0, %s164
      %p166 = scmp.lt.s32.totalorder %s14, 1
      %s167 = scalar_select %p166, %s14, 1
      %s168 = smul.addr %s167, 32
      %s169 = smul.addr %s168, 8
      %s170 = scalar_lea.vmem %s3, %s169
      %vm171 = vcmask 31744
      %172 = vst.msk [vmem:[#allocation2] sm:$0xff] %vm171, 0.0
      %173 = vst.msk [vmem:[#allocation2 + $0x8] sm:$0xff] %vm171, 0.0
      %vm174 = vcmask 29696
      %175 = vst.msk [vmem:[#allocation2 + $0x10] sm:$0x3f] %vm174, 0.0
      %176 = vst.msk [vmem:[#allocation2 + $0x18] sm:$0xff] %vm171, 0.0
      %177 = vst.msk [vmem:[#allocation2 + $0x20] sm:$0xff] %vm171, 0.0
      %178 = vst.msk [vmem:[#allocation2 + $0x28] sm:$0x3f] %vm174, 0.0
      %179 = vst.msk [vmem:[#allocation2 + $0x30] sm:$0xff] %vm171, 0.0
      %180 = vst.msk [vmem:[#allocation2 + $0x38] sm:$0xff] %vm171, 0.0
      %181 = vst.msk [vmem:[#allocation2 + $0x40] sm:$0x3f] %vm174, 0.0
      %s182 = scalar_lea.vmem [#allocation2], 456
      %183 = vst.msk [vmem:[%s182] sm:$0xff] %vm171, 0.0
      %184 = vst.msk [vmem:[%s182 + $0x8] sm:$0xff] %vm171, 0.0
      %185 = vst.msk [vmem:[%s182 + $0x10] sm:$0x3f] %vm174, 0.0
      %186 = vst.msk [vmem:[%s182 + $0x18] sm:$0xff] %vm171, 0.0
      %187 = vst.msk [vmem:[%s182 + $0x20] sm:$0xff] %vm171, 0.0
      %188 = vst.msk [vmem:[%s182 + $0x28] sm:$0x3f] %vm174, 0.0
      %189 = vst.msk [vmem:[%s182 + $0x30] sm:$0xff] %vm171, 0.0
      %190 = vst.msk [vmem:[%s182 + $0x38] sm:$0xff] %vm171, 0.0
      %191 = vst.msk [vmem:[%s182 + $0x40] sm:$0x3f] %vm174, 0.0
      %s192 = scalar_lea.vmem [#allocation2], 72
      %vm193 = vcmask 26624
      %194 = vst.msk [vmem:[%s192] sm:$0x7] %vm193, 0.0
      %195 = vst.msk [vmem:[%s192 + $0x18] sm:$0x7] %vm193, 0.0
      %196 = vst.msk [vmem:[%s192 + $0x30] sm:$0x7] %vm193, 0.0
      %197 = vst.msk [vmem:[%s192 + $0x48] sm:$0x7] %vm193, 0.0
      %198 = vst.msk [vmem:[%s192 + $0x60] sm:$0x7] %vm193, 0.0
      %199 = vst.msk [vmem:[%s192 + $0x78] sm:$0x7] %vm193, 0.0
      %200 = vst.msk [vmem:[%s192 + $0x90] sm:$0x7] %vm193, 0.0
      %201 = vst.msk [vmem:[%s192 + $0xa8] sm:$0x7] %vm193, 0.0
      %202 = vst.msk [vmem:[%s192 + $0xc0] sm:$0x7] %vm193, 0.0
      %203 = vst.msk [vmem:[%s192 + $0xd8] sm:$0x7] %vm193, 0.0
      %204 = vst.msk [vmem:[%s192 + $0xf0] sm:$0x7] %vm193, 0.0
      %205 = vst.msk [vmem:[%s192 + $0x108] sm:$0x7] %vm193, 0.0
      %206 = vst.msk [vmem:[%s192 + $0x120] sm:$0x7] %vm193, 0.0
      %207 = vst.msk [vmem:[%s192 + $0x138] sm:$0x7] %vm193, 0.0
      %208 = vst.msk [vmem:[%s192 + $0x150] sm:$0x7] %vm193, 0.0
      %209 = vst.msk [vmem:[%s192 + $0x168] sm:$0x7] %vm193, 0.0
      %210 = vst.msk [vmem:[%s192 + $0x13] sm:$0x7] %vm193, 0.0
      %211 = vst.msk [vmem:[%s192 + $0x2b] sm:$0x7] %vm193, 0.0
      %212 = vst.msk [vmem:[%s192 + $0x43] sm:$0x7] %vm193, 0.0
      %213 = vst.msk [vmem:[%s192 + $0x5b] sm:$0x7] %vm193, 0.0
      %214 = vst.msk [vmem:[%s192 + $0x73] sm:$0x7] %vm193, 0.0
      %215 = vst.msk [vmem:[%s192 + $0x8b] sm:$0x7] %vm193, 0.0
      %216 = vst.msk [vmem:[%s192 + $0xa3] sm:$0x7] %vm193, 0.0
      %217 = vst.msk [vmem:[%s192 + $0xbb] sm:$0x7] %vm193, 0.0
      %218 = vst.msk [vmem:[%s192 + $0xd3] sm:$0x7] %vm193, 0.0
      %219 = vst.msk [vmem:[%s192 + $0xeb] sm:$0x7] %vm193, 0.0
      %220 = vst.msk [vmem:[%s192 + $0x103] sm:$0x7] %vm193, 0.0
      %221 = vst.msk [vmem:[%s192 + $0x11b] sm:$0x7] %vm193, 0.0
      %222 = vst.msk [vmem:[%s192 + $0x133] sm:$0x7] %vm193, 0.0
      %223 = vst.msk [vmem:[%s192 + $0x14b] sm:$0x7] %vm193, 0.0
      %224 = vst.msk [vmem:[%s192 + $0x163] sm:$0x7] %vm193, 0.0
      %225 = vst.msk [vmem:[%s192 + $0x17b] sm:$0x7] %vm193, 0.0
      %s226 = smul.u32 0, 16
      %s227 = scalar_lea.vmem %s165, %s226
      %v228 = vld [vmem:[%s227] sm:$0xff]
      %v229 = vld [vmem:[%s227 + $0x8] sm:$0xff]
      %v230 = vld [vmem:[%s227 + $0x10] sm:$0xff]
      %v231 = vld [vmem:[%s227 + $0x18] sm:$0xff]
      %v232 = vld [vmem:[%s227 + $0x20] sm:$0xff]
      %v233 = vld [vmem:[%s227 + $0x28] sm:$0xff]
      %v234 = vld [vmem:[%s227 + $0x30] sm:$0xff]
      %v235 = vld [vmem:[%s227 + $0x38] sm:$0xff]
      %v236 = vld [vmem:[%s227 + $0x40] sm:$0xff]
      %v237 = vld [vmem:[%s227 + $0x48] sm:$0xff]
      %v238 = vld [vmem:[%s227 + $0x50] sm:$0xff]
      %v239 = vld [vmem:[%s227 + $0x58] sm:$0xff]
      %v240 = vld [vmem:[%s227 + $0x60] sm:$0xff]
      %v241 = vld [vmem:[%s227 + $0x68] sm:$0xff]
      %v242 = vld [vmem:[%s227 + $0x70] sm:$0xff]
      %v243 = vld [vmem:[%s227 + $0x78] sm:$0xff]
      %v244 = vld [vmem:[%s227 + $0x80] sm:$0xff]
      %v245 = vld [vmem:[%s227 + $0x88] sm:$0xff]
      %v246 = vld [vmem:[%s227 + $0x90] sm:$0xff]
      %v247 = vld [vmem:[%s227 + $0x98] sm:$0xff]
      %v248 = vld [vmem:[%s227 + $0xa0] sm:$0xff]
      %v249 = vld [vmem:[%s227 + $0xa8] sm:$0xff]
      %v250 = vld [vmem:[%s227 + $0xb0] sm:$0xff]
      %v251 = vld [vmem:[%s227 + $0xb8] sm:$0xff]
      %v252 = vld [vmem:[%s227 + $0xc0] sm:$0xff]
      %v253 = vld [vmem:[%s227 + $0xc8] sm:$0xff]
      %v254 = vld [vmem:[%s227 + $0xd0] sm:$0xff]
      %v255 = vld [vmem:[%s227 + $0xd8] sm:$0xff]
      %v256 = vld [vmem:[%s227 + $0xe0] sm:$0xff]
      %v257 = vld [vmem:[%s227 + $0xe8] sm:$0xff]
      %v258 = vld [vmem:[%s227 + $0xf0] sm:$0xff]
      %v259 = vld [vmem:[%s227 + $0xf8] sm:$0xff]
      %s260 = sadd.s32 0, 3
      %s261 = smul.u32 %s260, 24
      %s262 = scalar_lea.vmem [#allocation2], %s261
      %263 = vst.msk [vmem:[%s262 + $0x3] sm:$0xff] %vm171, %v228
      %264 = vst.msk [vmem:[%s262 + $0xb] sm:$0xff] %vm171, %v229
      %265 = vst.msk [vmem:[%s262 + $0x1b] sm:$0xff] %vm171, %v230
      %266 = vst.msk [vmem:[%s262 + $0x23] sm:$0xff] %vm171, %v231
      %267 = vst.msk [vmem:[%s262 + $0x33] sm:$0xff] %vm171, %v232
      %268 = vst.msk [vmem:[%s262 + $0x3b] sm:$0xff] %vm171, %v233
      %269 = vst.msk [vmem:[%s262 + $0x4b] sm:$0xff] %vm171, %v234
      %270 = vst.msk [vmem:[%s262 + $0x53] sm:$0xff] %vm171, %v235
      %271 = vst.msk [vmem:[%s262 + $0x63] sm:$0xff] %vm171, %v236
      %272 = vst.msk [vmem:[%s262 + $0x6b] sm:$0xff] %vm171, %v237
      %273 = vst.msk [vmem:[%s262 + $0x7b] sm:$0xff] %vm171, %v238
      %274 = vst.msk [vmem:[%s262 + $0x83] sm:$0xff] %vm171, %v239
      %275 = vst.msk [vmem:[%s262 + $0x93] sm:$0xff] %vm171, %v240
      %276 = vst.msk [vmem:[%s262 + $0x9b] sm:$0xff] %vm171, %v241
      %277 = vst.msk [vmem:[%s262 + $0xab] sm:$0xff] %vm171, %v242
      %278 = vst.msk [vmem:[%s262 + $0xb3] sm:$0xff] %vm171, %v243
      %279 = vst.msk [vmem:[%s262 + $0xc3] sm:$0xff] %vm171, %v244
      %280 = vst.msk [vmem:[%s262 + $0xcb] sm:$0xff] %vm171, %v245
      %281 = vst.msk [vmem:[%s262 + $0xdb] sm:$0xff] %vm171, %v246
      %282 = vst.msk [vmem:[%s262 + $0xe3] sm:$0xff] %vm171, %v247
      %283 = vst.msk [vmem:[%s262 + $0xf3] sm:$0xff] %vm171, %v248
      %284 = vst.msk [vmem:[%s262 + $0xfb] sm:$0xff] %vm171, %v249
      %285 = vst.msk [vmem:[%s262 + $0x10b] sm:$0xff] %vm171, %v250
      %286 = vst.msk [vmem:[%s262 + $0x113] sm:$0xff] %vm171, %v251
      %287 = vst.msk [vmem:[%s262 + $0x123] sm:$0xff] %vm171, %v252
      %288 = vst.msk [vmem:[%s262 + $0x12b] sm:$0xff] %vm171, %v253
      %289 = vst.msk [vmem:[%s262 + $0x13b] sm:$0xff] %vm171, %v254
      %290 = vst.msk [vmem:[%s262 + $0x143] sm:$0xff] %vm171, %v255
      %291 = vst.msk [vmem:[%s262 + $0x153] sm:$0xff] %vm171, %v256
      %292 = vst.msk [vmem:[%s262 + $0x15b] sm:$0xff] %vm171, %v257
      %293 = vst.msk [vmem:[%s262 + $0x16b] sm:$0xff] %vm171, %v258
      %294 = vst.msk [vmem:[%s262 + $0x173] sm:$0xff] %vm171, %v259
      %v295 = vld [vmem:[%s2] sm:$0x1]
      %s296 = smul.u32 0, 24
      %s297 = scalar_lea.vmem [#allocation2], %s296
      %v298 = vld [vmem:[%s297] sm:$0xff]
      %v299 = vld [vmem:[%s297 + $0x8] sm:$0xff]
      %v300 = vld [vmem:[%s297 + $0x18] sm:$0xff]
      %v301 = vld [vmem:[%s297 + $0x20] sm:$0xff]
      %v302 = vld [vmem:[%s297 + $0x30] sm:$0xff]
      %v303 = vld [vmem:[%s297 + $0x38] sm:$0xff]
      %v304 = vld [vmem:[%s297 + $0x48] sm:$0xff]
      %v305 = vld [vmem:[%s297 + $0x50] sm:$0xff]
      %v306 = vld [vmem:[%s297 + $0x60] sm:$0xff]
      %v307 = vld [vmem:[%s297 + $0x68] sm:$0xff]
      %v308 = vld [vmem:[%s297 + $0x78] sm:$0xff]
      %v309 = vld [vmem:[%s297 + $0x80] sm:$0xff]
      %v310 = vld [vmem:[%s297 + $0x90] sm:$0xff]
      %v311 = vld [vmem:[%s297 + $0x98] sm:$0xff]
      %v312 = vld [vmem:[%s297 + $0xa8] sm:$0xff]
      %v313 = vld [vmem:[%s297 + $0xb0] sm:$0xff]
      %v314 = vld [vmem:[%s297 + $0xc0] sm:$0xff]
      %v315 = vld [vmem:[%s297 + $0xc8] sm:$0xff]
      %v316 = vld [vmem:[%s297 + $0xd8] sm:$0xff]
      %v317 = vld [vmem:[%s297 + $0xe0] sm:$0xff]
      %v318 = vld [vmem:[%s297 + $0xf0] sm:$0xff]
      %v319 = vld [vmem:[%s297 + $0xf8] sm:$0xff]
      %v320 = vld [vmem:[%s297 + $0x108] sm:$0xff]
      %v321 = vld [vmem:[%s297 + $0x110] sm:$0xff]
      %v322 = vld [vmem:[%s297 + $0x120] sm:$0xff]
      %v323 = vld [vmem:[%s297 + $0x128] sm:$0xff]
      %v324 = vld [vmem:[%s297 + $0x138] sm:$0xff]
      %v325 = vld [vmem:[%s297 + $0x140] sm:$0xff]
      %v326 = vld [vmem:[%s297 + $0x150] sm:$0xff]
      %v327 = vld [vmem:[%s297 + $0x158] sm:$0xff]
      %v328 = vld [vmem:[%s297 + $0x168] sm:$0xff]
      %v329 = vld [vmem:[%s297 + $0x170] sm:$0xff]
      %v330 = vld [vmem:[%s1] sm:$0x1]
      %v331 = vperm.slane %v330, 0
      %v332 = vmul.f32 %v298, %v331
      %v333 = vmul.f32 %v299, %v331
      %v334 = vmul.f32 %v300, %v331
      %v335 = vmul.f32 %v301, %v331
      %v336 = vmul.f32 %v302, %v331
      %v337 = vmul.f32 %v303, %v331
      %v338 = vmul.f32 %v304, %v331
      %v339 = vmul.f32 %v305, %v331
      %v340 = vmul.f32 %v306, %v331
      %v341 = vmul.f32 %v307, %v331
      %v342 = vmul.f32 %v308, %v331
      %v343 = vmul.f32 %v309, %v331
      %v344 = vmul.f32 %v310, %v331
      %v345 = vmul.f32 %v311, %v331
      %v346 = vmul.f32 %v312, %v331
      %v347 = vmul.f32 %v313, %v331
      %v348 = vmul.f32 %v314, %v331
      %v349 = vmul.f32 %v315, %v331
      %v350 = vmul.f32 %v316, %v331
      %v351 = vmul.f32 %v317, %v331
      %v352 = vmul.f32 %v318, %v331
      %v353 = vmul.f32 %v319, %v331
      %v354 = vmul.f32 %v320, %v331
      %v355 = vmul.f32 %v321, %v331
      %v356 = vmul.f32 %v322, %v331
      %v357 = vmul.f32 %v323, %v331
      %v358 = vmul.f32 %v324, %v331
      %v359 = vmul.f32 %v325, %v331
      %v360 = vmul.f32 %v326, %v331
      %v361 = vmul.f32 %v327, %v331
      %v362 = vmul.f32 %v328, %v331
      %v363 = vmul.f32 %v329, %v331
      %v364 = vadd.f32 %v332, 0.0
      %v365 = vadd.f32 %v333, 0.0
      %v366 = vadd.f32 %v334, 0.0
      %v367 = vadd.f32 %v335, 0.0
      %v368 = vadd.f32 %v336, 0.0
      %v369 = vadd.f32 %v337, 0.0
      %v370 = vadd.f32 %v338, 0.0
      %v371 = vadd.f32 %v339, 0.0
      %v372 = vadd.f32 %v340, 0.0
      %v373 = vadd.f32 %v341, 0.0
      %v374 = vadd.f32 %v342, 0.0
      %v375 = vadd.f32 %v343, 0.0
      %v376 = vadd.f32 %v344, 0.0
      %v377 = vadd.f32 %v345, 0.0
      %v378 = vadd.f32 %v346, 0.0
      %v379 = vadd.f32 %v347, 0.0
      %v380 = vadd.f32 %v348, 0.0
      %v381 = vadd.f32 %v349, 0.0
      %v382 = vadd.f32 %v350, 0.0
      %v383 = vadd.f32 %v351, 0.0
      %v384 = vadd.f32 %v352, 0.0
      %v385 = vadd.f32 %v353, 0.0
      %v386 = vadd.f32 %v354, 0.0
      %v387 = vadd.f32 %v355, 0.0
      %v388 = vadd.f32 %v356, 0.0
      %v389 = vadd.f32 %v357, 0.0
      %v390 = vadd.f32 %v358, 0.0
      %v391 = vadd.f32 %v359, 0.0
      %v392 = vadd.f32 %v360, 0.0
      %v393 = vadd.f32 %v361, 0.0
      %v394 = vadd.f32 %v362, 0.0
      %v395 = vadd.f32 %v363, 0.0
      %v396 = vld [vmem:[%s297 + $0x1] sm:$0xff]
      %v397 = vld [vmem:[%s297 + $0x9] sm:$0xff]
      %v398 = vld [vmem:[%s297 + $0x19] sm:$0xff]
      %v399 = vld [vmem:[%s297 + $0x21] sm:$0xff]
      %v400 = vld [vmem:[%s297 + $0x31] sm:$0xff]
      %v401 = vld [vmem:[%s297 + $0x39] sm:$0xff]
      %v402 = vld [vmem:[%s297 + $0x49] sm:$0xff]
      %v403 = vld [vmem:[%s297 + $0x51] sm:$0xff]
      %v404 = vld [vmem:[%s297 + $0x61] sm:$0xff]
      %v405 = vld [vmem:[%s297 + $0x69] sm:$0xff]
      %v406 = vld [vmem:[%s297 + $0x79] sm:$0xff]
      %v407 = vld [vmem:[%s297 + $0x81] sm:$0xff]
      %v408 = vld [vmem:[%s297 + $0x91] sm:$0xff]
      %v409 = vld [vmem:[%s297 + $0x99] sm:$0xff]
      %v410 = vld [vmem:[%s297 + $0xa9] sm:$0xff]
      %v411 = vld [vmem:[%s297 + $0xb1] sm:$0xff]
      %v412 = vld [vmem:[%s297 + $0xc1] sm:$0xff]
      %v413 = vld [vmem:[%s297 + $0xc9] sm:$0xff]
      %v414 = vld [vmem:[%s297 + $0xd9] sm:$0xff]
      %v415 = vld [vmem:[%s297 + $0xe1] sm:$0xff]
      %v416 = vld [vmem:[%s297 + $0xf1] sm:$0xff]
      %v417 = vld [vmem:[%s297 + $0xf9] sm:$0xff]
      %v418 = vld [vmem:[%s297 + $0x109] sm:$0xff]
      %v419 = vld [vmem:[%s297 + $0x111] sm:$0xff]
      %v420 = vld [vmem:[%s297 + $0x121] sm:$0xff]
      %v421 = vld [vmem:[%s297 + $0x129] sm:$0xff]
      %v422 = vld [vmem:[%s297 + $0x139] sm:$0xff]
      %v423 = vld [vmem:[%s297 + $0x141] sm:$0xff]
      %v424 = vld [vmem:[%s297 + $0x151] sm:$0xff]
      %v425 = vld [vmem:[%s297 + $0x159] sm:$0xff]
      %v426 = vld [vmem:[%s297 + $0x169] sm:$0xff]
      %v427 = vld [vmem:[%s297 + $0x171] sm:$0xff]
      %v428 = vld [vmem:[%s1 + $0x1] sm:$0x1]
      %v429 = vperm.slane %v428, 0
      %v430 = vmul.f32 %v396, %v429
      %v431 = vmul.f32 %v397, %v429
      %v432 = vmul.f32 %v398, %v429
      %v433 = vmul.f32 %v399, %v429
      %v434 = vmul.f32 %v400, %v429
      %v435 = vmul.f32 %v401, %v429
      %v436 = vmul.f32 %v402, %v429
      %v437 = vmul.f32 %v403, %v429
      %v438 = vmul.f32 %v404, %v429
      %v439 = vmul.f32 %v405, %v429
      %v440 = vmul.f32 %v406, %v429
      %v441 = vmul.f32 %v407, %v429
      %v442 = vmul.f32 %v408, %v429
      %v443 = vmul.f32 %v409, %v429
      %v444 = vmul.f32 %v410, %v429
      %v445 = vmul.f32 %v411, %v429
      %v446 = vmul.f32 %v412, %v429
      %v447 = vmul.f32 %v413, %v429
      %v448 = vmul.f32 %v414, %v429
      %v449 = vmul.f32 %v415, %v429
      %v450 = vmul.f32 %v416, %v429
      %v451 = vmul.f32 %v417, %v429
      %v452 = vmul.f32 %v418, %v429
      %v453 = vmul.f32 %v419, %v429
      %v454 = vmul.f32 %v420, %v429
      %v455 = vmul.f32 %v421, %v429
      %v456 = vmul.f32 %v422, %v429
      %v457 = vmul.f32 %v423, %v429
      %v458 = vmul.f32 %v424, %v429
      %v459 = vmul.f32 %v425, %v429
      %v460 = vmul.f32 %v426, %v429
      %v461 = vmul.f32 %v427, %v429
      %v462 = vadd.f32 %v364, %v430
      %v463 = vadd.f32 %v365, %v431
      %v464 = vadd.f32 %v366, %v432
      %v465 = vadd.f32 %v367, %v433
      %v466 = vadd.f32 %v368, %v434
      %v467 = vadd.f32 %v369, %v435
      %v468 = vadd.f32 %v370, %v436
      %v469 = vadd.f32 %v371, %v437
      %v470 = vadd.f32 %v372, %v438
      %v471 = vadd.f32 %v373, %v439
      %v472 = vadd.f32 %v374, %v440
      %v473 = vadd.f32 %v375, %v441
      %v474 = vadd.f32 %v376, %v442
      %v475 = vadd.f32 %v377, %v443
      %v476 = vadd.f32 %v378, %v444
      %v477 = vadd.f32 %v379, %v445
      %v478 = vadd.f32 %v380, %v446
      %v479 = vadd.f32 %v381, %v447
      %v480 = vadd.f32 %v382, %v448
      %v481 = vadd.f32 %v383, %v449
      %v482 = vadd.f32 %v384, %v450
      %v483 = vadd.f32 %v385, %v451
      %v484 = vadd.f32 %v386, %v452
      %v485 = vadd.f32 %v387, %v453
      %v486 = vadd.f32 %v388, %v454
      %v487 = vadd.f32 %v389, %v455
      %v488 = vadd.f32 %v390, %v456
      %v489 = vadd.f32 %v391, %v457
      %v490 = vadd.f32 %v392, %v458
      %v491 = vadd.f32 %v393, %v459
      %v492 = vadd.f32 %v394, %v460
      %v493 = vadd.f32 %v395, %v461
      %v494 = vld [vmem:[%s297 + $0x2] sm:$0xff]
      %v495 = vld [vmem:[%s297 + $0xa] sm:$0xff]
      %v496 = vld [vmem:[%s297 + $0x1a] sm:$0xff]
      %v497 = vld [vmem:[%s297 + $0x22] sm:$0xff]
      %v498 = vld [vmem:[%s297 + $0x32] sm:$0xff]
      %v499 = vld [vmem:[%s297 + $0x3a] sm:$0xff]
      %v500 = vld [vmem:[%s297 + $0x4a] sm:$0xff]
      %v501 = vld [vmem:[%s297 + $0x52] sm:$0xff]
      %v502 = vld [vmem:[%s297 + $0x62] sm:$0xff]
      %v503 = vld [vmem:[%s297 + $0x6a] sm:$0xff]
      %v504 = vld [vmem:[%s297 + $0x7a] sm:$0xff]
      %v505 = vld [vmem:[%s297 + $0x82] sm:$0xff]
      %v506 = vld [vmem:[%s297 + $0x92] sm:$0xff]
      %v507 = vld [vmem:[%s297 + $0x9a] sm:$0xff]
      %v508 = vld [vmem:[%s297 + $0xaa] sm:$0xff]
      %v509 = vld [vmem:[%s297 + $0xb2] sm:$0xff]
      %v510 = vld [vmem:[%s297 + $0xc2] sm:$0xff]
      %v511 = vld [vmem:[%s297 + $0xca] sm:$0xff]
      %v512 = vld [vmem:[%s297 + $0xda] sm:$0xff]
      %v513 = vld [vmem:[%s297 + $0xe2] sm:$0xff]
      %v514 = vld [vmem:[%s297 + $0xf2] sm:$0xff]
      %v515 = vld [vmem:[%s297 + $0xfa] sm:$0xff]
      %v516 = vld [vmem:[%s297 + $0x10a] sm:$0xff]
      %v517 = vld [vmem:[%s297 + $0x112] sm:$0xff]
      %v518 = vld [vmem:[%s297 + $0x122] sm:$0xff]
      %v519 = vld [vmem:[%s297 + $0x12a] sm:$0xff]
      %v520 = vld [vmem:[%s297 + $0x13a] sm:$0xff]
      %v521 = vld [vmem:[%s297 + $0x142] sm:$0xff]
      %v522 = vld [vmem:[%s297 + $0x152] sm:$0xff]
      %v523 = vld [vmem:[%s297 + $0x15a] sm:$0xff]
      %v524 = vld [vmem:[%s297 + $0x16a] sm:$0xff]
      %v525 = vld [vmem:[%s297 + $0x172] sm:$0xff]
      %v526 = vld [vmem:[%s1 + $0x2] sm:$0x1]
      %v527 = vperm.slane %v526, 0
      %v528 = vmul.f32 %v494, %v527
      %v529 = vmul.f32 %v495, %v527
      %v530 = vmul.f32 %v496, %v527
      %v531 = vmul.f32 %v497, %v527
      %v532 = vmul.f32 %v498, %v527
      %v533 = vmul.f32 %v499, %v527
      %v534 = vmul.f32 %v500, %v527
      %v535 = vmul.f32 %v501, %v527
      %v536 = vmul.f32 %v502, %v527
      %v537 = vmul.f32 %v503, %v527
      %v538 = vmul.f32 %v504, %v527
      %v539 = vmul.f32 %v505, %v527
      %v540 = vmul.f32 %v506, %v527
      %v541 = vmul.f32 %v507, %v527
      %v542 = vmul.f32 %v508, %v527
      %v543 = vmul.f32 %v509, %v527
      %v544 = vmul.f32 %v510, %v527
      %v545 = vmul.f32 %v511, %v527
      %v546 = vmul.f32 %v512, %v527
      %v547 = vmul.f32 %v513, %v527
      %v548 = vmul.f32 %v514, %v527
      %v549 = vmul.f32 %v515, %v527
      %v550 = vmul.f32 %v516, %v527
      %v551 = vmul.f32 %v517, %v527
      %v552 = vmul.f32 %v518, %v527
      %v553 = vmul.f32 %v519, %v527
      %v554 = vmul.f32 %v520, %v527
      %v555 = vmul.f32 %v521, %v527
      %v556 = vmul.f32 %v522, %v527
      %v557 = vmul.f32 %v523, %v527
      %v558 = vmul.f32 %v524, %v527
      %v559 = vmul.f32 %v525, %v527
      %v560 = vadd.f32 %v462, %v528
      %v561 = vadd.f32 %v463, %v529
      %v562 = vadd.f32 %v464, %v530
      %v563 = vadd.f32 %v465, %v531
      %v564 = vadd.f32 %v466, %v532
      %v565 = vadd.f32 %v467, %v533
      %v566 = vadd.f32 %v468, %v534
      %v567 = vadd.f32 %v469, %v535
      %v568 = vadd.f32 %v470, %v536
      %v569 = vadd.f32 %v471, %v537
      %v570 = vadd.f32 %v472, %v538
      %v571 = vadd.f32 %v473, %v539
      %v572 = vadd.f32 %v474, %v540
      %v573 = vadd.f32 %v475, %v541
      %v574 = vadd.f32 %v476, %v542
      %v575 = vadd.f32 %v477, %v543
      %v576 = vadd.f32 %v478, %v544
      %v577 = vadd.f32 %v479, %v545
      %v578 = vadd.f32 %v480, %v546
      %v579 = vadd.f32 %v481, %v547
      %v580 = vadd.f32 %v482, %v548
      %v581 = vadd.f32 %v483, %v549
      %v582 = vadd.f32 %v484, %v550
      %v583 = vadd.f32 %v485, %v551
      %v584 = vadd.f32 %v486, %v552
      %v585 = vadd.f32 %v487, %v553
      %v586 = vadd.f32 %v488, %v554
      %v587 = vadd.f32 %v489, %v555
      %v588 = vadd.f32 %v490, %v556
      %v589 = vadd.f32 %v491, %v557
      %v590 = vadd.f32 %v492, %v558
      %v591 = vadd.f32 %v493, %v559
      %v592 = vld [vmem:[%s297 + $0x3] sm:$0xff]
      %v593 = vld [vmem:[%s297 + $0xb] sm:$0xff]
      %v594 = vld [vmem:[%s297 + $0x1b] sm:$0xff]
      %v595 = vld [vmem:[%s297 + $0x23] sm:$0xff]
      %v596 = vld [vmem:[%s297 + $0x33] sm:$0xff]
      %v597 = vld [vmem:[%s297 + $0x3b] sm:$0xff]
      %v598 = vld [vmem:[%s297 + $0x4b] sm:$0xff]
      %v599 = vld [vmem:[%s297 + $0x53] sm:$0xff]
      %v600 = vld [vmem:[%s297 + $0x63] sm:$0xff]
      %v601 = vld [vmem:[%s297 + $0x6b] sm:$0xff]
      %v602 = vld [vmem:[%s297 + $0x7b] sm:$0xff]
      %v603 = vld [vmem:[%s297 + $0x83] sm:$0xff]
      %v604 = vld [vmem:[%s297 + $0x93] sm:$0xff]
      %v605 = vld [vmem:[%s297 + $0x9b] sm:$0xff]
      %v606 = vld [vmem:[%s297 + $0xab] sm:$0xff]
      %v607 = vld [vmem:[%s297 + $0xb3] sm:$0xff]
      %v608 = vld [vmem:[%s297 + $0xc3] sm:$0xff]
      %v609 = vld [vmem:[%s297 + $0xcb] sm:$0xff]
      %v610 = vld [vmem:[%s297 + $0xdb] sm:$0xff]
      %v611 = vld [vmem:[%s297 + $0xe3] sm:$0xff]
      %v612 = vld [vmem:[%s297 + $0xf3] sm:$0xff]
      %v613 = vld [vmem:[%s297 + $0xfb] sm:$0xff]
      %v614 = vld [vmem:[%s297 + $0x10b] sm:$0xff]
      %v615 = vld [vmem:[%s297 + $0x113] sm:$0xff]
      %v616 = vld [vmem:[%s297 + $0x123] sm:$0xff]
      %v617 = vld [vmem:[%s297 + $0x12b] sm:$0xff]
      %v618 = vld [vmem:[%s297 + $0x13b] sm:$0xff]
      %v619 = vld [vmem:[%s297 + $0x143] sm:$0xff]
      %v620 = vld [vmem:[%s297 + $0x153] sm:$0xff]
      %v621 = vld [vmem:[%s297 + $0x15b] sm:$0xff]
      %v622 = vld [vmem:[%s297 + $0x16b] sm:$0xff]
      %v623 = vld [vmem:[%s297 + $0x173] sm:$0xff]
      %v624 = vld [vmem:[%s1 + $0x3] sm:$0x1]
      %v625 = vperm.slane %v624, 0
      %v626 = vmul.f32 %v592, %v625
      %v627 = vmul.f32 %v593, %v625
      %v628 = vmul.f32 %v594, %v625
      %v629 = vmul.f32 %v595, %v625
      %v630 = vmul.f32 %v596, %v625
      %v631 = vmul.f32 %v597, %v625
      %v632 = vmul.f32 %v598, %v625
      %v633 = vmul.f32 %v599, %v625
      %v634 = vmul.f32 %v600, %v625
      %v635 = vmul.f32 %v601, %v625
      %v636 = vmul.f32 %v602, %v625
      %v637 = vmul.f32 %v603, %v625
      %v638 = vmul.f32 %v604, %v625
      %v639 = vmul.f32 %v605, %v625
      %v640 = vmul.f32 %v606, %v625
      %v641 = vmul.f32 %v607, %v625
      %v642 = vmul.f32 %v608, %v625
      %v643 = vmul.f32 %v609, %v625
      %v644 = vmul.f32 %v610, %v625
      %v645 = vmul.f32 %v611, %v625
      %v646 = vmul.f32 %v612, %v625
      %v647 = vmul.f32 %v613, %v625
      %v648 = vmul.f32 %v614, %v625
      %v649 = vmul.f32 %v615, %v625
      %v650 = vmul.f32 %v616, %v625
      %v651 = vmul.f32 %v617, %v625
      %v652 = vmul.f32 %v618, %v625
      %v653 = vmul.f32 %v619, %v625
      %v654 = vmul.f32 %v620, %v625
      %v655 = vmul.f32 %v621, %v625
      %v656 = vmul.f32 %v622, %v625
      %v657 = vmul.f32 %v623, %v625
      %v658 = vadd.f32 %v560, %v626
      %v659 = vadd.f32 %v561, %v627
      %v660 = vadd.f32 %v562, %v628
      %v661 = vadd.f32 %v563, %v629
      %v662 = vadd.f32 %v564, %v630
      %v663 = vadd.f32 %v565, %v631
      %v664 = vadd.f32 %v566, %v632
      %v665 = vadd.f32 %v567, %v633
      %v666 = vadd.f32 %v568, %v634
      %v667 = vadd.f32 %v569, %v635
      %v668 = vadd.f32 %v570, %v636
      %v669 = vadd.f32 %v571, %v637
      %v670 = vadd.f32 %v572, %v638
      %v671 = vadd.f32 %v573, %v639
      %v672 = vadd.f32 %v574, %v640
      %v673 = vadd.f32 %v575, %v641
      %v674 = vadd.f32 %v576, %v642
      %v675 = vadd.f32 %v577, %v643
      %v676 = vadd.f32 %v578, %v644
      %v677 = vadd.f32 %v579, %v645
      %v678 = vadd.f32 %v580, %v646
      %v679 = vadd.f32 %v581, %v647
      %v680 = vadd.f32 %v582, %v648
      %v681 = vadd.f32 %v583, %v649
      %v682 = vadd.f32 %v584, %v650
      %v683 = vadd.f32 %v585, %v651
      %v684 = vadd.f32 %v586, %v652
      %v685 = vadd.f32 %v587, %v653
      %v686 = vadd.f32 %v588, %v654
      %v687 = vadd.f32 %v589, %v655
      %v688 = vadd.f32 %v590, %v656
      %v689 = vadd.f32 %v591, %v657
      %v690 = vld [vmem:[%s297 + $0x4] sm:$0xff]
      %v691 = vld [vmem:[%s297 + $0xc] sm:$0xff]
      %v692 = vld [vmem:[%s297 + $0x1c] sm:$0xff]
      %v693 = vld [vmem:[%s297 + $0x24] sm:$0xff]
      %v694 = vld [vmem:[%s297 + $0x34] sm:$0xff]
      %v695 = vld [vmem:[%s297 + $0x3c] sm:$0xff]
      %v696 = vld [vmem:[%s297 + $0x4c] sm:$0xff]
      %v697 = vld [vmem:[%s297 + $0x54] sm:$0xff]
      %v698 = vld [vmem:[%s297 + $0x64] sm:$0xff]
      %v699 = vld [vmem:[%s297 + $0x6c] sm:$0xff]
      %v700 = vld [vmem:[%s297 + $0x7c] sm:$0xff]
      %v701 = vld [vmem:[%s297 + $0x84] sm:$0xff]
      %v702 = vld [vmem:[%s297 + $0x94] sm:$0xff]
      %v703 = vld [vmem:[%s297 + $0x9c] sm:$0xff]
      %v704 = vld [vmem:[%s297 + $0xac] sm:$0xff]
      %v705 = vld [vmem:[%s297 + $0xb4] sm:$0xff]
      %v706 = vld [vmem:[%s297 + $0xc4] sm:$0xff]
      %v707 = vld [vmem:[%s297 + $0xcc] sm:$0xff]
      %v708 = vld [vmem:[%s297 + $0xdc] sm:$0xff]
      %v709 = vld [vmem:[%s297 + $0xe4] sm:$0xff]
      %v710 = vld [vmem:[%s297 + $0xf4] sm:$0xff]
      %v711 = vld [vmem:[%s297 + $0xfc] sm:$0xff]
      %v712 = vld [vmem:[%s297 + $0x10c] sm:$0xff]
      %v713 = vld [vmem:[%s297 + $0x114] sm:$0xff]
      %v714 = vld [vmem:[%s297 + $0x124] sm:$0xff]
      %v715 = vld [vmem:[%s297 + $0x12c] sm:$0xff]
      %v716 = vld [vmem:[%s297 + $0x13c] sm:$0xff]
      %v717 = vld [vmem:[%s297 + $0x144] sm:$0xff]
      %v718 = vld [vmem:[%s297 + $0x154] sm:$0xff]
      %v719 = vld [vmem:[%s297 + $0x15c] sm:$0xff]
      %v720 = vld [vmem:[%s297 + $0x16c] sm:$0xff]
      %v721 = vld [vmem:[%s297 + $0x174] sm:$0xff]
      %v722 = vld [vmem:[%s1 + $0x4] sm:$0x1]
      %v723 = vperm.slane %v722, 0
      %v724 = vmul.f32 %v690, %v723
      %v725 = vmul.f32 %v691, %v723
      %v726 = vmul.f32 %v692, %v723
      %v727 = vmul.f32 %v693, %v723
      %v728 = vmul.f32 %v694, %v723
      %v729 = vmul.f32 %v695, %v723
      %v730 = vmul.f32 %v696, %v723
      %v731 = vmul.f32 %v697, %v723
      %v732 = vmul.f32 %v698, %v723
      %v733 = vmul.f32 %v699, %v723
      %v734 = vmul.f32 %v700, %v723
      %v735 = vmul.f32 %v701, %v723
      %v736 = vmul.f32 %v702, %v723
      %v737 = vmul.f32 %v703, %v723
      %v738 = vmul.f32 %v704, %v723
      %v739 = vmul.f32 %v705, %v723
      %v740 = vmul.f32 %v706, %v723
      %v741 = vmul.f32 %v707, %v723
      %v742 = vmul.f32 %v708, %v723
      %v743 = vmul.f32 %v709, %v723
      %v744 = vmul.f32 %v710, %v723
      %v745 = vmul.f32 %v711, %v723
      %v746 = vmul.f32 %v712, %v723
      %v747 = vmul.f32 %v713, %v723
      %v748 = vmul.f32 %v714, %v723
      %v749 = vmul.f32 %v715, %v723
      %v750 = vmul.f32 %v716, %v723
      %v751 = vmul.f32 %v717, %v723
      %v752 = vmul.f32 %v718, %v723
      %v753 = vmul.f32 %v719, %v723
      %v754 = vmul.f32 %v720, %v723
      %v755 = vmul.f32 %v721, %v723
      %v756 = vadd.f32 %v658, %v724
      %v757 = vadd.f32 %v659, %v725
      %v758 = vadd.f32 %v660, %v726
      %v759 = vadd.f32 %v661, %v727
      %v760 = vadd.f32 %v662, %v728
      %v761 = vadd.f32 %v663, %v729
      %v762 = vadd.f32 %v664, %v730
      %v763 = vadd.f32 %v665, %v731
      %v764 = vadd.f32 %v666, %v732
      %v765 = vadd.f32 %v667, %v733
      %v766 = vadd.f32 %v668, %v734
      %v767 = vadd.f32 %v669, %v735
      %v768 = vadd.f32 %v670, %v736
      %v769 = vadd.f32 %v671, %v737
      %v770 = vadd.f32 %v672, %v738
      %v771 = vadd.f32 %v673, %v739
      %v772 = vadd.f32 %v674, %v740
      %v773 = vadd.f32 %v675, %v741
      %v774 = vadd.f32 %v676, %v742
      %v775 = vadd.f32 %v677, %v743
      %v776 = vadd.f32 %v678, %v744
      %v777 = vadd.f32 %v679, %v745
      %v778 = vadd.f32 %v680, %v746
      %v779 = vadd.f32 %v681, %v747
      %v780 = vadd.f32 %v682, %v748
      %v781 = vadd.f32 %v683, %v749
      %v782 = vadd.f32 %v684, %v750
      %v783 = vadd.f32 %v685, %v751
      %v784 = vadd.f32 %v686, %v752
      %v785 = vadd.f32 %v687, %v753
      %v786 = vadd.f32 %v688, %v754
      %v787 = vadd.f32 %v689, %v755
      %v788 = vld [vmem:[%s297 + $0x5] sm:$0xff]
      %v789 = vld [vmem:[%s297 + $0xd] sm:$0xff]
      %v790 = vld [vmem:[%s297 + $0x1d] sm:$0xff]
      %v791 = vld [vmem:[%s297 + $0x25] sm:$0xff]
      %v792 = vld [vmem:[%s297 + $0x35] sm:$0xff]
      %v793 = vld [vmem:[%s297 + $0x3d] sm:$0xff]
      %v794 = vld [vmem:[%s297 + $0x4d] sm:$0xff]
      %v795 = vld [vmem:[%s297 + $0x55] sm:$0xff]
      %v796 = vld [vmem:[%s297 + $0x65] sm:$0xff]
      %v797 = vld [vmem:[%s297 + $0x6d] sm:$0xff]
      %v798 = vld [vmem:[%s297 + $0x7d] sm:$0xff]
      %v799 = vld [vmem:[%s297 + $0x85] sm:$0xff]
      %v800 = vld [vmem:[%s297 + $0x95] sm:$0xff]
      %v801 = vld [vmem:[%s297 + $0x9d] sm:$0xff]
      %v802 = vld [vmem:[%s297 + $0xad] sm:$0xff]
      %v803 = vld [vmem:[%s297 + $0xb5] sm:$0xff]
      %v804 = vld [vmem:[%s297 + $0xc5] sm:$0xff]
      %v805 = vld [vmem:[%s297 + $0xcd] sm:$0xff]
      %v806 = vld [vmem:[%s297 + $0xdd] sm:$0xff]
      %v807 = vld [vmem:[%s297 + $0xe5] sm:$0xff]
      %v808 = vld [vmem:[%s297 + $0xf5] sm:$0xff]
      %v809 = vld [vmem:[%s297 + $0xfd] sm:$0xff]
      %v810 = vld [vmem:[%s297 + $0x10d] sm:$0xff]
      %v811 = vld [vmem:[%s297 + $0x115] sm:$0xff]
      %v812 = vld [vmem:[%s297 + $0x125] sm:$0xff]
      %v813 = vld [vmem:[%s297 + $0x12d] sm:$0xff]
      %v814 = vld [vmem:[%s297 + $0x13d] sm:$0xff]
      %v815 = vld [vmem:[%s297 + $0x145] sm:$0xff]
      %v816 = vld [vmem:[%s297 + $0x155] sm:$0xff]
      %v817 = vld [vmem:[%s297 + $0x15d] sm:$0xff]
      %v818 = vld [vmem:[%s297 + $0x16d] sm:$0xff]
      %v819 = vld [vmem:[%s297 + $0x175] sm:$0xff]
      %v820 = vld [vmem:[%s1 + $0x5] sm:$0x1]
      %v821 = vperm.slane %v820, 0
      %v822 = vmul.f32 %v788, %v821
      %v823 = vmul.f32 %v789, %v821
      %v824 = vmul.f32 %v790, %v821
      %v825 = vmul.f32 %v791, %v821
      %v826 = vmul.f32 %v792, %v821
      %v827 = vmul.f32 %v793, %v821
      %v828 = vmul.f32 %v794, %v821
      %v829 = vmul.f32 %v795, %v821
      %v830 = vmul.f32 %v796, %v821
      %v831 = vmul.f32 %v797, %v821
      %v832 = vmul.f32 %v798, %v821
      %v833 = vmul.f32 %v799, %v821
      %v834 = vmul.f32 %v800, %v821
      %v835 = vmul.f32 %v801, %v821
      %v836 = vmul.f32 %v802, %v821
      %v837 = vmul.f32 %v803, %v821
      %v838 = vmul.f32 %v804, %v821
      %v839 = vmul.f32 %v805, %v821
      %v840 = vmul.f32 %v806, %v821
      %v841 = vmul.f32 %v807, %v821
      %v842 = vmul.f32 %v808, %v821
      %v843 = vmul.f32 %v809, %v821
      %v844 = vmul.f32 %v810, %v821
      %v845 = vmul.f32 %v811, %v821
      %v846 = vmul.f32 %v812, %v821
      %v847 = vmul.f32 %v813, %v821
      %v848 = vmul.f32 %v814, %v821
      %v849 = vmul.f32 %v815, %v821
      %v850 = vmul.f32 %v816, %v821
      %v851 = vmul.f32 %v817, %v821
      %v852 = vmul.f32 %v818, %v821
      %v853 = vmul.f32 %v819, %v821
      %v854 = vadd.f32 %v756, %v822
      %v855 = vadd.f32 %v757, %v823
      %v856 = vadd.f32 %v758, %v824
      %v857 = vadd.f32 %v759, %v825
      %v858 = vadd.f32 %v760, %v826
      %v859 = vadd.f32 %v761, %v827
      %v860 = vadd.f32 %v762, %v828
      %v861 = vadd.f32 %v763, %v829
      %v862 = vadd.f32 %v764, %v830
      %v863 = vadd.f32 %v765, %v831
      %v864 = vadd.f32 %v766, %v832
      %v865 = vadd.f32 %v767, %v833
      %v866 = vadd.f32 %v768, %v834
      %v867 = vadd.f32 %v769, %v835
      %v868 = vadd.f32 %v770, %v836
      %v869 = vadd.f32 %v771, %v837
      %v870 = vadd.f32 %v772, %v838
      %v871 = vadd.f32 %v773, %v839
      %v872 = vadd.f32 %v774, %v840
      %v873 = vadd.f32 %v775, %v841
      %v874 = vadd.f32 %v776, %v842
      %v875 = vadd.f32 %v777, %v843
      %v876 = vadd.f32 %v778, %v844
      %v877 = vadd.f32 %v779, %v845
      %v878 = vadd.f32 %v780, %v846
      %v879 = vadd.f32 %v781, %v847
      %v880 = vadd.f32 %v782, %v848
      %v881 = vadd.f32 %v783, %v849
      %v882 = vadd.f32 %v784, %v850
      %v883 = vadd.f32 %v785, %v851
      %v884 = vadd.f32 %v786, %v852
      %v885 = vadd.f32 %v787, %v853
      %v886 = vld [vmem:[%s297 + $0x6] sm:$0xff]
      %v887 = vld [vmem:[%s297 + $0xe] sm:$0xff]
      %v888 = vld [vmem:[%s297 + $0x1e] sm:$0xff]
      %v889 = vld [vmem:[%s297 + $0x26] sm:$0xff]
      %v890 = vld [vmem:[%s297 + $0x36] sm:$0xff]
      %v891 = vld [vmem:[%s297 + $0x3e] sm:$0xff]
      %v892 = vld [vmem:[%s297 + $0x4e] sm:$0xff]
      %v893 = vld [vmem:[%s297 + $0x56] sm:$0xff]
      %v894 = vld [vmem:[%s297 + $0x66] sm:$0xff]
      %v895 = vld [vmem:[%s297 + $0x6e] sm:$0xff]
      %v896 = vld [vmem:[%s297 + $0x7e] sm:$0xff]
      %v897 = vld [vmem:[%s297 + $0x86] sm:$0xff]
      %v898 = vld [vmem:[%s297 + $0x96] sm:$0xff]
      %v899 = vld [vmem:[%s297 + $0x9e] sm:$0xff]
      %v900 = vld [vmem:[%s297 + $0xae] sm:$0xff]
      %v901 = vld [vmem:[%s297 + $0xb6] sm:$0xff]
      %v902 = vld [vmem:[%s297 + $0xc6] sm:$0xff]
      %v903 = vld [vmem:[%s297 + $0xce] sm:$0xff]
      %v904 = vld [vmem:[%s297 + $0xde] sm:$0xff]
      %v905 = vld [vmem:[%s297 + $0xe6] sm:$0xff]
      %v906 = vld [vmem:[%s297 + $0xf6] sm:$0xff]
      %v907 = vld [vmem:[%s297 + $0xfe] sm:$0xff]
      %v908 = vld [vmem:[%s297 + $0x10e] sm:$0xff]
      %v909 = vld [vmem:[%s297 + $0x116] sm:$0xff]
      %v910 = vld [vmem:[%s297 + $0x126] sm:$0xff]
      %v911 = vld [vmem:[%s297 + $0x12e] sm:$0xff]
      %v912 = vld [vmem:[%s297 + $0x13e] sm:$0xff]
      %v913 = vld [vmem:[%s297 + $0x146] sm:$0xff]
      %v914 = vld [vmem:[%s297 + $0x156] sm:$0xff]
      %v915 = vld [vmem:[%s297 + $0x15e] sm:$0xff]
      %v916 = vld [vmem:[%s297 + $0x16e] sm:$0xff]
      %v917 = vld [vmem:[%s297 + $0x176] sm:$0xff]
      %v918 = vld [vmem:[%s1 + $0x6] sm:$0x1]
      %v919 = vperm.slane %v918, 0
      %v920 = vmul.f32 %v886, %v919
      %v921 = vmul.f32 %v887, %v919
      %v922 = vmul.f32 %v888, %v919
      %v923 = vmul.f32 %v889, %v919
      %v924 = vmul.f32 %v890, %v919
      %v925 = vmul.f32 %v891, %v919
      %v926 = vmul.f32 %v892, %v919
      %v927 = vmul.f32 %v893, %v919
      %v928 = vmul.f32 %v894, %v919
      %v929 = vmul.f32 %v895, %v919
      %v930 = vmul.f32 %v896, %v919
      %v931 = vmul.f32 %v897, %v919
      %v932 = vmul.f32 %v898, %v919
      %v933 = vmul.f32 %v899, %v919
      %v934 = vmul.f32 %v900, %v919
      %v935 = vmul.f32 %v901, %v919
      %v936 = vmul.f32 %v902, %v919
      %v937 = vmul.f32 %v903, %v919
      %v938 = vmul.f32 %v904, %v919
      %v939 = vmul.f32 %v905, %v919
      %v940 = vmul.f32 %v906, %v919
      %v941 = vmul.f32 %v907, %v919
      %v942 = vmul.f32 %v908, %v919
      %v943 = vmul.f32 %v909, %v919
      %v944 = vmul.f32 %v910, %v919
      %v945 = vmul.f32 %v911, %v919
      %v946 = vmul.f32 %v912, %v919
      %v947 = vmul.f32 %v913, %v919
      %v948 = vmul.f32 %v914, %v919
      %v949 = vmul.f32 %v915, %v919
      %v950 = vmul.f32 %v916, %v919
      %v951 = vmul.f32 %v917, %v919
      %v952 = vadd.f32 %v854, %v920
      %v953 = vadd.f32 %v855, %v921
      %v954 = vadd.f32 %v856, %v922
      %v955 = vadd.f32 %v857, %v923
      %v956 = vadd.f32 %v858, %v924
      %v957 = vadd.f32 %v859, %v925
      %v958 = vadd.f32 %v860, %v926
      %v959 = vadd.f32 %v861, %v927
      %v960 = vadd.f32 %v862, %v928
      %v961 = vadd.f32 %v863, %v929
      %v962 = vadd.f32 %v864, %v930
      %v963 = vadd.f32 %v865, %v931
      %v964 = vadd.f32 %v866, %v932
      %v965 = vadd.f32 %v867, %v933
      %v966 = vadd.f32 %v868, %v934
      %v967 = vadd.f32 %v869, %v935
      %v968 = vadd.f32 %v870, %v936
      %v969 = vadd.f32 %v871, %v937
      %v970 = vadd.f32 %v872, %v938
      %v971 = vadd.f32 %v873, %v939
      %v972 = vadd.f32 %v874, %v940
      %v973 = vadd.f32 %v875, %v941
      %v974 = vadd.f32 %v876, %v942
      %v975 = vadd.f32 %v877, %v943
      %v976 = vadd.f32 %v878, %v944
      %v977 = vadd.f32 %v879, %v945
      %v978 = vadd.f32 %v880, %v946
      %v979 = vadd.f32 %v881, %v947
      %v980 = vadd.f32 %v882, %v948
      %v981 = vadd.f32 %v883, %v949
      %v982 = vadd.f32 %v884, %v950
      %v983 = vadd.f32 %v885, %v951
      %s984 = sadd.s32 0, 1
      %s985 = smul.u32 %s984, 24
      %s986 = scalar_lea.vmem [#allocation2], %s985
      %v987 = vld [vmem:[%s986] sm:$0xff]
      %v988 = vld [vmem:[%s986 + $0x8] sm:$0xff]
      %v989 = vld [vmem:[%s986 + $0x18] sm:$0xff]
      %v990 = vld [vmem:[%s986 + $0x20] sm:$0xff]
      %v991 = vld [vmem:[%s986 + $0x30] sm:$0xff]
      %v992 = vld [vmem:[%s986 + $0x38] sm:$0xff]
      %v993 = vld [vmem:[%s986 + $0x48] sm:$0xff]
      %v994 = vld [vmem:[%s986 + $0x50] sm:$0xff]
      %v995 = vld [vmem:[%s986 + $0x60] sm:$0xff]
      %v996 = vld [vmem:[%s986 + $0x68] sm:$0xff]
      %v997 = vld [vmem:[%s986 + $0x78] sm:$0xff]
      %v998 = vld [vmem:[%s986 + $0x80] sm:$0xff]
      %v999 = vld [vmem:[%s986 + $0x90] sm:$0xff]
      %v1000 = vld [vmem:[%s986 + $0x98] sm:$0xff]
      %v1001 = vld [vmem:[%s986 + $0xa8] sm:$0xff]
      %v1002 = vld [vmem:[%s986 + $0xb0] sm:$0xff]
      %v1003 = vld [vmem:[%s986 + $0xc0] sm:$0xff]
      %v1004 = vld [vmem:[%s986 + $0xc8] sm:$0xff]
      %v1005 = vld [vmem:[%s986 + $0xd8] sm:$0xff]
      %v1006 = vld [vmem:[%s986 + $0xe0] sm:$0xff]
      %v1007 = vld [vmem:[%s986 + $0xf0] sm:$0xff]
      %v1008 = vld [vmem:[%s986 + $0xf8] sm:$0xff]
      %v1009 = vld [vmem:[%s986 + $0x108] sm:$0xff]
      %v1010 = vld [vmem:[%s986 + $0x110] sm:$0xff]
      %v1011 = vld [vmem:[%s986 + $0x120] sm:$0xff]
      %v1012 = vld [vmem:[%s986 + $0x128] sm:$0xff]
      %v1013 = vld [vmem:[%s986 + $0x138] sm:$0xff]
      %v1014 = vld [vmem:[%s986 + $0x140] sm:$0xff]
      %v1015 = vld [vmem:[%s986 + $0x150] sm:$0xff]
      %v1016 = vld [vmem:[%s986 + $0x158] sm:$0xff]
      %v1017 = vld [vmem:[%s986 + $0x168] sm:$0xff]
      %v1018 = vld [vmem:[%s986 + $0x170] sm:$0xff]
      %s1019 = scalar_lea.vmem %s1, 8
      %v1020 = vld [vmem:[%s1019] sm:$0x1]
      %v1021 = vperm.slane %v1020, 0
      %v1022 = vmul.f32 %v987, %v1021
      %v1023 = vmul.f32 %v988, %v1021
      %v1024 = vmul.f32 %v989, %v1021
      %v1025 = vmul.f32 %v990, %v1021
      %v1026 = vmul.f32 %v991, %v1021
      %v1027 = vmul.f32 %v992, %v1021
      %v1028 = vmul.f32 %v993, %v1021
      %v1029 = vmul.f32 %v994, %v1021
      %v1030 = vmul.f32 %v995, %v1021
      %v1031 = vmul.f32 %v996, %v1021
      %v1032 = vmul.f32 %v997, %v1021
      %v1033 = vmul.f32 %v998, %v1021
      %v1034 = vmul.f32 %v999, %v1021
      %v1035 = vmul.f32 %v1000, %v1021
      %v1036 = vmul.f32 %v1001, %v1021
      %v1037 = vmul.f32 %v1002, %v1021
      %v1038 = vmul.f32 %v1003, %v1021
      %v1039 = vmul.f32 %v1004, %v1021
      %v1040 = vmul.f32 %v1005, %v1021
      %v1041 = vmul.f32 %v1006, %v1021
      %v1042 = vmul.f32 %v1007, %v1021
      %v1043 = vmul.f32 %v1008, %v1021
      %v1044 = vmul.f32 %v1009, %v1021
      %v1045 = vmul.f32 %v1010, %v1021
      %v1046 = vmul.f32 %v1011, %v1021
      %v1047 = vmul.f32 %v1012, %v1021
      %v1048 = vmul.f32 %v1013, %v1021
      %v1049 = vmul.f32 %v1014, %v1021
      %v1050 = vmul.f32 %v1015, %v1021
      %v1051 = vmul.f32 %v1016, %v1021
      %v1052 = vmul.f32 %v1017, %v1021
      %v1053 = vmul.f32 %v1018, %v1021
      %v1054 = vadd.f32 %v952, %v1022
      %v1055 = vadd.f32 %v953, %v1023
      %v1056 = vadd.f32 %v954, %v1024
      %v1057 = vadd.f32 %v955, %v1025
      %v1058 = vadd.f32 %v956, %v1026
      %v1059 = vadd.f32 %v957, %v1027
      %v1060 = vadd.f32 %v958, %v1028
      %v1061 = vadd.f32 %v959, %v1029
      %v1062 = vadd.f32 %v960, %v1030
      %v1063 = vadd.f32 %v961, %v1031
      %v1064 = vadd.f32 %v962, %v1032
      %v1065 = vadd.f32 %v963, %v1033
      %v1066 = vadd.f32 %v964, %v1034
      %v1067 = vadd.f32 %v965, %v1035
      %v1068 = vadd.f32 %v966, %v1036
      %v1069 = vadd.f32 %v967, %v1037
      %v1070 = vadd.f32 %v968, %v1038
      %v1071 = vadd.f32 %v969, %v1039
      %v1072 = vadd.f32 %v970, %v1040
      %v1073 = vadd.f32 %v971, %v1041
      %v1074 = vadd.f32 %v972, %v1042
      %v1075 = vadd.f32 %v973, %v1043
      %v1076 = vadd.f32 %v974, %v1044
      %v1077 = vadd.f32 %v975, %v1045
      %v1078 = vadd.f32 %v976, %v1046
      %v1079 = vadd.f32 %v977, %v1047
      %v1080 = vadd.f32 %v978, %v1048
      %v1081 = vadd.f32 %v979, %v1049
      %v1082 = vadd.f32 %v980, %v1050
      %v1083 = vadd.f32 %v981, %v1051
      %v1084 = vadd.f32 %v982, %v1052
      %v1085 = vadd.f32 %v983, %v1053
      %v1086 = vld [vmem:[%s986 + $0x1] sm:$0xff]
      %v1087 = vld [vmem:[%s986 + $0x9] sm:$0xff]
      %v1088 = vld [vmem:[%s986 + $0x19] sm:$0xff]
      %v1089 = vld [vmem:[%s986 + $0x21] sm:$0xff]
      %v1090 = vld [vmem:[%s986 + $0x31] sm:$0xff]
      %v1091 = vld [vmem:[%s986 + $0x39] sm:$0xff]
      %v1092 = vld [vmem:[%s986 + $0x49] sm:$0xff]
      %v1093 = vld [vmem:[%s986 + $0x51] sm:$0xff]
      %v1094 = vld [vmem:[%s986 + $0x61] sm:$0xff]
      %v1095 = vld [vmem:[%s986 + $0x69] sm:$0xff]
      %v1096 = vld [vmem:[%s986 + $0x79] sm:$0xff]
      %v1097 = vld [vmem:[%s986 + $0x81] sm:$0xff]
      %v1098 = vld [vmem:[%s986 + $0x91] sm:$0xff]
      %v1099 = vld [vmem:[%s986 + $0x99] sm:$0xff]
      %v1100 = vld [vmem:[%s986 + $0xa9] sm:$0xff]
      %v1101 = vld [vmem:[%s986 + $0xb1] sm:$0xff]
      %v1102 = vld [vmem:[%s986 + $0xc1] sm:$0xff]
      %v1103 = vld [vmem:[%s986 + $0xc9] sm:$0xff]
      %v1104 = vld [vmem:[%s986 + $0xd9] sm:$0xff]
      %v1105 = vld [vmem:[%s986 + $0xe1] sm:$0xff]
      %v1106 = vld [vmem:[%s986 + $0xf1] sm:$0xff]
      %v1107 = vld [vmem:[%s986 + $0xf9] sm:$0xff]
      %v1108 = vld [vmem:[%s986 + $0x109] sm:$0xff]
      %v1109 = vld [vmem:[%s986 + $0x111] sm:$0xff]
      %v1110 = vld [vmem:[%s986 + $0x121] sm:$0xff]
      %v1111 = vld [vmem:[%s986 + $0x129] sm:$0xff]
      %v1112 = vld [vmem:[%s986 + $0x139] sm:$0xff]
      %v1113 = vld [vmem:[%s986 + $0x141] sm:$0xff]
      %v1114 = vld [vmem:[%s986 + $0x151] sm:$0xff]
      %v1115 = vld [vmem:[%s986 + $0x159] sm:$0xff]
      %v1116 = vld [vmem:[%s986 + $0x169] sm:$0xff]
      %v1117 = vld [vmem:[%s986 + $0x171] sm:$0xff]
      %v1118 = vld [vmem:[%s1019 + $0x1] sm:$0x1]
      %v1119 = vperm.slane %v1118, 0
      %v1120 = vmul.f32 %v1086, %v1119
      %v1121 = vmul.f32 %v1087, %v1119
      %v1122 = vmul.f32 %v1088, %v1119
      %v1123 = vmul.f32 %v1089, %v1119
      %v1124 = vmul.f32 %v1090, %v1119
      %v1125 = vmul.f32 %v1091, %v1119
      %v1126 = vmul.f32 %v1092, %v1119
      %v1127 = vmul.f32 %v1093, %v1119
      %v1128 = vmul.f32 %v1094, %v1119
      %v1129 = vmul.f32 %v1095, %v1119
      %v1130 = vmul.f32 %v1096, %v1119
      %v1131 = vmul.f32 %v1097, %v1119
      %v1132 = vmul.f32 %v1098, %v1119
      %v1133 = vmul.f32 %v1099, %v1119
      %v1134 = vmul.f32 %v1100, %v1119
      %v1135 = vmul.f32 %v1101, %v1119
      %v1136 = vmul.f32 %v1102, %v1119
      %v1137 = vmul.f32 %v1103, %v1119
      %v1138 = vmul.f32 %v1104, %v1119
      %v1139 = vmul.f32 %v1105, %v1119
      %v1140 = vmul.f32 %v1106, %v1119
      %v1141 = vmul.f32 %v1107, %v1119
      %v1142 = vmul.f32 %v1108, %v1119
      %v1143 = vmul.f32 %v1109, %v1119
      %v1144 = vmul.f32 %v1110, %v1119
      %v1145 = vmul.f32 %v1111, %v1119
      %v1146 = vmul.f32 %v1112, %v1119
      %v1147 = vmul.f32 %v1113, %v1119
      %v1148 = vmul.f32 %v1114, %v1119
      %v1149 = vmul.f32 %v1115, %v1119
      %v1150 = vmul.f32 %v1116, %v1119
      %v1151 = vmul.f32 %v1117, %v1119
      %v1152 = vadd.f32 %v1054, %v1120
      %v1153 = vadd.f32 %v1055, %v1121
      %v1154 = vadd.f32 %v1056, %v1122
      %v1155 = vadd.f32 %v1057, %v1123
      %v1156 = vadd.f32 %v1058, %v1124
      %v1157 = vadd.f32 %v1059, %v1125
      %v1158 = vadd.f32 %v1060, %v1126
      %v1159 = vadd.f32 %v1061, %v1127
      %v1160 = vadd.f32 %v1062, %v1128
      %v1161 = vadd.f32 %v1063, %v1129
      %v1162 = vadd.f32 %v1064, %v1130
      %v1163 = vadd.f32 %v1065, %v1131
      %v1164 = vadd.f32 %v1066, %v1132
      %v1165 = vadd.f32 %v1067, %v1133
      %v1166 = vadd.f32 %v1068, %v1134
      %v1167 = vadd.f32 %v1069, %v1135
      %v1168 = vadd.f32 %v1070, %v1136
      %v1169 = vadd.f32 %v1071, %v1137
      %v1170 = vadd.f32 %v1072, %v1138
      %v1171 = vadd.f32 %v1073, %v1139
      %v1172 = vadd.f32 %v1074, %v1140
      %v1173 = vadd.f32 %v1075, %v1141
      %v1174 = vadd.f32 %v1076, %v1142
      %v1175 = vadd.f32 %v1077, %v1143
      %v1176 = vadd.f32 %v1078, %v1144
      %v1177 = vadd.f32 %v1079, %v1145
      %v1178 = vadd.f32 %v1080, %v1146
      %v1179 = vadd.f32 %v1081, %v1147
      %v1180 = vadd.f32 %v1082, %v1148
      %v1181 = vadd.f32 %v1083, %v1149
      %v1182 = vadd.f32 %v1084, %v1150
      %v1183 = vadd.f32 %v1085, %v1151
      %v1184 = vld [vmem:[%s986 + $0x2] sm:$0xff]
      %v1185 = vld [vmem:[%s986 + $0xa] sm:$0xff]
      %v1186 = vld [vmem:[%s986 + $0x1a] sm:$0xff]
      %v1187 = vld [vmem:[%s986 + $0x22] sm:$0xff]
      %v1188 = vld [vmem:[%s986 + $0x32] sm:$0xff]
      %v1189 = vld [vmem:[%s986 + $0x3a] sm:$0xff]
      %v1190 = vld [vmem:[%s986 + $0x4a] sm:$0xff]
      %v1191 = vld [vmem:[%s986 + $0x52] sm:$0xff]
      %v1192 = vld [vmem:[%s986 + $0x62] sm:$0xff]
      %v1193 = vld [vmem:[%s986 + $0x6a] sm:$0xff]
      %v1194 = vld [vmem:[%s986 + $0x7a] sm:$0xff]
      %v1195 = vld [vmem:[%s986 + $0x82] sm:$0xff]
      %v1196 = vld [vmem:[%s986 + $0x92] sm:$0xff]
      %v1197 = vld [vmem:[%s986 + $0x9a] sm:$0xff]
      %v1198 = vld [vmem:[%s986 + $0xaa] sm:$0xff]
      %v1199 = vld [vmem:[%s986 + $0xb2] sm:$0xff]
      %v1200 = vld [vmem:[%s986 + $0xc2] sm:$0xff]
      %v1201 = vld [vmem:[%s986 + $0xca] sm:$0xff]
      %v1202 = vld [vmem:[%s986 + $0xda] sm:$0xff]
      %v1203 = vld [vmem:[%s986 + $0xe2] sm:$0xff]
      %v1204 = vld [vmem:[%s986 + $0xf2] sm:$0xff]
      %v1205 = vld [vmem:[%s986 + $0xfa] sm:$0xff]
      %v1206 = vld [vmem:[%s986 + $0x10a] sm:$0xff]
      %v1207 = vld [vmem:[%s986 + $0x112] sm:$0xff]
      %v1208 = vld [vmem:[%s986 + $0x122] sm:$0xff]
      %v1209 = vld [vmem:[%s986 + $0x12a] sm:$0xff]
      %v1210 = vld [vmem:[%s986 + $0x13a] sm:$0xff]
      %v1211 = vld [vmem:[%s986 + $0x142] sm:$0xff]
      %v1212 = vld [vmem:[%s986 + $0x152] sm:$0xff]
      %v1213 = vld [vmem:[%s986 + $0x15a] sm:$0xff]
      %v1214 = vld [vmem:[%s986 + $0x16a] sm:$0xff]
      %v1215 = vld [vmem:[%s986 + $0x172] sm:$0xff]
      %v1216 = vld [vmem:[%s1019 + $0x2] sm:$0x1]
      %v1217 = vperm.slane %v1216, 0
      %v1218 = vmul.f32 %v1184, %v1217
      %v1219 = vmul.f32 %v1185, %v1217
      %v1220 = vmul.f32 %v1186, %v1217
      %v1221 = vmul.f32 %v1187, %v1217
      %v1222 = vmul.f32 %v1188, %v1217
      %v1223 = vmul.f32 %v1189, %v1217
      %v1224 = vmul.f32 %v1190, %v1217
      %v1225 = vmul.f32 %v1191, %v1217
      %v1226 = vmul.f32 %v1192, %v1217
      %v1227 = vmul.f32 %v1193, %v1217
      %v1228 = vmul.f32 %v1194, %v1217
      %v1229 = vmul.f32 %v1195, %v1217
      %v1230 = vmul.f32 %v1196, %v1217
      %v1231 = vmul.f32 %v1197, %v1217
      %v1232 = vmul.f32 %v1198, %v1217
      %v1233 = vmul.f32 %v1199, %v1217
      %v1234 = vmul.f32 %v1200, %v1217
      %v1235 = vmul.f32 %v1201, %v1217
      %v1236 = vmul.f32 %v1202, %v1217
      %v1237 = vmul.f32 %v1203, %v1217
      %v1238 = vmul.f32 %v1204, %v1217
      %v1239 = vmul.f32 %v1205, %v1217
      %v1240 = vmul.f32 %v1206, %v1217
      %v1241 = vmul.f32 %v1207, %v1217
      %v1242 = vmul.f32 %v1208, %v1217
      %v1243 = vmul.f32 %v1209, %v1217
      %v1244 = vmul.f32 %v1210, %v1217
      %v1245 = vmul.f32 %v1211, %v1217
      %v1246 = vmul.f32 %v1212, %v1217
      %v1247 = vmul.f32 %v1213, %v1217
      %v1248 = vmul.f32 %v1214, %v1217
      %v1249 = vmul.f32 %v1215, %v1217
      %v1250 = vadd.f32 %v1152, %v1218
      %v1251 = vadd.f32 %v1153, %v1219
      %v1252 = vadd.f32 %v1154, %v1220
      %v1253 = vadd.f32 %v1155, %v1221
      %v1254 = vadd.f32 %v1156, %v1222
      %v1255 = vadd.f32 %v1157, %v1223
      %v1256 = vadd.f32 %v1158, %v1224
      %v1257 = vadd.f32 %v1159, %v1225
      %v1258 = vadd.f32 %v1160, %v1226
      %v1259 = vadd.f32 %v1161, %v1227
      %v1260 = vadd.f32 %v1162, %v1228
      %v1261 = vadd.f32 %v1163, %v1229
      %v1262 = vadd.f32 %v1164, %v1230
      %v1263 = vadd.f32 %v1165, %v1231
      %v1264 = vadd.f32 %v1166, %v1232
      %v1265 = vadd.f32 %v1167, %v1233
      %v1266 = vadd.f32 %v1168, %v1234
      %v1267 = vadd.f32 %v1169, %v1235
      %v1268 = vadd.f32 %v1170, %v1236
      %v1269 = vadd.f32 %v1171, %v1237
      %v1270 = vadd.f32 %v1172, %v1238
      %v1271 = vadd.f32 %v1173, %v1239
      %v1272 = vadd.f32 %v1174, %v1240
      %v1273 = vadd.f32 %v1175, %v1241
      %v1274 = vadd.f32 %v1176, %v1242
      %v1275 = vadd.f32 %v1177, %v1243
      %v1276 = vadd.f32 %v1178, %v1244
      %v1277 = vadd.f32 %v1179, %v1245
      %v1278 = vadd.f32 %v1180, %v1246
      %v1279 = vadd.f32 %v1181, %v1247
      %v1280 = vadd.f32 %v1182, %v1248
      %v1281 = vadd.f32 %v1183, %v1249
      %v1282 = vld [vmem:[%s986 + $0x3] sm:$0xff]
      %v1283 = vld [vmem:[%s986 + $0xb] sm:$0xff]
      %v1284 = vld [vmem:[%s986 + $0x1b] sm:$0xff]
      %v1285 = vld [vmem:[%s986 + $0x23] sm:$0xff]
      %v1286 = vld [vmem:[%s986 + $0x33] sm:$0xff]
      %v1287 = vld [vmem:[%s986 + $0x3b] sm:$0xff]
      %v1288 = vld [vmem:[%s986 + $0x4b] sm:$0xff]
      %v1289 = vld [vmem:[%s986 + $0x53] sm:$0xff]
      %v1290 = vld [vmem:[%s986 + $0x63] sm:$0xff]
      %v1291 = vld [vmem:[%s986 + $0x6b] sm:$0xff]
      %v1292 = vld [vmem:[%s986 + $0x7b] sm:$0xff]
      %v1293 = vld [vmem:[%s986 + $0x83] sm:$0xff]
      %v1294 = vld [vmem:[%s986 + $0x93] sm:$0xff]
      %v1295 = vld [vmem:[%s986 + $0x9b] sm:$0xff]
      %v1296 = vld [vmem:[%s986 + $0xab] sm:$0xff]
      %v1297 = vld [vmem:[%s986 + $0xb3] sm:$0xff]
      %v1298 = vld [vmem:[%s986 + $0xc3] sm:$0xff]
      %v1299 = vld [vmem:[%s986 + $0xcb] sm:$0xff]
      %v1300 = vld [vmem:[%s986 + $0xdb] sm:$0xff]
      %v1301 = vld [vmem:[%s986 + $0xe3] sm:$0xff]
      %v1302 = vld [vmem:[%s986 + $0xf3] sm:$0xff]
      %v1303 = vld [vmem:[%s986 + $0xfb] sm:$0xff]
      %v1304 = vld [vmem:[%s986 + $0x10b] sm:$0xff]
      %v1305 = vld [vmem:[%s986 + $0x113] sm:$0xff]
      %v1306 = vld [vmem:[%s986 + $0x123] sm:$0xff]
      %v1307 = vld [vmem:[%s986 + $0x12b] sm:$0xff]
      %v1308 = vld [vmem:[%s986 + $0x13b] sm:$0xff]
      %v1309 = vld [vmem:[%s986 + $0x143] sm:$0xff]
      %v1310 = vld [vmem:[%s986 + $0x153] sm:$0xff]
      %v1311 = vld [vmem:[%s986 + $0x15b] sm:$0xff]
      %v1312 = vld [vmem:[%s986 + $0x16b] sm:$0xff]
      %v1313 = vld [vmem:[%s986 + $0x173] sm:$0xff]
      %v1314 = vld [vmem:[%s1019 + $0x3] sm:$0x1]
      %v1315 = vperm.slane %v1314, 0
      %v1316 = vmul.f32 %v1282, %v1315
      %v1317 = vmul.f32 %v1283, %v1315
      %v1318 = vmul.f32 %v1284, %v1315
      %v1319 = vmul.f32 %v1285, %v1315
      %v1320 = vmul.f32 %v1286, %v1315
      %v1321 = vmul.f32 %v1287, %v1315
      %v1322 = vmul.f32 %v1288, %v1315
      %v1323 = vmul.f32 %v1289, %v1315
      %v1324 = vmul.f32 %v1290, %v1315
      %v1325 = vmul.f32 %v1291, %v1315
      %v1326 = vmul.f32 %v1292, %v1315
      %v1327 = vmul.f32 %v1293, %v1315
      %v1328 = vmul.f32 %v1294, %v1315
      %v1329 = vmul.f32 %v1295, %v1315
      %v1330 = vmul.f32 %v1296, %v1315
      %v1331 = vmul.f32 %v1297, %v1315
      %v1332 = vmul.f32 %v1298, %v1315
      %v1333 = vmul.f32 %v1299, %v1315
      %v1334 = vmul.f32 %v1300, %v1315
      %v1335 = vmul.f32 %v1301, %v1315
      %v1336 = vmul.f32 %v1302, %v1315
      %v1337 = vmul.f32 %v1303, %v1315
      %v1338 = vmul.f32 %v1304, %v1315
      %v1339 = vmul.f32 %v1305, %v1315
      %v1340 = vmul.f32 %v1306, %v1315
      %v1341 = vmul.f32 %v1307, %v1315
      %v1342 = vmul.f32 %v1308, %v1315
      %v1343 = vmul.f32 %v1309, %v1315
      %v1344 = vmul.f32 %v1310, %v1315
      %v1345 = vmul.f32 %v1311, %v1315
      %v1346 = vmul.f32 %v1312, %v1315
      %v1347 = vmul.f32 %v1313, %v1315
      %v1348 = vadd.f32 %v1250, %v1316
      %v1349 = vadd.f32 %v1251, %v1317
      %v1350 = vadd.f32 %v1252, %v1318
      %v1351 = vadd.f32 %v1253, %v1319
      %v1352 = vadd.f32 %v1254, %v1320
      %v1353 = vadd.f32 %v1255, %v1321
      %v1354 = vadd.f32 %v1256, %v1322
      %v1355 = vadd.f32 %v1257, %v1323
      %v1356 = vadd.f32 %v1258, %v1324
      %v1357 = vadd.f32 %v1259, %v1325
      %v1358 = vadd.f32 %v1260, %v1326
      %v1359 = vadd.f32 %v1261, %v1327
      %v1360 = vadd.f32 %v1262, %v1328
      %v1361 = vadd.f32 %v1263, %v1329
      %v1362 = vadd.f32 %v1264, %v1330
      %v1363 = vadd.f32 %v1265, %v1331
      %v1364 = vadd.f32 %v1266, %v1332
      %v1365 = vadd.f32 %v1267, %v1333
      %v1366 = vadd.f32 %v1268, %v1334
      %v1367 = vadd.f32 %v1269, %v1335
      %v1368 = vadd.f32 %v1270, %v1336
      %v1369 = vadd.f32 %v1271, %v1337
      %v1370 = vadd.f32 %v1272, %v1338
      %v1371 = vadd.f32 %v1273, %v1339
      %v1372 = vadd.f32 %v1274, %v1340
      %v1373 = vadd.f32 %v1275, %v1341
      %v1374 = vadd.f32 %v1276, %v1342
      %v1375 = vadd.f32 %v1277, %v1343
      %v1376 = vadd.f32 %v1278, %v1344
      %v1377 = vadd.f32 %v1279, %v1345
      %v1378 = vadd.f32 %v1280, %v1346
      %v1379 = vadd.f32 %v1281, %v1347
      %v1380 = vld [vmem:[%s986 + $0x4] sm:$0xff]
      %v1381 = vld [vmem:[%s986 + $0xc] sm:$0xff]
      %v1382 = vld [vmem:[%s986 + $0x1c] sm:$0xff]
      %v1383 = vld [vmem:[%s986 + $0x24] sm:$0xff]
      %v1384 = vld [vmem:[%s986 + $0x34] sm:$0xff]
      %v1385 = vld [vmem:[%s986 + $0x3c] sm:$0xff]
      %v1386 = vld [vmem:[%s986 + $0x4c] sm:$0xff]
      %v1387 = vld [vmem:[%s986 + $0x54] sm:$0xff]
      %v1388 = vld [vmem:[%s986 + $0x64] sm:$0xff]
      %v1389 = vld [vmem:[%s986 + $0x6c] sm:$0xff]
      %v1390 = vld [vmem:[%s986 + $0x7c] sm:$0xff]
      %v1391 = vld [vmem:[%s986 + $0x84] sm:$0xff]
      %v1392 = vld [vmem:[%s986 + $0x94] sm:$0xff]
      %v1393 = vld [vmem:[%s986 + $0x9c] sm:$0xff]
      %v1394 = vld [vmem:[%s986 + $0xac] sm:$0xff]
      %v1395 = vld [vmem:[%s986 + $0xb4] sm:$0xff]
      %v1396 = vld [vmem:[%s986 + $0xc4] sm:$0xff]
      %v1397 = vld [vmem:[%s986 + $0xcc] sm:$0xff]
      %v1398 = vld [vmem:[%s986 + $0xdc] sm:$0xff]
      %v1399 = vld [vmem:[%s986 + $0xe4] sm:$0xff]
      %v1400 = vld [vmem:[%s986 + $0xf4] sm:$0xff]
      %v1401 = vld [vmem:[%s986 + $0xfc] sm:$0xff]
      %v1402 = vld [vmem:[%s986 + $0x10c] sm:$0xff]
      %v1403 = vld [vmem:[%s986 + $0x114] sm:$0xff]
      %v1404 = vld [vmem:[%s986 + $0x124] sm:$0xff]
      %v1405 = vld [vmem:[%s986 + $0x12c] sm:$0xff]
      %v1406 = vld [vmem:[%s986 + $0x13c] sm:$0xff]
      %v1407 = vld [vmem:[%s986 + $0x144] sm:$0xff]
      %v1408 = vld [vmem:[%s986 + $0x154] sm:$0xff]
      %v1409 = vld [vmem:[%s986 + $0x15c] sm:$0xff]
      %v1410 = vld [vmem:[%s986 + $0x16c] sm:$0xff]
      %v1411 = vld [vmem:[%s986 + $0x174] sm:$0xff]
      %v1412 = vld [vmem:[%s1019 + $0x4] sm:$0x1]
      %v1413 = vperm.slane %v1412, 0
      %v1414 = vmul.f32 %v1380, %v1413
      %v1415 = vmul.f32 %v1381, %v1413
      %v1416 = vmul.f32 %v1382, %v1413
      %v1417 = vmul.f32 %v1383, %v1413
      %v1418 = vmul.f32 %v1384, %v1413
      %v1419 = vmul.f32 %v1385, %v1413
      %v1420 = vmul.f32 %v1386, %v1413
      %v1421 = vmul.f32 %v1387, %v1413
      %v1422 = vmul.f32 %v1388, %v1413
      %v1423 = vmul.f32 %v1389, %v1413
      %v1424 = vmul.f32 %v1390, %v1413
      %v1425 = vmul.f32 %v1391, %v1413
      %v1426 = vmul.f32 %v1392, %v1413
      %v1427 = vmul.f32 %v1393, %v1413
      %v1428 = vmul.f32 %v1394, %v1413
      %v1429 = vmul.f32 %v1395, %v1413
      %v1430 = vmul.f32 %v1396, %v1413
      %v1431 = vmul.f32 %v1397, %v1413
      %v1432 = vmul.f32 %v1398, %v1413
      %v1433 = vmul.f32 %v1399, %v1413
      %v1434 = vmul.f32 %v1400, %v1413
      %v1435 = vmul.f32 %v1401, %v1413
      %v1436 = vmul.f32 %v1402, %v1413
      %v1437 = vmul.f32 %v1403, %v1413
      %v1438 = vmul.f32 %v1404, %v1413
      %v1439 = vmul.f32 %v1405, %v1413
      %v1440 = vmul.f32 %v1406, %v1413
      %v1441 = vmul.f32 %v1407, %v1413
      %v1442 = vmul.f32 %v1408, %v1413
      %v1443 = vmul.f32 %v1409, %v1413
      %v1444 = vmul.f32 %v1410, %v1413
      %v1445 = vmul.f32 %v1411, %v1413
      %v1446 = vadd.f32 %v1348, %v1414
      %v1447 = vadd.f32 %v1349, %v1415
      %v1448 = vadd.f32 %v1350, %v1416
      %v1449 = vadd.f32 %v1351, %v1417
      %v1450 = vadd.f32 %v1352, %v1418
      %v1451 = vadd.f32 %v1353, %v1419
      %v1452 = vadd.f32 %v1354, %v1420
      %v1453 = vadd.f32 %v1355, %v1421
      %v1454 = vadd.f32 %v1356, %v1422
      %v1455 = vadd.f32 %v1357, %v1423
      %v1456 = vadd.f32 %v1358, %v1424
      %v1457 = vadd.f32 %v1359, %v1425
      %v1458 = vadd.f32 %v1360, %v1426
      %v1459 = vadd.f32 %v1361, %v1427
      %v1460 = vadd.f32 %v1362, %v1428
      %v1461 = vadd.f32 %v1363, %v1429
      %v1462 = vadd.f32 %v1364, %v1430
      %v1463 = vadd.f32 %v1365, %v1431
      %v1464 = vadd.f32 %v1366, %v1432
      %v1465 = vadd.f32 %v1367, %v1433
      %v1466 = vadd.f32 %v1368, %v1434
      %v1467 = vadd.f32 %v1369, %v1435
      %v1468 = vadd.f32 %v1370, %v1436
      %v1469 = vadd.f32 %v1371, %v1437
      %v1470 = vadd.f32 %v1372, %v1438
      %v1471 = vadd.f32 %v1373, %v1439
      %v1472 = vadd.f32 %v1374, %v1440
      %v1473 = vadd.f32 %v1375, %v1441
      %v1474 = vadd.f32 %v1376, %v1442
      %v1475 = vadd.f32 %v1377, %v1443
      %v1476 = vadd.f32 %v1378, %v1444
      %v1477 = vadd.f32 %v1379, %v1445
      %v1478 = vld [vmem:[%s986 + $0x5] sm:$0xff]
      %v1479 = vld [vmem:[%s986 + $0xd] sm:$0xff]
      %v1480 = vld [vmem:[%s986 + $0x1d] sm:$0xff]
      %v1481 = vld [vmem:[%s986 + $0x25] sm:$0xff]
      %v1482 = vld [vmem:[%s986 + $0x35] sm:$0xff]
      %v1483 = vld [vmem:[%s986 + $0x3d] sm:$0xff]
      %v1484 = vld [vmem:[%s986 + $0x4d] sm:$0xff]
      %v1485 = vld [vmem:[%s986 + $0x55] sm:$0xff]
      %v1486 = vld [vmem:[%s986 + $0x65] sm:$0xff]
      %v1487 = vld [vmem:[%s986 + $0x6d] sm:$0xff]
      %v1488 = vld [vmem:[%s986 + $0x7d] sm:$0xff]
      %v1489 = vld [vmem:[%s986 + $0x85] sm:$0xff]
      %v1490 = vld [vmem:[%s986 + $0x95] sm:$0xff]
      %v1491 = vld [vmem:[%s986 + $0x9d] sm:$0xff]
      %v1492 = vld [vmem:[%s986 + $0xad] sm:$0xff]
      %v1493 = vld [vmem:[%s986 + $0xb5] sm:$0xff]
      %v1494 = vld [vmem:[%s986 + $0xc5] sm:$0xff]
      %v1495 = vld [vmem:[%s986 + $0xcd] sm:$0xff]
      %v1496 = vld [vmem:[%s986 + $0xdd] sm:$0xff]
      %v1497 = vld [vmem:[%s986 + $0xe5] sm:$0xff]
      %v1498 = vld [vmem:[%s986 + $0xf5] sm:$0xff]
      %v1499 = vld [vmem:[%s986 + $0xfd] sm:$0xff]
      %v1500 = vld [vmem:[%s986 + $0x10d] sm:$0xff]
      %v1501 = vld [vmem:[%s986 + $0x115] sm:$0xff]
      %v1502 = vld [vmem:[%s986 + $0x125] sm:$0xff]
      %v1503 = vld [vmem:[%s986 + $0x12d] sm:$0xff]
      %v1504 = vld [vmem:[%s986 + $0x13d] sm:$0xff]
      %v1505 = vld [vmem:[%s986 + $0x145] sm:$0xff]
      %v1506 = vld [vmem:[%s986 + $0x155] sm:$0xff]
      %v1507 = vld [vmem:[%s986 + $0x15d] sm:$0xff]
      %v1508 = vld [vmem:[%s986 + $0x16d] sm:$0xff]
      %v1509 = vld [vmem:[%s986 + $0x175] sm:$0xff]
      %v1510 = vld [vmem:[%s1019 + $0x5] sm:$0x1]
      %v1511 = vperm.slane %v1510, 0
      %v1512 = vmul.f32 %v1478, %v1511
      %v1513 = vmul.f32 %v1479, %v1511
      %v1514 = vmul.f32 %v1480, %v1511
      %v1515 = vmul.f32 %v1481, %v1511
      %v1516 = vmul.f32 %v1482, %v1511
      %v1517 = vmul.f32 %v1483, %v1511
      %v1518 = vmul.f32 %v1484, %v1511
      %v1519 = vmul.f32 %v1485, %v1511
      %v1520 = vmul.f32 %v1486, %v1511
      %v1521 = vmul.f32 %v1487, %v1511
      %v1522 = vmul.f32 %v1488, %v1511
      %v1523 = vmul.f32 %v1489, %v1511
      %v1524 = vmul.f32 %v1490, %v1511
      %v1525 = vmul.f32 %v1491, %v1511
      %v1526 = vmul.f32 %v1492, %v1511
      %v1527 = vmul.f32 %v1493, %v1511
      %v1528 = vmul.f32 %v1494, %v1511
      %v1529 = vmul.f32 %v1495, %v1511
      %v1530 = vmul.f32 %v1496, %v1511
      %v1531 = vmul.f32 %v1497, %v1511
      %v1532 = vmul.f32 %v1498, %v1511
      %v1533 = vmul.f32 %v1499, %v1511
      %v1534 = vmul.f32 %v1500, %v1511
      %v1535 = vmul.f32 %v1501, %v1511
      %v1536 = vmul.f32 %v1502, %v1511
      %v1537 = vmul.f32 %v1503, %v1511
      %v1538 = vmul.f32 %v1504, %v1511
      %v1539 = vmul.f32 %v1505, %v1511
      %v1540 = vmul.f32 %v1506, %v1511
      %v1541 = vmul.f32 %v1507, %v1511
      %v1542 = vmul.f32 %v1508, %v1511
      %v1543 = vmul.f32 %v1509, %v1511
      %v1544 = vadd.f32 %v1446, %v1512
      %v1545 = vadd.f32 %v1447, %v1513
      %v1546 = vadd.f32 %v1448, %v1514
      %v1547 = vadd.f32 %v1449, %v1515
      %v1548 = vadd.f32 %v1450, %v1516
      %v1549 = vadd.f32 %v1451, %v1517
      %v1550 = vadd.f32 %v1452, %v1518
      %v1551 = vadd.f32 %v1453, %v1519
      %v1552 = vadd.f32 %v1454, %v1520
      %v1553 = vadd.f32 %v1455, %v1521
      %v1554 = vadd.f32 %v1456, %v1522
      %v1555 = vadd.f32 %v1457, %v1523
      %v1556 = vadd.f32 %v1458, %v1524
      %v1557 = vadd.f32 %v1459, %v1525
      %v1558 = vadd.f32 %v1460, %v1526
      %v1559 = vadd.f32 %v1461, %v1527
      %v1560 = vadd.f32 %v1462, %v1528
      %v1561 = vadd.f32 %v1463, %v1529
      %v1562 = vadd.f32 %v1464, %v1530
      %v1563 = vadd.f32 %v1465, %v1531
      %v1564 = vadd.f32 %v1466, %v1532
      %v1565 = vadd.f32 %v1467, %v1533
      %v1566 = vadd.f32 %v1468, %v1534
      %v1567 = vadd.f32 %v1469, %v1535
      %v1568 = vadd.f32 %v1470, %v1536
      %v1569 = vadd.f32 %v1471, %v1537
      %v1570 = vadd.f32 %v1472, %v1538
      %v1571 = vadd.f32 %v1473, %v1539
      %v1572 = vadd.f32 %v1474, %v1540
      %v1573 = vadd.f32 %v1475, %v1541
      %v1574 = vadd.f32 %v1476, %v1542
      %v1575 = vadd.f32 %v1477, %v1543
      %v1576 = vld [vmem:[%s986 + $0x6] sm:$0xff]
      %v1577 = vld [vmem:[%s986 + $0xe] sm:$0xff]
      %v1578 = vld [vmem:[%s986 + $0x1e] sm:$0xff]
      %v1579 = vld [vmem:[%s986 + $0x26] sm:$0xff]
      %v1580 = vld [vmem:[%s986 + $0x36] sm:$0xff]
      %v1581 = vld [vmem:[%s986 + $0x3e] sm:$0xff]
      %v1582 = vld [vmem:[%s986 + $0x4e] sm:$0xff]
      %v1583 = vld [vmem:[%s986 + $0x56] sm:$0xff]
      %v1584 = vld [vmem:[%s986 + $0x66] sm:$0xff]
      %v1585 = vld [vmem:[%s986 + $0x6e] sm:$0xff]
      %v1586 = vld [vmem:[%s986 + $0x7e] sm:$0xff]
      %v1587 = vld [vmem:[%s986 + $0x86] sm:$0xff]
      %v1588 = vld [vmem:[%s986 + $0x96] sm:$0xff]
      %v1589 = vld [vmem:[%s986 + $0x9e] sm:$0xff]
      %v1590 = vld [vmem:[%s986 + $0xae] sm:$0xff]
      %v1591 = vld [vmem:[%s986 + $0xb6] sm:$0xff]
      %v1592 = vld [vmem:[%s986 + $0xc6] sm:$0xff]
      %v1593 = vld [vmem:[%s986 + $0xce] sm:$0xff]
      %v1594 = vld [vmem:[%s986 + $0xde] sm:$0xff]
      %v1595 = vld [vmem:[%s986 + $0xe6] sm:$0xff]
      %v1596 = vld [vmem:[%s986 + $0xf6] sm:$0xff]
      %v1597 = vld [vmem:[%s986 + $0xfe] sm:$0xff]
      %v1598 = vld [vmem:[%s986 + $0x10e] sm:$0xff]
      %v1599 = vld [vmem:[%s986 + $0x116] sm:$0xff]
      %v1600 = vld [vmem:[%s986 + $0x126] sm:$0xff]
      %v1601 = vld [vmem:[%s986 + $0x12e] sm:$0xff]
      %v1602 = vld [vmem:[%s986 + $0x13e] sm:$0xff]
      %v1603 = vld [vmem:[%s986 + $0x146] sm:$0xff]
      %v1604 = vld [vmem:[%s986 + $0x156] sm:$0xff]
      %v1605 = vld [vmem:[%s986 + $0x15e] sm:$0xff]
      %v1606 = vld [vmem:[%s986 + $0x16e] sm:$0xff]
      %v1607 = vld [vmem:[%s986 + $0x176] sm:$0xff]
      %v1608 = vld [vmem:[%s1019 + $0x6] sm:$0x1]
      %v1609 = vperm.slane %v1608, 0
      %v1610 = vmul.f32 %v1576, %v1609
      %v1611 = vmul.f32 %v1577, %v1609
      %v1612 = vmul.f32 %v1578, %v1609
      %v1613 = vmul.f32 %v1579, %v1609
      %v1614 = vmul.f32 %v1580, %v1609
      %v1615 = vmul.f32 %v1581, %v1609
      %v1616 = vmul.f32 %v1582, %v1609
      %v1617 = vmul.f32 %v1583, %v1609
      %v1618 = vmul.f32 %v1584, %v1609
      %v1619 = vmul.f32 %v1585, %v1609
      %v1620 = vmul.f32 %v1586, %v1609
      %v1621 = vmul.f32 %v1587, %v1609
      %v1622 = vmul.f32 %v1588, %v1609
      %v1623 = vmul.f32 %v1589, %v1609
      %v1624 = vmul.f32 %v1590, %v1609
      %v1625 = vmul.f32 %v1591, %v1609
      %v1626 = vmul.f32 %v1592, %v1609
      %v1627 = vmul.f32 %v1593, %v1609
      %v1628 = vmul.f32 %v1594, %v1609
      %v1629 = vmul.f32 %v1595, %v1609
      %v1630 = vmul.f32 %v1596, %v1609
      %v1631 = vmul.f32 %v1597, %v1609
      %v1632 = vmul.f32 %v1598, %v1609
      %v1633 = vmul.f32 %v1599, %v1609
      %v1634 = vmul.f32 %v1600, %v1609
      %v1635 = vmul.f32 %v1601, %v1609
      %v1636 = vmul.f32 %v1602, %v1609
      %v1637 = vmul.f32 %v1603, %v1609
      %v1638 = vmul.f32 %v1604, %v1609
      %v1639 = vmul.f32 %v1605, %v1609
      %v1640 = vmul.f32 %v1606, %v1609
      %v1641 = vmul.f32 %v1607, %v1609
      %v1642 = vadd.f32 %v1544, %v1610
      %v1643 = vadd.f32 %v1545, %v1611
      %v1644 = vadd.f32 %v1546, %v1612
      %v1645 = vadd.f32 %v1547, %v1613
      %v1646 = vadd.f32 %v1548, %v1614
      %v1647 = vadd.f32 %v1549, %v1615
      %v1648 = vadd.f32 %v1550, %v1616
      %v1649 = vadd.f32 %v1551, %v1617
      %v1650 = vadd.f32 %v1552, %v1618
      %v1651 = vadd.f32 %v1553, %v1619
      %v1652 = vadd.f32 %v1554, %v1620
      %v1653 = vadd.f32 %v1555, %v1621
      %v1654 = vadd.f32 %v1556, %v1622
      %v1655 = vadd.f32 %v1557, %v1623
      %v1656 = vadd.f32 %v1558, %v1624
      %v1657 = vadd.f32 %v1559, %v1625
      %v1658 = vadd.f32 %v1560, %v1626
      %v1659 = vadd.f32 %v1561, %v1627
      %v1660 = vadd.f32 %v1562, %v1628
      %v1661 = vadd.f32 %v1563, %v1629
      %v1662 = vadd.f32 %v1564, %v1630
      %v1663 = vadd.f32 %v1565, %v1631
      %v1664 = vadd.f32 %v1566, %v1632
      %v1665 = vadd.f32 %v1567, %v1633
      %v1666 = vadd.f32 %v1568, %v1634
      %v1667 = vadd.f32 %v1569, %v1635
      %v1668 = vadd.f32 %v1570, %v1636
      %v1669 = vadd.f32 %v1571, %v1637
      %v1670 = vadd.f32 %v1572, %v1638
      %v1671 = vadd.f32 %v1573, %v1639
      %v1672 = vadd.f32 %v1574, %v1640
      %v1673 = vadd.f32 %v1575, %v1641
      %s1674 = sadd.s32 0, 2
      %s1675 = smul.u32 %s1674, 24
      %s1676 = scalar_lea.vmem [#allocation2], %s1675
      %v1677 = vld [vmem:[%s1676] sm:$0xff]
      %v1678 = vld [vmem:[%s1676 + $0x8] sm:$0xff]
      %v1679 = vld [vmem:[%s1676 + $0x18] sm:$0xff]
      %v1680 = vld [vmem:[%s1676 + $0x20] sm:$0xff]
      %v1681 = vld [vmem:[%s1676 + $0x30] sm:$0xff]
      %v1682 = vld [vmem:[%s1676 + $0x38] sm:$0xff]
      %v1683 = vld [vmem:[%s1676 + $0x48] sm:$0xff]
      %v1684 = vld [vmem:[%s1676 + $0x50] sm:$0xff]
      %v1685 = vld [vmem:[%s1676 + $0x60] sm:$0xff]
      %v1686 = vld [vmem:[%s1676 + $0x68] sm:$0xff]
      %v1687 = vld [vmem:[%s1676 + $0x78] sm:$0xff]
      %v1688 = vld [vmem:[%s1676 + $0x80] sm:$0xff]
      %v1689 = vld [vmem:[%s1676 + $0x90] sm:$0xff]
      %v1690 = vld [vmem:[%s1676 + $0x98] sm:$0xff]
      %v1691 = vld [vmem:[%s1676 + $0xa8] sm:$0xff]
      %v1692 = vld [vmem:[%s1676 + $0xb0] sm:$0xff]
      %v1693 = vld [vmem:[%s1676 + $0xc0] sm:$0xff]
      %v1694 = vld [vmem:[%s1676 + $0xc8] sm:$0xff]
      %v1695 = vld [vmem:[%s1676 + $0xd8] sm:$0xff]
      %v1696 = vld [vmem:[%s1676 + $0xe0] sm:$0xff]
      %v1697 = vld [vmem:[%s1676 + $0xf0] sm:$0xff]
      %v1698 = vld [vmem:[%s1676 + $0xf8] sm:$0xff]
      %v1699 = vld [vmem:[%s1676 + $0x108] sm:$0xff]
      %v1700 = vld [vmem:[%s1676 + $0x110] sm:$0xff]
      %v1701 = vld [vmem:[%s1676 + $0x120] sm:$0xff]
      %v1702 = vld [vmem:[%s1676 + $0x128] sm:$0xff]
      %v1703 = vld [vmem:[%s1676 + $0x138] sm:$0xff]
      %v1704 = vld [vmem:[%s1676 + $0x140] sm:$0xff]
      %v1705 = vld [vmem:[%s1676 + $0x150] sm:$0xff]
      %v1706 = vld [vmem:[%s1676 + $0x158] sm:$0xff]
      %v1707 = vld [vmem:[%s1676 + $0x168] sm:$0xff]
      %v1708 = vld [vmem:[%s1676 + $0x170] sm:$0xff]
      %s1709 = scalar_lea.vmem %s1, 16
      %v1710 = vld [vmem:[%s1709] sm:$0x1]
      %v1711 = vperm.slane %v1710, 0
      %v1712 = vmul.f32 %v1677, %v1711
      %v1713 = vmul.f32 %v1678, %v1711
      %v1714 = vmul.f32 %v1679, %v1711
      %v1715 = vmul.f32 %v1680, %v1711
      %v1716 = vmul.f32 %v1681, %v1711
      %v1717 = vmul.f32 %v1682, %v1711
      %v1718 = vmul.f32 %v1683, %v1711
      %v1719 = vmul.f32 %v1684, %v1711
      %v1720 = vmul.f32 %v1685, %v1711
      %v1721 = vmul.f32 %v1686, %v1711
      %v1722 = vmul.f32 %v1687, %v1711
      %v1723 = vmul.f32 %v1688, %v1711
      %v1724 = vmul.f32 %v1689, %v1711
      %v1725 = vmul.f32 %v1690, %v1711
      %v1726 = vmul.f32 %v1691, %v1711
      %v1727 = vmul.f32 %v1692, %v1711
      %v1728 = vmul.f32 %v1693, %v1711
      %v1729 = vmul.f32 %v1694, %v1711
      %v1730 = vmul.f32 %v1695, %v1711
      %v1731 = vmul.f32 %v1696, %v1711
      %v1732 = vmul.f32 %v1697, %v1711
      %v1733 = vmul.f32 %v1698, %v1711
      %v1734 = vmul.f32 %v1699, %v1711
      %v1735 = vmul.f32 %v1700, %v1711
      %v1736 = vmul.f32 %v1701, %v1711
      %v1737 = vmul.f32 %v1702, %v1711
      %v1738 = vmul.f32 %v1703, %v1711
      %v1739 = vmul.f32 %v1704, %v1711
      %v1740 = vmul.f32 %v1705, %v1711
      %v1741 = vmul.f32 %v1706, %v1711
      %v1742 = vmul.f32 %v1707, %v1711
      %v1743 = vmul.f32 %v1708, %v1711
      %v1744 = vadd.f32 %v1642, %v1712
      %v1745 = vadd.f32 %v1643, %v1713
      %v1746 = vadd.f32 %v1644, %v1714
      %v1747 = vadd.f32 %v1645, %v1715
      %v1748 = vadd.f32 %v1646, %v1716
      %v1749 = vadd.f32 %v1647, %v1717
      %v1750 = vadd.f32 %v1648, %v1718
      %v1751 = vadd.f32 %v1649, %v1719
      %v1752 = vadd.f32 %v1650, %v1720
      %v1753 = vadd.f32 %v1651, %v1721
      %v1754 = vadd.f32 %v1652, %v1722
      %v1755 = vadd.f32 %v1653, %v1723
      %v1756 = vadd.f32 %v1654, %v1724
      %v1757 = vadd.f32 %v1655, %v1725
      %v1758 = vadd.f32 %v1656, %v1726
      %v1759 = vadd.f32 %v1657, %v1727
      %v1760 = vadd.f32 %v1658, %v1728
      %v1761 = vadd.f32 %v1659, %v1729
      %v1762 = vadd.f32 %v1660, %v1730
      %v1763 = vadd.f32 %v1661, %v1731
      %v1764 = vadd.f32 %v1662, %v1732
      %v1765 = vadd.f32 %v1663, %v1733
      %v1766 = vadd.f32 %v1664, %v1734
      %v1767 = vadd.f32 %v1665, %v1735
      %v1768 = vadd.f32 %v1666, %v1736
      %v1769 = vadd.f32 %v1667, %v1737
      %v1770 = vadd.f32 %v1668, %v1738
      %v1771 = vadd.f32 %v1669, %v1739
      %v1772 = vadd.f32 %v1670, %v1740
      %v1773 = vadd.f32 %v1671, %v1741
      %v1774 = vadd.f32 %v1672, %v1742
      %v1775 = vadd.f32 %v1673, %v1743
      %v1776 = vld [vmem:[%s1676 + $0x1] sm:$0xff]
      %v1777 = vld [vmem:[%s1676 + $0x9] sm:$0xff]
      %v1778 = vld [vmem:[%s1676 + $0x19] sm:$0xff]
      %v1779 = vld [vmem:[%s1676 + $0x21] sm:$0xff]
      %v1780 = vld [vmem:[%s1676 + $0x31] sm:$0xff]
      %v1781 = vld [vmem:[%s1676 + $0x39] sm:$0xff]
      %v1782 = vld [vmem:[%s1676 + $0x49] sm:$0xff]
      %v1783 = vld [vmem:[%s1676 + $0x51] sm:$0xff]
      %v1784 = vld [vmem:[%s1676 + $0x61] sm:$0xff]
      %v1785 = vld [vmem:[%s1676 + $0x69] sm:$0xff]
      %v1786 = vld [vmem:[%s1676 + $0x79] sm:$0xff]
      %v1787 = vld [vmem:[%s1676 + $0x81] sm:$0xff]
      %v1788 = vld [vmem:[%s1676 + $0x91] sm:$0xff]
      %v1789 = vld [vmem:[%s1676 + $0x99] sm:$0xff]
      %v1790 = vld [vmem:[%s1676 + $0xa9] sm:$0xff]
      %v1791 = vld [vmem:[%s1676 + $0xb1] sm:$0xff]
      %v1792 = vld [vmem:[%s1676 + $0xc1] sm:$0xff]
      %v1793 = vld [vmem:[%s1676 + $0xc9] sm:$0xff]
      %v1794 = vld [vmem:[%s1676 + $0xd9] sm:$0xff]
      %v1795 = vld [vmem:[%s1676 + $0xe1] sm:$0xff]
      %v1796 = vld [vmem:[%s1676 + $0xf1] sm:$0xff]
      %v1797 = vld [vmem:[%s1676 + $0xf9] sm:$0xff]
      %v1798 = vld [vmem:[%s1676 + $0x109] sm:$0xff]
      %v1799 = vld [vmem:[%s1676 + $0x111] sm:$0xff]
      %v1800 = vld [vmem:[%s1676 + $0x121] sm:$0xff]
      %v1801 = vld [vmem:[%s1676 + $0x129] sm:$0xff]
      %v1802 = vld [vmem:[%s1676 + $0x139] sm:$0xff]
      %v1803 = vld [vmem:[%s1676 + $0x141] sm:$0xff]
      %v1804 = vld [vmem:[%s1676 + $0x151] sm:$0xff]
      %v1805 = vld [vmem:[%s1676 + $0x159] sm:$0xff]
      %v1806 = vld [vmem:[%s1676 + $0x169] sm:$0xff]
      %v1807 = vld [vmem:[%s1676 + $0x171] sm:$0xff]
      %v1808 = vld [vmem:[%s1709 + $0x1] sm:$0x1]
      %v1809 = vperm.slane %v1808, 0
      %v1810 = vmul.f32 %v1776, %v1809
      %v1811 = vmul.f32 %v1777, %v1809
      %v1812 = vmul.f32 %v1778, %v1809
      %v1813 = vmul.f32 %v1779, %v1809
      %v1814 = vmul.f32 %v1780, %v1809
      %v1815 = vmul.f32 %v1781, %v1809
      %v1816 = vmul.f32 %v1782, %v1809
      %v1817 = vmul.f32 %v1783, %v1809
      %v1818 = vmul.f32 %v1784, %v1809
      %v1819 = vmul.f32 %v1785, %v1809
      %v1820 = vmul.f32 %v1786, %v1809
      %v1821 = vmul.f32 %v1787, %v1809
      %v1822 = vmul.f32 %v1788, %v1809
      %v1823 = vmul.f32 %v1789, %v1809
      %v1824 = vmul.f32 %v1790, %v1809
      %v1825 = vmul.f32 %v1791, %v1809
      %v1826 = vmul.f32 %v1792, %v1809
      %v1827 = vmul.f32 %v1793, %v1809
      %v1828 = vmul.f32 %v1794, %v1809
      %v1829 = vmul.f32 %v1795, %v1809
      %v1830 = vmul.f32 %v1796, %v1809
      %v1831 = vmul.f32 %v1797, %v1809
      %v1832 = vmul.f32 %v1798, %v1809
      %v1833 = vmul.f32 %v1799, %v1809
      %v1834 = vmul.f32 %v1800, %v1809
      %v1835 = vmul.f32 %v1801, %v1809
      %v1836 = vmul.f32 %v1802, %v1809
      %v1837 = vmul.f32 %v1803, %v1809
      %v1838 = vmul.f32 %v1804, %v1809
      %v1839 = vmul.f32 %v1805, %v1809
      %v1840 = vmul.f32 %v1806, %v1809
      %v1841 = vmul.f32 %v1807, %v1809
      %v1842 = vadd.f32 %v1744, %v1810
      %v1843 = vadd.f32 %v1745, %v1811
      %v1844 = vadd.f32 %v1746, %v1812
      %v1845 = vadd.f32 %v1747, %v1813
      %v1846 = vadd.f32 %v1748, %v1814
      %v1847 = vadd.f32 %v1749, %v1815
      %v1848 = vadd.f32 %v1750, %v1816
      %v1849 = vadd.f32 %v1751, %v1817
      %v1850 = vadd.f32 %v1752, %v1818
      %v1851 = vadd.f32 %v1753, %v1819
      %v1852 = vadd.f32 %v1754, %v1820
      %v1853 = vadd.f32 %v1755, %v1821
      %v1854 = vadd.f32 %v1756, %v1822
      %v1855 = vadd.f32 %v1757, %v1823
      %v1856 = vadd.f32 %v1758, %v1824
      %v1857 = vadd.f32 %v1759, %v1825
      %v1858 = vadd.f32 %v1760, %v1826
      %v1859 = vadd.f32 %v1761, %v1827
      %v1860 = vadd.f32 %v1762, %v1828
      %v1861 = vadd.f32 %v1763, %v1829
      %v1862 = vadd.f32 %v1764, %v1830
      %v1863 = vadd.f32 %v1765, %v1831
      %v1864 = vadd.f32 %v1766, %v1832
      %v1865 = vadd.f32 %v1767, %v1833
      %v1866 = vadd.f32 %v1768, %v1834
      %v1867 = vadd.f32 %v1769, %v1835
      %v1868 = vadd.f32 %v1770, %v1836
      %v1869 = vadd.f32 %v1771, %v1837
      %v1870 = vadd.f32 %v1772, %v1838
      %v1871 = vadd.f32 %v1773, %v1839
      %v1872 = vadd.f32 %v1774, %v1840
      %v1873 = vadd.f32 %v1775, %v1841
      %v1874 = vld [vmem:[%s1676 + $0x2] sm:$0xff]
      %v1875 = vld [vmem:[%s1676 + $0xa] sm:$0xff]
      %v1876 = vld [vmem:[%s1676 + $0x1a] sm:$0xff]
      %v1877 = vld [vmem:[%s1676 + $0x22] sm:$0xff]
      %v1878 = vld [vmem:[%s1676 + $0x32] sm:$0xff]
      %v1879 = vld [vmem:[%s1676 + $0x3a] sm:$0xff]
      %v1880 = vld [vmem:[%s1676 + $0x4a] sm:$0xff]
      %v1881 = vld [vmem:[%s1676 + $0x52] sm:$0xff]
      %v1882 = vld [vmem:[%s1676 + $0x62] sm:$0xff]
      %v1883 = vld [vmem:[%s1676 + $0x6a] sm:$0xff]
      %v1884 = vld [vmem:[%s1676 + $0x7a] sm:$0xff]
      %v1885 = vld [vmem:[%s1676 + $0x82] sm:$0xff]
      %v1886 = vld [vmem:[%s1676 + $0x92] sm:$0xff]
      %v1887 = vld [vmem:[%s1676 + $0x9a] sm:$0xff]
      %v1888 = vld [vmem:[%s1676 + $0xaa] sm:$0xff]
      %v1889 = vld [vmem:[%s1676 + $0xb2] sm:$0xff]
      %v1890 = vld [vmem:[%s1676 + $0xc2] sm:$0xff]
      %v1891 = vld [vmem:[%s1676 + $0xca] sm:$0xff]
      %v1892 = vld [vmem:[%s1676 + $0xda] sm:$0xff]
      %v1893 = vld [vmem:[%s1676 + $0xe2] sm:$0xff]
      %v1894 = vld [vmem:[%s1676 + $0xf2] sm:$0xff]
      %v1895 = vld [vmem:[%s1676 + $0xfa] sm:$0xff]
      %v1896 = vld [vmem:[%s1676 + $0x10a] sm:$0xff]
      %v1897 = vld [vmem:[%s1676 + $0x112] sm:$0xff]
      %v1898 = vld [vmem:[%s1676 + $0x122] sm:$0xff]
      %v1899 = vld [vmem:[%s1676 + $0x12a] sm:$0xff]
      %v1900 = vld [vmem:[%s1676 + $0x13a] sm:$0xff]
      %v1901 = vld [vmem:[%s1676 + $0x142] sm:$0xff]
      %v1902 = vld [vmem:[%s1676 + $0x152] sm:$0xff]
      %v1903 = vld [vmem:[%s1676 + $0x15a] sm:$0xff]
      %v1904 = vld [vmem:[%s1676 + $0x16a] sm:$0xff]
      %v1905 = vld [vmem:[%s1676 + $0x172] sm:$0xff]
      %v1906 = vld [vmem:[%s1709 + $0x2] sm:$0x1]
      %v1907 = vperm.slane %v1906, 0
      %v1908 = vmul.f32 %v1874, %v1907
      %v1909 = vmul.f32 %v1875, %v1907
      %v1910 = vmul.f32 %v1876, %v1907
      %v1911 = vmul.f32 %v1877, %v1907
      %v1912 = vmul.f32 %v1878, %v1907
      %v1913 = vmul.f32 %v1879, %v1907
      %v1914 = vmul.f32 %v1880, %v1907
      %v1915 = vmul.f32 %v1881, %v1907
      %v1916 = vmul.f32 %v1882, %v1907
      %v1917 = vmul.f32 %v1883, %v1907
      %v1918 = vmul.f32 %v1884, %v1907
      %v1919 = vmul.f32 %v1885, %v1907
      %v1920 = vmul.f32 %v1886, %v1907
      %v1921 = vmul.f32 %v1887, %v1907
      %v1922 = vmul.f32 %v1888, %v1907
      %v1923 = vmul.f32 %v1889, %v1907
      %v1924 = vmul.f32 %v1890, %v1907
      %v1925 = vmul.f32 %v1891, %v1907
      %v1926 = vmul.f32 %v1892, %v1907
      %v1927 = vmul.f32 %v1893, %v1907
      %v1928 = vmul.f32 %v1894, %v1907
      %v1929 = vmul.f32 %v1895, %v1907
      %v1930 = vmul.f32 %v1896, %v1907
      %v1931 = vmul.f32 %v1897, %v1907
      %v1932 = vmul.f32 %v1898, %v1907
      %v1933 = vmul.f32 %v1899, %v1907
      %v1934 = vmul.f32 %v1900, %v1907
      %v1935 = vmul.f32 %v1901, %v1907
      %v1936 = vmul.f32 %v1902, %v1907
      %v1937 = vmul.f32 %v1903, %v1907
      %v1938 = vmul.f32 %v1904, %v1907
      %v1939 = vmul.f32 %v1905, %v1907
      %v1940 = vadd.f32 %v1842, %v1908
      %v1941 = vadd.f32 %v1843, %v1909
      %v1942 = vadd.f32 %v1844, %v1910
      %v1943 = vadd.f32 %v1845, %v1911
      %v1944 = vadd.f32 %v1846, %v1912
      %v1945 = vadd.f32 %v1847, %v1913
      %v1946 = vadd.f32 %v1848, %v1914
      %v1947 = vadd.f32 %v1849, %v1915
      %v1948 = vadd.f32 %v1850, %v1916
      %v1949 = vadd.f32 %v1851, %v1917
      %v1950 = vadd.f32 %v1852, %v1918
      %v1951 = vadd.f32 %v1853, %v1919
      %v1952 = vadd.f32 %v1854, %v1920
      %v1953 = vadd.f32 %v1855, %v1921
      %v1954 = vadd.f32 %v1856, %v1922
      %v1955 = vadd.f32 %v1857, %v1923
      %v1956 = vadd.f32 %v1858, %v1924
      %v1957 = vadd.f32 %v1859, %v1925
      %v1958 = vadd.f32 %v1860, %v1926
      %v1959 = vadd.f32 %v1861, %v1927
      %v1960 = vadd.f32 %v1862, %v1928
      %v1961 = vadd.f32 %v1863, %v1929
      %v1962 = vadd.f32 %v1864, %v1930
      %v1963 = vadd.f32 %v1865, %v1931
      %v1964 = vadd.f32 %v1866, %v1932
      %v1965 = vadd.f32 %v1867, %v1933
      %v1966 = vadd.f32 %v1868, %v1934
      %v1967 = vadd.f32 %v1869, %v1935
      %v1968 = vadd.f32 %v1870, %v1936
      %v1969 = vadd.f32 %v1871, %v1937
      %v1970 = vadd.f32 %v1872, %v1938
      %v1971 = vadd.f32 %v1873, %v1939
      %v1972 = vld [vmem:[%s1676 + $0x3] sm:$0xff]
      %v1973 = vld [vmem:[%s1676 + $0xb] sm:$0xff]
      %v1974 = vld [vmem:[%s1676 + $0x1b] sm:$0xff]
      %v1975 = vld [vmem:[%s1676 + $0x23] sm:$0xff]
      %v1976 = vld [vmem:[%s1676 + $0x33] sm:$0xff]
      %v1977 = vld [vmem:[%s1676 + $0x3b] sm:$0xff]
      %v1978 = vld [vmem:[%s1676 + $0x4b] sm:$0xff]
      %v1979 = vld [vmem:[%s1676 + $0x53] sm:$0xff]
      %v1980 = vld [vmem:[%s1676 + $0x63] sm:$0xff]
      %v1981 = vld [vmem:[%s1676 + $0x6b] sm:$0xff]
      %v1982 = vld [vmem:[%s1676 + $0x7b] sm:$0xff]
      %v1983 = vld [vmem:[%s1676 + $0x83] sm:$0xff]
      %v1984 = vld [vmem:[%s1676 + $0x93] sm:$0xff]
      %v1985 = vld [vmem:[%s1676 + $0x9b] sm:$0xff]
      %v1986 = vld [vmem:[%s1676 + $0xab] sm:$0xff]
      %v1987 = vld [vmem:[%s1676 + $0xb3] sm:$0xff]
      %v1988 = vld [vmem:[%s1676 + $0xc3] sm:$0xff]
      %v1989 = vld [vmem:[%s1676 + $0xcb] sm:$0xff]
      %v1990 = vld [vmem:[%s1676 + $0xdb] sm:$0xff]
      %v1991 = vld [vmem:[%s1676 + $0xe3] sm:$0xff]
      %v1992 = vld [vmem:[%s1676 + $0xf3] sm:$0xff]
      %v1993 = vld [vmem:[%s1676 + $0xfb] sm:$0xff]
      %v1994 = vld [vmem:[%s1676 + $0x10b] sm:$0xff]
      %v1995 = vld [vmem:[%s1676 + $0x113] sm:$0xff]
      %v1996 = vld [vmem:[%s1676 + $0x123] sm:$0xff]
      %v1997 = vld [vmem:[%s1676 + $0x12b] sm:$0xff]
      %v1998 = vld [vmem:[%s1676 + $0x13b] sm:$0xff]
      %v1999 = vld [vmem:[%s1676 + $0x143] sm:$0xff]
      %v2000 = vld [vmem:[%s1676 + $0x153] sm:$0xff]
      %v2001 = vld [vmem:[%s1676 + $0x15b] sm:$0xff]
      %v2002 = vld [vmem:[%s1676 + $0x16b] sm:$0xff]
      %v2003 = vld [vmem:[%s1676 + $0x173] sm:$0xff]
      %v2004 = vld [vmem:[%s1709 + $0x3] sm:$0x1]
      %v2005 = vperm.slane %v2004, 0
      %v2006 = vmul.f32 %v1972, %v2005
      %v2007 = vmul.f32 %v1973, %v2005
      %v2008 = vmul.f32 %v1974, %v2005
      %v2009 = vmul.f32 %v1975, %v2005
      %v2010 = vmul.f32 %v1976, %v2005
      %v2011 = vmul.f32 %v1977, %v2005
      %v2012 = vmul.f32 %v1978, %v2005
      %v2013 = vmul.f32 %v1979, %v2005
      %v2014 = vmul.f32 %v1980, %v2005
      %v2015 = vmul.f32 %v1981, %v2005
      %v2016 = vmul.f32 %v1982, %v2005
      %v2017 = vmul.f32 %v1983, %v2005
      %v2018 = vmul.f32 %v1984, %v2005
      %v2019 = vmul.f32 %v1985, %v2005
      %v2020 = vmul.f32 %v1986, %v2005
      %v2021 = vmul.f32 %v1987, %v2005
      %v2022 = vmul.f32 %v1988, %v2005
      %v2023 = vmul.f32 %v1989, %v2005
      %v2024 = vmul.f32 %v1990, %v2005
      %v2025 = vmul.f32 %v1991, %v2005
      %v2026 = vmul.f32 %v1992, %v2005
      %v2027 = vmul.f32 %v1993, %v2005
      %v2028 = vmul.f32 %v1994, %v2005
      %v2029 = vmul.f32 %v1995, %v2005
      %v2030 = vmul.f32 %v1996, %v2005
      %v2031 = vmul.f32 %v1997, %v2005
      %v2032 = vmul.f32 %v1998, %v2005
      %v2033 = vmul.f32 %v1999, %v2005
      %v2034 = vmul.f32 %v2000, %v2005
      %v2035 = vmul.f32 %v2001, %v2005
      %v2036 = vmul.f32 %v2002, %v2005
      %v2037 = vmul.f32 %v2003, %v2005
      %v2038 = vadd.f32 %v1940, %v2006
      %v2039 = vadd.f32 %v1941, %v2007
      %v2040 = vadd.f32 %v1942, %v2008
      %v2041 = vadd.f32 %v1943, %v2009
      %v2042 = vadd.f32 %v1944, %v2010
      %v2043 = vadd.f32 %v1945, %v2011
      %v2044 = vadd.f32 %v1946, %v2012
      %v2045 = vadd.f32 %v1947, %v2013
      %v2046 = vadd.f32 %v1948, %v2014
      %v2047 = vadd.f32 %v1949, %v2015
      %v2048 = vadd.f32 %v1950, %v2016
      %v2049 = vadd.f32 %v1951, %v2017
      %v2050 = vadd.f32 %v1952, %v2018
      %v2051 = vadd.f32 %v1953, %v2019
      %v2052 = vadd.f32 %v1954, %v2020
      %v2053 = vadd.f32 %v1955, %v2021
      %v2054 = vadd.f32 %v1956, %v2022
      %v2055 = vadd.f32 %v1957, %v2023
      %v2056 = vadd.f32 %v1958, %v2024
      %v2057 = vadd.f32 %v1959, %v2025
      %v2058 = vadd.f32 %v1960, %v2026
      %v2059 = vadd.f32 %v1961, %v2027
      %v2060 = vadd.f32 %v1962, %v2028
      %v2061 = vadd.f32 %v1963, %v2029
      %v2062 = vadd.f32 %v1964, %v2030
      %v2063 = vadd.f32 %v1965, %v2031
      %v2064 = vadd.f32 %v1966, %v2032
      %v2065 = vadd.f32 %v1967, %v2033
      %v2066 = vadd.f32 %v1968, %v2034
      %v2067 = vadd.f32 %v1969, %v2035
      %v2068 = vadd.f32 %v1970, %v2036
      %v2069 = vadd.f32 %v1971, %v2037
      %v2070 = vld [vmem:[%s1676 + $0x4] sm:$0xff]
      %v2071 = vld [vmem:[%s1676 + $0xc] sm:$0xff]
      %v2072 = vld [vmem:[%s1676 + $0x1c] sm:$0xff]
      %v2073 = vld [vmem:[%s1676 + $0x24] sm:$0xff]
      %v2074 = vld [vmem:[%s1676 + $0x34] sm:$0xff]
      %v2075 = vld [vmem:[%s1676 + $0x3c] sm:$0xff]
      %v2076 = vld [vmem:[%s1676 + $0x4c] sm:$0xff]
      %v2077 = vld [vmem:[%s1676 + $0x54] sm:$0xff]
      %v2078 = vld [vmem:[%s1676 + $0x64] sm:$0xff]
      %v2079 = vld [vmem:[%s1676 + $0x6c] sm:$0xff]
      %v2080 = vld [vmem:[%s1676 + $0x7c] sm:$0xff]
      %v2081 = vld [vmem:[%s1676 + $0x84] sm:$0xff]
      %v2082 = vld [vmem:[%s1676 + $0x94] sm:$0xff]
      %v2083 = vld [vmem:[%s1676 + $0x9c] sm:$0xff]
      %v2084 = vld [vmem:[%s1676 + $0xac] sm:$0xff]
      %v2085 = vld [vmem:[%s1676 + $0xb4] sm:$0xff]
      %v2086 = vld [vmem:[%s1676 + $0xc4] sm:$0xff]
      %v2087 = vld [vmem:[%s1676 + $0xcc] sm:$0xff]
      %v2088 = vld [vmem:[%s1676 + $0xdc] sm:$0xff]
      %v2089 = vld [vmem:[%s1676 + $0xe4] sm:$0xff]
      %v2090 = vld [vmem:[%s1676 + $0xf4] sm:$0xff]
      %v2091 = vld [vmem:[%s1676 + $0xfc] sm:$0xff]
      %v2092 = vld [vmem:[%s1676 + $0x10c] sm:$0xff]
      %v2093 = vld [vmem:[%s1676 + $0x114] sm:$0xff]
      %v2094 = vld [vmem:[%s1676 + $0x124] sm:$0xff]
      %v2095 = vld [vmem:[%s1676 + $0x12c] sm:$0xff]
      %v2096 = vld [vmem:[%s1676 + $0x13c] sm:$0xff]
      %v2097 = vld [vmem:[%s1676 + $0x144] sm:$0xff]
      %v2098 = vld [vmem:[%s1676 + $0x154] sm:$0xff]
      %v2099 = vld [vmem:[%s1676 + $0x15c] sm:$0xff]
      %v2100 = vld [vmem:[%s1676 + $0x16c] sm:$0xff]
      %v2101 = vld [vmem:[%s1676 + $0x174] sm:$0xff]
      %v2102 = vld [vmem:[%s1709 + $0x4] sm:$0x1]
      %v2103 = vperm.slane %v2102, 0
      %v2104 = vmul.f32 %v2070, %v2103
      %v2105 = vmul.f32 %v2071, %v2103
      %v2106 = vmul.f32 %v2072, %v2103
      %v2107 = vmul.f32 %v2073, %v2103
      %v2108 = vmul.f32 %v2074, %v2103
      %v2109 = vmul.f32 %v2075, %v2103
      %v2110 = vmul.f32 %v2076, %v2103
      %v2111 = vmul.f32 %v2077, %v2103
      %v2112 = vmul.f32 %v2078, %v2103
      %v2113 = vmul.f32 %v2079, %v2103
      %v2114 = vmul.f32 %v2080, %v2103
      %v2115 = vmul.f32 %v2081, %v2103
      %v2116 = vmul.f32 %v2082, %v2103
      %v2117 = vmul.f32 %v2083, %v2103
      %v2118 = vmul.f32 %v2084, %v2103
      %v2119 = vmul.f32 %v2085, %v2103
      %v2120 = vmul.f32 %v2086, %v2103
      %v2121 = vmul.f32 %v2087, %v2103
      %v2122 = vmul.f32 %v2088, %v2103
      %v2123 = vmul.f32 %v2089, %v2103
      %v2124 = vmul.f32 %v2090, %v2103
      %v2125 = vmul.f32 %v2091, %v2103
      %v2126 = vmul.f32 %v2092, %v2103
      %v2127 = vmul.f32 %v2093, %v2103
      %v2128 = vmul.f32 %v2094, %v2103
      %v2129 = vmul.f32 %v2095, %v2103
      %v2130 = vmul.f32 %v2096, %v2103
      %v2131 = vmul.f32 %v2097, %v2103
      %v2132 = vmul.f32 %v2098, %v2103
      %v2133 = vmul.f32 %v2099, %v2103
      %v2134 = vmul.f32 %v2100, %v2103
      %v2135 = vmul.f32 %v2101, %v2103
      %v2136 = vadd.f32 %v2038, %v2104
      %v2137 = vadd.f32 %v2039, %v2105
      %v2138 = vadd.f32 %v2040, %v2106
      %v2139 = vadd.f32 %v2041, %v2107
      %v2140 = vadd.f32 %v2042, %v2108
      %v2141 = vadd.f32 %v2043, %v2109
      %v2142 = vadd.f32 %v2044, %v2110
      %v2143 = vadd.f32 %v2045, %v2111
      %v2144 = vadd.f32 %v2046, %v2112
      %v2145 = vadd.f32 %v2047, %v2113
      %v2146 = vadd.f32 %v2048, %v2114
      %v2147 = vadd.f32 %v2049, %v2115
      %v2148 = vadd.f32 %v2050, %v2116
      %v2149 = vadd.f32 %v2051, %v2117
      %v2150 = vadd.f32 %v2052, %v2118
      %v2151 = vadd.f32 %v2053, %v2119
      %v2152 = vadd.f32 %v2054, %v2120
      %v2153 = vadd.f32 %v2055, %v2121
      %v2154 = vadd.f32 %v2056, %v2122
      %v2155 = vadd.f32 %v2057, %v2123
      %v2156 = vadd.f32 %v2058, %v2124
      %v2157 = vadd.f32 %v2059, %v2125
      %v2158 = vadd.f32 %v2060, %v2126
      %v2159 = vadd.f32 %v2061, %v2127
      %v2160 = vadd.f32 %v2062, %v2128
      %v2161 = vadd.f32 %v2063, %v2129
      %v2162 = vadd.f32 %v2064, %v2130
      %v2163 = vadd.f32 %v2065, %v2131
      %v2164 = vadd.f32 %v2066, %v2132
      %v2165 = vadd.f32 %v2067, %v2133
      %v2166 = vadd.f32 %v2068, %v2134
      %v2167 = vadd.f32 %v2069, %v2135
      %v2168 = vld [vmem:[%s1676 + $0x5] sm:$0xff]
      %v2169 = vld [vmem:[%s1676 + $0xd] sm:$0xff]
      %v2170 = vld [vmem:[%s1676 + $0x1d] sm:$0xff]
      %v2171 = vld [vmem:[%s1676 + $0x25] sm:$0xff]
      %v2172 = vld [vmem:[%s1676 + $0x35] sm:$0xff]
      %v2173 = vld [vmem:[%s1676 + $0x3d] sm:$0xff]
      %v2174 = vld [vmem:[%s1676 + $0x4d] sm:$0xff]
      %v2175 = vld [vmem:[%s1676 + $0x55] sm:$0xff]
      %v2176 = vld [vmem:[%s1676 + $0x65] sm:$0xff]
      %v2177 = vld [vmem:[%s1676 + $0x6d] sm:$0xff]
      %v2178 = vld [vmem:[%s1676 + $0x7d] sm:$0xff]
      %v2179 = vld [vmem:[%s1676 + $0x85] sm:$0xff]
      %v2180 = vld [vmem:[%s1676 + $0x95] sm:$0xff]
      %v2181 = vld [vmem:[%s1676 + $0x9d] sm:$0xff]
      %v2182 = vld [vmem:[%s1676 + $0xad] sm:$0xff]
      %v2183 = vld [vmem:[%s1676 + $0xb5] sm:$0xff]
      %v2184 = vld [vmem:[%s1676 + $0xc5] sm:$0xff]
      %v2185 = vld [vmem:[%s1676 + $0xcd] sm:$0xff]
      %v2186 = vld [vmem:[%s1676 + $0xdd] sm:$0xff]
      %v2187 = vld [vmem:[%s1676 + $0xe5] sm:$0xff]
      %v2188 = vld [vmem:[%s1676 + $0xf5] sm:$0xff]
      %v2189 = vld [vmem:[%s1676 + $0xfd] sm:$0xff]
      %v2190 = vld [vmem:[%s1676 + $0x10d] sm:$0xff]
      %v2191 = vld [vmem:[%s1676 + $0x115] sm:$0xff]
      %v2192 = vld [vmem:[%s1676 + $0x125] sm:$0xff]
      %v2193 = vld [vmem:[%s1676 + $0x12d] sm:$0xff]
      %v2194 = vld [vmem:[%s1676 + $0x13d] sm:$0xff]
      %v2195 = vld [vmem:[%s1676 + $0x145] sm:$0xff]
      %v2196 = vld [vmem:[%s1676 + $0x155] sm:$0xff]
      %v2197 = vld [vmem:[%s1676 + $0x15d] sm:$0xff]
      %v2198 = vld [vmem:[%s1676 + $0x16d] sm:$0xff]
      %v2199 = vld [vmem:[%s1676 + $0x175] sm:$0xff]
      %v2200 = vld [vmem:[%s1709 + $0x5] sm:$0x1]
      %v2201 = vperm.slane %v2200, 0
      %v2202 = vmul.f32 %v2168, %v2201
      %v2203 = vmul.f32 %v2169, %v2201
      %v2204 = vmul.f32 %v2170, %v2201
      %v2205 = vmul.f32 %v2171, %v2201
      %v2206 = vmul.f32 %v2172, %v2201
      %v2207 = vmul.f32 %v2173, %v2201
      %v2208 = vmul.f32 %v2174, %v2201
      %v2209 = vmul.f32 %v2175, %v2201
      %v2210 = vmul.f32 %v2176, %v2201
      %v2211 = vmul.f32 %v2177, %v2201
      %v2212 = vmul.f32 %v2178, %v2201
      %v2213 = vmul.f32 %v2179, %v2201
      %v2214 = vmul.f32 %v2180, %v2201
      %v2215 = vmul.f32 %v2181, %v2201
      %v2216 = vmul.f32 %v2182, %v2201
      %v2217 = vmul.f32 %v2183, %v2201
      %v2218 = vmul.f32 %v2184, %v2201
      %v2219 = vmul.f32 %v2185, %v2201
      %v2220 = vmul.f32 %v2186, %v2201
      %v2221 = vmul.f32 %v2187, %v2201
      %v2222 = vmul.f32 %v2188, %v2201
      %v2223 = vmul.f32 %v2189, %v2201
      %v2224 = vmul.f32 %v2190, %v2201
      %v2225 = vmul.f32 %v2191, %v2201
      %v2226 = vmul.f32 %v2192, %v2201
      %v2227 = vmul.f32 %v2193, %v2201
      %v2228 = vmul.f32 %v2194, %v2201
      %v2229 = vmul.f32 %v2195, %v2201
      %v2230 = vmul.f32 %v2196, %v2201
      %v2231 = vmul.f32 %v2197, %v2201
      %v2232 = vmul.f32 %v2198, %v2201
      %v2233 = vmul.f32 %v2199, %v2201
      %v2234 = vadd.f32 %v2136, %v2202
      %v2235 = vadd.f32 %v2137, %v2203
      %v2236 = vadd.f32 %v2138, %v2204
      %v2237 = vadd.f32 %v2139, %v2205
      %v2238 = vadd.f32 %v2140, %v2206
      %v2239 = vadd.f32 %v2141, %v2207
      %v2240 = vadd.f32 %v2142, %v2208
      %v2241 = vadd.f32 %v2143, %v2209
      %v2242 = vadd.f32 %v2144, %v2210
      %v2243 = vadd.f32 %v2145, %v2211
      %v2244 = vadd.f32 %v2146, %v2212
      %v2245 = vadd.f32 %v2147, %v2213
      %v2246 = vadd.f32 %v2148, %v2214
      %v2247 = vadd.f32 %v2149, %v2215
      %v2248 = vadd.f32 %v2150, %v2216
      %v2249 = vadd.f32 %v2151, %v2217
      %v2250 = vadd.f32 %v2152, %v2218
      %v2251 = vadd.f32 %v2153, %v2219
      %v2252 = vadd.f32 %v2154, %v2220
      %v2253 = vadd.f32 %v2155, %v2221
      %v2254 = vadd.f32 %v2156, %v2222
      %v2255 = vadd.f32 %v2157, %v2223
      %v2256 = vadd.f32 %v2158, %v2224
      %v2257 = vadd.f32 %v2159, %v2225
      %v2258 = vadd.f32 %v2160, %v2226
      %v2259 = vadd.f32 %v2161, %v2227
      %v2260 = vadd.f32 %v2162, %v2228
      %v2261 = vadd.f32 %v2163, %v2229
      %v2262 = vadd.f32 %v2164, %v2230
      %v2263 = vadd.f32 %v2165, %v2231
      %v2264 = vadd.f32 %v2166, %v2232
      %v2265 = vadd.f32 %v2167, %v2233
      %v2266 = vld [vmem:[%s1676 + $0x6] sm:$0xff]
      %v2267 = vld [vmem:[%s1676 + $0xe] sm:$0xff]
      %v2268 = vld [vmem:[%s1676 + $0x1e] sm:$0xff]
      %v2269 = vld [vmem:[%s1676 + $0x26] sm:$0xff]
      %v2270 = vld [vmem:[%s1676 + $0x36] sm:$0xff]
      %v2271 = vld [vmem:[%s1676 + $0x3e] sm:$0xff]
      %v2272 = vld [vmem:[%s1676 + $0x4e] sm:$0xff]
      %v2273 = vld [vmem:[%s1676 + $0x56] sm:$0xff]
      %v2274 = vld [vmem:[%s1676 + $0x66] sm:$0xff]
      %v2275 = vld [vmem:[%s1676 + $0x6e] sm:$0xff]
      %v2276 = vld [vmem:[%s1676 + $0x7e] sm:$0xff]
      %v2277 = vld [vmem:[%s1676 + $0x86] sm:$0xff]
      %v2278 = vld [vmem:[%s1676 + $0x96] sm:$0xff]
      %v2279 = vld [vmem:[%s1676 + $0x9e] sm:$0xff]
      %v2280 = vld [vmem:[%s1676 + $0xae] sm:$0xff]
      %v2281 = vld [vmem:[%s1676 + $0xb6] sm:$0xff]
      %v2282 = vld [vmem:[%s1676 + $0xc6] sm:$0xff]
      %v2283 = vld [vmem:[%s1676 + $0xce] sm:$0xff]
      %v2284 = vld [vmem:[%s1676 + $0xde] sm:$0xff]
      %v2285 = vld [vmem:[%s1676 + $0xe6] sm:$0xff]
      %v2286 = vld [vmem:[%s1676 + $0xf6] sm:$0xff]
      %v2287 = vld [vmem:[%s1676 + $0xfe] sm:$0xff]
      %v2288 = vld [vmem:[%s1676 + $0x10e] sm:$0xff]
      %v2289 = vld [vmem:[%s1676 + $0x116] sm:$0xff]
      %v2290 = vld [vmem:[%s1676 + $0x126] sm:$0xff]
      %v2291 = vld [vmem:[%s1676 + $0x12e] sm:$0xff]
      %v2292 = vld [vmem:[%s1676 + $0x13e] sm:$0xff]
      %v2293 = vld [vmem:[%s1676 + $0x146] sm:$0xff]
      %v2294 = vld [vmem:[%s1676 + $0x156] sm:$0xff]
      %v2295 = vld [vmem:[%s1676 + $0x15e] sm:$0xff]
      %v2296 = vld [vmem:[%s1676 + $0x16e] sm:$0xff]
      %v2297 = vld [vmem:[%s1676 + $0x176] sm:$0xff]
      %v2298 = vld [vmem:[%s1709 + $0x6] sm:$0x1]
      %v2299 = vperm.slane %v2298, 0
      %v2300 = vmul.f32 %v2266, %v2299
      %v2301 = vmul.f32 %v2267, %v2299
      %v2302 = vmul.f32 %v2268, %v2299
      %v2303 = vmul.f32 %v2269, %v2299
      %v2304 = vmul.f32 %v2270, %v2299
      %v2305 = vmul.f32 %v2271, %v2299
      %v2306 = vmul.f32 %v2272, %v2299
      %v2307 = vmul.f32 %v2273, %v2299
      %v2308 = vmul.f32 %v2274, %v2299
      %v2309 = vmul.f32 %v2275, %v2299
      %v2310 = vmul.f32 %v2276, %v2299
      %v2311 = vmul.f32 %v2277, %v2299
      %v2312 = vmul.f32 %v2278, %v2299
      %v2313 = vmul.f32 %v2279, %v2299
      %v2314 = vmul.f32 %v2280, %v2299
      %v2315 = vmul.f32 %v2281, %v2299
      %v2316 = vmul.f32 %v2282, %v2299
      %v2317 = vmul.f32 %v2283, %v2299
      %v2318 = vmul.f32 %v2284, %v2299
      %v2319 = vmul.f32 %v2285, %v2299
      %v2320 = vmul.f32 %v2286, %v2299
      %v2321 = vmul.f32 %v2287, %v2299
      %v2322 = vmul.f32 %v2288, %v2299
      %v2323 = vmul.f32 %v2289, %v2299
      %v2324 = vmul.f32 %v2290, %v2299
      %v2325 = vmul.f32 %v2291, %v2299
      %v2326 = vmul.f32 %v2292, %v2299
      %v2327 = vmul.f32 %v2293, %v2299
      %v2328 = vmul.f32 %v2294, %v2299
      %v2329 = vmul.f32 %v2295, %v2299
      %v2330 = vmul.f32 %v2296, %v2299
      %v2331 = vmul.f32 %v2297, %v2299
      %v2332 = vadd.f32 %v2234, %v2300
      %v2333 = vadd.f32 %v2235, %v2301
      %v2334 = vadd.f32 %v2236, %v2302
      %v2335 = vadd.f32 %v2237, %v2303
      %v2336 = vadd.f32 %v2238, %v2304
      %v2337 = vadd.f32 %v2239, %v2305
      %v2338 = vadd.f32 %v2240, %v2306
      %v2339 = vadd.f32 %v2241, %v2307
      %v2340 = vadd.f32 %v2242, %v2308
      %v2341 = vadd.f32 %v2243, %v2309
      %v2342 = vadd.f32 %v2244, %v2310
      %v2343 = vadd.f32 %v2245, %v2311
      %v2344 = vadd.f32 %v2246, %v2312
      %v2345 = vadd.f32 %v2247, %v2313
      %v2346 = vadd.f32 %v2248, %v2314
      %v2347 = vadd.f32 %v2249, %v2315
      %v2348 = vadd.f32 %v2250, %v2316
      %v2349 = vadd.f32 %v2251, %v2317
      %v2350 = vadd.f32 %v2252, %v2318
      %v2351 = vadd.f32 %v2253, %v2319
      %v2352 = vadd.f32 %v2254, %v2320
      %v2353 = vadd.f32 %v2255, %v2321
      %v2354 = vadd.f32 %v2256, %v2322
      %v2355 = vadd.f32 %v2257, %v2323
      %v2356 = vadd.f32 %v2258, %v2324
      %v2357 = vadd.f32 %v2259, %v2325
      %v2358 = vadd.f32 %v2260, %v2326
      %v2359 = vadd.f32 %v2261, %v2327
      %v2360 = vadd.f32 %v2262, %v2328
      %v2361 = vadd.f32 %v2263, %v2329
      %v2362 = vadd.f32 %v2264, %v2330
      %v2363 = vadd.f32 %v2265, %v2331
      %v2364 = vld [vmem:[%s262] sm:$0xff]
      %v2365 = vld [vmem:[%s262 + $0x8] sm:$0xff]
      %v2366 = vld [vmem:[%s262 + $0x18] sm:$0xff]
      %v2367 = vld [vmem:[%s262 + $0x20] sm:$0xff]
      %v2368 = vld [vmem:[%s262 + $0x30] sm:$0xff]
      %v2369 = vld [vmem:[%s262 + $0x38] sm:$0xff]
      %v2370 = vld [vmem:[%s262 + $0x48] sm:$0xff]
      %v2371 = vld [vmem:[%s262 + $0x50] sm:$0xff]
      %v2372 = vld [vmem:[%s262 + $0x60] sm:$0xff]
      %v2373 = vld [vmem:[%s262 + $0x68] sm:$0xff]
      %v2374 = vld [vmem:[%s262 + $0x78] sm:$0xff]
      %v2375 = vld [vmem:[%s262 + $0x80] sm:$0xff]
      %v2376 = vld [vmem:[%s262 + $0x90] sm:$0xff]
      %v2377 = vld [vmem:[%s262 + $0x98] sm:$0xff]
      %v2378 = vld [vmem:[%s262 + $0xa8] sm:$0xff]
      %v2379 = vld [vmem:[%s262 + $0xb0] sm:$0xff]
      %v2380 = vld [vmem:[%s262 + $0xc0] sm:$0xff]
      %v2381 = vld [vmem:[%s262 + $0xc8] sm:$0xff]
      %v2382 = vld [vmem:[%s262 + $0xd8] sm:$0xff]
      %v2383 = vld [vmem:[%s262 + $0xe0] sm:$0xff]
      %v2384 = vld [vmem:[%s262 + $0xf0] sm:$0xff]
      %v2385 = vld [vmem:[%s262 + $0xf8] sm:$0xff]
      %v2386 = vld [vmem:[%s262 + $0x108] sm:$0xff]
      %v2387 = vld [vmem:[%s262 + $0x110] sm:$0xff]
      %v2388 = vld [vmem:[%s262 + $0x120] sm:$0xff]
      %v2389 = vld [vmem:[%s262 + $0x128] sm:$0xff]
      %v2390 = vld [vmem:[%s262 + $0x138] sm:$0xff]
      %v2391 = vld [vmem:[%s262 + $0x140] sm:$0xff]
      %v2392 = vld [vmem:[%s262 + $0x150] sm:$0xff]
      %v2393 = vld [vmem:[%s262 + $0x158] sm:$0xff]
      %v2394 = vld [vmem:[%s262 + $0x168] sm:$0xff]
      %v2395 = vld [vmem:[%s262 + $0x170] sm:$0xff]
      %s2396 = scalar_lea.vmem %s1, 24
      %v2397 = vld [vmem:[%s2396] sm:$0x1]
      %v2398 = vperm.slane %v2397, 0
      %v2399 = vmul.f32 %v2364, %v2398
      %v2400 = vmul.f32 %v2365, %v2398
      %v2401 = vmul.f32 %v2366, %v2398
      %v2402 = vmul.f32 %v2367, %v2398
      %v2403 = vmul.f32 %v2368, %v2398
      %v2404 = vmul.f32 %v2369, %v2398
      %v2405 = vmul.f32 %v2370, %v2398
      %v2406 = vmul.f32 %v2371, %v2398
      %v2407 = vmul.f32 %v2372, %v2398
      %v2408 = vmul.f32 %v2373, %v2398
      %v2409 = vmul.f32 %v2374, %v2398
      %v2410 = vmul.f32 %v2375, %v2398
      %v2411 = vmul.f32 %v2376, %v2398
      %v2412 = vmul.f32 %v2377, %v2398
      %v2413 = vmul.f32 %v2378, %v2398
      %v2414 = vmul.f32 %v2379, %v2398
      %v2415 = vmul.f32 %v2380, %v2398
      %v2416 = vmul.f32 %v2381, %v2398
      %v2417 = vmul.f32 %v2382, %v2398
      %v2418 = vmul.f32 %v2383, %v2398
      %v2419 = vmul.f32 %v2384, %v2398
      %v2420 = vmul.f32 %v2385, %v2398
      %v2421 = vmul.f32 %v2386, %v2398
      %v2422 = vmul.f32 %v2387, %v2398
      %v2423 = vmul.f32 %v2388, %v2398
      %v2424 = vmul.f32 %v2389, %v2398
      %v2425 = vmul.f32 %v2390, %v2398
      %v2426 = vmul.f32 %v2391, %v2398
      %v2427 = vmul.f32 %v2392, %v2398
      %v2428 = vmul.f32 %v2393, %v2398
      %v2429 = vmul.f32 %v2394, %v2398
      %v2430 = vmul.f32 %v2395, %v2398
      %v2431 = vadd.f32 %v2332, %v2399
      %v2432 = vadd.f32 %v2333, %v2400
      %v2433 = vadd.f32 %v2334, %v2401
      %v2434 = vadd.f32 %v2335, %v2402
      %v2435 = vadd.f32 %v2336, %v2403
      %v2436 = vadd.f32 %v2337, %v2404
      %v2437 = vadd.f32 %v2338, %v2405
      %v2438 = vadd.f32 %v2339, %v2406
      %v2439 = vadd.f32 %v2340, %v2407
      %v2440 = vadd.f32 %v2341, %v2408
      %v2441 = vadd.f32 %v2342, %v2409
      %v2442 = vadd.f32 %v2343, %v2410
      %v2443 = vadd.f32 %v2344, %v2411
      %v2444 = vadd.f32 %v2345, %v2412
      %v2445 = vadd.f32 %v2346, %v2413
      %v2446 = vadd.f32 %v2347, %v2414
      %v2447 = vadd.f32 %v2348, %v2415
      %v2448 = vadd.f32 %v2349, %v2416
      %v2449 = vadd.f32 %v2350, %v2417
      %v2450 = vadd.f32 %v2351, %v2418
      %v2451 = vadd.f32 %v2352, %v2419
      %v2452 = vadd.f32 %v2353, %v2420
      %v2453 = vadd.f32 %v2354, %v2421
      %v2454 = vadd.f32 %v2355, %v2422
      %v2455 = vadd.f32 %v2356, %v2423
      %v2456 = vadd.f32 %v2357, %v2424
      %v2457 = vadd.f32 %v2358, %v2425
      %v2458 = vadd.f32 %v2359, %v2426
      %v2459 = vadd.f32 %v2360, %v2427
      %v2460 = vadd.f32 %v2361, %v2428
      %v2461 = vadd.f32 %v2362, %v2429
      %v2462 = vadd.f32 %v2363, %v2430
      %v2463 = vld [vmem:[%s262 + $0x1] sm:$0xff]
      %v2464 = vld [vmem:[%s262 + $0x9] sm:$0xff]
      %v2465 = vld [vmem:[%s262 + $0x19] sm:$0xff]
      %v2466 = vld [vmem:[%s262 + $0x21] sm:$0xff]
      %v2467 = vld [vmem:[%s262 + $0x31] sm:$0xff]
      %v2468 = vld [vmem:[%s262 + $0x39] sm:$0xff]
      %v2469 = vld [vmem:[%s262 + $0x49] sm:$0xff]
      %v2470 = vld [vmem:[%s262 + $0x51] sm:$0xff]
      %v2471 = vld [vmem:[%s262 + $0x61] sm:$0xff]
      %v2472 = vld [vmem:[%s262 + $0x69] sm:$0xff]
      %v2473 = vld [vmem:[%s262 + $0x79] sm:$0xff]
      %v2474 = vld [vmem:[%s262 + $0x81] sm:$0xff]
      %v2475 = vld [vmem:[%s262 + $0x91] sm:$0xff]
      %v2476 = vld [vmem:[%s262 + $0x99] sm:$0xff]
      %v2477 = vld [vmem:[%s262 + $0xa9] sm:$0xff]
      %v2478 = vld [vmem:[%s262 + $0xb1] sm:$0xff]
      %v2479 = vld [vmem:[%s262 + $0xc1] sm:$0xff]
      %v2480 = vld [vmem:[%s262 + $0xc9] sm:$0xff]
      %v2481 = vld [vmem:[%s262 + $0xd9] sm:$0xff]
      %v2482 = vld [vmem:[%s262 + $0xe1] sm:$0xff]
      %v2483 = vld [vmem:[%s262 + $0xf1] sm:$0xff]
      %v2484 = vld [vmem:[%s262 + $0xf9] sm:$0xff]
      %v2485 = vld [vmem:[%s262 + $0x109] sm:$0xff]
      %v2486 = vld [vmem:[%s262 + $0x111] sm:$0xff]
      %v2487 = vld [vmem:[%s262 + $0x121] sm:$0xff]
      %v2488 = vld [vmem:[%s262 + $0x129] sm:$0xff]
      %v2489 = vld [vmem:[%s262 + $0x139] sm:$0xff]
      %v2490 = vld [vmem:[%s262 + $0x141] sm:$0xff]
      %v2491 = vld [vmem:[%s262 + $0x151] sm:$0xff]
      %v2492 = vld [vmem:[%s262 + $0x159] sm:$0xff]
      %v2493 = vld [vmem:[%s262 + $0x169] sm:$0xff]
      %v2494 = vld [vmem:[%s262 + $0x171] sm:$0xff]
      %v2495 = vld [vmem:[%s2396 + $0x1] sm:$0x1]
      %v2496 = vperm.slane %v2495, 0
      %v2497 = vmul.f32 %v2463, %v2496
      %v2498 = vmul.f32 %v2464, %v2496
      %v2499 = vmul.f32 %v2465, %v2496
      %v2500 = vmul.f32 %v2466, %v2496
      %v2501 = vmul.f32 %v2467, %v2496
      %v2502 = vmul.f32 %v2468, %v2496
      %v2503 = vmul.f32 %v2469, %v2496
      %v2504 = vmul.f32 %v2470, %v2496
      %v2505 = vmul.f32 %v2471, %v2496
      %v2506 = vmul.f32 %v2472, %v2496
      %v2507 = vmul.f32 %v2473, %v2496
      %v2508 = vmul.f32 %v2474, %v2496
      %v2509 = vmul.f32 %v2475, %v2496
      %v2510 = vmul.f32 %v2476, %v2496
      %v2511 = vmul.f32 %v2477, %v2496
      %v2512 = vmul.f32 %v2478, %v2496
      %v2513 = vmul.f32 %v2479, %v2496
      %v2514 = vmul.f32 %v2480, %v2496
      %v2515 = vmul.f32 %v2481, %v2496
      %v2516 = vmul.f32 %v2482, %v2496
      %v2517 = vmul.f32 %v2483, %v2496
      %v2518 = vmul.f32 %v2484, %v2496
      %v2519 = vmul.f32 %v2485, %v2496
      %v2520 = vmul.f32 %v2486, %v2496
      %v2521 = vmul.f32 %v2487, %v2496
      %v2522 = vmul.f32 %v2488, %v2496
      %v2523 = vmul.f32 %v2489, %v2496
      %v2524 = vmul.f32 %v2490, %v2496
      %v2525 = vmul.f32 %v2491, %v2496
      %v2526 = vmul.f32 %v2492, %v2496
      %v2527 = vmul.f32 %v2493, %v2496
      %v2528 = vmul.f32 %v2494, %v2496
      %v2529 = vadd.f32 %v2431, %v2497
      %v2530 = vadd.f32 %v2432, %v2498
      %v2531 = vadd.f32 %v2433, %v2499
      %v2532 = vadd.f32 %v2434, %v2500
      %v2533 = vadd.f32 %v2435, %v2501
      %v2534 = vadd.f32 %v2436, %v2502
      %v2535 = vadd.f32 %v2437, %v2503
      %v2536 = vadd.f32 %v2438, %v2504
      %v2537 = vadd.f32 %v2439, %v2505
      %v2538 = vadd.f32 %v2440, %v2506
      %v2539 = vadd.f32 %v2441, %v2507
      %v2540 = vadd.f32 %v2442, %v2508
      %v2541 = vadd.f32 %v2443, %v2509
      %v2542 = vadd.f32 %v2444, %v2510
      %v2543 = vadd.f32 %v2445, %v2511
      %v2544 = vadd.f32 %v2446, %v2512
      %v2545 = vadd.f32 %v2447, %v2513
      %v2546 = vadd.f32 %v2448, %v2514
      %v2547 = vadd.f32 %v2449, %v2515
      %v2548 = vadd.f32 %v2450, %v2516
      %v2549 = vadd.f32 %v2451, %v2517
      %v2550 = vadd.f32 %v2452, %v2518
      %v2551 = vadd.f32 %v2453, %v2519
      %v2552 = vadd.f32 %v2454, %v2520
      %v2553 = vadd.f32 %v2455, %v2521
      %v2554 = vadd.f32 %v2456, %v2522
      %v2555 = vadd.f32 %v2457, %v2523
      %v2556 = vadd.f32 %v2458, %v2524
      %v2557 = vadd.f32 %v2459, %v2525
      %v2558 = vadd.f32 %v2460, %v2526
      %v2559 = vadd.f32 %v2461, %v2527
      %v2560 = vadd.f32 %v2462, %v2528
      %v2561 = vld [vmem:[%s262 + $0x2] sm:$0xff]
      %v2562 = vld [vmem:[%s262 + $0xa] sm:$0xff]
      %v2563 = vld [vmem:[%s262 + $0x1a] sm:$0xff]
      %v2564 = vld [vmem:[%s262 + $0x22] sm:$0xff]
      %v2565 = vld [vmem:[%s262 + $0x32] sm:$0xff]
      %v2566 = vld [vmem:[%s262 + $0x3a] sm:$0xff]
      %v2567 = vld [vmem:[%s262 + $0x4a] sm:$0xff]
      %v2568 = vld [vmem:[%s262 + $0x52] sm:$0xff]
      %v2569 = vld [vmem:[%s262 + $0x62] sm:$0xff]
      %v2570 = vld [vmem:[%s262 + $0x6a] sm:$0xff]
      %v2571 = vld [vmem:[%s262 + $0x7a] sm:$0xff]
      %v2572 = vld [vmem:[%s262 + $0x82] sm:$0xff]
      %v2573 = vld [vmem:[%s262 + $0x92] sm:$0xff]
      %v2574 = vld [vmem:[%s262 + $0x9a] sm:$0xff]
      %v2575 = vld [vmem:[%s262 + $0xaa] sm:$0xff]
      %v2576 = vld [vmem:[%s262 + $0xb2] sm:$0xff]
      %v2577 = vld [vmem:[%s262 + $0xc2] sm:$0xff]
      %v2578 = vld [vmem:[%s262 + $0xca] sm:$0xff]
      %v2579 = vld [vmem:[%s262 + $0xda] sm:$0xff]
      %v2580 = vld [vmem:[%s262 + $0xe2] sm:$0xff]
      %v2581 = vld [vmem:[%s262 + $0xf2] sm:$0xff]
      %v2582 = vld [vmem:[%s262 + $0xfa] sm:$0xff]
      %v2583 = vld [vmem:[%s262 + $0x10a] sm:$0xff]
      %v2584 = vld [vmem:[%s262 + $0x112] sm:$0xff]
      %v2585 = vld [vmem:[%s262 + $0x122] sm:$0xff]
      %v2586 = vld [vmem:[%s262 + $0x12a] sm:$0xff]
      %v2587 = vld [vmem:[%s262 + $0x13a] sm:$0xff]
      %v2588 = vld [vmem:[%s262 + $0x142] sm:$0xff]
      %v2589 = vld [vmem:[%s262 + $0x152] sm:$0xff]
      %v2590 = vld [vmem:[%s262 + $0x15a] sm:$0xff]
      %v2591 = vld [vmem:[%s262 + $0x16a] sm:$0xff]
      %v2592 = vld [vmem:[%s262 + $0x172] sm:$0xff]
      %v2593 = vld [vmem:[%s2396 + $0x2] sm:$0x1]
      %v2594 = vperm.slane %v2593, 0
      %v2595 = vmul.f32 %v2561, %v2594
      %v2596 = vmul.f32 %v2562, %v2594
      %v2597 = vmul.f32 %v2563, %v2594
      %v2598 = vmul.f32 %v2564, %v2594
      %v2599 = vmul.f32 %v2565, %v2594
      %v2600 = vmul.f32 %v2566, %v2594
      %v2601 = vmul.f32 %v2567, %v2594
      %v2602 = vmul.f32 %v2568, %v2594
      %v2603 = vmul.f32 %v2569, %v2594
      %v2604 = vmul.f32 %v2570, %v2594
      %v2605 = vmul.f32 %v2571, %v2594
      %v2606 = vmul.f32 %v2572, %v2594
      %v2607 = vmul.f32 %v2573, %v2594
      %v2608 = vmul.f32 %v2574, %v2594
      %v2609 = vmul.f32 %v2575, %v2594
      %v2610 = vmul.f32 %v2576, %v2594
      %v2611 = vmul.f32 %v2577, %v2594
      %v2612 = vmul.f32 %v2578, %v2594
      %v2613 = vmul.f32 %v2579, %v2594
      %v2614 = vmul.f32 %v2580, %v2594
      %v2615 = vmul.f32 %v2581, %v2594
      %v2616 = vmul.f32 %v2582, %v2594
      %v2617 = vmul.f32 %v2583, %v2594
      %v2618 = vmul.f32 %v2584, %v2594
      %v2619 = vmul.f32 %v2585, %v2594
      %v2620 = vmul.f32 %v2586, %v2594
      %v2621 = vmul.f32 %v2587, %v2594
      %v2622 = vmul.f32 %v2588, %v2594
      %v2623 = vmul.f32 %v2589, %v2594
      %v2624 = vmul.f32 %v2590, %v2594
      %v2625 = vmul.f32 %v2591, %v2594
      %v2626 = vmul.f32 %v2592, %v2594
      %v2627 = vadd.f32 %v2529, %v2595
      %v2628 = vadd.f32 %v2530, %v2596
      %v2629 = vadd.f32 %v2531, %v2597
      %v2630 = vadd.f32 %v2532, %v2598
      %v2631 = vadd.f32 %v2533, %v2599
      %v2632 = vadd.f32 %v2534, %v2600
      %v2633 = vadd.f32 %v2535, %v2601
      %v2634 = vadd.f32 %v2536, %v2602
      %v2635 = vadd.f32 %v2537, %v2603
      %v2636 = vadd.f32 %v2538, %v2604
      %v2637 = vadd.f32 %v2539, %v2605
      %v2638 = vadd.f32 %v2540, %v2606
      %v2639 = vadd.f32 %v2541, %v2607
      %v2640 = vadd.f32 %v2542, %v2608
      %v2641 = vadd.f32 %v2543, %v2609
      %v2642 = vadd.f32 %v2544, %v2610
      %v2643 = vadd.f32 %v2545, %v2611
      %v2644 = vadd.f32 %v2546, %v2612
      %v2645 = vadd.f32 %v2547, %v2613
      %v2646 = vadd.f32 %v2548, %v2614
      %v2647 = vadd.f32 %v2549, %v2615
      %v2648 = vadd.f32 %v2550, %v2616
      %v2649 = vadd.f32 %v2551, %v2617
      %v2650 = vadd.f32 %v2552, %v2618
      %v2651 = vadd.f32 %v2553, %v2619
      %v2652 = vadd.f32 %v2554, %v2620
      %v2653 = vadd.f32 %v2555, %v2621
      %v2654 = vadd.f32 %v2556, %v2622
      %v2655 = vadd.f32 %v2557, %v2623
      %v2656 = vadd.f32 %v2558, %v2624
      %v2657 = vadd.f32 %v2559, %v2625
      %v2658 = vadd.f32 %v2560, %v2626
      %v2659 = vld [vmem:[%s262 + $0x3] sm:$0xff]
      %v2660 = vld [vmem:[%s262 + $0xb] sm:$0xff]
      %v2661 = vld [vmem:[%s262 + $0x1b] sm:$0xff]
      %v2662 = vld [vmem:[%s262 + $0x23] sm:$0xff]
      %v2663 = vld [vmem:[%s262 + $0x33] sm:$0xff]
      %v2664 = vld [vmem:[%s262 + $0x3b] sm:$0xff]
      %v2665 = vld [vmem:[%s262 + $0x4b] sm:$0xff]
      %v2666 = vld [vmem:[%s262 + $0x53] sm:$0xff]
      %v2667 = vld [vmem:[%s262 + $0x63] sm:$0xff]
      %v2668 = vld [vmem:[%s262 + $0x6b] sm:$0xff]
      %v2669 = vld [vmem:[%s262 + $0x7b] sm:$0xff]
      %v2670 = vld [vmem:[%s262 + $0x83] sm:$0xff]
      %v2671 = vld [vmem:[%s262 + $0x93] sm:$0xff]
      %v2672 = vld [vmem:[%s262 + $0x9b] sm:$0xff]
      %v2673 = vld [vmem:[%s262 + $0xab] sm:$0xff]
      %v2674 = vld [vmem:[%s262 + $0xb3] sm:$0xff]
      %v2675 = vld [vmem:[%s262 + $0xc3] sm:$0xff]
      %v2676 = vld [vmem:[%s262 + $0xcb] sm:$0xff]
      %v2677 = vld [vmem:[%s262 + $0xdb] sm:$0xff]
      %v2678 = vld [vmem:[%s262 + $0xe3] sm:$0xff]
      %v2679 = vld [vmem:[%s262 + $0xf3] sm:$0xff]
      %v2680 = vld [vmem:[%s262 + $0xfb] sm:$0xff]
      %v2681 = vld [vmem:[%s262 + $0x10b] sm:$0xff]
      %v2682 = vld [vmem:[%s262 + $0x113] sm:$0xff]
      %v2683 = vld [vmem:[%s262 + $0x123] sm:$0xff]
      %v2684 = vld [vmem:[%s262 + $0x12b] sm:$0xff]
      %v2685 = vld [vmem:[%s262 + $0x13b] sm:$0xff]
      %v2686 = vld [vmem:[%s262 + $0x143] sm:$0xff]
      %v2687 = vld [vmem:[%s262 + $0x153] sm:$0xff]
      %v2688 = vld [vmem:[%s262 + $0x15b] sm:$0xff]
      %v2689 = vld [vmem:[%s262 + $0x16b] sm:$0xff]
      %v2690 = vld [vmem:[%s262 + $0x173] sm:$0xff]
      %v2691 = vld [vmem:[%s2396 + $0x3] sm:$0x1]
      %v2692 = vperm.slane %v2691, 0
      %v2693 = vmul.f32 %v2659, %v2692
      %v2694 = vmul.f32 %v2660, %v2692
      %v2695 = vmul.f32 %v2661, %v2692
      %v2696 = vmul.f32 %v2662, %v2692
      %v2697 = vmul.f32 %v2663, %v2692
      %v2698 = vmul.f32 %v2664, %v2692
      %v2699 = vmul.f32 %v2665, %v2692
      %v2700 = vmul.f32 %v2666, %v2692
      %v2701 = vmul.f32 %v2667, %v2692
      %v2702 = vmul.f32 %v2668, %v2692
      %v2703 = vmul.f32 %v2669, %v2692
      %v2704 = vmul.f32 %v2670, %v2692
      %v2705 = vmul.f32 %v2671, %v2692
      %v2706 = vmul.f32 %v2672, %v2692
      %v2707 = vmul.f32 %v2673, %v2692
      %v2708 = vmul.f32 %v2674, %v2692
      %v2709 = vmul.f32 %v2675, %v2692
      %v2710 = vmul.f32 %v2676, %v2692
      %v2711 = vmul.f32 %v2677, %v2692
      %v2712 = vmul.f32 %v2678, %v2692
      %v2713 = vmul.f32 %v2679, %v2692
      %v2714 = vmul.f32 %v2680, %v2692
      %v2715 = vmul.f32 %v2681, %v2692
      %v2716 = vmul.f32 %v2682, %v2692
      %v2717 = vmul.f32 %v2683, %v2692
      %v2718 = vmul.f32 %v2684, %v2692
      %v2719 = vmul.f32 %v2685, %v2692
      %v2720 = vmul.f32 %v2686, %v2692
      %v2721 = vmul.f32 %v2687, %v2692
      %v2722 = vmul.f32 %v2688, %v2692
      %v2723 = vmul.f32 %v2689, %v2692
      %v2724 = vmul.f32 %v2690, %v2692
      %v2725 = vadd.f32 %v2627, %v2693
      %v2726 = vadd.f32 %v2628, %v2694
      %v2727 = vadd.f32 %v2629, %v2695
      %v2728 = vadd.f32 %v2630, %v2696
      %v2729 = vadd.f32 %v2631, %v2697
      %v2730 = vadd.f32 %v2632, %v2698
      %v2731 = vadd.f32 %v2633, %v2699
      %v2732 = vadd.f32 %v2634, %v2700
      %v2733 = vadd.f32 %v2635, %v2701
      %v2734 = vadd.f32 %v2636, %v2702
      %v2735 = vadd.f32 %v2637, %v2703
      %v2736 = vadd.f32 %v2638, %v2704
      %v2737 = vadd.f32 %v2639, %v2705
      %v2738 = vadd.f32 %v2640, %v2706
      %v2739 = vadd.f32 %v2641, %v2707
      %v2740 = vadd.f32 %v2642, %v2708
      %v2741 = vadd.f32 %v2643, %v2709
      %v2742 = vadd.f32 %v2644, %v2710
      %v2743 = vadd.f32 %v2645, %v2711
      %v2744 = vadd.f32 %v2646, %v2712
      %v2745 = vadd.f32 %v2647, %v2713
      %v2746 = vadd.f32 %v2648, %v2714
      %v2747 = vadd.f32 %v2649, %v2715
      %v2748 = vadd.f32 %v2650, %v2716
      %v2749 = vadd.f32 %v2651, %v2717
      %v2750 = vadd.f32 %v2652, %v2718
      %v2751 = vadd.f32 %v2653, %v2719
      %v2752 = vadd.f32 %v2654, %v2720
      %v2753 = vadd.f32 %v2655, %v2721
      %v2754 = vadd.f32 %v2656, %v2722
      %v2755 = vadd.f32 %v2657, %v2723
      %v2756 = vadd.f32 %v2658, %v2724
      %v2757 = vld [vmem:[%s262 + $0x4] sm:$0xff]
      %v2758 = vld [vmem:[%s262 + $0xc] sm:$0xff]
      %v2759 = vld [vmem:[%s262 + $0x1c] sm:$0xff]
      %v2760 = vld [vmem:[%s262 + $0x24] sm:$0xff]
      %v2761 = vld [vmem:[%s262 + $0x34] sm:$0xff]
      %v2762 = vld [vmem:[%s262 + $0x3c] sm:$0xff]
      %v2763 = vld [vmem:[%s262 + $0x4c] sm:$0xff]
      %v2764 = vld [vmem:[%s262 + $0x54] sm:$0xff]
      %v2765 = vld [vmem:[%s262 + $0x64] sm:$0xff]
      %v2766 = vld [vmem:[%s262 + $0x6c] sm:$0xff]
      %v2767 = vld [vmem:[%s262 + $0x7c] sm:$0xff]
      %v2768 = vld [vmem:[%s262 + $0x84] sm:$0xff]
      %v2769 = vld [vmem:[%s262 + $0x94] sm:$0xff]
      %v2770 = vld [vmem:[%s262 + $0x9c] sm:$0xff]
      %v2771 = vld [vmem:[%s262 + $0xac] sm:$0xff]
      %v2772 = vld [vmem:[%s262 + $0xb4] sm:$0xff]
      %v2773 = vld [vmem:[%s262 + $0xc4] sm:$0xff]
      %v2774 = vld [vmem:[%s262 + $0xcc] sm:$0xff]
      %v2775 = vld [vmem:[%s262 + $0xdc] sm:$0xff]
      %v2776 = vld [vmem:[%s262 + $0xe4] sm:$0xff]
      %v2777 = vld [vmem:[%s262 + $0xf4] sm:$0xff]
      %v2778 = vld [vmem:[%s262 + $0xfc] sm:$0xff]
      %v2779 = vld [vmem:[%s262 + $0x10c] sm:$0xff]
      %v2780 = vld [vmem:[%s262 + $0x114] sm:$0xff]
      %v2781 = vld [vmem:[%s262 + $0x124] sm:$0xff]
      %v2782 = vld [vmem:[%s262 + $0x12c] sm:$0xff]
      %v2783 = vld [vmem:[%s262 + $0x13c] sm:$0xff]
      %v2784 = vld [vmem:[%s262 + $0x144] sm:$0xff]
      %v2785 = vld [vmem:[%s262 + $0x154] sm:$0xff]
      %v2786 = vld [vmem:[%s262 + $0x15c] sm:$0xff]
      %v2787 = vld [vmem:[%s262 + $0x16c] sm:$0xff]
      %v2788 = vld [vmem:[%s262 + $0x174] sm:$0xff]
      %v2789 = vld [vmem:[%s2396 + $0x4] sm:$0x1]
      %v2790 = vperm.slane %v2789, 0
      %v2791 = vmul.f32 %v2757, %v2790
      %v2792 = vmul.f32 %v2758, %v2790
      %v2793 = vmul.f32 %v2759, %v2790
      %v2794 = vmul.f32 %v2760, %v2790
      %v2795 = vmul.f32 %v2761, %v2790
      %v2796 = vmul.f32 %v2762, %v2790
      %v2797 = vmul.f32 %v2763, %v2790
      %v2798 = vmul.f32 %v2764, %v2790
      %v2799 = vmul.f32 %v2765, %v2790
      %v2800 = vmul.f32 %v2766, %v2790
      %v2801 = vmul.f32 %v2767, %v2790
      %v2802 = vmul.f32 %v2768, %v2790
      %v2803 = vmul.f32 %v2769, %v2790
      %v2804 = vmul.f32 %v2770, %v2790
      %v2805 = vmul.f32 %v2771, %v2790
      %v2806 = vmul.f32 %v2772, %v2790
      %v2807 = vmul.f32 %v2773, %v2790
      %v2808 = vmul.f32 %v2774, %v2790
      %v2809 = vmul.f32 %v2775, %v2790
      %v2810 = vmul.f32 %v2776, %v2790
      %v2811 = vmul.f32 %v2777, %v2790
      %v2812 = vmul.f32 %v2778, %v2790
      %v2813 = vmul.f32 %v2779, %v2790
      %v2814 = vmul.f32 %v2780, %v2790
      %v2815 = vmul.f32 %v2781, %v2790
      %v2816 = vmul.f32 %v2782, %v2790
      %v2817 = vmul.f32 %v2783, %v2790
      %v2818 = vmul.f32 %v2784, %v2790
      %v2819 = vmul.f32 %v2785, %v2790
      %v2820 = vmul.f32 %v2786, %v2790
      %v2821 = vmul.f32 %v2787, %v2790
      %v2822 = vmul.f32 %v2788, %v2790
      %v2823 = vadd.f32 %v2725, %v2791
      %v2824 = vadd.f32 %v2726, %v2792
      %v2825 = vadd.f32 %v2727, %v2793
      %v2826 = vadd.f32 %v2728, %v2794
      %v2827 = vadd.f32 %v2729, %v2795
      %v2828 = vadd.f32 %v2730, %v2796
      %v2829 = vadd.f32 %v2731, %v2797
      %v2830 = vadd.f32 %v2732, %v2798
      %v2831 = vadd.f32 %v2733, %v2799
      %v2832 = vadd.f32 %v2734, %v2800
      %v2833 = vadd.f32 %v2735, %v2801
      %v2834 = vadd.f32 %v2736, %v2802
      %v2835 = vadd.f32 %v2737, %v2803
      %v2836 = vadd.f32 %v2738, %v2804
      %v2837 = vadd.f32 %v2739, %v2805
      %v2838 = vadd.f32 %v2740, %v2806
      %v2839 = vadd.f32 %v2741, %v2807
      %v2840 = vadd.f32 %v2742, %v2808
      %v2841 = vadd.f32 %v2743, %v2809
      %v2842 = vadd.f32 %v2744, %v2810
      %v2843 = vadd.f32 %v2745, %v2811
      %v2844 = vadd.f32 %v2746, %v2812
      %v2845 = vadd.f32 %v2747, %v2813
      %v2846 = vadd.f32 %v2748, %v2814
      %v2847 = vadd.f32 %v2749, %v2815
      %v2848 = vadd.f32 %v2750, %v2816
      %v2849 = vadd.f32 %v2751, %v2817
      %v2850 = vadd.f32 %v2752, %v2818
      %v2851 = vadd.f32 %v2753, %v2819
      %v2852 = vadd.f32 %v2754, %v2820
      %v2853 = vadd.f32 %v2755, %v2821
      %v2854 = vadd.f32 %v2756, %v2822
      %v2855 = vld [vmem:[%s262 + $0x5] sm:$0xff]
      %v2856 = vld [vmem:[%s262 + $0xd] sm:$0xff]
      %v2857 = vld [vmem:[%s262 + $0x1d] sm:$0xff]
      %v2858 = vld [vmem:[%s262 + $0x25] sm:$0xff]
      %v2859 = vld [vmem:[%s262 + $0x35] sm:$0xff]
      %v2860 = vld [vmem:[%s262 + $0x3d] sm:$0xff]
      %v2861 = vld [vmem:[%s262 + $0x4d] sm:$0xff]
      %v2862 = vld [vmem:[%s262 + $0x55] sm:$0xff]
      %v2863 = vld [vmem:[%s262 + $0x65] sm:$0xff]
      %v2864 = vld [vmem:[%s262 + $0x6d] sm:$0xff]
      %v2865 = vld [vmem:[%s262 + $0x7d] sm:$0xff]
      %v2866 = vld [vmem:[%s262 + $0x85] sm:$0xff]
      %v2867 = vld [vmem:[%s262 + $0x95] sm:$0xff]
      %v2868 = vld [vmem:[%s262 + $0x9d] sm:$0xff]
      %v2869 = vld [vmem:[%s262 + $0xad] sm:$0xff]
      %v2870 = vld [vmem:[%s262 + $0xb5] sm:$0xff]
      %v2871 = vld [vmem:[%s262 + $0xc5] sm:$0xff]
      %v2872 = vld [vmem:[%s262 + $0xcd] sm:$0xff]
      %v2873 = vld [vmem:[%s262 + $0xdd] sm:$0xff]
      %v2874 = vld [vmem:[%s262 + $0xe5] sm:$0xff]
      %v2875 = vld [vmem:[%s262 + $0xf5] sm:$0xff]
      %v2876 = vld [vmem:[%s262 + $0xfd] sm:$0xff]
      %v2877 = vld [vmem:[%s262 + $0x10d] sm:$0xff]
      %v2878 = vld [vmem:[%s262 + $0x115] sm:$0xff]
      %v2879 = vld [vmem:[%s262 + $0x125] sm:$0xff]
      %v2880 = vld [vmem:[%s262 + $0x12d] sm:$0xff]
      %v2881 = vld [vmem:[%s262 + $0x13d] sm:$0xff]
      %v2882 = vld [vmem:[%s262 + $0x145] sm:$0xff]
      %v2883 = vld [vmem:[%s262 + $0x155] sm:$0xff]
      %v2884 = vld [vmem:[%s262 + $0x15d] sm:$0xff]
      %v2885 = vld [vmem:[%s262 + $0x16d] sm:$0xff]
      %v2886 = vld [vmem:[%s262 + $0x175] sm:$0xff]
      %v2887 = vld [vmem:[%s2396 + $0x5] sm:$0x1]
      %v2888 = vperm.slane %v2887, 0
      %v2889 = vmul.f32 %v2855, %v2888
      %v2890 = vmul.f32 %v2856, %v2888
      %v2891 = vmul.f32 %v2857, %v2888
      %v2892 = vmul.f32 %v2858, %v2888
      %v2893 = vmul.f32 %v2859, %v2888
      %v2894 = vmul.f32 %v2860, %v2888
      %v2895 = vmul.f32 %v2861, %v2888
      %v2896 = vmul.f32 %v2862, %v2888
      %v2897 = vmul.f32 %v2863, %v2888
      %v2898 = vmul.f32 %v2864, %v2888
      %v2899 = vmul.f32 %v2865, %v2888
      %v2900 = vmul.f32 %v2866, %v2888
      %v2901 = vmul.f32 %v2867, %v2888
      %v2902 = vmul.f32 %v2868, %v2888
      %v2903 = vmul.f32 %v2869, %v2888
      %v2904 = vmul.f32 %v2870, %v2888
      %v2905 = vmul.f32 %v2871, %v2888
      %v2906 = vmul.f32 %v2872, %v2888
      %v2907 = vmul.f32 %v2873, %v2888
      %v2908 = vmul.f32 %v2874, %v2888
      %v2909 = vmul.f32 %v2875, %v2888
      %v2910 = vmul.f32 %v2876, %v2888
      %v2911 = vmul.f32 %v2877, %v2888
      %v2912 = vmul.f32 %v2878, %v2888
      %v2913 = vmul.f32 %v2879, %v2888
      %v2914 = vmul.f32 %v2880, %v2888
      %v2915 = vmul.f32 %v2881, %v2888
      %v2916 = vmul.f32 %v2882, %v2888
      %v2917 = vmul.f32 %v2883, %v2888
      %v2918 = vmul.f32 %v2884, %v2888
      %v2919 = vmul.f32 %v2885, %v2888
      %v2920 = vmul.f32 %v2886, %v2888
      %v2921 = vadd.f32 %v2823, %v2889
      %v2922 = vadd.f32 %v2824, %v2890
      %v2923 = vadd.f32 %v2825, %v2891
      %v2924 = vadd.f32 %v2826, %v2892
      %v2925 = vadd.f32 %v2827, %v2893
      %v2926 = vadd.f32 %v2828, %v2894
      %v2927 = vadd.f32 %v2829, %v2895
      %v2928 = vadd.f32 %v2830, %v2896
      %v2929 = vadd.f32 %v2831, %v2897
      %v2930 = vadd.f32 %v2832, %v2898
      %v2931 = vadd.f32 %v2833, %v2899
      %v2932 = vadd.f32 %v2834, %v2900
      %v2933 = vadd.f32 %v2835, %v2901
      %v2934 = vadd.f32 %v2836, %v2902
      %v2935 = vadd.f32 %v2837, %v2903
      %v2936 = vadd.f32 %v2838, %v2904
      %v2937 = vadd.f32 %v2839, %v2905
      %v2938 = vadd.f32 %v2840, %v2906
      %v2939 = vadd.f32 %v2841, %v2907
      %v2940 = vadd.f32 %v2842, %v2908
      %v2941 = vadd.f32 %v2843, %v2909
      %v2942 = vadd.f32 %v2844, %v2910
      %v2943 = vadd.f32 %v2845, %v2911
      %v2944 = vadd.f32 %v2846, %v2912
      %v2945 = vadd.f32 %v2847, %v2913
      %v2946 = vadd.f32 %v2848, %v2914
      %v2947 = vadd.f32 %v2849, %v2915
      %v2948 = vadd.f32 %v2850, %v2916
      %v2949 = vadd.f32 %v2851, %v2917
      %v2950 = vadd.f32 %v2852, %v2918
      %v2951 = vadd.f32 %v2853, %v2919
      %v2952 = vadd.f32 %v2854, %v2920
      %v2953 = vld [vmem:[%s262 + $0x6] sm:$0xff]
      %v2954 = vld [vmem:[%s262 + $0xe] sm:$0xff]
      %v2955 = vld [vmem:[%s262 + $0x1e] sm:$0xff]
      %v2956 = vld [vmem:[%s262 + $0x26] sm:$0xff]
      %v2957 = vld [vmem:[%s262 + $0x36] sm:$0xff]
      %v2958 = vld [vmem:[%s262 + $0x3e] sm:$0xff]
      %v2959 = vld [vmem:[%s262 + $0x4e] sm:$0xff]
      %v2960 = vld [vmem:[%s262 + $0x56] sm:$0xff]
      %v2961 = vld [vmem:[%s262 + $0x66] sm:$0xff]
      %v2962 = vld [vmem:[%s262 + $0x6e] sm:$0xff]
      %v2963 = vld [vmem:[%s262 + $0x7e] sm:$0xff]
      %v2964 = vld [vmem:[%s262 + $0x86] sm:$0xff]
      %v2965 = vld [vmem:[%s262 + $0x96] sm:$0xff]
      %v2966 = vld [vmem:[%s262 + $0x9e] sm:$0xff]
      %v2967 = vld [vmem:[%s262 + $0xae] sm:$0xff]
      %v2968 = vld [vmem:[%s262 + $0xb6] sm:$0xff]
      %v2969 = vld [vmem:[%s262 + $0xc6] sm:$0xff]
      %v2970 = vld [vmem:[%s262 + $0xce] sm:$0xff]
      %v2971 = vld [vmem:[%s262 + $0xde] sm:$0xff]
      %v2972 = vld [vmem:[%s262 + $0xe6] sm:$0xff]
      %v2973 = vld [vmem:[%s262 + $0xf6] sm:$0xff]
      %v2974 = vld [vmem:[%s262 + $0xfe] sm:$0xff]
      %v2975 = vld [vmem:[%s262 + $0x10e] sm:$0xff]
      %v2976 = vld [vmem:[%s262 + $0x116] sm:$0xff]
      %v2977 = vld [vmem:[%s262 + $0x126] sm:$0xff]
      %v2978 = vld [vmem:[%s262 + $0x12e] sm:$0xff]
      %v2979 = vld [vmem:[%s262 + $0x13e] sm:$0xff]
      %v2980 = vld [vmem:[%s262 + $0x146] sm:$0xff]
      %v2981 = vld [vmem:[%s262 + $0x156] sm:$0xff]
      %v2982 = vld [vmem:[%s262 + $0x15e] sm:$0xff]
      %v2983 = vld [vmem:[%s262 + $0x16e] sm:$0xff]
      %v2984 = vld [vmem:[%s262 + $0x176] sm:$0xff]
      %v2985 = vld [vmem:[%s2396 + $0x6] sm:$0x1]
      %v2986 = vperm.slane %v2985, 0
      %v2987 = vmul.f32 %v2953, %v2986
      %v2988 = vmul.f32 %v2954, %v2986
      %v2989 = vmul.f32 %v2955, %v2986
      %v2990 = vmul.f32 %v2956, %v2986
      %v2991 = vmul.f32 %v2957, %v2986
      %v2992 = vmul.f32 %v2958, %v2986
      %v2993 = vmul.f32 %v2959, %v2986
      %v2994 = vmul.f32 %v2960, %v2986
      %v2995 = vmul.f32 %v2961, %v2986
      %v2996 = vmul.f32 %v2962, %v2986
      %v2997 = vmul.f32 %v2963, %v2986
      %v2998 = vmul.f32 %v2964, %v2986
      %v2999 = vmul.f32 %v2965, %v2986
      %v3000 = vmul.f32 %v2966, %v2986
      %v3001 = vmul.f32 %v2967, %v2986
      %v3002 = vmul.f32 %v2968, %v2986
      %v3003 = vmul.f32 %v2969, %v2986
      %v3004 = vmul.f32 %v2970, %v2986
      %v3005 = vmul.f32 %v2971, %v2986
      %v3006 = vmul.f32 %v2972, %v2986
      %v3007 = vmul.f32 %v2973, %v2986
      %v3008 = vmul.f32 %v2974, %v2986
      %v3009 = vmul.f32 %v2975, %v2986
      %v3010 = vmul.f32 %v2976, %v2986
      %v3011 = vmul.f32 %v2977, %v2986
      %v3012 = vmul.f32 %v2978, %v2986
      %v3013 = vmul.f32 %v2979, %v2986
      %v3014 = vmul.f32 %v2980, %v2986
      %v3015 = vmul.f32 %v2981, %v2986
      %v3016 = vmul.f32 %v2982, %v2986
      %v3017 = vmul.f32 %v2983, %v2986
      %v3018 = vmul.f32 %v2984, %v2986
      %v3019 = vadd.f32 %v2921, %v2987
      %v3020 = vadd.f32 %v2922, %v2988
      %v3021 = vadd.f32 %v2923, %v2989
      %v3022 = vadd.f32 %v2924, %v2990
      %v3023 = vadd.f32 %v2925, %v2991
      %v3024 = vadd.f32 %v2926, %v2992
      %v3025 = vadd.f32 %v2927, %v2993
      %v3026 = vadd.f32 %v2928, %v2994
      %v3027 = vadd.f32 %v2929, %v2995
      %v3028 = vadd.f32 %v2930, %v2996
      %v3029 = vadd.f32 %v2931, %v2997
      %v3030 = vadd.f32 %v2932, %v2998
      %v3031 = vadd.f32 %v2933, %v2999
      %v3032 = vadd.f32 %v2934, %v3000
      %v3033 = vadd.f32 %v2935, %v3001
      %v3034 = vadd.f32 %v2936, %v3002
      %v3035 = vadd.f32 %v2937, %v3003
      %v3036 = vadd.f32 %v2938, %v3004
      %v3037 = vadd.f32 %v2939, %v3005
      %v3038 = vadd.f32 %v2940, %v3006
      %v3039 = vadd.f32 %v2941, %v3007
      %v3040 = vadd.f32 %v2942, %v3008
      %v3041 = vadd.f32 %v2943, %v3009
      %v3042 = vadd.f32 %v2944, %v3010
      %v3043 = vadd.f32 %v2945, %v3011
      %v3044 = vadd.f32 %v2946, %v3012
      %v3045 = vadd.f32 %v2947, %v3013
      %v3046 = vadd.f32 %v2948, %v3014
      %v3047 = vadd.f32 %v2949, %v3015
      %v3048 = vadd.f32 %v2950, %v3016
      %v3049 = vadd.f32 %v2951, %v3017
      %v3050 = vadd.f32 %v2952, %v3018
      %s3051 = sadd.s32 0, 4
      %s3052 = smul.u32 %s3051, 24
      %s3053 = scalar_lea.vmem [#allocation2], %s3052
      %v3054 = vld [vmem:[%s3053] sm:$0xff]
      %v3055 = vld [vmem:[%s3053 + $0x8] sm:$0xff]
      %v3056 = vld [vmem:[%s3053 + $0x18] sm:$0xff]
      %v3057 = vld [vmem:[%s3053 + $0x20] sm:$0xff]
      %v3058 = vld [vmem:[%s3053 + $0x30] sm:$0xff]
      %v3059 = vld [vmem:[%s3053 + $0x38] sm:$0xff]
      %v3060 = vld [vmem:[%s3053 + $0x48] sm:$0xff]
      %v3061 = vld [vmem:[%s3053 + $0x50] sm:$0xff]
      %v3062 = vld [vmem:[%s3053 + $0x60] sm:$0xff]
      %v3063 = vld [vmem:[%s3053 + $0x68] sm:$0xff]
      %v3064 = vld [vmem:[%s3053 + $0x78] sm:$0xff]
      %v3065 = vld [vmem:[%s3053 + $0x80] sm:$0xff]
      %v3066 = vld [vmem:[%s3053 + $0x90] sm:$0xff]
      %v3067 = vld [vmem:[%s3053 + $0x98] sm:$0xff]
      %v3068 = vld [vmem:[%s3053 + $0xa8] sm:$0xff]
      %v3069 = vld [vmem:[%s3053 + $0xb0] sm:$0xff]
      %v3070 = vld [vmem:[%s3053 + $0xc0] sm:$0xff]
      %v3071 = vld [vmem:[%s3053 + $0xc8] sm:$0xff]
      %v3072 = vld [vmem:[%s3053 + $0xd8] sm:$0xff]
      %v3073 = vld [vmem:[%s3053 + $0xe0] sm:$0xff]
      %v3074 = vld [vmem:[%s3053 + $0xf0] sm:$0xff]
      %v3075 = vld [vmem:[%s3053 + $0xf8] sm:$0xff]
      %v3076 = vld [vmem:[%s3053 + $0x108] sm:$0xff]
      %v3077 = vld [vmem:[%s3053 + $0x110] sm:$0xff]
      %v3078 = vld [vmem:[%s3053 + $0x120] sm:$0xff]
      %v3079 = vld [vmem:[%s3053 + $0x128] sm:$0xff]
      %v3080 = vld [vmem:[%s3053 + $0x138] sm:$0xff]
      %v3081 = vld [vmem:[%s3053 + $0x140] sm:$0xff]
      %v3082 = vld [vmem:[%s3053 + $0x150] sm:$0xff]
      %v3083 = vld [vmem:[%s3053 + $0x158] sm:$0xff]
      %v3084 = vld [vmem:[%s3053 + $0x168] sm:$0xff]
      %v3085 = vld [vmem:[%s3053 + $0x170] sm:$0xff]
      %s3086 = scalar_lea.vmem %s1, 32
      %v3087 = vld [vmem:[%s3086] sm:$0x1]
      %v3088 = vperm.slane %v3087, 0
      %v3089 = vmul.f32 %v3054, %v3088
      %v3090 = vmul.f32 %v3055, %v3088
      %v3091 = vmul.f32 %v3056, %v3088
      %v3092 = vmul.f32 %v3057, %v3088
      %v3093 = vmul.f32 %v3058, %v3088
      %v3094 = vmul.f32 %v3059, %v3088
      %v3095 = vmul.f32 %v3060, %v3088
      %v3096 = vmul.f32 %v3061, %v3088
      %v3097 = vmul.f32 %v3062, %v3088
      %v3098 = vmul.f32 %v3063, %v3088
      %v3099 = vmul.f32 %v3064, %v3088
      %v3100 = vmul.f32 %v3065, %v3088
      %v3101 = vmul.f32 %v3066, %v3088
      %v3102 = vmul.f32 %v3067, %v3088
      %v3103 = vmul.f32 %v3068, %v3088
      %v3104 = vmul.f32 %v3069, %v3088
      %v3105 = vmul.f32 %v3070, %v3088
      %v3106 = vmul.f32 %v3071, %v3088
      %v3107 = vmul.f32 %v3072, %v3088
      %v3108 = vmul.f32 %v3073, %v3088
      %v3109 = vmul.f32 %v3074, %v3088
      %v3110 = vmul.f32 %v3075, %v3088
      %v3111 = vmul.f32 %v3076, %v3088
      %v3112 = vmul.f32 %v3077, %v3088
      %v3113 = vmul.f32 %v3078, %v3088
      %v3114 = vmul.f32 %v3079, %v3088
      %v3115 = vmul.f32 %v3080, %v3088
      %v3116 = vmul.f32 %v3081, %v3088
      %v3117 = vmul.f32 %v3082, %v3088
      %v3118 = vmul.f32 %v3083, %v3088
      %v3119 = vmul.f32 %v3084, %v3088
      %v3120 = vmul.f32 %v3085, %v3088
      %v3121 = vadd.f32 %v3019, %v3089
      %v3122 = vadd.f32 %v3020, %v3090
      %v3123 = vadd.f32 %v3021, %v3091
      %v3124 = vadd.f32 %v3022, %v3092
      %v3125 = vadd.f32 %v3023, %v3093
      %v3126 = vadd.f32 %v3024, %v3094
      %v3127 = vadd.f32 %v3025, %v3095
      %v3128 = vadd.f32 %v3026, %v3096
      %v3129 = vadd.f32 %v3027, %v3097
      %v3130 = vadd.f32 %v3028, %v3098
      %v3131 = vadd.f32 %v3029, %v3099
      %v3132 = vadd.f32 %v3030, %v3100
      %v3133 = vadd.f32 %v3031, %v3101
      %v3134 = vadd.f32 %v3032, %v3102
      %v3135 = vadd.f32 %v3033, %v3103
      %v3136 = vadd.f32 %v3034, %v3104
      %v3137 = vadd.f32 %v3035, %v3105
      %v3138 = vadd.f32 %v3036, %v3106
      %v3139 = vadd.f32 %v3037, %v3107
      %v3140 = vadd.f32 %v3038, %v3108
      %v3141 = vadd.f32 %v3039, %v3109
      %v3142 = vadd.f32 %v3040, %v3110
      %v3143 = vadd.f32 %v3041, %v3111
      %v3144 = vadd.f32 %v3042, %v3112
      %v3145 = vadd.f32 %v3043, %v3113
      %v3146 = vadd.f32 %v3044, %v3114
      %v3147 = vadd.f32 %v3045, %v3115
      %v3148 = vadd.f32 %v3046, %v3116
      %v3149 = vadd.f32 %v3047, %v3117
      %v3150 = vadd.f32 %v3048, %v3118
      %v3151 = vadd.f32 %v3049, %v3119
      %v3152 = vadd.f32 %v3050, %v3120
      %v3153 = vld [vmem:[%s3053 + $0x1] sm:$0xff]
      %v3154 = vld [vmem:[%s3053 + $0x9] sm:$0xff]
      %v3155 = vld [vmem:[%s3053 + $0x19] sm:$0xff]
      %v3156 = vld [vmem:[%s3053 + $0x21] sm:$0xff]
      %v3157 = vld [vmem:[%s3053 + $0x31] sm:$0xff]
      %v3158 = vld [vmem:[%s3053 + $0x39] sm:$0xff]
      %v3159 = vld [vmem:[%s3053 + $0x49] sm:$0xff]
      %v3160 = vld [vmem:[%s3053 + $0x51] sm:$0xff]
      %v3161 = vld [vmem:[%s3053 + $0x61] sm:$0xff]
      %v3162 = vld [vmem:[%s3053 + $0x69] sm:$0xff]
      %v3163 = vld [vmem:[%s3053 + $0x79] sm:$0xff]
      %v3164 = vld [vmem:[%s3053 + $0x81] sm:$0xff]
      %v3165 = vld [vmem:[%s3053 + $0x91] sm:$0xff]
      %v3166 = vld [vmem:[%s3053 + $0x99] sm:$0xff]
      %v3167 = vld [vmem:[%s3053 + $0xa9] sm:$0xff]
      %v3168 = vld [vmem:[%s3053 + $0xb1] sm:$0xff]
      %v3169 = vld [vmem:[%s3053 + $0xc1] sm:$0xff]
      %v3170 = vld [vmem:[%s3053 + $0xc9] sm:$0xff]
      %v3171 = vld [vmem:[%s3053 + $0xd9] sm:$0xff]
      %v3172 = vld [vmem:[%s3053 + $0xe1] sm:$0xff]
      %v3173 = vld [vmem:[%s3053 + $0xf1] sm:$0xff]
      %v3174 = vld [vmem:[%s3053 + $0xf9] sm:$0xff]
      %v3175 = vld [vmem:[%s3053 + $0x109] sm:$0xff]
      %v3176 = vld [vmem:[%s3053 + $0x111] sm:$0xff]
      %v3177 = vld [vmem:[%s3053 + $0x121] sm:$0xff]
      %v3178 = vld [vmem:[%s3053 + $0x129] sm:$0xff]
      %v3179 = vld [vmem:[%s3053 + $0x139] sm:$0xff]
      %v3180 = vld [vmem:[%s3053 + $0x141] sm:$0xff]
      %v3181 = vld [vmem:[%s3053 + $0x151] sm:$0xff]
      %v3182 = vld [vmem:[%s3053 + $0x159] sm:$0xff]
      %v3183 = vld [vmem:[%s3053 + $0x169] sm:$0xff]
      %v3184 = vld [vmem:[%s3053 + $0x171] sm:$0xff]
      %v3185 = vld [vmem:[%s3086 + $0x1] sm:$0x1]
      %v3186 = vperm.slane %v3185, 0
      %v3187 = vmul.f32 %v3153, %v3186
      %v3188 = vmul.f32 %v3154, %v3186
      %v3189 = vmul.f32 %v3155, %v3186
      %v3190 = vmul.f32 %v3156, %v3186
      %v3191 = vmul.f32 %v3157, %v3186
      %v3192 = vmul.f32 %v3158, %v3186
      %v3193 = vmul.f32 %v3159, %v3186
      %v3194 = vmul.f32 %v3160, %v3186
      %v3195 = vmul.f32 %v3161, %v3186
      %v3196 = vmul.f32 %v3162, %v3186
      %v3197 = vmul.f32 %v3163, %v3186
      %v3198 = vmul.f32 %v3164, %v3186
      %v3199 = vmul.f32 %v3165, %v3186
      %v3200 = vmul.f32 %v3166, %v3186
      %v3201 = vmul.f32 %v3167, %v3186
      %v3202 = vmul.f32 %v3168, %v3186
      %v3203 = vmul.f32 %v3169, %v3186
      %v3204 = vmul.f32 %v3170, %v3186
      %v3205 = vmul.f32 %v3171, %v3186
      %v3206 = vmul.f32 %v3172, %v3186
      %v3207 = vmul.f32 %v3173, %v3186
      %v3208 = vmul.f32 %v3174, %v3186
      %v3209 = vmul.f32 %v3175, %v3186
      %v3210 = vmul.f32 %v3176, %v3186
      %v3211 = vmul.f32 %v3177, %v3186
      %v3212 = vmul.f32 %v3178, %v3186
      %v3213 = vmul.f32 %v3179, %v3186
      %v3214 = vmul.f32 %v3180, %v3186
      %v3215 = vmul.f32 %v3181, %v3186
      %v3216 = vmul.f32 %v3182, %v3186
      %v3217 = vmul.f32 %v3183, %v3186
      %v3218 = vmul.f32 %v3184, %v3186
      %v3219 = vadd.f32 %v3121, %v3187
      %v3220 = vadd.f32 %v3122, %v3188
      %v3221 = vadd.f32 %v3123, %v3189
      %v3222 = vadd.f32 %v3124, %v3190
      %v3223 = vadd.f32 %v3125, %v3191
      %v3224 = vadd.f32 %v3126, %v3192
      %v3225 = vadd.f32 %v3127, %v3193
      %v3226 = vadd.f32 %v3128, %v3194
      %v3227 = vadd.f32 %v3129, %v3195
      %v3228 = vadd.f32 %v3130, %v3196
      %v3229 = vadd.f32 %v3131, %v3197
      %v3230 = vadd.f32 %v3132, %v3198
      %v3231 = vadd.f32 %v3133, %v3199
      %v3232 = vadd.f32 %v3134, %v3200
      %v3233 = vadd.f32 %v3135, %v3201
      %v3234 = vadd.f32 %v3136, %v3202
      %v3235 = vadd.f32 %v3137, %v3203
      %v3236 = vadd.f32 %v3138, %v3204
      %v3237 = vadd.f32 %v3139, %v3205
      %v3238 = vadd.f32 %v3140, %v3206
      %v3239 = vadd.f32 %v3141, %v3207
      %v3240 = vadd.f32 %v3142, %v3208
      %v3241 = vadd.f32 %v3143, %v3209
      %v3242 = vadd.f32 %v3144, %v3210
      %v3243 = vadd.f32 %v3145, %v3211
      %v3244 = vadd.f32 %v3146, %v3212
      %v3245 = vadd.f32 %v3147, %v3213
      %v3246 = vadd.f32 %v3148, %v3214
      %v3247 = vadd.f32 %v3149, %v3215
      %v3248 = vadd.f32 %v3150, %v3216
      %v3249 = vadd.f32 %v3151, %v3217
      %v3250 = vadd.f32 %v3152, %v3218
      %v3251 = vld [vmem:[%s3053 + $0x2] sm:$0xff]
      %v3252 = vld [vmem:[%s3053 + $0xa] sm:$0xff]
      %v3253 = vld [vmem:[%s3053 + $0x1a] sm:$0xff]
      %v3254 = vld [vmem:[%s3053 + $0x22] sm:$0xff]
      %v3255 = vld [vmem:[%s3053 + $0x32] sm:$0xff]
      %v3256 = vld [vmem:[%s3053 + $0x3a] sm:$0xff]
      %v3257 = vld [vmem:[%s3053 + $0x4a] sm:$0xff]
      %v3258 = vld [vmem:[%s3053 + $0x52] sm:$0xff]
      %v3259 = vld [vmem:[%s3053 + $0x62] sm:$0xff]
      %v3260 = vld [vmem:[%s3053 + $0x6a] sm:$0xff]
      %v3261 = vld [vmem:[%s3053 + $0x7a] sm:$0xff]
      %v3262 = vld [vmem:[%s3053 + $0x82] sm:$0xff]
      %v3263 = vld [vmem:[%s3053 + $0x92] sm:$0xff]
      %v3264 = vld [vmem:[%s3053 + $0x9a] sm:$0xff]
      %v3265 = vld [vmem:[%s3053 + $0xaa] sm:$0xff]
      %v3266 = vld [vmem:[%s3053 + $0xb2] sm:$0xff]
      %v3267 = vld [vmem:[%s3053 + $0xc2] sm:$0xff]
      %v3268 = vld [vmem:[%s3053 + $0xca] sm:$0xff]
      %v3269 = vld [vmem:[%s3053 + $0xda] sm:$0xff]
      %v3270 = vld [vmem:[%s3053 + $0xe2] sm:$0xff]
      %v3271 = vld [vmem:[%s3053 + $0xf2] sm:$0xff]
      %v3272 = vld [vmem:[%s3053 + $0xfa] sm:$0xff]
      %v3273 = vld [vmem:[%s3053 + $0x10a] sm:$0xff]
      %v3274 = vld [vmem:[%s3053 + $0x112] sm:$0xff]
      %v3275 = vld [vmem:[%s3053 + $0x122] sm:$0xff]
      %v3276 = vld [vmem:[%s3053 + $0x12a] sm:$0xff]
      %v3277 = vld [vmem:[%s3053 + $0x13a] sm:$0xff]
      %v3278 = vld [vmem:[%s3053 + $0x142] sm:$0xff]
      %v3279 = vld [vmem:[%s3053 + $0x152] sm:$0xff]
      %v3280 = vld [vmem:[%s3053 + $0x15a] sm:$0xff]
      %v3281 = vld [vmem:[%s3053 + $0x16a] sm:$0xff]
      %v3282 = vld [vmem:[%s3053 + $0x172] sm:$0xff]
      %v3283 = vld [vmem:[%s3086 + $0x2] sm:$0x1]
      %v3284 = vperm.slane %v3283, 0
      %v3285 = vmul.f32 %v3251, %v3284
      %v3286 = vmul.f32 %v3252, %v3284
      %v3287 = vmul.f32 %v3253, %v3284
      %v3288 = vmul.f32 %v3254, %v3284
      %v3289 = vmul.f32 %v3255, %v3284
      %v3290 = vmul.f32 %v3256, %v3284
      %v3291 = vmul.f32 %v3257, %v3284
      %v3292 = vmul.f32 %v3258, %v3284
      %v3293 = vmul.f32 %v3259, %v3284
      %v3294 = vmul.f32 %v3260, %v3284
      %v3295 = vmul.f32 %v3261, %v3284
      %v3296 = vmul.f32 %v3262, %v3284
      %v3297 = vmul.f32 %v3263, %v3284
      %v3298 = vmul.f32 %v3264, %v3284
      %v3299 = vmul.f32 %v3265, %v3284
      %v3300 = vmul.f32 %v3266, %v3284
      %v3301 = vmul.f32 %v3267, %v3284
      %v3302 = vmul.f32 %v3268, %v3284
      %v3303 = vmul.f32 %v3269, %v3284
      %v3304 = vmul.f32 %v3270, %v3284
      %v3305 = vmul.f32 %v3271, %v3284
      %v3306 = vmul.f32 %v3272, %v3284
      %v3307 = vmul.f32 %v3273, %v3284
      %v3308 = vmul.f32 %v3274, %v3284
      %v3309 = vmul.f32 %v3275, %v3284
      %v3310 = vmul.f32 %v3276, %v3284
      %v3311 = vmul.f32 %v3277, %v3284
      %v3312 = vmul.f32 %v3278, %v3284
      %v3313 = vmul.f32 %v3279, %v3284
      %v3314 = vmul.f32 %v3280, %v3284
      %v3315 = vmul.f32 %v3281, %v3284
      %v3316 = vmul.f32 %v3282, %v3284
      %v3317 = vadd.f32 %v3219, %v3285
      %v3318 = vadd.f32 %v3220, %v3286
      %v3319 = vadd.f32 %v3221, %v3287
      %v3320 = vadd.f32 %v3222, %v3288
      %v3321 = vadd.f32 %v3223, %v3289
      %v3322 = vadd.f32 %v3224, %v3290
      %v3323 = vadd.f32 %v3225, %v3291
      %v3324 = vadd.f32 %v3226, %v3292
      %v3325 = vadd.f32 %v3227, %v3293
      %v3326 = vadd.f32 %v3228, %v3294
      %v3327 = vadd.f32 %v3229, %v3295
      %v3328 = vadd.f32 %v3230, %v3296
      %v3329 = vadd.f32 %v3231, %v3297
      %v3330 = vadd.f32 %v3232, %v3298
      %v3331 = vadd.f32 %v3233, %v3299
      %v3332 = vadd.f32 %v3234, %v3300
      %v3333 = vadd.f32 %v3235, %v3301
      %v3334 = vadd.f32 %v3236, %v3302
      %v3335 = vadd.f32 %v3237, %v3303
      %v3336 = vadd.f32 %v3238, %v3304
      %v3337 = vadd.f32 %v3239, %v3305
      %v3338 = vadd.f32 %v3240, %v3306
      %v3339 = vadd.f32 %v3241, %v3307
      %v3340 = vadd.f32 %v3242, %v3308
      %v3341 = vadd.f32 %v3243, %v3309
      %v3342 = vadd.f32 %v3244, %v3310
      %v3343 = vadd.f32 %v3245, %v3311
      %v3344 = vadd.f32 %v3246, %v3312
      %v3345 = vadd.f32 %v3247, %v3313
      %v3346 = vadd.f32 %v3248, %v3314
      %v3347 = vadd.f32 %v3249, %v3315
      %v3348 = vadd.f32 %v3250, %v3316
      %v3349 = vld [vmem:[%s3053 + $0x3] sm:$0xff]
      %v3350 = vld [vmem:[%s3053 + $0xb] sm:$0xff]
      %v3351 = vld [vmem:[%s3053 + $0x1b] sm:$0xff]
      %v3352 = vld [vmem:[%s3053 + $0x23] sm:$0xff]
      %v3353 = vld [vmem:[%s3053 + $0x33] sm:$0xff]
      %v3354 = vld [vmem:[%s3053 + $0x3b] sm:$0xff]
      %v3355 = vld [vmem:[%s3053 + $0x4b] sm:$0xff]
      %v3356 = vld [vmem:[%s3053 + $0x53] sm:$0xff]
      %v3357 = vld [vmem:[%s3053 + $0x63] sm:$0xff]
      %v3358 = vld [vmem:[%s3053 + $0x6b] sm:$0xff]
      %v3359 = vld [vmem:[%s3053 + $0x7b] sm:$0xff]
      %v3360 = vld [vmem:[%s3053 + $0x83] sm:$0xff]
      %v3361 = vld [vmem:[%s3053 + $0x93] sm:$0xff]
      %v3362 = vld [vmem:[%s3053 + $0x9b] sm:$0xff]
      %v3363 = vld [vmem:[%s3053 + $0xab] sm:$0xff]
      %v3364 = vld [vmem:[%s3053 + $0xb3] sm:$0xff]
      %v3365 = vld [vmem:[%s3053 + $0xc3] sm:$0xff]
      %v3366 = vld [vmem:[%s3053 + $0xcb] sm:$0xff]
      %v3367 = vld [vmem:[%s3053 + $0xdb] sm:$0xff]
      %v3368 = vld [vmem:[%s3053 + $0xe3] sm:$0xff]
      %v3369 = vld [vmem:[%s3053 + $0xf3] sm:$0xff]
      %v3370 = vld [vmem:[%s3053 + $0xfb] sm:$0xff]
      %v3371 = vld [vmem:[%s3053 + $0x10b] sm:$0xff]
      %v3372 = vld [vmem:[%s3053 + $0x113] sm:$0xff]
      %v3373 = vld [vmem:[%s3053 + $0x123] sm:$0xff]
      %v3374 = vld [vmem:[%s3053 + $0x12b] sm:$0xff]
      %v3375 = vld [vmem:[%s3053 + $0x13b] sm:$0xff]
      %v3376 = vld [vmem:[%s3053 + $0x143] sm:$0xff]
      %v3377 = vld [vmem:[%s3053 + $0x153] sm:$0xff]
      %v3378 = vld [vmem:[%s3053 + $0x15b] sm:$0xff]
      %v3379 = vld [vmem:[%s3053 + $0x16b] sm:$0xff]
      %v3380 = vld [vmem:[%s3053 + $0x173] sm:$0xff]
      %v3381 = vld [vmem:[%s3086 + $0x3] sm:$0x1]
      %v3382 = vperm.slane %v3381, 0
      %v3383 = vmul.f32 %v3349, %v3382
      %v3384 = vmul.f32 %v3350, %v3382
      %v3385 = vmul.f32 %v3351, %v3382
      %v3386 = vmul.f32 %v3352, %v3382
      %v3387 = vmul.f32 %v3353, %v3382
      %v3388 = vmul.f32 %v3354, %v3382
      %v3389 = vmul.f32 %v3355, %v3382
      %v3390 = vmul.f32 %v3356, %v3382
      %v3391 = vmul.f32 %v3357, %v3382
      %v3392 = vmul.f32 %v3358, %v3382
      %v3393 = vmul.f32 %v3359, %v3382
      %v3394 = vmul.f32 %v3360, %v3382
      %v3395 = vmul.f32 %v3361, %v3382
      %v3396 = vmul.f32 %v3362, %v3382
      %v3397 = vmul.f32 %v3363, %v3382
      %v3398 = vmul.f32 %v3364, %v3382
      %v3399 = vmul.f32 %v3365, %v3382
      %v3400 = vmul.f32 %v3366, %v3382
      %v3401 = vmul.f32 %v3367, %v3382
      %v3402 = vmul.f32 %v3368, %v3382
      %v3403 = vmul.f32 %v3369, %v3382
      %v3404 = vmul.f32 %v3370, %v3382
      %v3405 = vmul.f32 %v3371, %v3382
      %v3406 = vmul.f32 %v3372, %v3382
      %v3407 = vmul.f32 %v3373, %v3382
      %v3408 = vmul.f32 %v3374, %v3382
      %v3409 = vmul.f32 %v3375, %v3382
      %v3410 = vmul.f32 %v3376, %v3382
      %v3411 = vmul.f32 %v3377, %v3382
      %v3412 = vmul.f32 %v3378, %v3382
      %v3413 = vmul.f32 %v3379, %v3382
      %v3414 = vmul.f32 %v3380, %v3382
      %v3415 = vadd.f32 %v3317, %v3383
      %v3416 = vadd.f32 %v3318, %v3384
      %v3417 = vadd.f32 %v3319, %v3385
      %v3418 = vadd.f32 %v3320, %v3386
      %v3419 = vadd.f32 %v3321, %v3387
      %v3420 = vadd.f32 %v3322, %v3388
      %v3421 = vadd.f32 %v3323, %v3389
      %v3422 = vadd.f32 %v3324, %v3390
      %v3423 = vadd.f32 %v3325, %v3391
      %v3424 = vadd.f32 %v3326, %v3392
      %v3425 = vadd.f32 %v3327, %v3393
      %v3426 = vadd.f32 %v3328, %v3394
      %v3427 = vadd.f32 %v3329, %v3395
      %v3428 = vadd.f32 %v3330, %v3396
      %v3429 = vadd.f32 %v3331, %v3397
      %v3430 = vadd.f32 %v3332, %v3398
      %v3431 = vadd.f32 %v3333, %v3399
      %v3432 = vadd.f32 %v3334, %v3400
      %v3433 = vadd.f32 %v3335, %v3401
      %v3434 = vadd.f32 %v3336, %v3402
      %v3435 = vadd.f32 %v3337, %v3403
      %v3436 = vadd.f32 %v3338, %v3404
      %v3437 = vadd.f32 %v3339, %v3405
      %v3438 = vadd.f32 %v3340, %v3406
      %v3439 = vadd.f32 %v3341, %v3407
      %v3440 = vadd.f32 %v3342, %v3408
      %v3441 = vadd.f32 %v3343, %v3409
      %v3442 = vadd.f32 %v3344, %v3410
      %v3443 = vadd.f32 %v3345, %v3411
      %v3444 = vadd.f32 %v3346, %v3412
      %v3445 = vadd.f32 %v3347, %v3413
      %v3446 = vadd.f32 %v3348, %v3414
      %v3447 = vld [vmem:[%s3053 + $0x4] sm:$0xff]
      %v3448 = vld [vmem:[%s3053 + $0xc] sm:$0xff]
      %v3449 = vld [vmem:[%s3053 + $0x1c] sm:$0xff]
      %v3450 = vld [vmem:[%s3053 + $0x24] sm:$0xff]
      %v3451 = vld [vmem:[%s3053 + $0x34] sm:$0xff]
      %v3452 = vld [vmem:[%s3053 + $0x3c] sm:$0xff]
      %v3453 = vld [vmem:[%s3053 + $0x4c] sm:$0xff]
      %v3454 = vld [vmem:[%s3053 + $0x54] sm:$0xff]
      %v3455 = vld [vmem:[%s3053 + $0x64] sm:$0xff]
      %v3456 = vld [vmem:[%s3053 + $0x6c] sm:$0xff]
      %v3457 = vld [vmem:[%s3053 + $0x7c] sm:$0xff]
      %v3458 = vld [vmem:[%s3053 + $0x84] sm:$0xff]
      %v3459 = vld [vmem:[%s3053 + $0x94] sm:$0xff]
      %v3460 = vld [vmem:[%s3053 + $0x9c] sm:$0xff]
      %v3461 = vld [vmem:[%s3053 + $0xac] sm:$0xff]
      %v3462 = vld [vmem:[%s3053 + $0xb4] sm:$0xff]
      %v3463 = vld [vmem:[%s3053 + $0xc4] sm:$0xff]
      %v3464 = vld [vmem:[%s3053 + $0xcc] sm:$0xff]
      %v3465 = vld [vmem:[%s3053 + $0xdc] sm:$0xff]
      %v3466 = vld [vmem:[%s3053 + $0xe4] sm:$0xff]
      %v3467 = vld [vmem:[%s3053 + $0xf4] sm:$0xff]
      %v3468 = vld [vmem:[%s3053 + $0xfc] sm:$0xff]
      %v3469 = vld [vmem:[%s3053 + $0x10c] sm:$0xff]
      %v3470 = vld [vmem:[%s3053 + $0x114] sm:$0xff]
      %v3471 = vld [vmem:[%s3053 + $0x124] sm:$0xff]
      %v3472 = vld [vmem:[%s3053 + $0x12c] sm:$0xff]
      %v3473 = vld [vmem:[%s3053 + $0x13c] sm:$0xff]
      %v3474 = vld [vmem:[%s3053 + $0x144] sm:$0xff]
      %v3475 = vld [vmem:[%s3053 + $0x154] sm:$0xff]
      %v3476 = vld [vmem:[%s3053 + $0x15c] sm:$0xff]
      %v3477 = vld [vmem:[%s3053 + $0x16c] sm:$0xff]
      %v3478 = vld [vmem:[%s3053 + $0x174] sm:$0xff]
      %v3479 = vld [vmem:[%s3086 + $0x4] sm:$0x1]
      %v3480 = vperm.slane %v3479, 0
      %v3481 = vmul.f32 %v3447, %v3480
      %v3482 = vmul.f32 %v3448, %v3480
      %v3483 = vmul.f32 %v3449, %v3480
      %v3484 = vmul.f32 %v3450, %v3480
      %v3485 = vmul.f32 %v3451, %v3480
      %v3486 = vmul.f32 %v3452, %v3480
      %v3487 = vmul.f32 %v3453, %v3480
      %v3488 = vmul.f32 %v3454, %v3480
      %v3489 = vmul.f32 %v3455, %v3480
      %v3490 = vmul.f32 %v3456, %v3480
      %v3491 = vmul.f32 %v3457, %v3480
      %v3492 = vmul.f32 %v3458, %v3480
      %v3493 = vmul.f32 %v3459, %v3480
      %v3494 = vmul.f32 %v3460, %v3480
      %v3495 = vmul.f32 %v3461, %v3480
      %v3496 = vmul.f32 %v3462, %v3480
      %v3497 = vmul.f32 %v3463, %v3480
      %v3498 = vmul.f32 %v3464, %v3480
      %v3499 = vmul.f32 %v3465, %v3480
      %v3500 = vmul.f32 %v3466, %v3480
      %v3501 = vmul.f32 %v3467, %v3480
      %v3502 = vmul.f32 %v3468, %v3480
      %v3503 = vmul.f32 %v3469, %v3480
      %v3504 = vmul.f32 %v3470, %v3480
      %v3505 = vmul.f32 %v3471, %v3480
      %v3506 = vmul.f32 %v3472, %v3480
      %v3507 = vmul.f32 %v3473, %v3480
      %v3508 = vmul.f32 %v3474, %v3480
      %v3509 = vmul.f32 %v3475, %v3480
      %v3510 = vmul.f32 %v3476, %v3480
      %v3511 = vmul.f32 %v3477, %v3480
      %v3512 = vmul.f32 %v3478, %v3480
      %v3513 = vadd.f32 %v3415, %v3481
      %v3514 = vadd.f32 %v3416, %v3482
      %v3515 = vadd.f32 %v3417, %v3483
      %v3516 = vadd.f32 %v3418, %v3484
      %v3517 = vadd.f32 %v3419, %v3485
      %v3518 = vadd.f32 %v3420, %v3486
      %v3519 = vadd.f32 %v3421, %v3487
      %v3520 = vadd.f32 %v3422, %v3488
      %v3521 = vadd.f32 %v3423, %v3489
      %v3522 = vadd.f32 %v3424, %v3490
      %v3523 = vadd.f32 %v3425, %v3491
      %v3524 = vadd.f32 %v3426, %v3492
      %v3525 = vadd.f32 %v3427, %v3493
      %v3526 = vadd.f32 %v3428, %v3494
      %v3527 = vadd.f32 %v3429, %v3495
      %v3528 = vadd.f32 %v3430, %v3496
      %v3529 = vadd.f32 %v3431, %v3497
      %v3530 = vadd.f32 %v3432, %v3498
      %v3531 = vadd.f32 %v3433, %v3499
      %v3532 = vadd.f32 %v3434, %v3500
      %v3533 = vadd.f32 %v3435, %v3501
      %v3534 = vadd.f32 %v3436, %v3502
      %v3535 = vadd.f32 %v3437, %v3503
      %v3536 = vadd.f32 %v3438, %v3504
      %v3537 = vadd.f32 %v3439, %v3505
      %v3538 = vadd.f32 %v3440, %v3506
      %v3539 = vadd.f32 %v3441, %v3507
      %v3540 = vadd.f32 %v3442, %v3508
      %v3541 = vadd.f32 %v3443, %v3509
      %v3542 = vadd.f32 %v3444, %v3510
      %v3543 = vadd.f32 %v3445, %v3511
      %v3544 = vadd.f32 %v3446, %v3512
      %v3545 = vld [vmem:[%s3053 + $0x5] sm:$0xff]
      %v3546 = vld [vmem:[%s3053 + $0xd] sm:$0xff]
      %v3547 = vld [vmem:[%s3053 + $0x1d] sm:$0xff]
      %v3548 = vld [vmem:[%s3053 + $0x25] sm:$0xff]
      %v3549 = vld [vmem:[%s3053 + $0x35] sm:$0xff]
      %v3550 = vld [vmem:[%s3053 + $0x3d] sm:$0xff]
      %v3551 = vld [vmem:[%s3053 + $0x4d] sm:$0xff]
      %v3552 = vld [vmem:[%s3053 + $0x55] sm:$0xff]
      %v3553 = vld [vmem:[%s3053 + $0x65] sm:$0xff]
      %v3554 = vld [vmem:[%s3053 + $0x6d] sm:$0xff]
      %v3555 = vld [vmem:[%s3053 + $0x7d] sm:$0xff]
      %v3556 = vld [vmem:[%s3053 + $0x85] sm:$0xff]
      %v3557 = vld [vmem:[%s3053 + $0x95] sm:$0xff]
      %v3558 = vld [vmem:[%s3053 + $0x9d] sm:$0xff]
      %v3559 = vld [vmem:[%s3053 + $0xad] sm:$0xff]
      %v3560 = vld [vmem:[%s3053 + $0xb5] sm:$0xff]
      %v3561 = vld [vmem:[%s3053 + $0xc5] sm:$0xff]
      %v3562 = vld [vmem:[%s3053 + $0xcd] sm:$0xff]
      %v3563 = vld [vmem:[%s3053 + $0xdd] sm:$0xff]
      %v3564 = vld [vmem:[%s3053 + $0xe5] sm:$0xff]
      %v3565 = vld [vmem:[%s3053 + $0xf5] sm:$0xff]
      %v3566 = vld [vmem:[%s3053 + $0xfd] sm:$0xff]
      %v3567 = vld [vmem:[%s3053 + $0x10d] sm:$0xff]
      %v3568 = vld [vmem:[%s3053 + $0x115] sm:$0xff]
      %v3569 = vld [vmem:[%s3053 + $0x125] sm:$0xff]
      %v3570 = vld [vmem:[%s3053 + $0x12d] sm:$0xff]
      %v3571 = vld [vmem:[%s3053 + $0x13d] sm:$0xff]
      %v3572 = vld [vmem:[%s3053 + $0x145] sm:$0xff]
      %v3573 = vld [vmem:[%s3053 + $0x155] sm:$0xff]
      %v3574 = vld [vmem:[%s3053 + $0x15d] sm:$0xff]
      %v3575 = vld [vmem:[%s3053 + $0x16d] sm:$0xff]
      %v3576 = vld [vmem:[%s3053 + $0x175] sm:$0xff]
      %v3577 = vld [vmem:[%s3086 + $0x5] sm:$0x1]
      %v3578 = vperm.slane %v3577, 0
      %v3579 = vmul.f32 %v3545, %v3578
      %v3580 = vmul.f32 %v3546, %v3578
      %v3581 = vmul.f32 %v3547, %v3578
      %v3582 = vmul.f32 %v3548, %v3578
      %v3583 = vmul.f32 %v3549, %v3578
      %v3584 = vmul.f32 %v3550, %v3578
      %v3585 = vmul.f32 %v3551, %v3578
      %v3586 = vmul.f32 %v3552, %v3578
      %v3587 = vmul.f32 %v3553, %v3578
      %v3588 = vmul.f32 %v3554, %v3578
      %v3589 = vmul.f32 %v3555, %v3578
      %v3590 = vmul.f32 %v3556, %v3578
      %v3591 = vmul.f32 %v3557, %v3578
      %v3592 = vmul.f32 %v3558, %v3578
      %v3593 = vmul.f32 %v3559, %v3578
      %v3594 = vmul.f32 %v3560, %v3578
      %v3595 = vmul.f32 %v3561, %v3578
      %v3596 = vmul.f32 %v3562, %v3578
      %v3597 = vmul.f32 %v3563, %v3578
      %v3598 = vmul.f32 %v3564, %v3578
      %v3599 = vmul.f32 %v3565, %v3578
      %v3600 = vmul.f32 %v3566, %v3578
      %v3601 = vmul.f32 %v3567, %v3578
      %v3602 = vmul.f32 %v3568, %v3578
      %v3603 = vmul.f32 %v3569, %v3578
      %v3604 = vmul.f32 %v3570, %v3578
      %v3605 = vmul.f32 %v3571, %v3578
      %v3606 = vmul.f32 %v3572, %v3578
      %v3607 = vmul.f32 %v3573, %v3578
      %v3608 = vmul.f32 %v3574, %v3578
      %v3609 = vmul.f32 %v3575, %v3578
      %v3610 = vmul.f32 %v3576, %v3578
      %v3611 = vadd.f32 %v3513, %v3579
      %v3612 = vadd.f32 %v3514, %v3580
      %v3613 = vadd.f32 %v3515, %v3581
      %v3614 = vadd.f32 %v3516, %v3582
      %v3615 = vadd.f32 %v3517, %v3583
      %v3616 = vadd.f32 %v3518, %v3584
      %v3617 = vadd.f32 %v3519, %v3585
      %v3618 = vadd.f32 %v3520, %v3586
      %v3619 = vadd.f32 %v3521, %v3587
      %v3620 = vadd.f32 %v3522, %v3588
      %v3621 = vadd.f32 %v3523, %v3589
      %v3622 = vadd.f32 %v3524, %v3590
      %v3623 = vadd.f32 %v3525, %v3591
      %v3624 = vadd.f32 %v3526, %v3592
      %v3625 = vadd.f32 %v3527, %v3593
      %v3626 = vadd.f32 %v3528, %v3594
      %v3627 = vadd.f32 %v3529, %v3595
      %v3628 = vadd.f32 %v3530, %v3596
      %v3629 = vadd.f32 %v3531, %v3597
      %v3630 = vadd.f32 %v3532, %v3598
      %v3631 = vadd.f32 %v3533, %v3599
      %v3632 = vadd.f32 %v3534, %v3600
      %v3633 = vadd.f32 %v3535, %v3601
      %v3634 = vadd.f32 %v3536, %v3602
      %v3635 = vadd.f32 %v3537, %v3603
      %v3636 = vadd.f32 %v3538, %v3604
      %v3637 = vadd.f32 %v3539, %v3605
      %v3638 = vadd.f32 %v3540, %v3606
      %v3639 = vadd.f32 %v3541, %v3607
      %v3640 = vadd.f32 %v3542, %v3608
      %v3641 = vadd.f32 %v3543, %v3609
      %v3642 = vadd.f32 %v3544, %v3610
      %v3643 = vld [vmem:[%s3053 + $0x6] sm:$0xff]
      %v3644 = vld [vmem:[%s3053 + $0xe] sm:$0xff]
      %v3645 = vld [vmem:[%s3053 + $0x1e] sm:$0xff]
      %v3646 = vld [vmem:[%s3053 + $0x26] sm:$0xff]
      %v3647 = vld [vmem:[%s3053 + $0x36] sm:$0xff]
      %v3648 = vld [vmem:[%s3053 + $0x3e] sm:$0xff]
      %v3649 = vld [vmem:[%s3053 + $0x4e] sm:$0xff]
      %v3650 = vld [vmem:[%s3053 + $0x56] sm:$0xff]
      %v3651 = vld [vmem:[%s3053 + $0x66] sm:$0xff]
      %v3652 = vld [vmem:[%s3053 + $0x6e] sm:$0xff]
      %v3653 = vld [vmem:[%s3053 + $0x7e] sm:$0xff]
      %v3654 = vld [vmem:[%s3053 + $0x86] sm:$0xff]
      %v3655 = vld [vmem:[%s3053 + $0x96] sm:$0xff]
      %v3656 = vld [vmem:[%s3053 + $0x9e] sm:$0xff]
      %v3657 = vld [vmem:[%s3053 + $0xae] sm:$0xff]
      %v3658 = vld [vmem:[%s3053 + $0xb6] sm:$0xff]
      %v3659 = vld [vmem:[%s3053 + $0xc6] sm:$0xff]
      %v3660 = vld [vmem:[%s3053 + $0xce] sm:$0xff]
      %v3661 = vld [vmem:[%s3053 + $0xde] sm:$0xff]
      %v3662 = vld [vmem:[%s3053 + $0xe6] sm:$0xff]
      %v3663 = vld [vmem:[%s3053 + $0xf6] sm:$0xff]
      %v3664 = vld [vmem:[%s3053 + $0xfe] sm:$0xff]
      %v3665 = vld [vmem:[%s3053 + $0x10e] sm:$0xff]
      %v3666 = vld [vmem:[%s3053 + $0x116] sm:$0xff]
      %v3667 = vld [vmem:[%s3053 + $0x126] sm:$0xff]
      %v3668 = vld [vmem:[%s3053 + $0x12e] sm:$0xff]
      %v3669 = vld [vmem:[%s3053 + $0x13e] sm:$0xff]
      %v3670 = vld [vmem:[%s3053 + $0x146] sm:$0xff]
      %v3671 = vld [vmem:[%s3053 + $0x156] sm:$0xff]
      %v3672 = vld [vmem:[%s3053 + $0x15e] sm:$0xff]
      %v3673 = vld [vmem:[%s3053 + $0x16e] sm:$0xff]
      %v3674 = vld [vmem:[%s3053 + $0x176] sm:$0xff]
      %v3675 = vld [vmem:[%s3086 + $0x6] sm:$0x1]
      %v3676 = vperm.slane %v3675, 0
      %v3677 = vmul.f32 %v3643, %v3676
      %v3678 = vmul.f32 %v3644, %v3676
      %v3679 = vmul.f32 %v3645, %v3676
      %v3680 = vmul.f32 %v3646, %v3676
      %v3681 = vmul.f32 %v3647, %v3676
      %v3682 = vmul.f32 %v3648, %v3676
      %v3683 = vmul.f32 %v3649, %v3676
      %v3684 = vmul.f32 %v3650, %v3676
      %v3685 = vmul.f32 %v3651, %v3676
      %v3686 = vmul.f32 %v3652, %v3676
      %v3687 = vmul.f32 %v3653, %v3676
      %v3688 = vmul.f32 %v3654, %v3676
      %v3689 = vmul.f32 %v3655, %v3676
      %v3690 = vmul.f32 %v3656, %v3676
      %v3691 = vmul.f32 %v3657, %v3676
      %v3692 = vmul.f32 %v3658, %v3676
      %v3693 = vmul.f32 %v3659, %v3676
      %v3694 = vmul.f32 %v3660, %v3676
      %v3695 = vmul.f32 %v3661, %v3676
      %v3696 = vmul.f32 %v3662, %v3676
      %v3697 = vmul.f32 %v3663, %v3676
      %v3698 = vmul.f32 %v3664, %v3676
      %v3699 = vmul.f32 %v3665, %v3676
      %v3700 = vmul.f32 %v3666, %v3676
      %v3701 = vmul.f32 %v3667, %v3676
      %v3702 = vmul.f32 %v3668, %v3676
      %v3703 = vmul.f32 %v3669, %v3676
      %v3704 = vmul.f32 %v3670, %v3676
      %v3705 = vmul.f32 %v3671, %v3676
      %v3706 = vmul.f32 %v3672, %v3676
      %v3707 = vmul.f32 %v3673, %v3676
      %v3708 = vmul.f32 %v3674, %v3676
      %v3709 = vadd.f32 %v3611, %v3677
      %v3710 = vadd.f32 %v3612, %v3678
      %v3711 = vadd.f32 %v3613, %v3679
      %v3712 = vadd.f32 %v3614, %v3680
      %v3713 = vadd.f32 %v3615, %v3681
      %v3714 = vadd.f32 %v3616, %v3682
      %v3715 = vadd.f32 %v3617, %v3683
      %v3716 = vadd.f32 %v3618, %v3684
      %v3717 = vadd.f32 %v3619, %v3685
      %v3718 = vadd.f32 %v3620, %v3686
      %v3719 = vadd.f32 %v3621, %v3687
      %v3720 = vadd.f32 %v3622, %v3688
      %v3721 = vadd.f32 %v3623, %v3689
      %v3722 = vadd.f32 %v3624, %v3690
      %v3723 = vadd.f32 %v3625, %v3691
      %v3724 = vadd.f32 %v3626, %v3692
      %v3725 = vadd.f32 %v3627, %v3693
      %v3726 = vadd.f32 %v3628, %v3694
      %v3727 = vadd.f32 %v3629, %v3695
      %v3728 = vadd.f32 %v3630, %v3696
      %v3729 = vadd.f32 %v3631, %v3697
      %v3730 = vadd.f32 %v3632, %v3698
      %v3731 = vadd.f32 %v3633, %v3699
      %v3732 = vadd.f32 %v3634, %v3700
      %v3733 = vadd.f32 %v3635, %v3701
      %v3734 = vadd.f32 %v3636, %v3702
      %v3735 = vadd.f32 %v3637, %v3703
      %v3736 = vadd.f32 %v3638, %v3704
      %v3737 = vadd.f32 %v3639, %v3705
      %v3738 = vadd.f32 %v3640, %v3706
      %v3739 = vadd.f32 %v3641, %v3707
      %v3740 = vadd.f32 %v3642, %v3708
      %s3741 = sadd.s32 0, 5
      %s3742 = smul.u32 %s3741, 24
      %s3743 = scalar_lea.vmem [#allocation2], %s3742
      %v3744 = vld [vmem:[%s3743] sm:$0xff]
      %v3745 = vld [vmem:[%s3743 + $0x8] sm:$0xff]
      %v3746 = vld [vmem:[%s3743 + $0x18] sm:$0xff]
      %v3747 = vld [vmem:[%s3743 + $0x20] sm:$0xff]
      %v3748 = vld [vmem:[%s3743 + $0x30] sm:$0xff]
      %v3749 = vld [vmem:[%s3743 + $0x38] sm:$0xff]
      %v3750 = vld [vmem:[%s3743 + $0x48] sm:$0xff]
      %v3751 = vld [vmem:[%s3743 + $0x50] sm:$0xff]
      %v3752 = vld [vmem:[%s3743 + $0x60] sm:$0xff]
      %v3753 = vld [vmem:[%s3743 + $0x68] sm:$0xff]
      %v3754 = vld [vmem:[%s3743 + $0x78] sm:$0xff]
      %v3755 = vld [vmem:[%s3743 + $0x80] sm:$0xff]
      %v3756 = vld [vmem:[%s3743 + $0x90] sm:$0xff]
      %v3757 = vld [vmem:[%s3743 + $0x98] sm:$0xff]
      %v3758 = vld [vmem:[%s3743 + $0xa8] sm:$0xff]
      %v3759 = vld [vmem:[%s3743 + $0xb0] sm:$0xff]
      %v3760 = vld [vmem:[%s3743 + $0xc0] sm:$0xff]
      %v3761 = vld [vmem:[%s3743 + $0xc8] sm:$0xff]
      %v3762 = vld [vmem:[%s3743 + $0xd8] sm:$0xff]
      %v3763 = vld [vmem:[%s3743 + $0xe0] sm:$0xff]
      %v3764 = vld [vmem:[%s3743 + $0xf0] sm:$0xff]
      %v3765 = vld [vmem:[%s3743 + $0xf8] sm:$0xff]
      %v3766 = vld [vmem:[%s3743 + $0x108] sm:$0xff]
      %v3767 = vld [vmem:[%s3743 + $0x110] sm:$0xff]
      %v3768 = vld [vmem:[%s3743 + $0x120] sm:$0xff]
      %v3769 = vld [vmem:[%s3743 + $0x128] sm:$0xff]
      %v3770 = vld [vmem:[%s3743 + $0x138] sm:$0xff]
      %v3771 = vld [vmem:[%s3743 + $0x140] sm:$0xff]
      %v3772 = vld [vmem:[%s3743 + $0x150] sm:$0xff]
      %v3773 = vld [vmem:[%s3743 + $0x158] sm:$0xff]
      %v3774 = vld [vmem:[%s3743 + $0x168] sm:$0xff]
      %v3775 = vld [vmem:[%s3743 + $0x170] sm:$0xff]
      %s3776 = scalar_lea.vmem %s1, 40
      %v3777 = vld [vmem:[%s3776] sm:$0x1]
      %v3778 = vperm.slane %v3777, 0
      %v3779 = vmul.f32 %v3744, %v3778
      %v3780 = vmul.f32 %v3745, %v3778
      %v3781 = vmul.f32 %v3746, %v3778
      %v3782 = vmul.f32 %v3747, %v3778
      %v3783 = vmul.f32 %v3748, %v3778
      %v3784 = vmul.f32 %v3749, %v3778
      %v3785 = vmul.f32 %v3750, %v3778
      %v3786 = vmul.f32 %v3751, %v3778
      %v3787 = vmul.f32 %v3752, %v3778
      %v3788 = vmul.f32 %v3753, %v3778
      %v3789 = vmul.f32 %v3754, %v3778
      %v3790 = vmul.f32 %v3755, %v3778
      %v3791 = vmul.f32 %v3756, %v3778
      %v3792 = vmul.f32 %v3757, %v3778
      %v3793 = vmul.f32 %v3758, %v3778
      %v3794 = vmul.f32 %v3759, %v3778
      %v3795 = vmul.f32 %v3760, %v3778
      %v3796 = vmul.f32 %v3761, %v3778
      %v3797 = vmul.f32 %v3762, %v3778
      %v3798 = vmul.f32 %v3763, %v3778
      %v3799 = vmul.f32 %v3764, %v3778
      %v3800 = vmul.f32 %v3765, %v3778
      %v3801 = vmul.f32 %v3766, %v3778
      %v3802 = vmul.f32 %v3767, %v3778
      %v3803 = vmul.f32 %v3768, %v3778
      %v3804 = vmul.f32 %v3769, %v3778
      %v3805 = vmul.f32 %v3770, %v3778
      %v3806 = vmul.f32 %v3771, %v3778
      %v3807 = vmul.f32 %v3772, %v3778
      %v3808 = vmul.f32 %v3773, %v3778
      %v3809 = vmul.f32 %v3774, %v3778
      %v3810 = vmul.f32 %v3775, %v3778
      %v3811 = vadd.f32 %v3709, %v3779
      %v3812 = vadd.f32 %v3710, %v3780
      %v3813 = vadd.f32 %v3711, %v3781
      %v3814 = vadd.f32 %v3712, %v3782
      %v3815 = vadd.f32 %v3713, %v3783
      %v3816 = vadd.f32 %v3714, %v3784
      %v3817 = vadd.f32 %v3715, %v3785
      %v3818 = vadd.f32 %v3716, %v3786
      %v3819 = vadd.f32 %v3717, %v3787
      %v3820 = vadd.f32 %v3718, %v3788
      %v3821 = vadd.f32 %v3719, %v3789
      %v3822 = vadd.f32 %v3720, %v3790
      %v3823 = vadd.f32 %v3721, %v3791
      %v3824 = vadd.f32 %v3722, %v3792
      %v3825 = vadd.f32 %v3723, %v3793
      %v3826 = vadd.f32 %v3724, %v3794
      %v3827 = vadd.f32 %v3725, %v3795
      %v3828 = vadd.f32 %v3726, %v3796
      %v3829 = vadd.f32 %v3727, %v3797
      %v3830 = vadd.f32 %v3728, %v3798
      %v3831 = vadd.f32 %v3729, %v3799
      %v3832 = vadd.f32 %v3730, %v3800
      %v3833 = vadd.f32 %v3731, %v3801
      %v3834 = vadd.f32 %v3732, %v3802
      %v3835 = vadd.f32 %v3733, %v3803
      %v3836 = vadd.f32 %v3734, %v3804
      %v3837 = vadd.f32 %v3735, %v3805
      %v3838 = vadd.f32 %v3736, %v3806
      %v3839 = vadd.f32 %v3737, %v3807
      %v3840 = vadd.f32 %v3738, %v3808
      %v3841 = vadd.f32 %v3739, %v3809
      %v3842 = vadd.f32 %v3740, %v3810
      %v3843 = vld [vmem:[%s3743 + $0x1] sm:$0xff]
      %v3844 = vld [vmem:[%s3743 + $0x9] sm:$0xff]
      %v3845 = vld [vmem:[%s3743 + $0x19] sm:$0xff]
      %v3846 = vld [vmem:[%s3743 + $0x21] sm:$0xff]
      %v3847 = vld [vmem:[%s3743 + $0x31] sm:$0xff]
      %v3848 = vld [vmem:[%s3743 + $0x39] sm:$0xff]
      %v3849 = vld [vmem:[%s3743 + $0x49] sm:$0xff]
      %v3850 = vld [vmem:[%s3743 + $0x51] sm:$0xff]
      %v3851 = vld [vmem:[%s3743 + $0x61] sm:$0xff]
      %v3852 = vld [vmem:[%s3743 + $0x69] sm:$0xff]
      %v3853 = vld [vmem:[%s3743 + $0x79] sm:$0xff]
      %v3854 = vld [vmem:[%s3743 + $0x81] sm:$0xff]
      %v3855 = vld [vmem:[%s3743 + $0x91] sm:$0xff]
      %v3856 = vld [vmem:[%s3743 + $0x99] sm:$0xff]
      %v3857 = vld [vmem:[%s3743 + $0xa9] sm:$0xff]
      %v3858 = vld [vmem:[%s3743 + $0xb1] sm:$0xff]
      %v3859 = vld [vmem:[%s3743 + $0xc1] sm:$0xff]
      %v3860 = vld [vmem:[%s3743 + $0xc9] sm:$0xff]
      %v3861 = vld [vmem:[%s3743 + $0xd9] sm:$0xff]
      %v3862 = vld [vmem:[%s3743 + $0xe1] sm:$0xff]
      %v3863 = vld [vmem:[%s3743 + $0xf1] sm:$0xff]
      %v3864 = vld [vmem:[%s3743 + $0xf9] sm:$0xff]
      %v3865 = vld [vmem:[%s3743 + $0x109] sm:$0xff]
      %v3866 = vld [vmem:[%s3743 + $0x111] sm:$0xff]
      %v3867 = vld [vmem:[%s3743 + $0x121] sm:$0xff]
      %v3868 = vld [vmem:[%s3743 + $0x129] sm:$0xff]
      %v3869 = vld [vmem:[%s3743 + $0x139] sm:$0xff]
      %v3870 = vld [vmem:[%s3743 + $0x141] sm:$0xff]
      %v3871 = vld [vmem:[%s3743 + $0x151] sm:$0xff]
      %v3872 = vld [vmem:[%s3743 + $0x159] sm:$0xff]
      %v3873 = vld [vmem:[%s3743 + $0x169] sm:$0xff]
      %v3874 = vld [vmem:[%s3743 + $0x171] sm:$0xff]
      %v3875 = vld [vmem:[%s3776 + $0x1] sm:$0x1]
      %v3876 = vperm.slane %v3875, 0
      %v3877 = vmul.f32 %v3843, %v3876
      %v3878 = vmul.f32 %v3844, %v3876
      %v3879 = vmul.f32 %v3845, %v3876
      %v3880 = vmul.f32 %v3846, %v3876
      %v3881 = vmul.f32 %v3847, %v3876
      %v3882 = vmul.f32 %v3848, %v3876
      %v3883 = vmul.f32 %v3849, %v3876
      %v3884 = vmul.f32 %v3850, %v3876
      %v3885 = vmul.f32 %v3851, %v3876
      %v3886 = vmul.f32 %v3852, %v3876
      %v3887 = vmul.f32 %v3853, %v3876
      %v3888 = vmul.f32 %v3854, %v3876
      %v3889 = vmul.f32 %v3855, %v3876
      %v3890 = vmul.f32 %v3856, %v3876
      %v3891 = vmul.f32 %v3857, %v3876
      %v3892 = vmul.f32 %v3858, %v3876
      %v3893 = vmul.f32 %v3859, %v3876
      %v3894 = vmul.f32 %v3860, %v3876
      %v3895 = vmul.f32 %v3861, %v3876
      %v3896 = vmul.f32 %v3862, %v3876
      %v3897 = vmul.f32 %v3863, %v3876
      %v3898 = vmul.f32 %v3864, %v3876
      %v3899 = vmul.f32 %v3865, %v3876
      %v3900 = vmul.f32 %v3866, %v3876
      %v3901 = vmul.f32 %v3867, %v3876
      %v3902 = vmul.f32 %v3868, %v3876
      %v3903 = vmul.f32 %v3869, %v3876
      %v3904 = vmul.f32 %v3870, %v3876
      %v3905 = vmul.f32 %v3871, %v3876
      %v3906 = vmul.f32 %v3872, %v3876
      %v3907 = vmul.f32 %v3873, %v3876
      %v3908 = vmul.f32 %v3874, %v3876
      %v3909 = vadd.f32 %v3811, %v3877
      %v3910 = vadd.f32 %v3812, %v3878
      %v3911 = vadd.f32 %v3813, %v3879
      %v3912 = vadd.f32 %v3814, %v3880
      %v3913 = vadd.f32 %v3815, %v3881
      %v3914 = vadd.f32 %v3816, %v3882
      %v3915 = vadd.f32 %v3817, %v3883
      %v3916 = vadd.f32 %v3818, %v3884
      %v3917 = vadd.f32 %v3819, %v3885
      %v3918 = vadd.f32 %v3820, %v3886
      %v3919 = vadd.f32 %v3821, %v3887
      %v3920 = vadd.f32 %v3822, %v3888
      %v3921 = vadd.f32 %v3823, %v3889
      %v3922 = vadd.f32 %v3824, %v3890
      %v3923 = vadd.f32 %v3825, %v3891
      %v3924 = vadd.f32 %v3826, %v3892
      %v3925 = vadd.f32 %v3827, %v3893
      %v3926 = vadd.f32 %v3828, %v3894
      %v3927 = vadd.f32 %v3829, %v3895
      %v3928 = vadd.f32 %v3830, %v3896
      %v3929 = vadd.f32 %v3831, %v3897
      %v3930 = vadd.f32 %v3832, %v3898
      %v3931 = vadd.f32 %v3833, %v3899
      %v3932 = vadd.f32 %v3834, %v3900
      %v3933 = vadd.f32 %v3835, %v3901
      %v3934 = vadd.f32 %v3836, %v3902
      %v3935 = vadd.f32 %v3837, %v3903
      %v3936 = vadd.f32 %v3838, %v3904
      %v3937 = vadd.f32 %v3839, %v3905
      %v3938 = vadd.f32 %v3840, %v3906
      %v3939 = vadd.f32 %v3841, %v3907
      %v3940 = vadd.f32 %v3842, %v3908
      %v3941 = vld [vmem:[%s3743 + $0x2] sm:$0xff]
      %v3942 = vld [vmem:[%s3743 + $0xa] sm:$0xff]
      %v3943 = vld [vmem:[%s3743 + $0x1a] sm:$0xff]
      %v3944 = vld [vmem:[%s3743 + $0x22] sm:$0xff]
      %v3945 = vld [vmem:[%s3743 + $0x32] sm:$0xff]
      %v3946 = vld [vmem:[%s3743 + $0x3a] sm:$0xff]
      %v3947 = vld [vmem:[%s3743 + $0x4a] sm:$0xff]
      %v3948 = vld [vmem:[%s3743 + $0x52] sm:$0xff]
      %v3949 = vld [vmem:[%s3743 + $0x62] sm:$0xff]
      %v3950 = vld [vmem:[%s3743 + $0x6a] sm:$0xff]
      %v3951 = vld [vmem:[%s3743 + $0x7a] sm:$0xff]
      %v3952 = vld [vmem:[%s3743 + $0x82] sm:$0xff]
      %v3953 = vld [vmem:[%s3743 + $0x92] sm:$0xff]
      %v3954 = vld [vmem:[%s3743 + $0x9a] sm:$0xff]
      %v3955 = vld [vmem:[%s3743 + $0xaa] sm:$0xff]
      %v3956 = vld [vmem:[%s3743 + $0xb2] sm:$0xff]
      %v3957 = vld [vmem:[%s3743 + $0xc2] sm:$0xff]
      %v3958 = vld [vmem:[%s3743 + $0xca] sm:$0xff]
      %v3959 = vld [vmem:[%s3743 + $0xda] sm:$0xff]
      %v3960 = vld [vmem:[%s3743 + $0xe2] sm:$0xff]
      %v3961 = vld [vmem:[%s3743 + $0xf2] sm:$0xff]
      %v3962 = vld [vmem:[%s3743 + $0xfa] sm:$0xff]
      %v3963 = vld [vmem:[%s3743 + $0x10a] sm:$0xff]
      %v3964 = vld [vmem:[%s3743 + $0x112] sm:$0xff]
      %v3965 = vld [vmem:[%s3743 + $0x122] sm:$0xff]
      %v3966 = vld [vmem:[%s3743 + $0x12a] sm:$0xff]
      %v3967 = vld [vmem:[%s3743 + $0x13a] sm:$0xff]
      %v3968 = vld [vmem:[%s3743 + $0x142] sm:$0xff]
      %v3969 = vld [vmem:[%s3743 + $0x152] sm:$0xff]
      %v3970 = vld [vmem:[%s3743 + $0x15a] sm:$0xff]
      %v3971 = vld [vmem:[%s3743 + $0x16a] sm:$0xff]
      %v3972 = vld [vmem:[%s3743 + $0x172] sm:$0xff]
      %v3973 = vld [vmem:[%s3776 + $0x2] sm:$0x1]
      %v3974 = vperm.slane %v3973, 0
      %v3975 = vmul.f32 %v3941, %v3974
      %v3976 = vmul.f32 %v3942, %v3974
      %v3977 = vmul.f32 %v3943, %v3974
      %v3978 = vmul.f32 %v3944, %v3974
      %v3979 = vmul.f32 %v3945, %v3974
      %v3980 = vmul.f32 %v3946, %v3974
      %v3981 = vmul.f32 %v3947, %v3974
      %v3982 = vmul.f32 %v3948, %v3974
      %v3983 = vmul.f32 %v3949, %v3974
      %v3984 = vmul.f32 %v3950, %v3974
      %v3985 = vmul.f32 %v3951, %v3974
      %v3986 = vmul.f32 %v3952, %v3974
      %v3987 = vmul.f32 %v3953, %v3974
      %v3988 = vmul.f32 %v3954, %v3974
      %v3989 = vmul.f32 %v3955, %v3974
      %v3990 = vmul.f32 %v3956, %v3974
      %v3991 = vmul.f32 %v3957, %v3974
      %v3992 = vmul.f32 %v3958, %v3974
      %v3993 = vmul.f32 %v3959, %v3974
      %v3994 = vmul.f32 %v3960, %v3974
      %v3995 = vmul.f32 %v3961, %v3974
      %v3996 = vmul.f32 %v3962, %v3974
      %v3997 = vmul.f32 %v3963, %v3974
      %v3998 = vmul.f32 %v3964, %v3974
      %v3999 = vmul.f32 %v3965, %v3974
      %v4000 = vmul.f32 %v3966, %v3974
      %v4001 = vmul.f32 %v3967, %v3974
      %v4002 = vmul.f32 %v3968, %v3974
      %v4003 = vmul.f32 %v3969, %v3974
      %v4004 = vmul.f32 %v3970, %v3974
      %v4005 = vmul.f32 %v3971, %v3974
      %v4006 = vmul.f32 %v3972, %v3974
      %v4007 = vadd.f32 %v3909, %v3975
      %v4008 = vadd.f32 %v3910, %v3976
      %v4009 = vadd.f32 %v3911, %v3977
      %v4010 = vadd.f32 %v3912, %v3978
      %v4011 = vadd.f32 %v3913, %v3979
      %v4012 = vadd.f32 %v3914, %v3980
      %v4013 = vadd.f32 %v3915, %v3981
      %v4014 = vadd.f32 %v3916, %v3982
      %v4015 = vadd.f32 %v3917, %v3983
      %v4016 = vadd.f32 %v3918, %v3984
      %v4017 = vadd.f32 %v3919, %v3985
      %v4018 = vadd.f32 %v3920, %v3986
      %v4019 = vadd.f32 %v3921, %v3987
      %v4020 = vadd.f32 %v3922, %v3988
      %v4021 = vadd.f32 %v3923, %v3989
      %v4022 = vadd.f32 %v3924, %v3990
      %v4023 = vadd.f32 %v3925, %v3991
      %v4024 = vadd.f32 %v3926, %v3992
      %v4025 = vadd.f32 %v3927, %v3993
      %v4026 = vadd.f32 %v3928, %v3994
      %v4027 = vadd.f32 %v3929, %v3995
      %v4028 = vadd.f32 %v3930, %v3996
      %v4029 = vadd.f32 %v3931, %v3997
      %v4030 = vadd.f32 %v3932, %v3998
      %v4031 = vadd.f32 %v3933, %v3999
      %v4032 = vadd.f32 %v3934, %v4000
      %v4033 = vadd.f32 %v3935, %v4001
      %v4034 = vadd.f32 %v3936, %v4002
      %v4035 = vadd.f32 %v3937, %v4003
      %v4036 = vadd.f32 %v3938, %v4004
      %v4037 = vadd.f32 %v3939, %v4005
      %v4038 = vadd.f32 %v3940, %v4006
      %v4039 = vld [vmem:[%s3743 + $0x3] sm:$0xff]
      %v4040 = vld [vmem:[%s3743 + $0xb] sm:$0xff]
      %v4041 = vld [vmem:[%s3743 + $0x1b] sm:$0xff]
      %v4042 = vld [vmem:[%s3743 + $0x23] sm:$0xff]
      %v4043 = vld [vmem:[%s3743 + $0x33] sm:$0xff]
      %v4044 = vld [vmem:[%s3743 + $0x3b] sm:$0xff]
      %v4045 = vld [vmem:[%s3743 + $0x4b] sm:$0xff]
      %v4046 = vld [vmem:[%s3743 + $0x53] sm:$0xff]
      %v4047 = vld [vmem:[%s3743 + $0x63] sm:$0xff]
      %v4048 = vld [vmem:[%s3743 + $0x6b] sm:$0xff]
      %v4049 = vld [vmem:[%s3743 + $0x7b] sm:$0xff]
      %v4050 = vld [vmem:[%s3743 + $0x83] sm:$0xff]
      %v4051 = vld [vmem:[%s3743 + $0x93] sm:$0xff]
      %v4052 = vld [vmem:[%s3743 + $0x9b] sm:$0xff]
      %v4053 = vld [vmem:[%s3743 + $0xab] sm:$0xff]
      %v4054 = vld [vmem:[%s3743 + $0xb3] sm:$0xff]
      %v4055 = vld [vmem:[%s3743 + $0xc3] sm:$0xff]
      %v4056 = vld [vmem:[%s3743 + $0xcb] sm:$0xff]
      %v4057 = vld [vmem:[%s3743 + $0xdb] sm:$0xff]
      %v4058 = vld [vmem:[%s3743 + $0xe3] sm:$0xff]
      %v4059 = vld [vmem:[%s3743 + $0xf3] sm:$0xff]
      %v4060 = vld [vmem:[%s3743 + $0xfb] sm:$0xff]
      %v4061 = vld [vmem:[%s3743 + $0x10b] sm:$0xff]
      %v4062 = vld [vmem:[%s3743 + $0x113] sm:$0xff]
      %v4063 = vld [vmem:[%s3743 + $0x123] sm:$0xff]
      %v4064 = vld [vmem:[%s3743 + $0x12b] sm:$0xff]
      %v4065 = vld [vmem:[%s3743 + $0x13b] sm:$0xff]
      %v4066 = vld [vmem:[%s3743 + $0x143] sm:$0xff]
      %v4067 = vld [vmem:[%s3743 + $0x153] sm:$0xff]
      %v4068 = vld [vmem:[%s3743 + $0x15b] sm:$0xff]
      %v4069 = vld [vmem:[%s3743 + $0x16b] sm:$0xff]
      %v4070 = vld [vmem:[%s3743 + $0x173] sm:$0xff]
      %v4071 = vld [vmem:[%s3776 + $0x3] sm:$0x1]
      %v4072 = vperm.slane %v4071, 0
      %v4073 = vmul.f32 %v4039, %v4072
      %v4074 = vmul.f32 %v4040, %v4072
      %v4075 = vmul.f32 %v4041, %v4072
      %v4076 = vmul.f32 %v4042, %v4072
      %v4077 = vmul.f32 %v4043, %v4072
      %v4078 = vmul.f32 %v4044, %v4072
      %v4079 = vmul.f32 %v4045, %v4072
      %v4080 = vmul.f32 %v4046, %v4072
      %v4081 = vmul.f32 %v4047, %v4072
      %v4082 = vmul.f32 %v4048, %v4072
      %v4083 = vmul.f32 %v4049, %v4072
      %v4084 = vmul.f32 %v4050, %v4072
      %v4085 = vmul.f32 %v4051, %v4072
      %v4086 = vmul.f32 %v4052, %v4072
      %v4087 = vmul.f32 %v4053, %v4072
      %v4088 = vmul.f32 %v4054, %v4072
      %v4089 = vmul.f32 %v4055, %v4072
      %v4090 = vmul.f32 %v4056, %v4072
      %v4091 = vmul.f32 %v4057, %v4072
      %v4092 = vmul.f32 %v4058, %v4072
      %v4093 = vmul.f32 %v4059, %v4072
      %v4094 = vmul.f32 %v4060, %v4072
      %v4095 = vmul.f32 %v4061, %v4072
      %v4096 = vmul.f32 %v4062, %v4072
      %v4097 = vmul.f32 %v4063, %v4072
      %v4098 = vmul.f32 %v4064, %v4072
      %v4099 = vmul.f32 %v4065, %v4072
      %v4100 = vmul.f32 %v4066, %v4072
      %v4101 = vmul.f32 %v4067, %v4072
      %v4102 = vmul.f32 %v4068, %v4072
      %v4103 = vmul.f32 %v4069, %v4072
      %v4104 = vmul.f32 %v4070, %v4072
      %v4105 = vadd.f32 %v4007, %v4073
      %v4106 = vadd.f32 %v4008, %v4074
      %v4107 = vadd.f32 %v4009, %v4075
      %v4108 = vadd.f32 %v4010, %v4076
      %v4109 = vadd.f32 %v4011, %v4077
      %v4110 = vadd.f32 %v4012, %v4078
      %v4111 = vadd.f32 %v4013, %v4079
      %v4112 = vadd.f32 %v4014, %v4080
      %v4113 = vadd.f32 %v4015, %v4081
      %v4114 = vadd.f32 %v4016, %v4082
      %v4115 = vadd.f32 %v4017, %v4083
      %v4116 = vadd.f32 %v4018, %v4084
      %v4117 = vadd.f32 %v4019, %v4085
      %v4118 = vadd.f32 %v4020, %v4086
      %v4119 = vadd.f32 %v4021, %v4087
      %v4120 = vadd.f32 %v4022, %v4088
      %v4121 = vadd.f32 %v4023, %v4089
      %v4122 = vadd.f32 %v4024, %v4090
      %v4123 = vadd.f32 %v4025, %v4091
      %v4124 = vadd.f32 %v4026, %v4092
      %v4125 = vadd.f32 %v4027, %v4093
      %v4126 = vadd.f32 %v4028, %v4094
      %v4127 = vadd.f32 %v4029, %v4095
      %v4128 = vadd.f32 %v4030, %v4096
      %v4129 = vadd.f32 %v4031, %v4097
      %v4130 = vadd.f32 %v4032, %v4098
      %v4131 = vadd.f32 %v4033, %v4099
      %v4132 = vadd.f32 %v4034, %v4100
      %v4133 = vadd.f32 %v4035, %v4101
      %v4134 = vadd.f32 %v4036, %v4102
      %v4135 = vadd.f32 %v4037, %v4103
      %v4136 = vadd.f32 %v4038, %v4104
      %v4137 = vld [vmem:[%s3743 + $0x4] sm:$0xff]
      %v4138 = vld [vmem:[%s3743 + $0xc] sm:$0xff]
      %v4139 = vld [vmem:[%s3743 + $0x1c] sm:$0xff]
      %v4140 = vld [vmem:[%s3743 + $0x24] sm:$0xff]
      %v4141 = vld [vmem:[%s3743 + $0x34] sm:$0xff]
      %v4142 = vld [vmem:[%s3743 + $0x3c] sm:$0xff]
      %v4143 = vld [vmem:[%s3743 + $0x4c] sm:$0xff]
      %v4144 = vld [vmem:[%s3743 + $0x54] sm:$0xff]
      %v4145 = vld [vmem:[%s3743 + $0x64] sm:$0xff]
      %v4146 = vld [vmem:[%s3743 + $0x6c] sm:$0xff]
      %v4147 = vld [vmem:[%s3743 + $0x7c] sm:$0xff]
      %v4148 = vld [vmem:[%s3743 + $0x84] sm:$0xff]
      %v4149 = vld [vmem:[%s3743 + $0x94] sm:$0xff]
      %v4150 = vld [vmem:[%s3743 + $0x9c] sm:$0xff]
      %v4151 = vld [vmem:[%s3743 + $0xac] sm:$0xff]
      %v4152 = vld [vmem:[%s3743 + $0xb4] sm:$0xff]
      %v4153 = vld [vmem:[%s3743 + $0xc4] sm:$0xff]
      %v4154 = vld [vmem:[%s3743 + $0xcc] sm:$0xff]
      %v4155 = vld [vmem:[%s3743 + $0xdc] sm:$0xff]
      %v4156 = vld [vmem:[%s3743 + $0xe4] sm:$0xff]
      %v4157 = vld [vmem:[%s3743 + $0xf4] sm:$0xff]
      %v4158 = vld [vmem:[%s3743 + $0xfc] sm:$0xff]
      %v4159 = vld [vmem:[%s3743 + $0x10c] sm:$0xff]
      %v4160 = vld [vmem:[%s3743 + $0x114] sm:$0xff]
      %v4161 = vld [vmem:[%s3743 + $0x124] sm:$0xff]
      %v4162 = vld [vmem:[%s3743 + $0x12c] sm:$0xff]
      %v4163 = vld [vmem:[%s3743 + $0x13c] sm:$0xff]
      %v4164 = vld [vmem:[%s3743 + $0x144] sm:$0xff]
      %v4165 = vld [vmem:[%s3743 + $0x154] sm:$0xff]
      %v4166 = vld [vmem:[%s3743 + $0x15c] sm:$0xff]
      %v4167 = vld [vmem:[%s3743 + $0x16c] sm:$0xff]
      %v4168 = vld [vmem:[%s3743 + $0x174] sm:$0xff]
      %v4169 = vld [vmem:[%s3776 + $0x4] sm:$0x1]
      %v4170 = vperm.slane %v4169, 0
      %v4171 = vmul.f32 %v4137, %v4170
      %v4172 = vmul.f32 %v4138, %v4170
      %v4173 = vmul.f32 %v4139, %v4170
      %v4174 = vmul.f32 %v4140, %v4170
      %v4175 = vmul.f32 %v4141, %v4170
      %v4176 = vmul.f32 %v4142, %v4170
      %v4177 = vmul.f32 %v4143, %v4170
      %v4178 = vmul.f32 %v4144, %v4170
      %v4179 = vmul.f32 %v4145, %v4170
      %v4180 = vmul.f32 %v4146, %v4170
      %v4181 = vmul.f32 %v4147, %v4170
      %v4182 = vmul.f32 %v4148, %v4170
      %v4183 = vmul.f32 %v4149, %v4170
      %v4184 = vmul.f32 %v4150, %v4170
      %v4185 = vmul.f32 %v4151, %v4170
      %v4186 = vmul.f32 %v4152, %v4170
      %v4187 = vmul.f32 %v4153, %v4170
      %v4188 = vmul.f32 %v4154, %v4170
      %v4189 = vmul.f32 %v4155, %v4170
      %v4190 = vmul.f32 %v4156, %v4170
      %v4191 = vmul.f32 %v4157, %v4170
      %v4192 = vmul.f32 %v4158, %v4170
      %v4193 = vmul.f32 %v4159, %v4170
      %v4194 = vmul.f32 %v4160, %v4170
      %v4195 = vmul.f32 %v4161, %v4170
      %v4196 = vmul.f32 %v4162, %v4170
      %v4197 = vmul.f32 %v4163, %v4170
      %v4198 = vmul.f32 %v4164, %v4170
      %v4199 = vmul.f32 %v4165, %v4170
      %v4200 = vmul.f32 %v4166, %v4170
      %v4201 = vmul.f32 %v4167, %v4170
      %v4202 = vmul.f32 %v4168, %v4170
      %v4203 = vadd.f32 %v4105, %v4171
      %v4204 = vadd.f32 %v4106, %v4172
      %v4205 = vadd.f32 %v4107, %v4173
      %v4206 = vadd.f32 %v4108, %v4174
      %v4207 = vadd.f32 %v4109, %v4175
      %v4208 = vadd.f32 %v4110, %v4176
      %v4209 = vadd.f32 %v4111, %v4177
      %v4210 = vadd.f32 %v4112, %v4178
      %v4211 = vadd.f32 %v4113, %v4179
      %v4212 = vadd.f32 %v4114, %v4180
      %v4213 = vadd.f32 %v4115, %v4181
      %v4214 = vadd.f32 %v4116, %v4182
      %v4215 = vadd.f32 %v4117, %v4183
      %v4216 = vadd.f32 %v4118, %v4184
      %v4217 = vadd.f32 %v4119, %v4185
      %v4218 = vadd.f32 %v4120, %v4186
      %v4219 = vadd.f32 %v4121, %v4187
      %v4220 = vadd.f32 %v4122, %v4188
      %v4221 = vadd.f32 %v4123, %v4189
      %v4222 = vadd.f32 %v4124, %v4190
      %v4223 = vadd.f32 %v4125, %v4191
      %v4224 = vadd.f32 %v4126, %v4192
      %v4225 = vadd.f32 %v4127, %v4193
      %v4226 = vadd.f32 %v4128, %v4194
      %v4227 = vadd.f32 %v4129, %v4195
      %v4228 = vadd.f32 %v4130, %v4196
      %v4229 = vadd.f32 %v4131, %v4197
      %v4230 = vadd.f32 %v4132, %v4198
      %v4231 = vadd.f32 %v4133, %v4199
      %v4232 = vadd.f32 %v4134, %v4200
      %v4233 = vadd.f32 %v4135, %v4201
      %v4234 = vadd.f32 %v4136, %v4202
      %v4235 = vld [vmem:[%s3743 + $0x5] sm:$0xff]
      %v4236 = vld [vmem:[%s3743 + $0xd] sm:$0xff]
      %v4237 = vld [vmem:[%s3743 + $0x1d] sm:$0xff]
      %v4238 = vld [vmem:[%s3743 + $0x25] sm:$0xff]
      %v4239 = vld [vmem:[%s3743 + $0x35] sm:$0xff]
      %v4240 = vld [vmem:[%s3743 + $0x3d] sm:$0xff]
      %v4241 = vld [vmem:[%s3743 + $0x4d] sm:$0xff]
      %v4242 = vld [vmem:[%s3743 + $0x55] sm:$0xff]
      %v4243 = vld [vmem:[%s3743 + $0x65] sm:$0xff]
      %v4244 = vld [vmem:[%s3743 + $0x6d] sm:$0xff]
      %v4245 = vld [vmem:[%s3743 + $0x7d] sm:$0xff]
      %v4246 = vld [vmem:[%s3743 + $0x85] sm:$0xff]
      %v4247 = vld [vmem:[%s3743 + $0x95] sm:$0xff]
      %v4248 = vld [vmem:[%s3743 + $0x9d] sm:$0xff]
      %v4249 = vld [vmem:[%s3743 + $0xad] sm:$0xff]
      %v4250 = vld [vmem:[%s3743 + $0xb5] sm:$0xff]
      %v4251 = vld [vmem:[%s3743 + $0xc5] sm:$0xff]
      %v4252 = vld [vmem:[%s3743 + $0xcd] sm:$0xff]
      %v4253 = vld [vmem:[%s3743 + $0xdd] sm:$0xff]
      %v4254 = vld [vmem:[%s3743 + $0xe5] sm:$0xff]
      %v4255 = vld [vmem:[%s3743 + $0xf5] sm:$0xff]
      %v4256 = vld [vmem:[%s3743 + $0xfd] sm:$0xff]
      %v4257 = vld [vmem:[%s3743 + $0x10d] sm:$0xff]
      %v4258 = vld [vmem:[%s3743 + $0x115] sm:$0xff]
      %v4259 = vld [vmem:[%s3743 + $0x125] sm:$0xff]
      %v4260 = vld [vmem:[%s3743 + $0x12d] sm:$0xff]
      %v4261 = vld [vmem:[%s3743 + $0x13d] sm:$0xff]
      %v4262 = vld [vmem:[%s3743 + $0x145] sm:$0xff]
      %v4263 = vld [vmem:[%s3743 + $0x155] sm:$0xff]
      %v4264 = vld [vmem:[%s3743 + $0x15d] sm:$0xff]
      %v4265 = vld [vmem:[%s3743 + $0x16d] sm:$0xff]
      %v4266 = vld [vmem:[%s3743 + $0x175] sm:$0xff]
      %v4267 = vld [vmem:[%s3776 + $0x5] sm:$0x1]
      %v4268 = vperm.slane %v4267, 0
      %v4269 = vmul.f32 %v4235, %v4268
      %v4270 = vmul.f32 %v4236, %v4268
      %v4271 = vmul.f32 %v4237, %v4268
      %v4272 = vmul.f32 %v4238, %v4268
      %v4273 = vmul.f32 %v4239, %v4268
      %v4274 = vmul.f32 %v4240, %v4268
      %v4275 = vmul.f32 %v4241, %v4268
      %v4276 = vmul.f32 %v4242, %v4268
      %v4277 = vmul.f32 %v4243, %v4268
      %v4278 = vmul.f32 %v4244, %v4268
      %v4279 = vmul.f32 %v4245, %v4268
      %v4280 = vmul.f32 %v4246, %v4268
      %v4281 = vmul.f32 %v4247, %v4268
      %v4282 = vmul.f32 %v4248, %v4268
      %v4283 = vmul.f32 %v4249, %v4268
      %v4284 = vmul.f32 %v4250, %v4268
      %v4285 = vmul.f32 %v4251, %v4268
      %v4286 = vmul.f32 %v4252, %v4268
      %v4287 = vmul.f32 %v4253, %v4268
      %v4288 = vmul.f32 %v4254, %v4268
      %v4289 = vmul.f32 %v4255, %v4268
      %v4290 = vmul.f32 %v4256, %v4268
      %v4291 = vmul.f32 %v4257, %v4268
      %v4292 = vmul.f32 %v4258, %v4268
      %v4293 = vmul.f32 %v4259, %v4268
      %v4294 = vmul.f32 %v4260, %v4268
      %v4295 = vmul.f32 %v4261, %v4268
      %v4296 = vmul.f32 %v4262, %v4268
      %v4297 = vmul.f32 %v4263, %v4268
      %v4298 = vmul.f32 %v4264, %v4268
      %v4299 = vmul.f32 %v4265, %v4268
      %v4300 = vmul.f32 %v4266, %v4268
      %v4301 = vadd.f32 %v4203, %v4269
      %v4302 = vadd.f32 %v4204, %v4270
      %v4303 = vadd.f32 %v4205, %v4271
      %v4304 = vadd.f32 %v4206, %v4272
      %v4305 = vadd.f32 %v4207, %v4273
      %v4306 = vadd.f32 %v4208, %v4274
      %v4307 = vadd.f32 %v4209, %v4275
      %v4308 = vadd.f32 %v4210, %v4276
      %v4309 = vadd.f32 %v4211, %v4277
      %v4310 = vadd.f32 %v4212, %v4278
      %v4311 = vadd.f32 %v4213, %v4279
      %v4312 = vadd.f32 %v4214, %v4280
      %v4313 = vadd.f32 %v4215, %v4281
      %v4314 = vadd.f32 %v4216, %v4282
      %v4315 = vadd.f32 %v4217, %v4283
      %v4316 = vadd.f32 %v4218, %v4284
      %v4317 = vadd.f32 %v4219, %v4285
      %v4318 = vadd.f32 %v4220, %v4286
      %v4319 = vadd.f32 %v4221, %v4287
      %v4320 = vadd.f32 %v4222, %v4288
      %v4321 = vadd.f32 %v4223, %v4289
      %v4322 = vadd.f32 %v4224, %v4290
      %v4323 = vadd.f32 %v4225, %v4291
      %v4324 = vadd.f32 %v4226, %v4292
      %v4325 = vadd.f32 %v4227, %v4293
      %v4326 = vadd.f32 %v4228, %v4294
      %v4327 = vadd.f32 %v4229, %v4295
      %v4328 = vadd.f32 %v4230, %v4296
      %v4329 = vadd.f32 %v4231, %v4297
      %v4330 = vadd.f32 %v4232, %v4298
      %v4331 = vadd.f32 %v4233, %v4299
      %v4332 = vadd.f32 %v4234, %v4300
      %v4333 = vld [vmem:[%s3743 + $0x6] sm:$0xff]
      %v4334 = vld [vmem:[%s3743 + $0xe] sm:$0xff]
      %v4335 = vld [vmem:[%s3743 + $0x1e] sm:$0xff]
      %v4336 = vld [vmem:[%s3743 + $0x26] sm:$0xff]
      %v4337 = vld [vmem:[%s3743 + $0x36] sm:$0xff]
      %v4338 = vld [vmem:[%s3743 + $0x3e] sm:$0xff]
      %v4339 = vld [vmem:[%s3743 + $0x4e] sm:$0xff]
      %v4340 = vld [vmem:[%s3743 + $0x56] sm:$0xff]
      %v4341 = vld [vmem:[%s3743 + $0x66] sm:$0xff]
      %v4342 = vld [vmem:[%s3743 + $0x6e] sm:$0xff]
      %v4343 = vld [vmem:[%s3743 + $0x7e] sm:$0xff]
      %v4344 = vld [vmem:[%s3743 + $0x86] sm:$0xff]
      %v4345 = vld [vmem:[%s3743 + $0x96] sm:$0xff]
      %v4346 = vld [vmem:[%s3743 + $0x9e] sm:$0xff]
      %v4347 = vld [vmem:[%s3743 + $0xae] sm:$0xff]
      %v4348 = vld [vmem:[%s3743 + $0xb6] sm:$0xff]
      %v4349 = vld [vmem:[%s3743 + $0xc6] sm:$0xff]
      %v4350 = vld [vmem:[%s3743 + $0xce] sm:$0xff]
      %v4351 = vld [vmem:[%s3743 + $0xde] sm:$0xff]
      %v4352 = vld [vmem:[%s3743 + $0xe6] sm:$0xff]
      %v4353 = vld [vmem:[%s3743 + $0xf6] sm:$0xff]
      %v4354 = vld [vmem:[%s3743 + $0xfe] sm:$0xff]
      %v4355 = vld [vmem:[%s3743 + $0x10e] sm:$0xff]
      %v4356 = vld [vmem:[%s3743 + $0x116] sm:$0xff]
      %v4357 = vld [vmem:[%s3743 + $0x126] sm:$0xff]
      %v4358 = vld [vmem:[%s3743 + $0x12e] sm:$0xff]
      %v4359 = vld [vmem:[%s3743 + $0x13e] sm:$0xff]
      %v4360 = vld [vmem:[%s3743 + $0x146] sm:$0xff]
      %v4361 = vld [vmem:[%s3743 + $0x156] sm:$0xff]
      %v4362 = vld [vmem:[%s3743 + $0x15e] sm:$0xff]
      %v4363 = vld [vmem:[%s3743 + $0x16e] sm:$0xff]
      %v4364 = vld [vmem:[%s3743 + $0x176] sm:$0xff]
      %v4365 = vld [vmem:[%s3776 + $0x6] sm:$0x1]
      %v4366 = vperm.slane %v4365, 0
      %v4367 = vmul.f32 %v4333, %v4366
      %v4368 = vmul.f32 %v4334, %v4366
      %v4369 = vmul.f32 %v4335, %v4366
      %v4370 = vmul.f32 %v4336, %v4366
      %v4371 = vmul.f32 %v4337, %v4366
      %v4372 = vmul.f32 %v4338, %v4366
      %v4373 = vmul.f32 %v4339, %v4366
      %v4374 = vmul.f32 %v4340, %v4366
      %v4375 = vmul.f32 %v4341, %v4366
      %v4376 = vmul.f32 %v4342, %v4366
      %v4377 = vmul.f32 %v4343, %v4366
      %v4378 = vmul.f32 %v4344, %v4366
      %v4379 = vmul.f32 %v4345, %v4366
      %v4380 = vmul.f32 %v4346, %v4366
      %v4381 = vmul.f32 %v4347, %v4366
      %v4382 = vmul.f32 %v4348, %v4366
      %v4383 = vmul.f32 %v4349, %v4366
      %v4384 = vmul.f32 %v4350, %v4366
      %v4385 = vmul.f32 %v4351, %v4366
      %v4386 = vmul.f32 %v4352, %v4366
      %v4387 = vmul.f32 %v4353, %v4366
      %v4388 = vmul.f32 %v4354, %v4366
      %v4389 = vmul.f32 %v4355, %v4366
      %v4390 = vmul.f32 %v4356, %v4366
      %v4391 = vmul.f32 %v4357, %v4366
      %v4392 = vmul.f32 %v4358, %v4366
      %v4393 = vmul.f32 %v4359, %v4366
      %v4394 = vmul.f32 %v4360, %v4366
      %v4395 = vmul.f32 %v4361, %v4366
      %v4396 = vmul.f32 %v4362, %v4366
      %v4397 = vmul.f32 %v4363, %v4366
      %v4398 = vmul.f32 %v4364, %v4366
      %v4399 = vadd.f32 %v4301, %v4367
      %v4400 = vadd.f32 %v4302, %v4368
      %v4401 = vadd.f32 %v4303, %v4369
      %v4402 = vadd.f32 %v4304, %v4370
      %v4403 = vadd.f32 %v4305, %v4371
      %v4404 = vadd.f32 %v4306, %v4372
      %v4405 = vadd.f32 %v4307, %v4373
      %v4406 = vadd.f32 %v4308, %v4374
      %v4407 = vadd.f32 %v4309, %v4375
      %v4408 = vadd.f32 %v4310, %v4376
      %v4409 = vadd.f32 %v4311, %v4377
      %v4410 = vadd.f32 %v4312, %v4378
      %v4411 = vadd.f32 %v4313, %v4379
      %v4412 = vadd.f32 %v4314, %v4380
      %v4413 = vadd.f32 %v4315, %v4381
      %v4414 = vadd.f32 %v4316, %v4382
      %v4415 = vadd.f32 %v4317, %v4383
      %v4416 = vadd.f32 %v4318, %v4384
      %v4417 = vadd.f32 %v4319, %v4385
      %v4418 = vadd.f32 %v4320, %v4386
      %v4419 = vadd.f32 %v4321, %v4387
      %v4420 = vadd.f32 %v4322, %v4388
      %v4421 = vadd.f32 %v4323, %v4389
      %v4422 = vadd.f32 %v4324, %v4390
      %v4423 = vadd.f32 %v4325, %v4391
      %v4424 = vadd.f32 %v4326, %v4392
      %v4425 = vadd.f32 %v4327, %v4393
      %v4426 = vadd.f32 %v4328, %v4394
      %v4427 = vadd.f32 %v4329, %v4395
      %v4428 = vadd.f32 %v4330, %v4396
      %v4429 = vadd.f32 %v4331, %v4397
      %v4430 = vadd.f32 %v4332, %v4398
      %s4431 = sadd.s32 0, 6
      %s4432 = smul.u32 %s4431, 24
      %s4433 = scalar_lea.vmem [#allocation2], %s4432
      %v4434 = vld [vmem:[%s4433] sm:$0xff]
      %v4435 = vld [vmem:[%s4433 + $0x8] sm:$0xff]
      %v4436 = vld [vmem:[%s4433 + $0x18] sm:$0xff]
      %v4437 = vld [vmem:[%s4433 + $0x20] sm:$0xff]
      %v4438 = vld [vmem:[%s4433 + $0x30] sm:$0xff]
      %v4439 = vld [vmem:[%s4433 + $0x38] sm:$0xff]
      %v4440 = vld [vmem:[%s4433 + $0x48] sm:$0xff]
      %v4441 = vld [vmem:[%s4433 + $0x50] sm:$0xff]
      %v4442 = vld [vmem:[%s4433 + $0x60] sm:$0xff]
      %v4443 = vld [vmem:[%s4433 + $0x68] sm:$0xff]
      %v4444 = vld [vmem:[%s4433 + $0x78] sm:$0xff]
      %v4445 = vld [vmem:[%s4433 + $0x80] sm:$0xff]
      %v4446 = vld [vmem:[%s4433 + $0x90] sm:$0xff]
      %v4447 = vld [vmem:[%s4433 + $0x98] sm:$0xff]
      %v4448 = vld [vmem:[%s4433 + $0xa8] sm:$0xff]
      %v4449 = vld [vmem:[%s4433 + $0xb0] sm:$0xff]
      %v4450 = vld [vmem:[%s4433 + $0xc0] sm:$0xff]
      %v4451 = vld [vmem:[%s4433 + $0xc8] sm:$0xff]
      %v4452 = vld [vmem:[%s4433 + $0xd8] sm:$0xff]
      %v4453 = vld [vmem:[%s4433 + $0xe0] sm:$0xff]
      %v4454 = vld [vmem:[%s4433 + $0xf0] sm:$0xff]
      %v4455 = vld [vmem:[%s4433 + $0xf8] sm:$0xff]
      %v4456 = vld [vmem:[%s4433 + $0x108] sm:$0xff]
      %v4457 = vld [vmem:[%s4433 + $0x110] sm:$0xff]
      %v4458 = vld [vmem:[%s4433 + $0x120] sm:$0xff]
      %v4459 = vld [vmem:[%s4433 + $0x128] sm:$0xff]
      %v4460 = vld [vmem:[%s4433 + $0x138] sm:$0xff]
      %v4461 = vld [vmem:[%s4433 + $0x140] sm:$0xff]
      %v4462 = vld [vmem:[%s4433 + $0x150] sm:$0xff]
      %v4463 = vld [vmem:[%s4433 + $0x158] sm:$0xff]
      %v4464 = vld [vmem:[%s4433 + $0x168] sm:$0xff]
      %v4465 = vld [vmem:[%s4433 + $0x170] sm:$0xff]
      %s4466 = scalar_lea.vmem %s1, 48
      %v4467 = vld [vmem:[%s4466] sm:$0x1]
      %v4468 = vperm.slane %v4467, 0
      %v4469 = vmul.f32 %v4434, %v4468
      %v4470 = vmul.f32 %v4435, %v4468
      %v4471 = vmul.f32 %v4436, %v4468
      %v4472 = vmul.f32 %v4437, %v4468
      %v4473 = vmul.f32 %v4438, %v4468
      %v4474 = vmul.f32 %v4439, %v4468
      %v4475 = vmul.f32 %v4440, %v4468
      %v4476 = vmul.f32 %v4441, %v4468
      %v4477 = vmul.f32 %v4442, %v4468
      %v4478 = vmul.f32 %v4443, %v4468
      %v4479 = vmul.f32 %v4444, %v4468
      %v4480 = vmul.f32 %v4445, %v4468
      %v4481 = vmul.f32 %v4446, %v4468
      %v4482 = vmul.f32 %v4447, %v4468
      %v4483 = vmul.f32 %v4448, %v4468
      %v4484 = vmul.f32 %v4449, %v4468
      %v4485 = vmul.f32 %v4450, %v4468
      %v4486 = vmul.f32 %v4451, %v4468
      %v4487 = vmul.f32 %v4452, %v4468
      %v4488 = vmul.f32 %v4453, %v4468
      %v4489 = vmul.f32 %v4454, %v4468
      %v4490 = vmul.f32 %v4455, %v4468
      %v4491 = vmul.f32 %v4456, %v4468
      %v4492 = vmul.f32 %v4457, %v4468
      %v4493 = vmul.f32 %v4458, %v4468
      %v4494 = vmul.f32 %v4459, %v4468
      %v4495 = vmul.f32 %v4460, %v4468
      %v4496 = vmul.f32 %v4461, %v4468
      %v4497 = vmul.f32 %v4462, %v4468
      %v4498 = vmul.f32 %v4463, %v4468
      %v4499 = vmul.f32 %v4464, %v4468
      %v4500 = vmul.f32 %v4465, %v4468
      %v4501 = vadd.f32 %v4399, %v4469
      %v4502 = vadd.f32 %v4400, %v4470
      %v4503 = vadd.f32 %v4401, %v4471
      %v4504 = vadd.f32 %v4402, %v4472
      %v4505 = vadd.f32 %v4403, %v4473
      %v4506 = vadd.f32 %v4404, %v4474
      %v4507 = vadd.f32 %v4405, %v4475
      %v4508 = vadd.f32 %v4406, %v4476
      %v4509 = vadd.f32 %v4407, %v4477
      %v4510 = vadd.f32 %v4408, %v4478
      %v4511 = vadd.f32 %v4409, %v4479
      %v4512 = vadd.f32 %v4410, %v4480
      %v4513 = vadd.f32 %v4411, %v4481
      %v4514 = vadd.f32 %v4412, %v4482
      %v4515 = vadd.f32 %v4413, %v4483
      %v4516 = vadd.f32 %v4414, %v4484
      %v4517 = vadd.f32 %v4415, %v4485
      %v4518 = vadd.f32 %v4416, %v4486
      %v4519 = vadd.f32 %v4417, %v4487
      %v4520 = vadd.f32 %v4418, %v4488
      %v4521 = vadd.f32 %v4419, %v4489
      %v4522 = vadd.f32 %v4420, %v4490
      %v4523 = vadd.f32 %v4421, %v4491
      %v4524 = vadd.f32 %v4422, %v4492
      %v4525 = vadd.f32 %v4423, %v4493
      %v4526 = vadd.f32 %v4424, %v4494
      %v4527 = vadd.f32 %v4425, %v4495
      %v4528 = vadd.f32 %v4426, %v4496
      %v4529 = vadd.f32 %v4427, %v4497
      %v4530 = vadd.f32 %v4428, %v4498
      %v4531 = vadd.f32 %v4429, %v4499
      %v4532 = vadd.f32 %v4430, %v4500
      %v4533 = vld [vmem:[%s4433 + $0x1] sm:$0xff]
      %v4534 = vld [vmem:[%s4433 + $0x9] sm:$0xff]
      %v4535 = vld [vmem:[%s4433 + $0x19] sm:$0xff]
      %v4536 = vld [vmem:[%s4433 + $0x21] sm:$0xff]
      %v4537 = vld [vmem:[%s4433 + $0x31] sm:$0xff]
      %v4538 = vld [vmem:[%s4433 + $0x39] sm:$0xff]
      %v4539 = vld [vmem:[%s4433 + $0x49] sm:$0xff]
      %v4540 = vld [vmem:[%s4433 + $0x51] sm:$0xff]
      %v4541 = vld [vmem:[%s4433 + $0x61] sm:$0xff]
      %v4542 = vld [vmem:[%s4433 + $0x69] sm:$0xff]
      %v4543 = vld [vmem:[%s4433 + $0x79] sm:$0xff]
      %v4544 = vld [vmem:[%s4433 + $0x81] sm:$0xff]
      %v4545 = vld [vmem:[%s4433 + $0x91] sm:$0xff]
      %v4546 = vld [vmem:[%s4433 + $0x99] sm:$0xff]
      %v4547 = vld [vmem:[%s4433 + $0xa9] sm:$0xff]
      %v4548 = vld [vmem:[%s4433 + $0xb1] sm:$0xff]
      %v4549 = vld [vmem:[%s4433 + $0xc1] sm:$0xff]
      %v4550 = vld [vmem:[%s4433 + $0xc9] sm:$0xff]
      %v4551 = vld [vmem:[%s4433 + $0xd9] sm:$0xff]
      %v4552 = vld [vmem:[%s4433 + $0xe1] sm:$0xff]
      %v4553 = vld [vmem:[%s4433 + $0xf1] sm:$0xff]
      %v4554 = vld [vmem:[%s4433 + $0xf9] sm:$0xff]
      %v4555 = vld [vmem:[%s4433 + $0x109] sm:$0xff]
      %v4556 = vld [vmem:[%s4433 + $0x111] sm:$0xff]
      %v4557 = vld [vmem:[%s4433 + $0x121] sm:$0xff]
      %v4558 = vld [vmem:[%s4433 + $0x129] sm:$0xff]
      %v4559 = vld [vmem:[%s4433 + $0x139] sm:$0xff]
      %v4560 = vld [vmem:[%s4433 + $0x141] sm:$0xff]
      %v4561 = vld [vmem:[%s4433 + $0x151] sm:$0xff]
      %v4562 = vld [vmem:[%s4433 + $0x159] sm:$0xff]
      %v4563 = vld [vmem:[%s4433 + $0x169] sm:$0xff]
      %v4564 = vld [vmem:[%s4433 + $0x171] sm:$0xff]
      %v4565 = vld [vmem:[%s4466 + $0x1] sm:$0x1]
      %v4566 = vperm.slane %v4565, 0
      %v4567 = vmul.f32 %v4533, %v4566
      %v4568 = vmul.f32 %v4534, %v4566
      %v4569 = vmul.f32 %v4535, %v4566
      %v4570 = vmul.f32 %v4536, %v4566
      %v4571 = vmul.f32 %v4537, %v4566
      %v4572 = vmul.f32 %v4538, %v4566
      %v4573 = vmul.f32 %v4539, %v4566
      %v4574 = vmul.f32 %v4540, %v4566
      %v4575 = vmul.f32 %v4541, %v4566
      %v4576 = vmul.f32 %v4542, %v4566
      %v4577 = vmul.f32 %v4543, %v4566
      %v4578 = vmul.f32 %v4544, %v4566
      %v4579 = vmul.f32 %v4545, %v4566
      %v4580 = vmul.f32 %v4546, %v4566
      %v4581 = vmul.f32 %v4547, %v4566
      %v4582 = vmul.f32 %v4548, %v4566
      %v4583 = vmul.f32 %v4549, %v4566
      %v4584 = vmul.f32 %v4550, %v4566
      %v4585 = vmul.f32 %v4551, %v4566
      %v4586 = vmul.f32 %v4552, %v4566
      %v4587 = vmul.f32 %v4553, %v4566
      %v4588 = vmul.f32 %v4554, %v4566
      %v4589 = vmul.f32 %v4555, %v4566
      %v4590 = vmul.f32 %v4556, %v4566
      %v4591 = vmul.f32 %v4557, %v4566
      %v4592 = vmul.f32 %v4558, %v4566
      %v4593 = vmul.f32 %v4559, %v4566
      %v4594 = vmul.f32 %v4560, %v4566
      %v4595 = vmul.f32 %v4561, %v4566
      %v4596 = vmul.f32 %v4562, %v4566
      %v4597 = vmul.f32 %v4563, %v4566
      %v4598 = vmul.f32 %v4564, %v4566
      %v4599 = vadd.f32 %v4501, %v4567
      %v4600 = vadd.f32 %v4502, %v4568
      %v4601 = vadd.f32 %v4503, %v4569
      %v4602 = vadd.f32 %v4504, %v4570
      %v4603 = vadd.f32 %v4505, %v4571
      %v4604 = vadd.f32 %v4506, %v4572
      %v4605 = vadd.f32 %v4507, %v4573
      %v4606 = vadd.f32 %v4508, %v4574
      %v4607 = vadd.f32 %v4509, %v4575
      %v4608 = vadd.f32 %v4510, %v4576
      %v4609 = vadd.f32 %v4511, %v4577
      %v4610 = vadd.f32 %v4512, %v4578
      %v4611 = vadd.f32 %v4513, %v4579
      %v4612 = vadd.f32 %v4514, %v4580
      %v4613 = vadd.f32 %v4515, %v4581
      %v4614 = vadd.f32 %v4516, %v4582
      %v4615 = vadd.f32 %v4517, %v4583
      %v4616 = vadd.f32 %v4518, %v4584
      %v4617 = vadd.f32 %v4519, %v4585
      %v4618 = vadd.f32 %v4520, %v4586
      %v4619 = vadd.f32 %v4521, %v4587
      %v4620 = vadd.f32 %v4522, %v4588
      %v4621 = vadd.f32 %v4523, %v4589
      %v4622 = vadd.f32 %v4524, %v4590
      %v4623 = vadd.f32 %v4525, %v4591
      %v4624 = vadd.f32 %v4526, %v4592
      %v4625 = vadd.f32 %v4527, %v4593
      %v4626 = vadd.f32 %v4528, %v4594
      %v4627 = vadd.f32 %v4529, %v4595
      %v4628 = vadd.f32 %v4530, %v4596
      %v4629 = vadd.f32 %v4531, %v4597
      %v4630 = vadd.f32 %v4532, %v4598
      %v4631 = vld [vmem:[%s4433 + $0x2] sm:$0xff]
      %v4632 = vld [vmem:[%s4433 + $0xa] sm:$0xff]
      %v4633 = vld [vmem:[%s4433 + $0x1a] sm:$0xff]
      %v4634 = vld [vmem:[%s4433 + $0x22] sm:$0xff]
      %v4635 = vld [vmem:[%s4433 + $0x32] sm:$0xff]
      %v4636 = vld [vmem:[%s4433 + $0x3a] sm:$0xff]
      %v4637 = vld [vmem:[%s4433 + $0x4a] sm:$0xff]
      %v4638 = vld [vmem:[%s4433 + $0x52] sm:$0xff]
      %v4639 = vld [vmem:[%s4433 + $0x62] sm:$0xff]
      %v4640 = vld [vmem:[%s4433 + $0x6a] sm:$0xff]
      %v4641 = vld [vmem:[%s4433 + $0x7a] sm:$0xff]
      %v4642 = vld [vmem:[%s4433 + $0x82] sm:$0xff]
      %v4643 = vld [vmem:[%s4433 + $0x92] sm:$0xff]
      %v4644 = vld [vmem:[%s4433 + $0x9a] sm:$0xff]
      %v4645 = vld [vmem:[%s4433 + $0xaa] sm:$0xff]
      %v4646 = vld [vmem:[%s4433 + $0xb2] sm:$0xff]
      %v4647 = vld [vmem:[%s4433 + $0xc2] sm:$0xff]
      %v4648 = vld [vmem:[%s4433 + $0xca] sm:$0xff]
      %v4649 = vld [vmem:[%s4433 + $0xda] sm:$0xff]
      %v4650 = vld [vmem:[%s4433 + $0xe2] sm:$0xff]
      %v4651 = vld [vmem:[%s4433 + $0xf2] sm:$0xff]
      %v4652 = vld [vmem:[%s4433 + $0xfa] sm:$0xff]
      %v4653 = vld [vmem:[%s4433 + $0x10a] sm:$0xff]
      %v4654 = vld [vmem:[%s4433 + $0x112] sm:$0xff]
      %v4655 = vld [vmem:[%s4433 + $0x122] sm:$0xff]
      %v4656 = vld [vmem:[%s4433 + $0x12a] sm:$0xff]
      %v4657 = vld [vmem:[%s4433 + $0x13a] sm:$0xff]
      %v4658 = vld [vmem:[%s4433 + $0x142] sm:$0xff]
      %v4659 = vld [vmem:[%s4433 + $0x152] sm:$0xff]
      %v4660 = vld [vmem:[%s4433 + $0x15a] sm:$0xff]
      %v4661 = vld [vmem:[%s4433 + $0x16a] sm:$0xff]
      %v4662 = vld [vmem:[%s4433 + $0x172] sm:$0xff]
      %v4663 = vld [vmem:[%s4466 + $0x2] sm:$0x1]
      %v4664 = vperm.slane %v4663, 0
      %v4665 = vmul.f32 %v4631, %v4664
      %v4666 = vmul.f32 %v4632, %v4664
      %v4667 = vmul.f32 %v4633, %v4664
      %v4668 = vmul.f32 %v4634, %v4664
      %v4669 = vmul.f32 %v4635, %v4664
      %v4670 = vmul.f32 %v4636, %v4664
      %v4671 = vmul.f32 %v4637, %v4664
      %v4672 = vmul.f32 %v4638, %v4664
      %v4673 = vmul.f32 %v4639, %v4664
      %v4674 = vmul.f32 %v4640, %v4664
      %v4675 = vmul.f32 %v4641, %v4664
      %v4676 = vmul.f32 %v4642, %v4664
      %v4677 = vmul.f32 %v4643, %v4664
      %v4678 = vmul.f32 %v4644, %v4664
      %v4679 = vmul.f32 %v4645, %v4664
      %v4680 = vmul.f32 %v4646, %v4664
      %v4681 = vmul.f32 %v4647, %v4664
      %v4682 = vmul.f32 %v4648, %v4664
      %v4683 = vmul.f32 %v4649, %v4664
      %v4684 = vmul.f32 %v4650, %v4664
      %v4685 = vmul.f32 %v4651, %v4664
      %v4686 = vmul.f32 %v4652, %v4664
      %v4687 = vmul.f32 %v4653, %v4664
      %v4688 = vmul.f32 %v4654, %v4664
      %v4689 = vmul.f32 %v4655, %v4664
      %v4690 = vmul.f32 %v4656, %v4664
      %v4691 = vmul.f32 %v4657, %v4664
      %v4692 = vmul.f32 %v4658, %v4664
      %v4693 = vmul.f32 %v4659, %v4664
      %v4694 = vmul.f32 %v4660, %v4664
      %v4695 = vmul.f32 %v4661, %v4664
      %v4696 = vmul.f32 %v4662, %v4664
      %v4697 = vadd.f32 %v4599, %v4665
      %v4698 = vadd.f32 %v4600, %v4666
      %v4699 = vadd.f32 %v4601, %v4667
      %v4700 = vadd.f32 %v4602, %v4668
      %v4701 = vadd.f32 %v4603, %v4669
      %v4702 = vadd.f32 %v4604, %v4670
      %v4703 = vadd.f32 %v4605, %v4671
      %v4704 = vadd.f32 %v4606, %v4672
      %v4705 = vadd.f32 %v4607, %v4673
      %v4706 = vadd.f32 %v4608, %v4674
      %v4707 = vadd.f32 %v4609, %v4675
      %v4708 = vadd.f32 %v4610, %v4676
      %v4709 = vadd.f32 %v4611, %v4677
      %v4710 = vadd.f32 %v4612, %v4678
      %v4711 = vadd.f32 %v4613, %v4679
      %v4712 = vadd.f32 %v4614, %v4680
      %v4713 = vadd.f32 %v4615, %v4681
      %v4714 = vadd.f32 %v4616, %v4682
      %v4715 = vadd.f32 %v4617, %v4683
      %v4716 = vadd.f32 %v4618, %v4684
      %v4717 = vadd.f32 %v4619, %v4685
      %v4718 = vadd.f32 %v4620, %v4686
      %v4719 = vadd.f32 %v4621, %v4687
      %v4720 = vadd.f32 %v4622, %v4688
      %v4721 = vadd.f32 %v4623, %v4689
      %v4722 = vadd.f32 %v4624, %v4690
      %v4723 = vadd.f32 %v4625, %v4691
      %v4724 = vadd.f32 %v4626, %v4692
      %v4725 = vadd.f32 %v4627, %v4693
      %v4726 = vadd.f32 %v4628, %v4694
      %v4727 = vadd.f32 %v4629, %v4695
      %v4728 = vadd.f32 %v4630, %v4696
      %v4729 = vld [vmem:[%s4433 + $0x3] sm:$0xff]
      %v4730 = vld [vmem:[%s4433 + $0xb] sm:$0xff]
      %v4731 = vld [vmem:[%s4433 + $0x1b] sm:$0xff]
      %v4732 = vld [vmem:[%s4433 + $0x23] sm:$0xff]
      %v4733 = vld [vmem:[%s4433 + $0x33] sm:$0xff]
      %v4734 = vld [vmem:[%s4433 + $0x3b] sm:$0xff]
      %v4735 = vld [vmem:[%s4433 + $0x4b] sm:$0xff]
      %v4736 = vld [vmem:[%s4433 + $0x53] sm:$0xff]
      %v4737 = vld [vmem:[%s4433 + $0x63] sm:$0xff]
      %v4738 = vld [vmem:[%s4433 + $0x6b] sm:$0xff]
      %v4739 = vld [vmem:[%s4433 + $0x7b] sm:$0xff]
      %v4740 = vld [vmem:[%s4433 + $0x83] sm:$0xff]
      %v4741 = vld [vmem:[%s4433 + $0x93] sm:$0xff]
      %v4742 = vld [vmem:[%s4433 + $0x9b] sm:$0xff]
      %v4743 = vld [vmem:[%s4433 + $0xab] sm:$0xff]
      %v4744 = vld [vmem:[%s4433 + $0xb3] sm:$0xff]
      %v4745 = vld [vmem:[%s4433 + $0xc3] sm:$0xff]
      %v4746 = vld [vmem:[%s4433 + $0xcb] sm:$0xff]
      %v4747 = vld [vmem:[%s4433 + $0xdb] sm:$0xff]
      %v4748 = vld [vmem:[%s4433 + $0xe3] sm:$0xff]
      %v4749 = vld [vmem:[%s4433 + $0xf3] sm:$0xff]
      %v4750 = vld [vmem:[%s4433 + $0xfb] sm:$0xff]
      %v4751 = vld [vmem:[%s4433 + $0x10b] sm:$0xff]
      %v4752 = vld [vmem:[%s4433 + $0x113] sm:$0xff]
      %v4753 = vld [vmem:[%s4433 + $0x123] sm:$0xff]
      %v4754 = vld [vmem:[%s4433 + $0x12b] sm:$0xff]
      %v4755 = vld [vmem:[%s4433 + $0x13b] sm:$0xff]
      %v4756 = vld [vmem:[%s4433 + $0x143] sm:$0xff]
      %v4757 = vld [vmem:[%s4433 + $0x153] sm:$0xff]
      %v4758 = vld [vmem:[%s4433 + $0x15b] sm:$0xff]
      %v4759 = vld [vmem:[%s4433 + $0x16b] sm:$0xff]
      %v4760 = vld [vmem:[%s4433 + $0x173] sm:$0xff]
      %v4761 = vld [vmem:[%s4466 + $0x3] sm:$0x1]
      %v4762 = vperm.slane %v4761, 0
      %v4763 = vmul.f32 %v4729, %v4762
      %v4764 = vmul.f32 %v4730, %v4762
      %v4765 = vmul.f32 %v4731, %v4762
      %v4766 = vmul.f32 %v4732, %v4762
      %v4767 = vmul.f32 %v4733, %v4762
      %v4768 = vmul.f32 %v4734, %v4762
      %v4769 = vmul.f32 %v4735, %v4762
      %v4770 = vmul.f32 %v4736, %v4762
      %v4771 = vmul.f32 %v4737, %v4762
      %v4772 = vmul.f32 %v4738, %v4762
      %v4773 = vmul.f32 %v4739, %v4762
      %v4774 = vmul.f32 %v4740, %v4762
      %v4775 = vmul.f32 %v4741, %v4762
      %v4776 = vmul.f32 %v4742, %v4762
      %v4777 = vmul.f32 %v4743, %v4762
      %v4778 = vmul.f32 %v4744, %v4762
      %v4779 = vmul.f32 %v4745, %v4762
      %v4780 = vmul.f32 %v4746, %v4762
      %v4781 = vmul.f32 %v4747, %v4762
      %v4782 = vmul.f32 %v4748, %v4762
      %v4783 = vmul.f32 %v4749, %v4762
      %v4784 = vmul.f32 %v4750, %v4762
      %v4785 = vmul.f32 %v4751, %v4762
      %v4786 = vmul.f32 %v4752, %v4762
      %v4787 = vmul.f32 %v4753, %v4762
      %v4788 = vmul.f32 %v4754, %v4762
      %v4789 = vmul.f32 %v4755, %v4762
      %v4790 = vmul.f32 %v4756, %v4762
      %v4791 = vmul.f32 %v4757, %v4762
      %v4792 = vmul.f32 %v4758, %v4762
      %v4793 = vmul.f32 %v4759, %v4762
      %v4794 = vmul.f32 %v4760, %v4762
      %v4795 = vadd.f32 %v4697, %v4763
      %v4796 = vadd.f32 %v4698, %v4764
      %v4797 = vadd.f32 %v4699, %v4765
      %v4798 = vadd.f32 %v4700, %v4766
      %v4799 = vadd.f32 %v4701, %v4767
      %v4800 = vadd.f32 %v4702, %v4768
      %v4801 = vadd.f32 %v4703, %v4769
      %v4802 = vadd.f32 %v4704, %v4770
      %v4803 = vadd.f32 %v4705, %v4771
      %v4804 = vadd.f32 %v4706, %v4772
      %v4805 = vadd.f32 %v4707, %v4773
      %v4806 = vadd.f32 %v4708, %v4774
      %v4807 = vadd.f32 %v4709, %v4775
      %v4808 = vadd.f32 %v4710, %v4776
      %v4809 = vadd.f32 %v4711, %v4777
      %v4810 = vadd.f32 %v4712, %v4778
      %v4811 = vadd.f32 %v4713, %v4779
      %v4812 = vadd.f32 %v4714, %v4780
      %v4813 = vadd.f32 %v4715, %v4781
      %v4814 = vadd.f32 %v4716, %v4782
      %v4815 = vadd.f32 %v4717, %v4783
      %v4816 = vadd.f32 %v4718, %v4784
      %v4817 = vadd.f32 %v4719, %v4785
      %v4818 = vadd.f32 %v4720, %v4786
      %v4819 = vadd.f32 %v4721, %v4787
      %v4820 = vadd.f32 %v4722, %v4788
      %v4821 = vadd.f32 %v4723, %v4789
      %v4822 = vadd.f32 %v4724, %v4790
      %v4823 = vadd.f32 %v4725, %v4791
      %v4824 = vadd.f32 %v4726, %v4792
      %v4825 = vadd.f32 %v4727, %v4793
      %v4826 = vadd.f32 %v4728, %v4794
      %v4827 = vld [vmem:[%s4433 + $0x4] sm:$0xff]
      %v4828 = vld [vmem:[%s4433 + $0xc] sm:$0xff]
      %v4829 = vld [vmem:[%s4433 + $0x1c] sm:$0xff]
      %v4830 = vld [vmem:[%s4433 + $0x24] sm:$0xff]
      %v4831 = vld [vmem:[%s4433 + $0x34] sm:$0xff]
      %v4832 = vld [vmem:[%s4433 + $0x3c] sm:$0xff]
      %v4833 = vld [vmem:[%s4433 + $0x4c] sm:$0xff]
      %v4834 = vld [vmem:[%s4433 + $0x54] sm:$0xff]
      %v4835 = vld [vmem:[%s4433 + $0x64] sm:$0xff]
      %v4836 = vld [vmem:[%s4433 + $0x6c] sm:$0xff]
      %v4837 = vld [vmem:[%s4433 + $0x7c] sm:$0xff]
      %v4838 = vld [vmem:[%s4433 + $0x84] sm:$0xff]
      %v4839 = vld [vmem:[%s4433 + $0x94] sm:$0xff]
      %v4840 = vld [vmem:[%s4433 + $0x9c] sm:$0xff]
      %v4841 = vld [vmem:[%s4433 + $0xac] sm:$0xff]
      %v4842 = vld [vmem:[%s4433 + $0xb4] sm:$0xff]
      %v4843 = vld [vmem:[%s4433 + $0xc4] sm:$0xff]
      %v4844 = vld [vmem:[%s4433 + $0xcc] sm:$0xff]
      %v4845 = vld [vmem:[%s4433 + $0xdc] sm:$0xff]
      %v4846 = vld [vmem:[%s4433 + $0xe4] sm:$0xff]
      %v4847 = vld [vmem:[%s4433 + $0xf4] sm:$0xff]
      %v4848 = vld [vmem:[%s4433 + $0xfc] sm:$0xff]
      %v4849 = vld [vmem:[%s4433 + $0x10c] sm:$0xff]
      %v4850 = vld [vmem:[%s4433 + $0x114] sm:$0xff]
      %v4851 = vld [vmem:[%s4433 + $0x124] sm:$0xff]
      %v4852 = vld [vmem:[%s4433 + $0x12c] sm:$0xff]
      %v4853 = vld [vmem:[%s4433 + $0x13c] sm:$0xff]
      %v4854 = vld [vmem:[%s4433 + $0x144] sm:$0xff]
      %v4855 = vld [vmem:[%s4433 + $0x154] sm:$0xff]
      %v4856 = vld [vmem:[%s4433 + $0x15c] sm:$0xff]
      %v4857 = vld [vmem:[%s4433 + $0x16c] sm:$0xff]
      %v4858 = vld [vmem:[%s4433 + $0x174] sm:$0xff]
      %v4859 = vld [vmem:[%s4466 + $0x4] sm:$0x1]
      %v4860 = vperm.slane %v4859, 0
      %v4861 = vmul.f32 %v4827, %v4860
      %v4862 = vmul.f32 %v4828, %v4860
      %v4863 = vmul.f32 %v4829, %v4860
      %v4864 = vmul.f32 %v4830, %v4860
      %v4865 = vmul.f32 %v4831, %v4860
      %v4866 = vmul.f32 %v4832, %v4860
      %v4867 = vmul.f32 %v4833, %v4860
      %v4868 = vmul.f32 %v4834, %v4860
      %v4869 = vmul.f32 %v4835, %v4860
      %v4870 = vmul.f32 %v4836, %v4860
      %v4871 = vmul.f32 %v4837, %v4860
      %v4872 = vmul.f32 %v4838, %v4860
      %v4873 = vmul.f32 %v4839, %v4860
      %v4874 = vmul.f32 %v4840, %v4860
      %v4875 = vmul.f32 %v4841, %v4860
      %v4876 = vmul.f32 %v4842, %v4860
      %v4877 = vmul.f32 %v4843, %v4860
      %v4878 = vmul.f32 %v4844, %v4860
      %v4879 = vmul.f32 %v4845, %v4860
      %v4880 = vmul.f32 %v4846, %v4860
      %v4881 = vmul.f32 %v4847, %v4860
      %v4882 = vmul.f32 %v4848, %v4860
      %v4883 = vmul.f32 %v4849, %v4860
      %v4884 = vmul.f32 %v4850, %v4860
      %v4885 = vmul.f32 %v4851, %v4860
      %v4886 = vmul.f32 %v4852, %v4860
      %v4887 = vmul.f32 %v4853, %v4860
      %v4888 = vmul.f32 %v4854, %v4860
      %v4889 = vmul.f32 %v4855, %v4860
      %v4890 = vmul.f32 %v4856, %v4860
      %v4891 = vmul.f32 %v4857, %v4860
      %v4892 = vmul.f32 %v4858, %v4860
      %v4893 = vadd.f32 %v4795, %v4861
      %v4894 = vadd.f32 %v4796, %v4862
      %v4895 = vadd.f32 %v4797, %v4863
      %v4896 = vadd.f32 %v4798, %v4864
      %v4897 = vadd.f32 %v4799, %v4865
      %v4898 = vadd.f32 %v4800, %v4866
      %v4899 = vadd.f32 %v4801, %v4867
      %v4900 = vadd.f32 %v4802, %v4868
      %v4901 = vadd.f32 %v4803, %v4869
      %v4902 = vadd.f32 %v4804, %v4870
      %v4903 = vadd.f32 %v4805, %v4871
      %v4904 = vadd.f32 %v4806, %v4872
      %v4905 = vadd.f32 %v4807, %v4873
      %v4906 = vadd.f32 %v4808, %v4874
      %v4907 = vadd.f32 %v4809, %v4875
      %v4908 = vadd.f32 %v4810, %v4876
      %v4909 = vadd.f32 %v4811, %v4877
      %v4910 = vadd.f32 %v4812, %v4878
      %v4911 = vadd.f32 %v4813, %v4879
      %v4912 = vadd.f32 %v4814, %v4880
      %v4913 = vadd.f32 %v4815, %v4881
      %v4914 = vadd.f32 %v4816, %v4882
      %v4915 = vadd.f32 %v4817, %v4883
      %v4916 = vadd.f32 %v4818, %v4884
      %v4917 = vadd.f32 %v4819, %v4885
      %v4918 = vadd.f32 %v4820, %v4886
      %v4919 = vadd.f32 %v4821, %v4887
      %v4920 = vadd.f32 %v4822, %v4888
      %v4921 = vadd.f32 %v4823, %v4889
      %v4922 = vadd.f32 %v4824, %v4890
      %v4923 = vadd.f32 %v4825, %v4891
      %v4924 = vadd.f32 %v4826, %v4892
      %v4925 = vld [vmem:[%s4433 + $0x5] sm:$0xff]
      %v4926 = vld [vmem:[%s4433 + $0xd] sm:$0xff]
      %v4927 = vld [vmem:[%s4433 + $0x1d] sm:$0xff]
      %v4928 = vld [vmem:[%s4433 + $0x25] sm:$0xff]
      %v4929 = vld [vmem:[%s4433 + $0x35] sm:$0xff]
      %v4930 = vld [vmem:[%s4433 + $0x3d] sm:$0xff]
      %v4931 = vld [vmem:[%s4433 + $0x4d] sm:$0xff]
      %v4932 = vld [vmem:[%s4433 + $0x55] sm:$0xff]
      %v4933 = vld [vmem:[%s4433 + $0x65] sm:$0xff]
      %v4934 = vld [vmem:[%s4433 + $0x6d] sm:$0xff]
      %v4935 = vld [vmem:[%s4433 + $0x7d] sm:$0xff]
      %v4936 = vld [vmem:[%s4433 + $0x85] sm:$0xff]
      %v4937 = vld [vmem:[%s4433 + $0x95] sm:$0xff]
      %v4938 = vld [vmem:[%s4433 + $0x9d] sm:$0xff]
      %v4939 = vld [vmem:[%s4433 + $0xad] sm:$0xff]
      %v4940 = vld [vmem:[%s4433 + $0xb5] sm:$0xff]
      %v4941 = vld [vmem:[%s4433 + $0xc5] sm:$0xff]
      %v4942 = vld [vmem:[%s4433 + $0xcd] sm:$0xff]
      %v4943 = vld [vmem:[%s4433 + $0xdd] sm:$0xff]
      %v4944 = vld [vmem:[%s4433 + $0xe5] sm:$0xff]
      %v4945 = vld [vmem:[%s4433 + $0xf5] sm:$0xff]
      %v4946 = vld [vmem:[%s4433 + $0xfd] sm:$0xff]
      %v4947 = vld [vmem:[%s4433 + $0x10d] sm:$0xff]
      %v4948 = vld [vmem:[%s4433 + $0x115] sm:$0xff]
      %v4949 = vld [vmem:[%s4433 + $0x125] sm:$0xff]
      %v4950 = vld [vmem:[%s4433 + $0x12d] sm:$0xff]
      %v4951 = vld [vmem:[%s4433 + $0x13d] sm:$0xff]
      %v4952 = vld [vmem:[%s4433 + $0x145] sm:$0xff]
      %v4953 = vld [vmem:[%s4433 + $0x155] sm:$0xff]
      %v4954 = vld [vmem:[%s4433 + $0x15d] sm:$0xff]
      %v4955 = vld [vmem:[%s4433 + $0x16d] sm:$0xff]
      %v4956 = vld [vmem:[%s4433 + $0x175] sm:$0xff]
      %v4957 = vld [vmem:[%s4466 + $0x5] sm:$0x1]
      %v4958 = vperm.slane %v4957, 0
      %v4959 = vmul.f32 %v4925, %v4958
      %v4960 = vmul.f32 %v4926, %v4958
      %v4961 = vmul.f32 %v4927, %v4958
      %v4962 = vmul.f32 %v4928, %v4958
      %v4963 = vmul.f32 %v4929, %v4958
      %v4964 = vmul.f32 %v4930, %v4958
      %v4965 = vmul.f32 %v4931, %v4958
      %v4966 = vmul.f32 %v4932, %v4958
      %v4967 = vmul.f32 %v4933, %v4958
      %v4968 = vmul.f32 %v4934, %v4958
      %v4969 = vmul.f32 %v4935, %v4958
      %v4970 = vmul.f32 %v4936, %v4958
      %v4971 = vmul.f32 %v4937, %v4958
      %v4972 = vmul.f32 %v4938, %v4958
      %v4973 = vmul.f32 %v4939, %v4958
      %v4974 = vmul.f32 %v4940, %v4958
      %v4975 = vmul.f32 %v4941, %v4958
      %v4976 = vmul.f32 %v4942, %v4958
      %v4977 = vmul.f32 %v4943, %v4958
      %v4978 = vmul.f32 %v4944, %v4958
      %v4979 = vmul.f32 %v4945, %v4958
      %v4980 = vmul.f32 %v4946, %v4958
      %v4981 = vmul.f32 %v4947, %v4958
      %v4982 = vmul.f32 %v4948, %v4958
      %v4983 = vmul.f32 %v4949, %v4958
      %v4984 = vmul.f32 %v4950, %v4958
      %v4985 = vmul.f32 %v4951, %v4958
      %v4986 = vmul.f32 %v4952, %v4958
      %v4987 = vmul.f32 %v4953, %v4958
      %v4988 = vmul.f32 %v4954, %v4958
      %v4989 = vmul.f32 %v4955, %v4958
      %v4990 = vmul.f32 %v4956, %v4958
      %v4991 = vadd.f32 %v4893, %v4959
      %v4992 = vadd.f32 %v4894, %v4960
      %v4993 = vadd.f32 %v4895, %v4961
      %v4994 = vadd.f32 %v4896, %v4962
      %v4995 = vadd.f32 %v4897, %v4963
      %v4996 = vadd.f32 %v4898, %v4964
      %v4997 = vadd.f32 %v4899, %v4965
      %v4998 = vadd.f32 %v4900, %v4966
      %v4999 = vadd.f32 %v4901, %v4967
      %v5000 = vadd.f32 %v4902, %v4968
      %v5001 = vadd.f32 %v4903, %v4969
      %v5002 = vadd.f32 %v4904, %v4970
      %v5003 = vadd.f32 %v4905, %v4971
      %v5004 = vadd.f32 %v4906, %v4972
      %v5005 = vadd.f32 %v4907, %v4973
      %v5006 = vadd.f32 %v4908, %v4974
      %v5007 = vadd.f32 %v4909, %v4975
      %v5008 = vadd.f32 %v4910, %v4976
      %v5009 = vadd.f32 %v4911, %v4977
      %v5010 = vadd.f32 %v4912, %v4978
      %v5011 = vadd.f32 %v4913, %v4979
      %v5012 = vadd.f32 %v4914, %v4980
      %v5013 = vadd.f32 %v4915, %v4981
      %v5014 = vadd.f32 %v4916, %v4982
      %v5015 = vadd.f32 %v4917, %v4983
      %v5016 = vadd.f32 %v4918, %v4984
      %v5017 = vadd.f32 %v4919, %v4985
      %v5018 = vadd.f32 %v4920, %v4986
      %v5019 = vadd.f32 %v4921, %v4987
      %v5020 = vadd.f32 %v4922, %v4988
      %v5021 = vadd.f32 %v4923, %v4989
      %v5022 = vadd.f32 %v4924, %v4990
      %v5023 = vld [vmem:[%s4433 + $0x6] sm:$0xff]
      %v5024 = vld [vmem:[%s4433 + $0xe] sm:$0xff]
      %v5025 = vld [vmem:[%s4433 + $0x1e] sm:$0xff]
      %v5026 = vld [vmem:[%s4433 + $0x26] sm:$0xff]
      %v5027 = vld [vmem:[%s4433 + $0x36] sm:$0xff]
      %v5028 = vld [vmem:[%s4433 + $0x3e] sm:$0xff]
      %v5029 = vld [vmem:[%s4433 + $0x4e] sm:$0xff]
      %v5030 = vld [vmem:[%s4433 + $0x56] sm:$0xff]
      %v5031 = vld [vmem:[%s4433 + $0x66] sm:$0xff]
      %v5032 = vld [vmem:[%s4433 + $0x6e] sm:$0xff]
      %v5033 = vld [vmem:[%s4433 + $0x7e] sm:$0xff]
      %v5034 = vld [vmem:[%s4433 + $0x86] sm:$0xff]
      %v5035 = vld [vmem:[%s4433 + $0x96] sm:$0xff]
      %v5036 = vld [vmem:[%s4433 + $0x9e] sm:$0xff]
      %v5037 = vld [vmem:[%s4433 + $0xae] sm:$0xff]
      %v5038 = vld [vmem:[%s4433 + $0xb6] sm:$0xff]
      %v5039 = vld [vmem:[%s4433 + $0xc6] sm:$0xff]
      %v5040 = vld [vmem:[%s4433 + $0xce] sm:$0xff]
      %v5041 = vld [vmem:[%s4433 + $0xde] sm:$0xff]
      %v5042 = vld [vmem:[%s4433 + $0xe6] sm:$0xff]
      %v5043 = vld [vmem:[%s4433 + $0xf6] sm:$0xff]
      %v5044 = vld [vmem:[%s4433 + $0xfe] sm:$0xff]
      %v5045 = vld [vmem:[%s4433 + $0x10e] sm:$0xff]
      %v5046 = vld [vmem:[%s4433 + $0x116] sm:$0xff]
      %v5047 = vld [vmem:[%s4433 + $0x126] sm:$0xff]
      %v5048 = vld [vmem:[%s4433 + $0x12e] sm:$0xff]
      %v5049 = vld [vmem:[%s4433 + $0x13e] sm:$0xff]
      %v5050 = vld [vmem:[%s4433 + $0x146] sm:$0xff]
      %v5051 = vld [vmem:[%s4433 + $0x156] sm:$0xff]
      %v5052 = vld [vmem:[%s4433 + $0x15e] sm:$0xff]
      %v5053 = vld [vmem:[%s4433 + $0x16e] sm:$0xff]
      %v5054 = vld [vmem:[%s4433 + $0x176] sm:$0xff]
      %v5055 = vld [vmem:[%s4466 + $0x6] sm:$0x1]
      %v5056 = vperm.slane %v5055, 0
      %v5057 = vmul.f32 %v5023, %v5056
      %v5058 = vmul.f32 %v5024, %v5056
      %v5059 = vmul.f32 %v5025, %v5056
      %v5060 = vmul.f32 %v5026, %v5056
      %v5061 = vmul.f32 %v5027, %v5056
      %v5062 = vmul.f32 %v5028, %v5056
      %v5063 = vmul.f32 %v5029, %v5056
      %v5064 = vmul.f32 %v5030, %v5056
      %v5065 = vmul.f32 %v5031, %v5056
      %v5066 = vmul.f32 %v5032, %v5056
      %v5067 = vmul.f32 %v5033, %v5056
      %v5068 = vmul.f32 %v5034, %v5056
      %v5069 = vmul.f32 %v5035, %v5056
      %v5070 = vmul.f32 %v5036, %v5056
      %v5071 = vmul.f32 %v5037, %v5056
      %v5072 = vmul.f32 %v5038, %v5056
      %v5073 = vmul.f32 %v5039, %v5056
      %v5074 = vmul.f32 %v5040, %v5056
      %v5075 = vmul.f32 %v5041, %v5056
      %v5076 = vmul.f32 %v5042, %v5056
      %v5077 = vmul.f32 %v5043, %v5056
      %v5078 = vmul.f32 %v5044, %v5056
      %v5079 = vmul.f32 %v5045, %v5056
      %v5080 = vmul.f32 %v5046, %v5056
      %v5081 = vmul.f32 %v5047, %v5056
      %v5082 = vmul.f32 %v5048, %v5056
      %v5083 = vmul.f32 %v5049, %v5056
      %v5084 = vmul.f32 %v5050, %v5056
      %v5085 = vmul.f32 %v5051, %v5056
      %v5086 = vmul.f32 %v5052, %v5056
      %v5087 = vmul.f32 %v5053, %v5056
      %v5088 = vmul.f32 %v5054, %v5056
      %v5089 = vadd.f32 %v4991, %v5057
      %v5090 = vadd.f32 %v4992, %v5058
      %v5091 = vadd.f32 %v4993, %v5059
      %v5092 = vadd.f32 %v4994, %v5060
      %v5093 = vadd.f32 %v4995, %v5061
      %v5094 = vadd.f32 %v4996, %v5062
      %v5095 = vadd.f32 %v4997, %v5063
      %v5096 = vadd.f32 %v4998, %v5064
      %v5097 = vadd.f32 %v4999, %v5065
      %v5098 = vadd.f32 %v5000, %v5066
      %v5099 = vadd.f32 %v5001, %v5067
      %v5100 = vadd.f32 %v5002, %v5068
      %v5101 = vadd.f32 %v5003, %v5069
      %v5102 = vadd.f32 %v5004, %v5070
      %v5103 = vadd.f32 %v5005, %v5071
      %v5104 = vadd.f32 %v5006, %v5072
      %v5105 = vadd.f32 %v5007, %v5073
      %v5106 = vadd.f32 %v5008, %v5074
      %v5107 = vadd.f32 %v5009, %v5075
      %v5108 = vadd.f32 %v5010, %v5076
      %v5109 = vadd.f32 %v5011, %v5077
      %v5110 = vadd.f32 %v5012, %v5078
      %v5111 = vadd.f32 %v5013, %v5079
      %v5112 = vadd.f32 %v5014, %v5080
      %v5113 = vadd.f32 %v5015, %v5081
      %v5114 = vadd.f32 %v5016, %v5082
      %v5115 = vadd.f32 %v5017, %v5083
      %v5116 = vadd.f32 %v5018, %v5084
      %v5117 = vadd.f32 %v5019, %v5085
      %v5118 = vadd.f32 %v5020, %v5086
      %v5119 = vadd.f32 %v5021, %v5087
      %v5120 = vadd.f32 %v5022, %v5088
      %v5122 = vperm.slane %v295, 0
      %v5124 = vadd.f32 %v5089, %v5122
      %v5125 = vadd.f32 %v5090, %v5122
      %v5126 = vadd.f32 %v5091, %v5122
      %v5127 = vadd.f32 %v5092, %v5122
      %v5128 = vadd.f32 %v5093, %v5122
      %v5129 = vadd.f32 %v5094, %v5122
      %v5130 = vadd.f32 %v5095, %v5122
      %v5131 = vadd.f32 %v5096, %v5122
      %v5132 = vadd.f32 %v5097, %v5122
      %v5133 = vadd.f32 %v5098, %v5122
      %v5134 = vadd.f32 %v5099, %v5122
      %v5135 = vadd.f32 %v5100, %v5122
      %v5136 = vadd.f32 %v5101, %v5122
      %v5137 = vadd.f32 %v5102, %v5122
      %v5138 = vadd.f32 %v5103, %v5122
      %v5139 = vadd.f32 %v5104, %v5122
      %v5140 = vadd.f32 %v5105, %v5122
      %v5141 = vadd.f32 %v5106, %v5122
      %v5142 = vadd.f32 %v5107, %v5122
      %v5143 = vadd.f32 %v5108, %v5122
      %v5144 = vadd.f32 %v5109, %v5122
      %v5145 = vadd.f32 %v5110, %v5122
      %v5146 = vadd.f32 %v5111, %v5122
      %v5147 = vadd.f32 %v5112, %v5122
      %v5148 = vadd.f32 %v5113, %v5122
      %v5149 = vadd.f32 %v5114, %v5122
      %v5150 = vadd.f32 %v5115, %v5122
      %v5151 = vadd.f32 %v5116, %v5122
      %v5152 = vadd.f32 %v5117, %v5122
      %v5153 = vadd.f32 %v5118, %v5122
      %v5154 = vadd.f32 %v5119, %v5122
      %v5155 = vadd.f32 %v5120, %v5122
      %s5156 = scalar_lea.vmem %s170, %s226
      %5157 = vst.msk [vmem:[%s5156] sm:$0xff] %vm171, %v5124
      %5158 = vst.msk [vmem:[%s5156 + $0x8] sm:$0xff] %vm171, %v5125
      %5159 = vst.msk [vmem:[%s5156 + $0x10] sm:$0xff] %vm171, %v5126
      %5160 = vst.msk [vmem:[%s5156 + $0x18] sm:$0xff] %vm171, %v5127
      %5161 = vst.msk [vmem:[%s5156 + $0x20] sm:$0xff] %vm171, %v5128
      %5162 = vst.msk [vmem:[%s5156 + $0x28] sm:$0xff] %vm171, %v5129
      %5163 = vst.msk [vmem:[%s5156 + $0x30] sm:$0xff] %vm171, %v5130
      %5164 = vst.msk [vmem:[%s5156 + $0x38] sm:$0xff] %vm171, %v5131
      %5165 = vst.msk [vmem:[%s5156 + $0x40] sm:$0xff] %vm171, %v5132
      %5166 = vst.msk [vmem:[%s5156 + $0x48] sm:$0xff] %vm171, %v5133
      %5167 = vst.msk [vmem:[%s5156 + $0x50] sm:$0xff] %vm171, %v5134
      %5168 = vst.msk [vmem:[%s5156 + $0x58] sm:$0xff] %vm171, %v5135
      %5169 = vst.msk [vmem:[%s5156 + $0x60] sm:$0xff] %vm171, %v5136
      %5170 = vst.msk [vmem:[%s5156 + $0x68] sm:$0xff] %vm171, %v5137
      %5171 = vst.msk [vmem:[%s5156 + $0x70] sm:$0xff] %vm171, %v5138
      %5172 = vst.msk [vmem:[%s5156 + $0x78] sm:$0xff] %vm171, %v5139
      %5173 = vst.msk [vmem:[%s5156 + $0x80] sm:$0xff] %vm171, %v5140
      %5174 = vst.msk [vmem:[%s5156 + $0x88] sm:$0xff] %vm171, %v5141
      %5175 = vst.msk [vmem:[%s5156 + $0x90] sm:$0xff] %vm171, %v5142
      %5176 = vst.msk [vmem:[%s5156 + $0x98] sm:$0xff] %vm171, %v5143
      %5177 = vst.msk [vmem:[%s5156 + $0xa0] sm:$0xff] %vm171, %v5144
      %5178 = vst.msk [vmem:[%s5156 + $0xa8] sm:$0xff] %vm171, %v5145
      %5179 = vst.msk [vmem:[%s5156 + $0xb0] sm:$0xff] %vm171, %v5146
      %5180 = vst.msk [vmem:[%s5156 + $0xb8] sm:$0xff] %vm171, %v5147
      %5181 = vst.msk [vmem:[%s5156 + $0xc0] sm:$0xff] %vm171, %v5148
      %5182 = vst.msk [vmem:[%s5156 + $0xc8] sm:$0xff] %vm171, %v5149
      %5183 = vst.msk [vmem:[%s5156 + $0xd0] sm:$0xff] %vm171, %v5150
      %5184 = vst.msk [vmem:[%s5156 + $0xd8] sm:$0xff] %vm171, %v5151
      %5185 = vst.msk [vmem:[%s5156 + $0xe0] sm:$0xff] %vm171, %v5152
      %5186 = vst.msk [vmem:[%s5156 + $0xe8] sm:$0xff] %vm171, %v5153
      %5187 = vst.msk [vmem:[%s5156 + $0xf0] sm:$0xff] %vm171, %v5154
      %5188 = vst.msk [vmem:[%s5156 + $0xf8] sm:$0xff] %vm171, %v5155
      %p5189 = scmp.lt.s32.totalorder %s14, 1
      %s5190 = scalar_select %p5189, %s14, 1
      %s5191 = smul.addr %s5190, 32
      %s5192 = smul.addr %s5191, 8
      %s5193 = scalar_lea.vmem %s3, %s5192
      // Predicated region
      $region33: #{tpu_custom_call.1} parent=31 // pred_check
        %p5194 = pneg %p100
      $region34: #{tpu_custom_call.1} parent=31 // pred_check_branch
        %5196 = sbr.rel (%p5194) target = $region36
      $region35: #{tpu_custom_call.1} parent=31 // pred_region
        _
      $region36: #{tpu_custom_call.1} parent=31 // pred_fallthru
        _
    $region32: #{tpu_custom_call.1} parent=5 // pred_fallthru
      _
    %p5197 = scmp.le.s32.totalorder 2, %s9
    // Predicated region
    $region37: #{tpu_custom_call.1} parent=5 // pred_check
      %p5198 = pneg %p5197
    $region38: #{tpu_custom_call.1} parent=5 // pred_check_branch
      %5200 = sbr.rel (%p5198) target = $region40
    $region39: #{tpu_custom_call.1} parent=5 // pred_region
      %s5201 = ssub.s32 %s9, 2
      // Predicated region
      $region41: #{tpu_custom_call.1} parent=39 // pred_check
        %p5202 = pneg %p106
      $region42: #{tpu_custom_call.1} parent=39 // pred_check_branch
        %5204 = sbr.rel (%p5202) target = $region44
      $region43: #{tpu_custom_call.1} parent=39 // pred_region
        %p5205 = scmp.lt.s32.totalorder %s15, 1
        %s5206 = scalar_select %p5205, %s15, 1
        %s5207 = smul.addr %s5206, 32
        %s5208 = smul.addr %s5207, 8
        %s5209 = scalar_lea.vmem %s3, %s5208
      $region44: #{tpu_custom_call.1} parent=39 // pred_fallthru
        _
    $region40: #{tpu_custom_call.1} parent=5 // pred_fallthru
      _
  $region6: #{tpu_custom_call.1} parent=0 // loop_footer
    %s13 = sadd.s32 1, %s9
  $region7: #{tpu_custom_call.1} parent=0 // loop_footer_branch
    %8 = sbr.rel target = $region3
  $region8: #{tpu_custom_call.1} parent=0 // loop_exit
    _

</llo_original>
